<compile_context>
chip_gen: v7x
topology: tpu7x:2x2x1
jax: 0.10.0
libtpu: 0.0.40
codegen_flags: <defaults>
</compile_context>

<pallas_src>
import functools

import jax
import jax.numpy as jnp
import numpy as np
from jax import lax
from jax.experimental import pallas as pl
from jax.experimental.pallas import tpu as pltpu


# ---------------------------------------------------------------------------
# Fused Pallas kernel: conv1 -> conv2 -> conv3 -> dueling head
# ---------------------------------------------------------------------------
def _fused_dqn_kernel(x_ref, w1_ref, b1_ref, w2_ref, b2_ref, w3_ref, b3_ref,
                      wh1_ref, bh1_ref, wh2_ref, bh2_ref, o_ref, *, dims):
    B, Ho1, Wo1, Ho2, Wo2, Ho3, Wo3 = dims
    f32, bf16 = jnp.float32, jnp.bfloat16
    C1 = x_ref.shape[3]            # 16 * Cin  (space-to-depth(4) channels)
    N1 = w1_ref.shape[3]           # 32
    N2 = w2_ref.shape[3]           # 64
    N3 = w3_ref.shape[3]           # 64
    Nh = wh1_ref.shape[2]          # 512 (= 256 val + 256 adv hidden units)

    # ---- uint8 -> f32 and /256 in-kernel (raw bytes come from HBM) ----
    xs = x_ref[...].astype(jnp.int32).astype(f32) * (1.0 / 256.0)

    # ---- conv1: 8x8 / stride 4  ==  2x2 / stride 1 over the s2d(4) input ----
    M1 = B * Ho1 * Wo1
    acc1 = jnp.zeros((M1, N1), f32)
    for dh in range(2):
        for dw in range(2):
            slab = xs[:, dh:dh + Ho1, dw:dw + Wo1, :]            # (B,Ho1,Wo1,C1)
            lhs = slab.reshape(M1, C1).astype(bf16)
            acc1 = acc1 + jnp.dot(lhs, w1_ref[dh, dw],
                                  preferred_element_type=f32)
    h1 = jnp.maximum(acc1 + b1_ref[...], 0.0)                    # rows = (b,ho1,wo1)

    # ---- conv2: 4x4 / stride 2  ==  2x2 / stride 1 over s2d(2) of h1 ----
    Hh, Wh = Ho1 // 2, Wo1 // 2
    th = h1.reshape(B, Hh, 2, Wo1, N1)                           # split H parity
    grids = []
    for p in range(2):
        hp = th[:, :, p, :, :]                                   # (B,Hh,Wo1,N1)
        up = hp.reshape(B, Hh, Wh, 2, N1)                        # split W parity
        for q in range(2):
            grids.append(up[:, :, :, q, :])                      # (B,Hh,Wh,N1)
    x2 = jnp.concatenate(grids, axis=-1)                         # (B,Hh,Wh,4*N1)

    M2 = B * Ho2 * Wo2
    acc2 = jnp.zeros((M2, N2), f32)
    for dh in range(2):
        for dw in range(2):
            slab = x2[:, dh:dh + Ho2, dw:dw + Wo2, :]
            lhs = slab.reshape(M2, 4 * N1).astype(bf16)
            acc2 = acc2 + jnp.dot(lhs, w2_ref[dh, dw],
                                  preferred_element_type=f32)
    h2 = jnp.maximum(acc2 + b2_ref[...], 0.0)                    # rows = (b,ho2,wo2)

    # ---- conv3: 3x3 / stride 1, accumulated over the 9 taps ----
    h24 = h2.reshape(B, Ho2, Wo2, N2)
    M3 = B * Ho3 * Wo3
    acc3 = jnp.zeros((M3, N3), f32)
    for kh in range(3):
        for kw in range(3):
            slab = h24[:, kh:kh + Ho3, kw:kw + Wo3, :]
            lhs = slab.reshape(M3, N2).astype(bf16)
            acc3 = acc3 + jnp.dot(lhs, w3_ref[kh, kw],
                                  preferred_element_type=f32)
    h3 = jnp.maximum(acc3 + b3_ref[...], 0.0)                    # rows = (b, spatial)

    # ---- dueling head layer 1 (val|adv fused), accumulated over spatial pos ----
    S3 = Ho3 * Wo3
    h3r = h3.reshape(B, S3, N3)
    acc_h = jnp.zeros((B, Nh), f32)
    for s in range(S3):
        acc_h = acc_h + jnp.dot(h3r[:, s, :].astype(bf16), wh1_ref[s],
                                preferred_element_type=f32)
    hid = jnp.maximum(acc_h + bh1_ref[...], 0.0)                 # (B, Nh)

    # ---- layer 2 (block-diagonal [val | adv]) + dueling combine ----
    q2 = jnp.dot(hid.astype(bf16), wh2_ref[...],
                 preferred_element_type=f32) + bh2_ref[...]      # (B, 1+A)
    val = q2[:, 0:1]
    adv = q2[:, 1:]
    o_ref[...] = val + adv - jnp.mean(adv, axis=1, keepdims=True)


def _full_spec(shape):
    zeros = (0,) * len(shape)
    return pl.BlockSpec(shape, lambda i, zeros=zeros: zeros)


# ---------------------------------------------------------------------------
# One-time weight packing (PyTorch layouts -> kernel layouts, bf16 MXU operands)
# ---------------------------------------------------------------------------
def pack_params(params):
    f32, bf16 = jnp.float32, jnp.bfloat16
    w1, b1 = params["w1"], params["b1"]          # (32, Cin, 8, 8), (32,)
    w2, b2 = params["w2"], params["b2"]          # (64, 32, 4, 4), (64,)
    w3, b3 = params["w3"], params["b3"]          # (64, 64, 3, 3), (64,)
    Co1, Cin = w1.shape[0], w1.shape[1]
    Co2, Ci2 = w2.shape[0], w2.shape[1]
    Co3 = w3.shape[0]

    # conv1: kh = 4*dh + rh, kw = 4*dw + rw; s2d(4) input channels ordered (rh,rw,ci).
    w1p = (w1.reshape(Co1, Cin, 2, 4, 2, 4)
             .transpose(2, 4, 3, 5, 1, 0)
             .reshape(2, 2, 16 * Cin, Co1).astype(bf16))
    # conv2: kh = 2*dh + p, kw = 2*dw + q; s2d(2) activation channels ordered (p,q,ci).
    w2p = (w2.reshape(Co2, Ci2, 2, 2, 2, 2)
             .transpose(2, 4, 3, 5, 1, 0)
             .reshape(2, 2, 4 * Ci2, Co2).astype(bf16))
    w3p = w3.transpose(2, 3, 1, 0).astype(bf16)                  # (3, 3, Ci3, Co3)

    # Head layer 1: concat val|adv hidden units; permute rows from PyTorch's NCHW
    # flatten order (c*S + s) to the kernel's per-spatial-position accumulation.
    wv1, wa1 = params["wv1"], params["wa1"]                      # (256, F)
    Hhid = wv1.shape[0]
    F = wv1.shape[1]
    S = F // Co3
    wcat = jnp.concatenate([wv1, wa1], axis=0)                   # (2*Hhid, F)
    wh1 = wcat.reshape(2 * Hhid, Co3, S).transpose(2, 1, 0).astype(bf16)  # (S,Co3,2H)
    bh1 = jnp.concatenate([params["bv1"], params["ba1"]]).reshape(1, 2 * Hhid).astype(f32)

    # Head layer 2: block-diagonal so one matmul yields [val, adv_0..A-1].
    wv2, wa2 = params["wv2"], params["wa2"]                      # (1, 256), (A, 256)
    A = wa2.shape[0]
    wh2 = jnp.zeros((2 * Hhid, 1 + A), f32)
    wh2 = wh2.at[:Hhid, 0].set(wv2[0])
    wh2 = wh2.at[Hhid:, 1:].set(wa2.T)
    wh2 = wh2.astype(bf16)
    bh2 = jnp.concatenate([params["bv2"], params["ba2"]]).reshape(1, 1 + A).astype(f32)

    return dict(
        w1p=w1p, b1=b1.reshape(1, -1).astype(f32),
        w2p=w2p, b2=b2.reshape(1, -1).astype(f32),
        w3p=w3p, b3=b3.reshape(1, -1).astype(f32),
        wh1=wh1, bh1=bh1, wh2=wh2, bh2=bh2)


# ---------------------------------------------------------------------------
# Forward wrapper
# ---------------------------------------------------------------------------
def dueling_dqn_forward(packed, x_nchw_u8):
    B, Cin, H, W = x_nchw_u8.shape
    assert H % 8 == 4 and W % 8 == 4, "conv stack needs H, W == 4 (mod 8)"
    Hq, Wq = H // 4, W // 4
    Ho1, Wo1 = Hq - 1, Wq - 1                    # (H-8)//4 + 1
    Ho2, Wo2 = (Ho1 - 4) // 2 + 1, (Wo1 - 4) // 2 + 1
    Ho3, Wo3 = Ho2 - 2, Wo2 - 2
    A = packed["wh2"].shape[1] - 1

    # uint8 NCHW -> space-to-depth(4) layout (B, H/4, W/4, 16*Cin); channels (rh,rw,ci).
    x6 = x_nchw_u8.reshape(B, Cin, Hq, 4, Wq, 4)
    x_s2d = jnp.transpose(x6, (0, 2, 4, 3, 5, 1)).reshape(B, Hq, Wq, 16 * Cin)

    args = (x_s2d, packed["w1p"], packed["b1"], packed["w2p"], packed["b2"],
            packed["w3p"], packed["b3"], packed["wh1"], packed["bh1"],
            packed["wh2"], packed["bh2"])

    C1 = 16 * Cin
    N1 = packed["w1p"].shape[3]
    N2 = packed["w2p"].shape[3]
    N3 = packed["w3p"].shape[3]
    Nh = packed["wh1"].shape[2]
    M1, M2, M3 = B * Ho1 * Wo1, B * Ho2 * Wo2, B * Ho3 * Wo3
    flops = 2 * (M1 * (4 * C1) * N1 + M2 * (4 * 4 * N1) * N2 + M3 * (9 * N2) * N3
                 + B * (Ho3 * Wo3 * N3) * Nh + B * Nh * (1 + A))
    bytes_accessed = sum(int(np.prod(a.shape)) * a.dtype.itemsize for a in args) + B * A * 4

    kernel = functools.partial(
        _fused_dqn_kernel, dims=(B, Ho1, Wo1, Ho2, Wo2, Ho3, Wo3))

    return pl.pallas_call(
        kernel,
        out_shape=jax.ShapeDtypeStruct((B, A), jnp.float32),
        grid=(1,),
        in_specs=[_full_spec(a.shape) for a in args],
        out_specs=_full_spec((B, A)),
        compiler_params=pltpu.CompilerParams(dimension_semantics=("arbitrary",)),
        cost_estimate=pl.CostEstimate(flops=flops, transcendentals=0,
                                      bytes_accessed=bytes_accessed),
    )(*args)


# ---------------------------------------------------------------------------
# Pure-JAX f32 reference (matches the PyTorch module semantics)
# ---------------------------------------------------------------------------
def reference_forward(params, x_nchw_u8):
    x = x_nchw_u8.astype(jnp.float32) / 256.0

    def conv(h, w, b, stride):
        y = lax.conv_general_dilated(h, w, (stride, stride), "VALID",
                                     dimension_numbers=("NCHW", "OIHW", "NCHW"))
        return jnp.maximum(y + b[None, :, None, None], 0.0)

    h = conv(x, params["w1"], params["b1"], 4)
    h = conv(h, params["w2"], params["b2"], 2)
    h = conv(h, params["w3"], params["b3"], 1)
    feat = h.reshape(h.shape[0], -1)
    hv = jnp.maximum(feat @ params["wv1"].T + params["bv1"], 0.0)
    val = hv @ params["wv2"].T + params["bv2"]
    ha = jnp.maximum(feat @ params["wa1"].T + params["ba1"], 0.0)
    adv = ha @ params["wa2"].T + params["ba2"]
    return val + (adv - adv.mean(axis=1, keepdims=True))


# ---------------------------------------------------------------------------
# Deterministic parameter init (PyTorch-style shapes, uniform(+-1/sqrt(fan_in)))
# ---------------------------------------------------------------------------
def init_params(key, in_ch, n_actions, conv_out_size):
    keys = jax.random.split(key, 14)

    def u(k, shape, fan_in):
        bound = 1.0 / np.sqrt(fan_in)
        return jax.random.uniform(k, shape, jnp.float32, -bound, bound)

    return dict(
        w1=u(keys[0], (32, in_ch, 8, 8), in_ch * 64), b1=u(keys[1], (32,), in_ch * 64),
        w2=u(keys[2], (64, 32, 4, 4), 32 * 16),       b2=u(keys[3], (64,), 32 * 16),
        w3=u(keys[4], (64, 64, 3, 3), 64 * 9),        b3=u(keys[5], (64,), 64 * 9),
        wv1=u(keys[6], (256, conv_out_size), conv_out_size),
        bv1=u(keys[7], (256,), conv_out_size),
        wv2=u(keys[8], (1, 256), 256),                bv2=u(keys[9], (1,), 256),
        wa1=u(keys[10], (256, conv_out_size), conv_out_size),
        ba1=u(keys[11], (256,), conv_out_size),
        wa2=u(keys[12], (n_actions, 256), 256),       ba2=u(keys[13], (n_actions,), 256),
    )


if __name__ == "__main__":
    # Smallest "Atari-like" input that keeps the 8/4, 4/2, 3/1 conv stack valid:
    # 52x52 -> 12x12 -> 5x5 -> 3x3, conv_out_size = 64*3*3 = 576 (84x84 also works).
    B, C, H, W = 2, 4, 52, 52
    n_actions = 6

    def out_hw(h):
        h1 = (h - 8) // 4 + 1
        h2 = (h1 - 4) // 2 + 1
        return h2 - 2

    conv_out_size = 64 * out_hw(H) * out_hw(W)

    key = jax.random.PRNGKey(0)
    k_x, k_p = jax.random.split(key)
    x = jax.random.randint(k_x, (B, C, H, W), 0, 256, dtype=jnp.int32).astype(jnp.uint8)
    params = init_params(k_p, C, n_actions, conv_out_size)

    packed = pack_params(params)          # one-time weight packing / transposes / bf16 cast

    fwd = jax.jit(dueling_dqn_forward)
    q = jax.block_until_ready(fwd(packed, x))

    q_ref = reference_forward(params, x)
    # bf16 MXU operands with f32 accumulation -> tiny drift vs. the f32 reference.
    np.testing.assert_allclose(np.asarray(q), np.asarray(q_ref), atol=1e-2, rtol=1e-2)
    assert q.shape == (B, n_actions) and q.dtype == jnp.float32

    print("KERNEL_OK")
</pallas_src>

<mosaic_0001>
module attributes {stable_mosaic.version = 11 : i64} {
  func.func @_fused_dqn_kernel(%arg0: i32, %arg1: memref<2x13x13x64xi8, #tpu.memory_space<vmem>>, %arg2: memref<2x2x64x32xbf16, #tpu.memory_space<vmem>>, %arg3: memref<1x32xf32, #tpu.memory_space<vmem>>, %arg4: memref<2x2x128x64xbf16, #tpu.memory_space<vmem>>, %arg5: memref<1x64xf32, #tpu.memory_space<vmem>>, %arg6: memref<3x3x64x64xbf16, #tpu.memory_space<vmem>>, %arg7: memref<1x64xf32, #tpu.memory_space<vmem>>, %arg8: memref<9x64x512xbf16, #tpu.memory_space<vmem>>, %arg9: memref<1x512xf32, #tpu.memory_space<vmem>>, %arg10: memref<512x7xbf16, #tpu.memory_space<vmem>>, %arg11: memref<1x7xf32, #tpu.memory_space<vmem>>, %arg12: memref<2x6xf32, #tpu.memory_space<vmem>>) attributes {dimension_semantics = [#tpu.dimension_semantics<arbitrary>], iteration_bounds = array<i64: 1>, scalar_prefetch = 0 : i64, scratch_operands = 0 : i64, tpu.core_type = #tpu.core_type<tc>, window_params = [{pipeline_mode = #tpu.pipeline_mode<synchronous>, transform_indices = @transform_0, window_bounds = array<i64: 2, 13, 13, 64>}, {pipeline_mode = #tpu.pipeline_mode<synchronous>, transform_indices = @transform_1, window_bounds = array<i64: 2, 2, 64, 32>}, {pipeline_mode = #tpu.pipeline_mode<synchronous>, transform_indices = @transform_2, window_bounds = array<i64: 1, 32>}, {pipeline_mode = #tpu.pipeline_mode<synchronous>, transform_indices = @transform_3, window_bounds = array<i64: 2, 2, 128, 64>}, {pipeline_mode = #tpu.pipeline_mode<synchronous>, transform_indices = @transform_4, window_bounds = array<i64: 1, 64>}, {pipeline_mode = #tpu.pipeline_mode<synchronous>, transform_indices = @transform_5, window_bounds = array<i64: 3, 3, 64, 64>}, {pipeline_mode = #tpu.pipeline_mode<synchronous>, transform_indices = @transform_6, window_bounds = array<i64: 1, 64>}, {pipeline_mode = #tpu.pipeline_mode<synchronous>, transform_indices = @transform_7, window_bounds = array<i64: 9, 64, 512>}, {pipeline_mode = #tpu.pipeline_mode<synchronous>, transform_indices = @transform_8, window_bounds = array<i64: 1, 512>}, {pipeline_mode = #tpu.pipeline_mode<synchronous>, transform_indices = @transform_9, window_bounds = array<i64: 512, 7>}, {pipeline_mode = #tpu.pipeline_mode<synchronous>, transform_indices = @transform_10, window_bounds = array<i64: 1, 7>}, {pipeline_mode = #tpu.pipeline_mode<synchronous>, transform_indices = @transform_11, window_bounds = array<i64: 2, 6>}]} {
    %c0 = arith.constant 0 : index
    %c0_0 = arith.constant 0 : index
    %c0_1 = arith.constant 0 : index
    %c0_2 = arith.constant 0 : index
    %0 = vector.load %arg1[%c0, %c0_0, %c0_1, %c0_2] : memref<2x13x13x64xi8, #tpu.memory_space<vmem>>, vector<2x13x13x64xi8>
    %1 = arith.extui %0 : vector<2x13x13x64xi8> to vector<2x13x13x64xi32>
    %2 = arith.sitofp %1 : vector<2x13x13x64xi32> to vector<2x13x13x64xf32>
    %cst = arith.constant 3.906250e-03 : f32
    %3 = vector.broadcast %cst : f32 to vector<2x13x13x64xf32>
    %4 = arith.mulf %2, %3 : vector<2x13x13x64xf32>
    %cst_3 = arith.constant 0.000000e+00 : f32
    %5 = vector.broadcast %cst_3 : f32 to vector<288x32xf32>
    %6 = vector.extract_strided_slice %4 {offsets = [0, 0, 0, 0], sizes = [2, 12, 12, 64], strides = [1, 1, 1, 1]} : vector<2x13x13x64xf32> to vector<2x12x12x64xf32>
    %7 = vector.shape_cast %6 : vector<2x12x12x64xf32> to vector<288x64xf32>
    %8 = arith.truncf %7 : vector<288x64xf32> to vector<288x64xbf16>
    %c0_4 = arith.constant 0 : index
    %c0_5 = arith.constant 0 : index
    %c0_6 = arith.constant 0 : index
    %c0_7 = arith.constant 0 : index
    %9 = vector.load %arg2[%c0_4, %c0_5, %c0_6, %c0_7] : memref<2x2x64x32xbf16, #tpu.memory_space<vmem>>, vector<1x1x64x32xbf16>
    %10 = vector.shape_cast %9 : vector<1x1x64x32xbf16> to vector<64x32xbf16>
    %cst_8 = arith.constant dense<0.000000e+00> : vector<288x32xf32>
    %11 = tpu.matmul %8, %10, %cst_8 {dimension_numbers = #tpu.dot_dimension_numbers<[1], [0], [0], [1], [0, 0, 1, 1], [], []>} : vector<288x64xbf16>, vector<64x32xbf16>, vector<288x32xf32> -> vector<288x32xf32>
    %12 = arith.addf %5, %11 : vector<288x32xf32>
    %13 = vector.extract_strided_slice %4 {offsets = [0, 0, 1, 0], sizes = [2, 12, 12, 64], strides = [1, 1, 1, 1]} : vector<2x13x13x64xf32> to vector<2x12x12x64xf32>
    %14 = vector.shape_cast %13 : vector<2x12x12x64xf32> to vector<288x64xf32>
    %15 = arith.truncf %14 : vector<288x64xf32> to vector<288x64xbf16>
    %c0_9 = arith.constant 0 : index
    %c1 = arith.constant 1 : index
    %c0_10 = arith.constant 0 : index
    %c0_11 = arith.constant 0 : index
    %16 = vector.load %arg2[%c0_9, %c1, %c0_10, %c0_11] : memref<2x2x64x32xbf16, #tpu.memory_space<vmem>>, vector<1x1x64x32xbf16>
    %17 = vector.shape_cast %16 : vector<1x1x64x32xbf16> to vector<64x32xbf16>
    %cst_12 = arith.constant dense<0.000000e+00> : vector<288x32xf32>
    %18 = tpu.matmul %15, %17, %cst_12 {dimension_numbers = #tpu.dot_dimension_numbers<[1], [0], [0], [1], [0, 0, 1, 1], [], []>} : vector<288x64xbf16>, vector<64x32xbf16>, vector<288x32xf32> -> vector<288x32xf32>
    %19 = arith.addf %12, %18 : vector<288x32xf32>
    %20 = vector.extract_strided_slice %4 {offsets = [0, 1, 0, 0], sizes = [2, 12, 12, 64], strides = [1, 1, 1, 1]} : vector<2x13x13x64xf32> to vector<2x12x12x64xf32>
    %21 = vector.shape_cast %20 : vector<2x12x12x64xf32> to vector<288x64xf32>
    %22 = arith.truncf %21 : vector<288x64xf32> to vector<288x64xbf16>
    %c1_13 = arith.constant 1 : index
    %c0_14 = arith.constant 0 : index
    %c0_15 = arith.constant 0 : index
    %c0_16 = arith.constant 0 : index
    %23 = vector.load %arg2[%c1_13, %c0_14, %c0_15, %c0_16] : memref<2x2x64x32xbf16, #tpu.memory_space<vmem>>, vector<1x1x64x32xbf16>
    %24 = vector.shape_cast %23 : vector<1x1x64x32xbf16> to vector<64x32xbf16>
    %cst_17 = arith.constant dense<0.000000e+00> : vector<288x32xf32>
    %25 = tpu.matmul %22, %24, %cst_17 {dimension_numbers = #tpu.dot_dimension_numbers<[1], [0], [0], [1], [0, 0, 1, 1], [], []>} : vector<288x64xbf16>, vector<64x32xbf16>, vector<288x32xf32> -> vector<288x32xf32>
    %26 = arith.addf %19, %25 : vector<288x32xf32>
    %27 = vector.extract_strided_slice %4 {offsets = [0, 1, 1, 0], sizes = [2, 12, 12, 64], strides = [1, 1, 1, 1]} : vector<2x13x13x64xf32> to vector<2x12x12x64xf32>
    %28 = vector.shape_cast %27 : vector<2x12x12x64xf32> to vector<288x64xf32>
    %29 = arith.truncf %28 : vector<288x64xf32> to vector<288x64xbf16>
    %c1_18 = arith.constant 1 : index
    %c1_19 = arith.constant 1 : index
    %c0_20 = arith.constant 0 : index
    %c0_21 = arith.constant 0 : index
    %30 = vector.load %arg2[%c1_18, %c1_19, %c0_20, %c0_21] : memref<2x2x64x32xbf16, #tpu.memory_space<vmem>>, vector<1x1x64x32xbf16>
    %31 = vector.shape_cast %30 : vector<1x1x64x32xbf16> to vector<64x32xbf16>
    %cst_22 = arith.constant dense<0.000000e+00> : vector<288x32xf32>
    %32 = tpu.matmul %29, %31, %cst_22 {dimension_numbers = #tpu.dot_dimension_numbers<[1], [0], [0], [1], [0, 0, 1, 1], [], []>} : vector<288x64xbf16>, vector<64x32xbf16>, vector<288x32xf32> -> vector<288x32xf32>
    %33 = arith.addf %26, %32 : vector<288x32xf32>
    %c0_23 = arith.constant 0 : index
    %c0_24 = arith.constant 0 : index
    %34 = vector.load %arg3[%c0_23, %c0_24] : memref<1x32xf32, #tpu.memory_space<vmem>>, vector<1x32xf32>
    %35 = vector.broadcast %34 : vector<1x32xf32> to vector<288x32xf32>
    %36 = arith.addf %33, %35 : vector<288x32xf32>
    %cst_25 = arith.constant 0.000000e+00 : f32
    %37 = vector.broadcast %cst_25 : f32 to vector<288x32xf32>
    %38 = arith.maximumf %36, %37 : vector<288x32xf32>
    %39 = vector.shape_cast %38 : vector<288x32xf32> to vector<2x6x2x12x32xf32>
    %40 = vector.extract_strided_slice %39 {offsets = [0, 0, 0, 0, 0], sizes = [2, 6, 1, 12, 32], strides = [1, 1, 1, 1, 1]} : vector<2x6x2x12x32xf32> to vector<2x6x1x12x32xf32>
    %41 = vector.shape_cast %40 : vector<2x6x1x12x32xf32> to vector<2x6x12x32xf32>
    %42 = vector.shape_cast %41 : vector<2x6x12x32xf32> to vector<2x6x6x2x32xf32>
    %43 = vector.extract_strided_slice %42 {offsets = [0, 0, 0, 0, 0], sizes = [2, 6, 6, 1, 32], strides = [1, 1, 1, 1, 1]} : vector<2x6x6x2x32xf32> to vector<2x6x6x1x32xf32>
    %44 = vector.shape_cast %43 : vector<2x6x6x1x32xf32> to vector<2x6x6x32xf32>
    %45 = vector.extract_strided_slice %42 {offsets = [0, 0, 0, 1, 0], sizes = [2, 6, 6, 1, 32], strides = [1, 1, 1, 1, 1]} : vector<2x6x6x2x32xf32> to vector<2x6x6x1x32xf32>
    %46 = vector.shape_cast %45 : vector<2x6x6x1x32xf32> to vector<2x6x6x32xf32>
    %47 = vector.extract_strided_slice %39 {offsets = [0, 0, 1, 0, 0], sizes = [2, 6, 1, 12, 32], strides = [1, 1, 1, 1, 1]} : vector<2x6x2x12x32xf32> to vector<2x6x1x12x32xf32>
    %48 = vector.shape_cast %47 : vector<2x6x1x12x32xf32> to vector<2x6x12x32xf32>
    %49 = vector.shape_cast %48 : vector<2x6x12x32xf32> to vector<2x6x6x2x32xf32>
    %50 = vector.extract_strided_slice %49 {offsets = [0, 0, 0, 0, 0], sizes = [2, 6, 6, 1, 32], strides = [1, 1, 1, 1, 1]} : vector<2x6x6x2x32xf32> to vector<2x6x6x1x32xf32>
    %51 = vector.shape_cast %50 : vector<2x6x6x1x32xf32> to vector<2x6x6x32xf32>
    %52 = vector.extract_strided_slice %49 {offsets = [0, 0, 0, 1, 0], sizes = [2, 6, 6, 1, 32], strides = [1, 1, 1, 1, 1]} : vector<2x6x6x2x32xf32> to vector<2x6x6x1x32xf32>
    %53 = vector.shape_cast %52 : vector<2x6x6x1x32xf32> to vector<2x6x6x32xf32>
    %54 = tpu.concatenate %44, %46, %51, %53 in 3 : vector<2x6x6x32xf32>, vector<2x6x6x32xf32>, vector<2x6x6x32xf32>, vector<2x6x6x32xf32> -> vector<2x6x6x128xf32>
    %cst_26 = arith.constant 0.000000e+00 : f32
    %55 = vector.broadcast %cst_26 : f32 to vector<50x64xf32>
    %56 = vector.extract_strided_slice %54 {offsets = [0, 0, 0, 0], sizes = [2, 5, 5, 128], strides = [1, 1, 1, 1]} : vector<2x6x6x128xf32> to vector<2x5x5x128xf32>
    %57 = vector.shape_cast %56 : vector<2x5x5x128xf32> to vector<50x128xf32>
    %58 = arith.truncf %57 : vector<50x128xf32> to vector<50x128xbf16>
    %c0_27 = arith.constant 0 : index
    %c0_28 = arith.constant 0 : index
    %c0_29 = arith.constant 0 : index
    %c0_30 = arith.constant 0 : index
    %59 = vector.load %arg4[%c0_27, %c0_28, %c0_29, %c0_30] : memref<2x2x128x64xbf16, #tpu.memory_space<vmem>>, vector<1x1x128x64xbf16>
    %60 = vector.shape_cast %59 : vector<1x1x128x64xbf16> to vector<128x64xbf16>
    %cst_31 = arith.constant dense<0.000000e+00> : vector<50x64xf32>
    %61 = tpu.matmul %58, %60, %cst_31 {dimension_numbers = #tpu.dot_dimension_numbers<[1], [0], [0], [1], [0, 0, 1, 1], [], []>} : vector<50x128xbf16>, vector<128x64xbf16>, vector<50x64xf32> -> vector<50x64xf32>
    %62 = arith.addf %55, %61 : vector<50x64xf32>
    %63 = vector.extract_strided_slice %54 {offsets = [0, 0, 1, 0], sizes = [2, 5, 5, 128], strides = [1, 1, 1, 1]} : vector<2x6x6x128xf32> to vector<2x5x5x128xf32>
    %64 = vector.shape_cast %63 : vector<2x5x5x128xf32> to vector<50x128xf32>
    %65 = arith.truncf %64 : vector<50x128xf32> to vector<50x128xbf16>
    %c0_32 = arith.constant 0 : index
    %c1_33 = arith.constant 1 : index
    %c0_34 = arith.constant 0 : index
    %c0_35 = arith.constant 0 : index
    %66 = vector.load %arg4[%c0_32, %c1_33, %c0_34, %c0_35] : memref<2x2x128x64xbf16, #tpu.memory_space<vmem>>, vector<1x1x128x64xbf16>
    %67 = vector.shape_cast %66 : vector<1x1x128x64xbf16> to vector<128x64xbf16>
    %cst_36 = arith.constant dense<0.000000e+00> : vector<50x64xf32>
    %68 = tpu.matmul %65, %67, %cst_36 {dimension_numbers = #tpu.dot_dimension_numbers<[1], [0], [0], [1], [0, 0, 1, 1], [], []>} : vector<50x128xbf16>, vector<128x64xbf16>, vector<50x64xf32> -> vector<50x64xf32>
    %69 = arith.addf %62, %68 : vector<50x64xf32>
    %70 = vector.extract_strided_slice %54 {offsets = [0, 1, 0, 0], sizes = [2, 5, 5, 128], strides = [1, 1, 1, 1]} : vector<2x6x6x128xf32> to vector<2x5x5x128xf32>
    %71 = vector.shape_cast %70 : vector<2x5x5x128xf32> to vector<50x128xf32>
    %72 = arith.truncf %71 : vector<50x128xf32> to vector<50x128xbf16>
    %c1_37 = arith.constant 1 : index
    %c0_38 = arith.constant 0 : index
    %c0_39 = arith.constant 0 : index
    %c0_40 = arith.constant 0 : index
    %73 = vector.load %arg4[%c1_37, %c0_38, %c0_39, %c0_40] : memref<2x2x128x64xbf16, #tpu.memory_space<vmem>>, vector<1x1x128x64xbf16>
    %74 = vector.shape_cast %73 : vector<1x1x128x64xbf16> to vector<128x64xbf16>
    %cst_41 = arith.constant dense<0.000000e+00> : vector<50x64xf32>
    %75 = tpu.matmul %72, %74, %cst_41 {dimension_numbers = #tpu.dot_dimension_numbers<[1], [0], [0], [1], [0, 0, 1, 1], [], []>} : vector<50x128xbf16>, vector<128x64xbf16>, vector<50x64xf32> -> vector<50x64xf32>
    %76 = arith.addf %69, %75 : vector<50x64xf32>
    %77 = vector.extract_strided_slice %54 {offsets = [0, 1, 1, 0], sizes = [2, 5, 5, 128], strides = [1, 1, 1, 1]} : vector<2x6x6x128xf32> to vector<2x5x5x128xf32>
    %78 = vector.shape_cast %77 : vector<2x5x5x128xf32> to vector<50x128xf32>
    %79 = arith.truncf %78 : vector<50x128xf32> to vector<50x128xbf16>
    %c1_42 = arith.constant 1 : index
    %c1_43 = arith.constant 1 : index
    %c0_44 = arith.constant 0 : index
    %c0_45 = arith.constant 0 : index
    %80 = vector.load %arg4[%c1_42, %c1_43, %c0_44, %c0_45] : memref<2x2x128x64xbf16, #tpu.memory_space<vmem>>, vector<1x1x128x64xbf16>
    %81 = vector.shape_cast %80 : vector<1x1x128x64xbf16> to vector<128x64xbf16>
    %cst_46 = arith.constant dense<0.000000e+00> : vector<50x64xf32>
    %82 = tpu.matmul %79, %81, %cst_46 {dimension_numbers = #tpu.dot_dimension_numbers<[1], [0], [0], [1], [0, 0, 1, 1], [], []>} : vector<50x128xbf16>, vector<128x64xbf16>, vector<50x64xf32> -> vector<50x64xf32>
    %83 = arith.addf %76, %82 : vector<50x64xf32>
    %c0_47 = arith.constant 0 : index
    %c0_48 = arith.constant 0 : index
    %84 = vector.load %arg5[%c0_47, %c0_48] : memref<1x64xf32, #tpu.memory_space<vmem>>, vector<1x64xf32>
    %85 = vector.broadcast %84 : vector<1x64xf32> to vector<50x64xf32>
    %86 = arith.addf %83, %85 : vector<50x64xf32>
    %cst_49 = arith.constant 0.000000e+00 : f32
    %87 = vector.broadcast %cst_49 : f32 to vector<50x64xf32>
    %88 = arith.maximumf %86, %87 : vector<50x64xf32>
    %89 = vector.shape_cast %88 : vector<50x64xf32> to vector<2x5x5x64xf32>
    %cst_50 = arith.constant 0.000000e+00 : f32
    %90 = vector.broadcast %cst_50 : f32 to vector<18x64xf32>
    %91 = vector.extract_strided_slice %89 {offsets = [0, 0, 0, 0], sizes = [2, 3, 3, 64], strides = [1, 1, 1, 1]} : vector<2x5x5x64xf32> to vector<2x3x3x64xf32>
    %92 = vector.shape_cast %91 : vector<2x3x3x64xf32> to vector<18x64xf32>
    %93 = arith.truncf %92 : vector<18x64xf32> to vector<18x64xbf16>
    %c0_51 = arith.constant 0 : index
    %c0_52 = arith.constant 0 : index
    %c0_53 = arith.constant 0 : index
    %c0_54 = arith.constant 0 : index
    %94 = vector.load %arg6[%c0_51, %c0_52, %c0_53, %c0_54] : memref<3x3x64x64xbf16, #tpu.memory_space<vmem>>, vector<1x1x64x64xbf16>
    %95 = vector.shape_cast %94 : vector<1x1x64x64xbf16> to vector<64x64xbf16>
    %cst_55 = arith.constant dense<0.000000e+00> : vector<18x64xf32>
    %96 = tpu.matmul %93, %95, %cst_55 {dimension_numbers = #tpu.dot_dimension_numbers<[1], [0], [0], [1], [0, 0, 1, 1], [], []>} : vector<18x64xbf16>, vector<64x64xbf16>, vector<18x64xf32> -> vector<18x64xf32>
    %97 = arith.addf %90, %96 : vector<18x64xf32>
    %98 = vector.extract_strided_slice %89 {offsets = [0, 0, 1, 0], sizes = [2, 3, 3, 64], strides = [1, 1, 1, 1]} : vector<2x5x5x64xf32> to vector<2x3x3x64xf32>
    %99 = vector.shape_cast %98 : vector<2x3x3x64xf32> to vector<18x64xf32>
    %100 = arith.truncf %99 : vector<18x64xf32> to vector<18x64xbf16>
    %c0_56 = arith.constant 0 : index
    %c1_57 = arith.constant 1 : index
    %c0_58 = arith.constant 0 : index
    %c0_59 = arith.constant 0 : index
    %101 = vector.load %arg6[%c0_56, %c1_57, %c0_58, %c0_59] : memref<3x3x64x64xbf16, #tpu.memory_space<vmem>>, vector<1x1x64x64xbf16>
    %102 = vector.shape_cast %101 : vector<1x1x64x64xbf16> to vector<64x64xbf16>
    %cst_60 = arith.constant dense<0.000000e+00> : vector<18x64xf32>
    %103 = tpu.matmul %100, %102, %cst_60 {dimension_numbers = #tpu.dot_dimension_numbers<[1], [0], [0], [1], [0, 0, 1, 1], [], []>} : vector<18x64xbf16>, vector<64x64xbf16>, vector<18x64xf32> -> vector<18x64xf32>
    %104 = arith.addf %97, %103 : vector<18x64xf32>
    %105 = vector.extract_strided_slice %89 {offsets = [0, 0, 2, 0], sizes = [2, 3, 3, 64], strides = [1, 1, 1, 1]} : vector<2x5x5x64xf32> to vector<2x3x3x64xf32>
    %106 = vector.shape_cast %105 : vector<2x3x3x64xf32> to vector<18x64xf32>
    %107 = arith.truncf %106 : vector<18x64xf32> to vector<18x64xbf16>
    %c0_61 = arith.constant 0 : index
    %c2 = arith.constant 2 : index
    %c0_62 = arith.constant 0 : index
    %c0_63 = arith.constant 0 : index
    %108 = vector.load %arg6[%c0_61, %c2, %c0_62, %c0_63] : memref<3x3x64x64xbf16, #tpu.memory_space<vmem>>, vector<1x1x64x64xbf16>
    %109 = vector.shape_cast %108 : vector<1x1x64x64xbf16> to vector<64x64xbf16>
    %cst_64 = arith.constant dense<0.000000e+00> : vector<18x64xf32>
    %110 = tpu.matmul %107, %109, %cst_64 {dimension_numbers = #tpu.dot_dimension_numbers<[1], [0], [0], [1], [0, 0, 1, 1], [], []>} : vector<18x64xbf16>, vector<64x64xbf16>, vector<18x64xf32> -> vector<18x64xf32>
    %111 = arith.addf %104, %110 : vector<18x64xf32>
    %112 = vector.extract_strided_slice %89 {offsets = [0, 1, 0, 0], sizes = [2, 3, 3, 64], strides = [1, 1, 1, 1]} : vector<2x5x5x64xf32> to vector<2x3x3x64xf32>
    %113 = vector.shape_cast %112 : vector<2x3x3x64xf32> to vector<18x64xf32>
    %114 = arith.truncf %113 : vector<18x64xf32> to vector<18x64xbf16>
    %c1_65 = arith.constant 1 : index
    %c0_66 = arith.constant 0 : index
    %c0_67 = arith.constant 0 : index
    %c0_68 = arith.constant 0 : index
    %115 = vector.load %arg6[%c1_65, %c0_66, %c0_67, %c0_68] : memref<3x3x64x64xbf16, #tpu.memory_space<vmem>>, vector<1x1x64x64xbf16>
    %116 = vector.shape_cast %115 : vector<1x1x64x64xbf16> to vector<64x64xbf16>
    %cst_69 = arith.constant dense<0.000000e+00> : vector<18x64xf32>
    %117 = tpu.matmul %114, %116, %cst_69 {dimension_numbers = #tpu.dot_dimension_numbers<[1], [0], [0], [1], [0, 0, 1, 1], [], []>} : vector<18x64xbf16>, vector<64x64xbf16>, vector<18x64xf32> -> vector<18x64xf32>
    %118 = arith.addf %111, %117 : vector<18x64xf32>
    %119 = vector.extract_strided_slice %89 {offsets = [0, 1, 1, 0], sizes = [2, 3, 3, 64], strides = [1, 1, 1, 1]} : vector<2x5x5x64xf32> to vector<2x3x3x64xf32>
    %120 = vector.shape_cast %119 : vector<2x3x3x64xf32> to vector<18x64xf32>
    %121 = arith.truncf %120 : vector<18x64xf32> to vector<18x64xbf16>
    %c1_70 = arith.constant 1 : index
    %c1_71 = arith.constant 1 : index
    %c0_72 = arith.constant 0 : index
    %c0_73 = arith.constant 0 : index
    %122 = vector.load %arg6[%c1_70, %c1_71, %c0_72, %c0_73] : memref<3x3x64x64xbf16, #tpu.memory_space<vmem>>, vector<1x1x64x64xbf16>
    %123 = vector.shape_cast %122 : vector<1x1x64x64xbf16> to vector<64x64xbf16>
    %cst_74 = arith.constant dense<0.000000e+00> : vector<18x64xf32>
    %124 = tpu.matmul %121, %123, %cst_74 {dimension_numbers = #tpu.dot_dimension_numbers<[1], [0], [0], [1], [0, 0, 1, 1], [], []>} : vector<18x64xbf16>, vector<64x64xbf16>, vector<18x64xf32> -> vector<18x64xf32>
    %125 = arith.addf %118, %124 : vector<18x64xf32>
    %126 = vector.extract_strided_slice %89 {offsets = [0, 1, 2, 0], sizes = [2, 3, 3, 64], strides = [1, 1, 1, 1]} : vector<2x5x5x64xf32> to vector<2x3x3x64xf32>
    %127 = vector.shape_cast %126 : vector<2x3x3x64xf32> to vector<18x64xf32>
    %128 = arith.truncf %127 : vector<18x64xf32> to vector<18x64xbf16>
    %c1_75 = arith.constant 1 : index
    %c2_76 = arith.constant 2 : index
    %c0_77 = arith.constant 0 : index
    %c0_78 = arith.constant 0 : index
    %129 = vector.load %arg6[%c1_75, %c2_76, %c0_77, %c0_78] : memref<3x3x64x64xbf16, #tpu.memory_space<vmem>>, vector<1x1x64x64xbf16>
    %130 = vector.shape_cast %129 : vector<1x1x64x64xbf16> to vector<64x64xbf16>
    %cst_79 = arith.constant dense<0.000000e+00> : vector<18x64xf32>
    %131 = tpu.matmul %128, %130, %cst_79 {dimension_numbers = #tpu.dot_dimension_numbers<[1], [0], [0], [1], [0, 0, 1, 1], [], []>} : vector<18x64xbf16>, vector<64x64xbf16>, vector<18x64xf32> -> vector<18x64xf32>
    %132 = arith.addf %125, %131 : vector<18x64xf32>
    %133 = vector.extract_strided_slice %89 {offsets = [0, 2, 0, 0], sizes = [2, 3, 3, 64], strides = [1, 1, 1, 1]} : vector<2x5x5x64xf32> to vector<2x3x3x64xf32>
    %134 = vector.shape_cast %133 : vector<2x3x3x64xf32> to vector<18x64xf32>
    %135 = arith.truncf %134 : vector<18x64xf32> to vector<18x64xbf16>
    %c2_80 = arith.constant 2 : index
    %c0_81 = arith.constant 0 : index
    %c0_82 = arith.constant 0 : index
    %c0_83 = arith.constant 0 : index
    %136 = vector.load %arg6[%c2_80, %c0_81, %c0_82, %c0_83] : memref<3x3x64x64xbf16, #tpu.memory_space<vmem>>, vector<1x1x64x64xbf16>
    %137 = vector.shape_cast %136 : vector<1x1x64x64xbf16> to vector<64x64xbf16>
    %cst_84 = arith.constant dense<0.000000e+00> : vector<18x64xf32>
    %138 = tpu.matmul %135, %137, %cst_84 {dimension_numbers = #tpu.dot_dimension_numbers<[1], [0], [0], [1], [0, 0, 1, 1], [], []>} : vector<18x64xbf16>, vector<64x64xbf16>, vector<18x64xf32> -> vector<18x64xf32>
    %139 = arith.addf %132, %138 : vector<18x64xf32>
    %140 = vector.extract_strided_slice %89 {offsets = [0, 2, 1, 0], sizes = [2, 3, 3, 64], strides = [1, 1, 1, 1]} : vector<2x5x5x64xf32> to vector<2x3x3x64xf32>
    %141 = vector.shape_cast %140 : vector<2x3x3x64xf32> to vector<18x64xf32>
    %142 = arith.truncf %141 : vector<18x64xf32> to vector<18x64xbf16>
    %c2_85 = arith.constant 2 : index
    %c1_86 = arith.constant 1 : index
    %c0_87 = arith.constant 0 : index
    %c0_88 = arith.constant 0 : index
    %143 = vector.load %arg6[%c2_85, %c1_86, %c0_87, %c0_88] : memref<3x3x64x64xbf16, #tpu.memory_space<vmem>>, vector<1x1x64x64xbf16>
    %144 = vector.shape_cast %143 : vector<1x1x64x64xbf16> to vector<64x64xbf16>
    %cst_89 = arith.constant dense<0.000000e+00> : vector<18x64xf32>
    %145 = tpu.matmul %142, %144, %cst_89 {dimension_numbers = #tpu.dot_dimension_numbers<[1], [0], [0], [1], [0, 0, 1, 1], [], []>} : vector<18x64xbf16>, vector<64x64xbf16>, vector<18x64xf32> -> vector<18x64xf32>
    %146 = arith.addf %139, %145 : vector<18x64xf32>
    %147 = vector.extract_strided_slice %89 {offsets = [0, 2, 2, 0], sizes = [2, 3, 3, 64], strides = [1, 1, 1, 1]} : vector<2x5x5x64xf32> to vector<2x3x3x64xf32>
    %148 = vector.shape_cast %147 : vector<2x3x3x64xf32> to vector<18x64xf32>
    %149 = arith.truncf %148 : vector<18x64xf32> to vector<18x64xbf16>
    %c2_90 = arith.constant 2 : index
    %c2_91 = arith.constant 2 : index
    %c0_92 = arith.constant 0 : index
    %c0_93 = arith.constant 0 : index
    %150 = vector.load %arg6[%c2_90, %c2_91, %c0_92, %c0_93] : memref<3x3x64x64xbf16, #tpu.memory_space<vmem>>, vector<1x1x64x64xbf16>
    %151 = vector.shape_cast %150 : vector<1x1x64x64xbf16> to vector<64x64xbf16>
    %cst_94 = arith.constant dense<0.000000e+00> : vector<18x64xf32>
    %152 = tpu.matmul %149, %151, %cst_94 {dimension_numbers = #tpu.dot_dimension_numbers<[1], [0], [0], [1], [0, 0, 1, 1], [], []>} : vector<18x64xbf16>, vector<64x64xbf16>, vector<18x64xf32> -> vector<18x64xf32>
    %153 = arith.addf %146, %152 : vector<18x64xf32>
    %c0_95 = arith.constant 0 : index
    %c0_96 = arith.constant 0 : index
    %154 = vector.load %arg7[%c0_95, %c0_96] : memref<1x64xf32, #tpu.memory_space<vmem>>, vector<1x64xf32>
    %155 = vector.broadcast %154 : vector<1x64xf32> to vector<18x64xf32>
    %156 = arith.addf %153, %155 : vector<18x64xf32>
    %cst_97 = arith.constant 0.000000e+00 : f32
    %157 = vector.broadcast %cst_97 : f32 to vector<18x64xf32>
    %158 = arith.maximumf %156, %157 : vector<18x64xf32>
    %159 = vector.shape_cast %158 : vector<18x64xf32> to vector<2x9x64xf32>
    %cst_98 = arith.constant 0.000000e+00 : f32
    %160 = vector.broadcast %cst_98 : f32 to vector<2x512xf32>
    %161 = vector.extract_strided_slice %159 {offsets = [0, 0, 0], sizes = [2, 1, 64], strides = [1, 1, 1]} : vector<2x9x64xf32> to vector<2x1x64xf32>
    %162 = vector.shape_cast %161 : vector<2x1x64xf32> to vector<2x64xf32>
    %163 = arith.truncf %162 : vector<2x64xf32> to vector<2x64xbf16>
    %c0_99 = arith.constant 0 : index
    %c0_100 = arith.constant 0 : index
    %c0_101 = arith.constant 0 : index
    %164 = vector.load %arg8[%c0_99, %c0_100, %c0_101] : memref<9x64x512xbf16, #tpu.memory_space<vmem>>, vector<1x64x512xbf16>
    %165 = vector.shape_cast %164 : vector<1x64x512xbf16> to vector<64x512xbf16>
    %cst_102 = arith.constant dense<0.000000e+00> : vector<2x512xf32>
    %166 = tpu.matmul %163, %165, %cst_102 {dimension_numbers = #tpu.dot_dimension_numbers<[1], [0], [0], [1], [0, 0, 1, 1], [], []>} : vector<2x64xbf16>, vector<64x512xbf16>, vector<2x512xf32> -> vector<2x512xf32>
    %167 = arith.addf %160, %166 : vector<2x512xf32>
    %168 = vector.extract_strided_slice %159 {offsets = [0, 1, 0], sizes = [2, 1, 64], strides = [1, 1, 1]} : vector<2x9x64xf32> to vector<2x1x64xf32>
    %169 = vector.shape_cast %168 : vector<2x1x64xf32> to vector<2x64xf32>
    %170 = arith.truncf %169 : vector<2x64xf32> to vector<2x64xbf16>
    %c1_103 = arith.constant 1 : index
    %c0_104 = arith.constant 0 : index
    %c0_105 = arith.constant 0 : index
    %171 = vector.load %arg8[%c1_103, %c0_104, %c0_105] : memref<9x64x512xbf16, #tpu.memory_space<vmem>>, vector<1x64x512xbf16>
    %172 = vector.shape_cast %171 : vector<1x64x512xbf16> to vector<64x512xbf16>
    %cst_106 = arith.constant dense<0.000000e+00> : vector<2x512xf32>
    %173 = tpu.matmul %170, %172, %cst_106 {dimension_numbers = #tpu.dot_dimension_numbers<[1], [0], [0], [1], [0, 0, 1, 1], [], []>} : vector<2x64xbf16>, vector<64x512xbf16>, vector<2x512xf32> -> vector<2x512xf32>
    %174 = arith.addf %167, %173 : vector<2x512xf32>
    %175 = vector.extract_strided_slice %159 {offsets = [0, 2, 0], sizes = [2, 1, 64], strides = [1, 1, 1]} : vector<2x9x64xf32> to vector<2x1x64xf32>
    %176 = vector.shape_cast %175 : vector<2x1x64xf32> to vector<2x64xf32>
    %177 = arith.truncf %176 : vector<2x64xf32> to vector<2x64xbf16>
    %c2_107 = arith.constant 2 : index
    %c0_108 = arith.constant 0 : index
    %c0_109 = arith.constant 0 : index
    %178 = vector.load %arg8[%c2_107, %c0_108, %c0_109] : memref<9x64x512xbf16, #tpu.memory_space<vmem>>, vector<1x64x512xbf16>
    %179 = vector.shape_cast %178 : vector<1x64x512xbf16> to vector<64x512xbf16>
    %cst_110 = arith.constant dense<0.000000e+00> : vector<2x512xf32>
    %180 = tpu.matmul %177, %179, %cst_110 {dimension_numbers = #tpu.dot_dimension_numbers<[1], [0], [0], [1], [0, 0, 1, 1], [], []>} : vector<2x64xbf16>, vector<64x512xbf16>, vector<2x512xf32> -> vector<2x512xf32>
    %181 = arith.addf %174, %180 : vector<2x512xf32>
    %182 = vector.extract_strided_slice %159 {offsets = [0, 3, 0], sizes = [2, 1, 64], strides = [1, 1, 1]} : vector<2x9x64xf32> to vector<2x1x64xf32>
    %183 = vector.shape_cast %182 : vector<2x1x64xf32> to vector<2x64xf32>
    %184 = arith.truncf %183 : vector<2x64xf32> to vector<2x64xbf16>
    %c3 = arith.constant 3 : index
    %c0_111 = arith.constant 0 : index
    %c0_112 = arith.constant 0 : index
    %185 = vector.load %arg8[%c3, %c0_111, %c0_112] : memref<9x64x512xbf16, #tpu.memory_space<vmem>>, vector<1x64x512xbf16>
    %186 = vector.shape_cast %185 : vector<1x64x512xbf16> to vector<64x512xbf16>
    %cst_113 = arith.constant dense<0.000000e+00> : vector<2x512xf32>
    %187 = tpu.matmul %184, %186, %cst_113 {dimension_numbers = #tpu.dot_dimension_numbers<[1], [0], [0], [1], [0, 0, 1, 1], [], []>} : vector<2x64xbf16>, vector<64x512xbf16>, vector<2x512xf32> -> vector<2x512xf32>
    %188 = arith.addf %181, %187 : vector<2x512xf32>
    %189 = vector.extract_strided_slice %159 {offsets = [0, 4, 0], sizes = [2, 1, 64], strides = [1, 1, 1]} : vector<2x9x64xf32> to vector<2x1x64xf32>
    %190 = vector.shape_cast %189 : vector<2x1x64xf32> to vector<2x64xf32>
    %191 = arith.truncf %190 : vector<2x64xf32> to vector<2x64xbf16>
    %c4 = arith.constant 4 : index
    %c0_114 = arith.constant 0 : index
    %c0_115 = arith.constant 0 : index
    %192 = vector.load %arg8[%c4, %c0_114, %c0_115] : memref<9x64x512xbf16, #tpu.memory_space<vmem>>, vector<1x64x512xbf16>
    %193 = vector.shape_cast %192 : vector<1x64x512xbf16> to vector<64x512xbf16>
    %cst_116 = arith.constant dense<0.000000e+00> : vector<2x512xf32>
    %194 = tpu.matmul %191, %193, %cst_116 {dimension_numbers = #tpu.dot_dimension_numbers<[1], [0], [0], [1], [0, 0, 1, 1], [], []>} : vector<2x64xbf16>, vector<64x512xbf16>, vector<2x512xf32> -> vector<2x512xf32>
    %195 = arith.addf %188, %194 : vector<2x512xf32>
    %196 = vector.extract_strided_slice %159 {offsets = [0, 5, 0], sizes = [2, 1, 64], strides = [1, 1, 1]} : vector<2x9x64xf32> to vector<2x1x64xf32>
    %197 = vector.shape_cast %196 : vector<2x1x64xf32> to vector<2x64xf32>
    %198 = arith.truncf %197 : vector<2x64xf32> to vector<2x64xbf16>
    %c5 = arith.constant 5 : index
    %c0_117 = arith.constant 0 : index
    %c0_118 = arith.constant 0 : index
    %199 = vector.load %arg8[%c5, %c0_117, %c0_118] : memref<9x64x512xbf16, #tpu.memory_space<vmem>>, vector<1x64x512xbf16>
    %200 = vector.shape_cast %199 : vector<1x64x512xbf16> to vector<64x512xbf16>
    %cst_119 = arith.constant dense<0.000000e+00> : vector<2x512xf32>
    %201 = tpu.matmul %198, %200, %cst_119 {dimension_numbers = #tpu.dot_dimension_numbers<[1], [0], [0], [1], [0, 0, 1, 1], [], []>} : vector<2x64xbf16>, vector<64x512xbf16>, vector<2x512xf32> -> vector<2x512xf32>
    %202 = arith.addf %195, %201 : vector<2x512xf32>
    %203 = vector.extract_strided_slice %159 {offsets = [0, 6, 0], sizes = [2, 1, 64], strides = [1, 1, 1]} : vector<2x9x64xf32> to vector<2x1x64xf32>
    %204 = vector.shape_cast %203 : vector<2x1x64xf32> to vector<2x64xf32>
    %205 = arith.truncf %204 : vector<2x64xf32> to vector<2x64xbf16>
    %c6 = arith.constant 6 : index
    %c0_120 = arith.constant 0 : index
    %c0_121 = arith.constant 0 : index
    %206 = vector.load %arg8[%c6, %c0_120, %c0_121] : memref<9x64x512xbf16, #tpu.memory_space<vmem>>, vector<1x64x512xbf16>
    %207 = vector.shape_cast %206 : vector<1x64x512xbf16> to vector<64x512xbf16>
    %cst_122 = arith.constant dense<0.000000e+00> : vector<2x512xf32>
    %208 = tpu.matmul %205, %207, %cst_122 {dimension_numbers = #tpu.dot_dimension_numbers<[1], [0], [0], [1], [0, 0, 1, 1], [], []>} : vector<2x64xbf16>, vector<64x512xbf16>, vector<2x512xf32> -> vector<2x512xf32>
    %209 = arith.addf %202, %208 : vector<2x512xf32>
    %210 = vector.extract_strided_slice %159 {offsets = [0, 7, 0], sizes = [2, 1, 64], strides = [1, 1, 1]} : vector<2x9x64xf32> to vector<2x1x64xf32>
    %211 = vector.shape_cast %210 : vector<2x1x64xf32> to vector<2x64xf32>
    %212 = arith.truncf %211 : vector<2x64xf32> to vector<2x64xbf16>
    %c7 = arith.constant 7 : index
    %c0_123 = arith.constant 0 : index
    %c0_124 = arith.constant 0 : index
    %213 = vector.load %arg8[%c7, %c0_123, %c0_124] : memref<9x64x512xbf16, #tpu.memory_space<vmem>>, vector<1x64x512xbf16>
    %214 = vector.shape_cast %213 : vector<1x64x512xbf16> to vector<64x512xbf16>
    %cst_125 = arith.constant dense<0.000000e+00> : vector<2x512xf32>
    %215 = tpu.matmul %212, %214, %cst_125 {dimension_numbers = #tpu.dot_dimension_numbers<[1], [0], [0], [1], [0, 0, 1, 1], [], []>} : vector<2x64xbf16>, vector<64x512xbf16>, vector<2x512xf32> -> vector<2x512xf32>
    %216 = arith.addf %209, %215 : vector<2x512xf32>
    %217 = vector.extract_strided_slice %159 {offsets = [0, 8, 0], sizes = [2, 1, 64], strides = [1, 1, 1]} : vector<2x9x64xf32> to vector<2x1x64xf32>
    %218 = vector.shape_cast %217 : vector<2x1x64xf32> to vector<2x64xf32>
    %219 = arith.truncf %218 : vector<2x64xf32> to vector<2x64xbf16>
    %c8 = arith.constant 8 : index
    %c0_126 = arith.constant 0 : index
    %c0_127 = arith.constant 0 : index
    %220 = vector.load %arg8[%c8, %c0_126, %c0_127] : memref<9x64x512xbf16, #tpu.memory_space<vmem>>, vector<1x64x512xbf16>
    %221 = vector.shape_cast %220 : vector<1x64x512xbf16> to vector<64x512xbf16>
    %cst_128 = arith.constant dense<0.000000e+00> : vector<2x512xf32>
    %222 = tpu.matmul %219, %221, %cst_128 {dimension_numbers = #tpu.dot_dimension_numbers<[1], [0], [0], [1], [0, 0, 1, 1], [], []>} : vector<2x64xbf16>, vector<64x512xbf16>, vector<2x512xf32> -> vector<2x512xf32>
    %223 = arith.addf %216, %222 : vector<2x512xf32>
    %c0_129 = arith.constant 0 : index
    %c0_130 = arith.constant 0 : index
    %224 = vector.load %arg9[%c0_129, %c0_130] : memref<1x512xf32, #tpu.memory_space<vmem>>, vector<1x512xf32>
    %225 = vector.broadcast %224 : vector<1x512xf32> to vector<2x512xf32>
    %226 = arith.addf %223, %225 : vector<2x512xf32>
    %cst_131 = arith.constant 0.000000e+00 : f32
    %227 = vector.broadcast %cst_131 : f32 to vector<2x512xf32>
    %228 = arith.maximumf %226, %227 : vector<2x512xf32>
    %229 = arith.truncf %228 : vector<2x512xf32> to vector<2x512xbf16>
    %c0_132 = arith.constant 0 : index
    %c0_133 = arith.constant 0 : index
    %230 = vector.load %arg10[%c0_132, %c0_133] : memref<512x7xbf16, #tpu.memory_space<vmem>>, vector<512x7xbf16>
    %cst_134 = arith.constant dense<0.000000e+00> : vector<2x7xf32>
    %231 = tpu.matmul %229, %230, %cst_134 {dimension_numbers = #tpu.dot_dimension_numbers<[1], [0], [0], [1], [0, 0, 1, 1], [], []>} : vector<2x512xbf16>, vector<512x7xbf16>, vector<2x7xf32> -> vector<2x7xf32>
    %c0_135 = arith.constant 0 : index
    %c0_136 = arith.constant 0 : index
    %232 = vector.load %arg11[%c0_135, %c0_136] : memref<1x7xf32, #tpu.memory_space<vmem>>, vector<1x7xf32>
    %233 = vector.broadcast %232 : vector<1x7xf32> to vector<2x7xf32>
    %234 = arith.addf %231, %233 : vector<2x7xf32>
    %235 = vector.extract_strided_slice %234 {offsets = [0, 0], sizes = [2, 1], strides = [1, 1]} : vector<2x7xf32> to vector<2x1xf32>
    %236 = vector.extract_strided_slice %234 {offsets = [0, 1], sizes = [2, 6], strides = [1, 1]} : vector<2x7xf32> to vector<2x6xf32>
    %237 = vector.broadcast %235 : vector<2x1xf32> to vector<2x6xf32>
    %238 = arith.addf %237, %236 : vector<2x6xf32>
    %cst_137 = arith.constant dense<0.000000e+00> : vector<2xf32>
    %239 = vector.multi_reduction <add>, %236, %cst_137 [1] : vector<2x6xf32> to vector<2xf32>
    %240 = vector.shape_cast %239 : vector<2xf32> to vector<2x1xf32>
    %cst_138 = arith.constant 6.000000e+00 : f32
    %241 = vector.broadcast %cst_138 : f32 to vector<2x1xf32>
    %242 = arith.divf %240, %241 : vector<2x1xf32>
    %243 = vector.broadcast %242 : vector<2x1xf32> to vector<2x6xf32>
    %244 = arith.subf %238, %243 : vector<2x6xf32>
    %c0_139 = arith.constant 0 : index
    %c0_140 = arith.constant 0 : index
    %245 = vector.load %arg12[%c0_139, %c0_140] : memref<2x6xf32, #tpu.memory_space<vmem>>, vector<2x6xf32>
    tpu.vector_store %arg12[%c0_139, %c0_140], %244 {strides = array<i32>} : memref<2x6xf32, #tpu.memory_space<vmem>>, vector<2x6xf32>,
    return
  }
  func.func @transform_0(%arg0: i32) -> (i32, i32, i32, i32) {
    %c0_i32 = arith.constant 0 : i32
    %c0_i32_0 = arith.constant 0 : i32
    %c0_i32_1 = arith.constant 0 : i32
    %c0_i32_2 = arith.constant 0 : i32
    %c0_i32_3 = arith.constant 0 : i32
    return %c0_i32, %c0_i32_0, %c0_i32_1, %c0_i32_2 : i32, i32, i32, i32
  }
  func.func @transform_1(%arg0: i32) -> (i32, i32, i32, i32) {
    %c0_i32 = arith.constant 0 : i32
    %c0_i32_0 = arith.constant 0 : i32
    %c0_i32_1 = arith.constant 0 : i32
    %c0_i32_2 = arith.constant 0 : i32
    %c0_i32_3 = arith.constant 0 : i32
    return %c0_i32, %c0_i32_0, %c0_i32_1, %c0_i32_2 : i32, i32, i32, i32
  }
  func.func @transform_2(%arg0: i32) -> (i32, i32) {
    %c0_i32 = arith.constant 0 : i32
    %c0_i32_0 = arith.constant 0 : i32
    %c0_i32_1 = arith.constant 0 : i32
    return %c0_i32, %c0_i32_0 : i32, i32
  }
  func.func @transform_3(%arg0: i32) -> (i32, i32, i32, i32) {
    %c0_i32 = arith.constant 0 : i32
    %c0_i32_0 = arith.constant 0 : i32
    %c0_i32_1 = arith.constant 0 : i32
    %c0_i32_2 = arith.constant 0 : i32
    %c0_i32_3 = arith.constant 0 : i32
    return %c0_i32, %c0_i32_0, %c0_i32_1, %c0_i32_2 : i32, i32, i32, i32
  }
  func.func @transform_4(%arg0: i32) -> (i32, i32) {
    %c0_i32 = arith.constant 0 : i32
    %c0_i32_0 = arith.constant 0 : i32
    %c0_i32_1 = arith.constant 0 : i32
    return %c0_i32, %c0_i32_0 : i32, i32
  }
  func.func @transform_5(%arg0: i32) -> (i32, i32, i32, i32) {
    %c0_i32 = arith.constant 0 : i32
    %c0_i32_0 = arith.constant 0 : i32
    %c0_i32_1 = arith.constant 0 : i32
    %c0_i32_2 = arith.constant 0 : i32
    %c0_i32_3 = arith.constant 0 : i32
    return %c0_i32, %c0_i32_0, %c0_i32_1, %c0_i32_2 : i32, i32, i32, i32
  }
  func.func @transform_6(%arg0: i32) -> (i32, i32) {
    %c0_i32 = arith.constant 0 : i32
    %c0_i32_0 = arith.constant 0 : i32
    %c0_i32_1 = arith.constant 0 : i32
    return %c0_i32, %c0_i32_0 : i32, i32
  }
  func.func @transform_7(%arg0: i32) -> (i32, i32, i32) {
    %c0_i32 = arith.constant 0 : i32
    %c0_i32_0 = arith.constant 0 : i32
    %c0_i32_1 = arith.constant 0 : i32
    %c0_i32_2 = arith.constant 0 : i32
    return %c0_i32, %c0_i32_0, %c0_i32_1 : i32, i32, i32
  }
  func.func @transform_8(%arg0: i32) -> (i32, i32) {
    %c0_i32 = arith.constant 0 : i32
    %c0_i32_0 = arith.constant 0 : i32
    %c0_i32_1 = arith.constant 0 : i32
    return %c0_i32, %c0_i32_0 : i32, i32
  }
  func.func @transform_9(%arg0: i32) -> (i32, i32) {
    %c0_i32 = arith.constant 0 : i32
    %c0_i32_0 = arith.constant 0 : i32
    %c0_i32_1 = arith.constant 0 : i32
    return %c0_i32, %c0_i32_0 : i32, i32
  }
  func.func @transform_10(%arg0: i32) -> (i32, i32) {
    %c0_i32 = arith.constant 0 : i32
    %c0_i32_0 = arith.constant 0 : i32
    %c0_i32_1 = arith.constant 0 : i32
    return %c0_i32, %c0_i32_0 : i32, i32
  }
  func.func @transform_11(%arg0: i32) -> (i32, i32) {
    %c0_i32 = arith.constant 0 : i32
    %c0_i32_0 = arith.constant 0 : i32
    %c0_i32_1 = arith.constant 0 : i32
    return %c0_i32, %c0_i32_0 : i32, i32
  }
}

</mosaic_0001>

<llo_original>
// kernel: dueling_dqn_forward.1
$region0: #{dueling_dqn_forward.1}
  #allocation0 [shape = 'u32[]', space=smem, size = 0x4, offset = 0x4, fixed_abs, tag = 'smem constant byte address 0x4 - core index']
  #allocation1 [shape = 'u32[144,128]{1,0:T(1,128)}', space=vmem, size = 0x12000, scoped, tag = 'internal scratch']
  %s0 = inlined_call_operand.vmem [shape: u8[2,13,13,64], index: 0, kind: input, shape index: {}]
  %s1 = inlined_call_operand.vmem [shape: bf16[2,2,64,32], index: 1, kind: input, shape index: {}]
  %s2 = inlined_call_operand.vmem [shape: f32[1,32], index: 2, kind: input, shape index: {}]
  %s3 = inlined_call_operand.vmem [shape: bf16[2,2,128,64], index: 3, kind: input, shape index: {}]
  %s4 = inlined_call_operand.vmem [shape: f32[1,64], index: 4, kind: input, shape index: {}]
  %s5 = inlined_call_operand.vmem [shape: bf16[3,3,64,64], index: 5, kind: input, shape index: {}]
  %s6 = inlined_call_operand.vmem [shape: f32[1,64], index: 6, kind: input, shape index: {}]
  %s7 = inlined_call_operand.vmem [shape: bf16[9,64,512], index: 7, kind: input, shape index: {}]
  %s8 = inlined_call_operand.vmem [shape: f32[1,512], index: 8, kind: input, shape index: {}]
  %s9 = inlined_call_operand.vmem [shape: bf16[512,7], index: 9, kind: input, shape index: {}]
  %s10 = inlined_call_operand.vmem [shape: f32[1,7], index: 10, kind: input, shape index: {}]
  %s11 = inlined_call_operand.hbm [shape: f32[2,6], index: 11, kind: output, shape index: {}]
  %s12 = sld [smem:[#allocation0]]
  $region54: #{dueling_dqn_forward.1} parent=0
    _
  %s14 = ssub.s32 1, %s12
  %s15 = scalar_select 0, %s14, %s12
  $region1: #{dueling_dqn_forward.1} parent=0
    #allocation2 [shape = 'u8[1024]{0}', space=vmem, size = 0x400, scoped, tag = 'output window, operand 0, single buffered']
    #allocation3 [shape = 's32[1]{0}', space=sflag, size = 0x4, scoped, tag = 'scoped memory for dueling_dqn_forward.1']
    %16 = vsyncpa [#allocation3], 0
    // Predicated region
    $region2: #{dueling_dqn_forward.1} parent=1 // pred_check
      _
    $region3: #{dueling_dqn_forward.1} parent=1 // pred_check_branch
      %18 = sbr.rel (0) target = $region5
    $region4: #{dueling_dqn_forward.1} parent=1 // pred_region
      _
    $region5: #{dueling_dqn_forward.1} parent=1 // pred_fallthru
      _
    // Predicated region
    $region6: #{dueling_dqn_forward.1} parent=1 // pred_check
      _
    $region7: #{dueling_dqn_forward.1} parent=1 // pred_check_branch
      %20 = sbr.rel (0) target = $region9
    $region8: #{dueling_dqn_forward.1} parent=1 // pred_region
      _
    $region9: #{dueling_dqn_forward.1} parent=1 // pred_fallthru
      _
    // Predicated region
    $region10: #{dueling_dqn_forward.1} parent=1 // pred_check
      _
    $region11: #{dueling_dqn_forward.1} parent=1 // pred_check_branch
      %22 = sbr.rel (0) target = $region13
    $region12: #{dueling_dqn_forward.1} parent=1 // pred_region
      _
    $region13: #{dueling_dqn_forward.1} parent=1 // pred_fallthru
      _
    // Predicated region
    $region14: #{dueling_dqn_forward.1} parent=1 // pred_check
      _
    $region15: #{dueling_dqn_forward.1} parent=1 // pred_check_branch
      %24 = sbr.rel (0) target = $region17
    $region16: #{dueling_dqn_forward.1} parent=1 // pred_region
      _
    $region17: #{dueling_dqn_forward.1} parent=1 // pred_fallthru
      _
    // Predicated region
    $region18: #{dueling_dqn_forward.1} parent=1 // pred_check
      _
    $region19: #{dueling_dqn_forward.1} parent=1 // pred_check_branch
      %26 = sbr.rel (0) target = $region21
    $region20: #{dueling_dqn_forward.1} parent=1 // pred_region
      _
    $region21: #{dueling_dqn_forward.1} parent=1 // pred_fallthru
      _
    // Predicated region
    $region22: #{dueling_dqn_forward.1} parent=1 // pred_check
      _
    $region23: #{dueling_dqn_forward.1} parent=1 // pred_check_branch
      %28 = sbr.rel (0) target = $region25
    $region24: #{dueling_dqn_forward.1} parent=1 // pred_region
      _
    $region25: #{dueling_dqn_forward.1} parent=1 // pred_fallthru
      _
    // Predicated region
    $region26: #{dueling_dqn_forward.1} parent=1 // pred_check
      _
    $region27: #{dueling_dqn_forward.1} parent=1 // pred_check_branch
      %30 = sbr.rel (0) target = $region29
    $region28: #{dueling_dqn_forward.1} parent=1 // pred_region
      _
    $region29: #{dueling_dqn_forward.1} parent=1 // pred_fallthru
      _
    // Predicated region
    $region30: #{dueling_dqn_forward.1} parent=1 // pred_check
      _
    $region31: #{dueling_dqn_forward.1} parent=1 // pred_check_branch
      %32 = sbr.rel (0) target = $region33
    $region32: #{dueling_dqn_forward.1} parent=1 // pred_region
      _
    $region33: #{dueling_dqn_forward.1} parent=1 // pred_fallthru
      _
    // Predicated region
    $region34: #{dueling_dqn_forward.1} parent=1 // pred_check
      _
    $region35: #{dueling_dqn_forward.1} parent=1 // pred_check_branch
      %34 = sbr.rel (0) target = $region37
    $region36: #{dueling_dqn_forward.1} parent=1 // pred_region
      _
    $region37: #{dueling_dqn_forward.1} parent=1 // pred_fallthru
      _
    // Predicated region
    $region38: #{dueling_dqn_forward.1} parent=1 // pred_check
      _
    $region39: #{dueling_dqn_forward.1} parent=1 // pred_check_branch
      %36 = sbr.rel (0) target = $region41
    $region40: #{dueling_dqn_forward.1} parent=1 // pred_region
      _
    $region41: #{dueling_dqn_forward.1} parent=1 // pred_fallthru
      _
    // Predicated region
    $region42: #{dueling_dqn_forward.1} parent=1 // pred_check
      _
    $region43: #{dueling_dqn_forward.1} parent=1 // pred_check_branch
      %38 = sbr.rel (0) target = $region45
    $region44: #{dueling_dqn_forward.1} parent=1 // pred_region
      _
    $region45: #{dueling_dqn_forward.1} parent=1 // pred_fallthru
      _
    %v40 = vld [vmem:[%s0] sm:$0x3]
    %v41 = vld [vmem:[%s0 + $0x2] sm:$0x3]
    %v42 = vld [vmem:[%s0 + $0x4] sm:$0x3]
    %v43 = vld [vmem:[%s0 + $0x6] sm:$0x3]
    %v44 = vld [vmem:[%s0 + $0x8] sm:$0x3]
    %v45 = vld [vmem:[%s0 + $0xa] sm:$0x3]
    %v46 = vld [vmem:[%s0 + $0xc] sm:$0x3]
    %v47 = vld [vmem:[%s0 + $0xe] sm:$0x3]
    %v48 = vld [vmem:[%s0 + $0x10] sm:$0x3]
    %v49 = vld [vmem:[%s0 + $0x12] sm:$0x3]
    %v50 = vld [vmem:[%s0 + $0x14] sm:$0x3]
    %v51 = vld [vmem:[%s0 + $0x16] sm:$0x3]
    %v52 = vld [vmem:[%s0 + $0x18] sm:$0x3]
    %v53 = vld [vmem:[%s0 + $0x1a] sm:$0x3]
    %v54 = vld [vmem:[%s0 + $0x1c] sm:$0x3]
    %v55 = vld [vmem:[%s0 + $0x1e] sm:$0x3]
    %v56 = vld [vmem:[%s0 + $0x20] sm:$0x3]
    %v57 = vld [vmem:[%s0 + $0x22] sm:$0x3]
    %v58 = vld [vmem:[%s0 + $0x24] sm:$0x3]
    %v59 = vld [vmem:[%s0 + $0x26] sm:$0x3]
    %v60 = vld [vmem:[%s0 + $0x28] sm:$0x3]
    %v61 = vld [vmem:[%s0 + $0x2a] sm:$0x3]
    %v62 = vld [vmem:[%s0 + $0x2c] sm:$0x3]
    %v63 = vld [vmem:[%s0 + $0x2e] sm:$0x3]
    %v64 = vld [vmem:[%s0 + $0x30] sm:$0x3]
    %v65 = vld [vmem:[%s0 + $0x32] sm:$0x3]
    %v66 = vld [vmem:[%s0 + $0x34] sm:$0x3]
    %v67 = vld [vmem:[%s0 + $0x36] sm:$0x3]
    %v68 = vld [vmem:[%s0 + $0x38] sm:$0x3]
    %v69 = vld [vmem:[%s0 + $0x3a] sm:$0x3]
    %v70 = vld [vmem:[%s0 + $0x3c] sm:$0x3]
    %v71 = vld [vmem:[%s0 + $0x3e] sm:$0x3]
    %v72 = vld [vmem:[%s0 + $0x40] sm:$0x3]
    %v73 = vld [vmem:[%s0 + $0x42] sm:$0x3]
    %v74 = vld [vmem:[%s0 + $0x44] sm:$0x3]
    %v75 = vld [vmem:[%s0 + $0x46] sm:$0x3]
    %v76 = vld [vmem:[%s0 + $0x48] sm:$0x3]
    %v77 = vld [vmem:[%s0 + $0x4a] sm:$0x3]
    %v78 = vld [vmem:[%s0 + $0x4c] sm:$0x3]
    %v79 = vld [vmem:[%s0 + $0x4e] sm:$0x3]
    %v80 = vld [vmem:[%s0 + $0x50] sm:$0x3]
    %v81 = vld [vmem:[%s0 + $0x52] sm:$0x3]
    %v82 = vld [vmem:[%s0 + $0x54] sm:$0x3]
    %v83 = vld [vmem:[%s0 + $0x56] sm:$0x3]
    %v84 = vld [vmem:[%s0 + $0x58] sm:$0x3]
    %v85 = vld [vmem:[%s0 + $0x5a] sm:$0x3]
    %v86 = vld [vmem:[%s0 + $0x5c] sm:$0x3]
    %v87 = vld [vmem:[%s0 + $0x5e] sm:$0x3]
    %v88 = vld [vmem:[%s0 + $0x60] sm:$0x3]
    %v89 = vld [vmem:[%s0 + $0x62] sm:$0x3]
    %v90 = vld [vmem:[%s0 + $0x64] sm:$0x3]
    %v91 = vld [vmem:[%s0 + $0x66] sm:$0x3]
    %v92 = vunpack.c.0.s8 %v40
    %v93 = vunpack.c.0.s8 %v41
    %v94 = vunpack.c.0.s8 %v42
    %v95 = vunpack.c.0.s8 %v43
    %v96 = vunpack.c.0.s8 %v44
    %v97 = vunpack.c.0.s8 %v45
    %v98 = vunpack.c.0.s8 %v46
    %v99 = vunpack.c.0.s8 %v47
    %v100 = vunpack.c.0.s8 %v48
    %v101 = vunpack.c.0.s8 %v49
    %v102 = vunpack.c.0.s8 %v50
    %v103 = vunpack.c.0.s8 %v51
    %v104 = vunpack.c.0.s8 %v52
    %v105 = vunpack.c.0.s8 %v53
    %v106 = vunpack.c.0.s8 %v54
    %v107 = vunpack.c.0.s8 %v55
    %v108 = vunpack.c.0.s8 %v56
    %v109 = vunpack.c.0.s8 %v57
    %v110 = vunpack.c.0.s8 %v58
    %v111 = vunpack.c.0.s8 %v59
    %v112 = vunpack.c.0.s8 %v60
    %v113 = vunpack.c.0.s8 %v61
    %v114 = vunpack.c.0.s8 %v62
    %v115 = vunpack.c.0.s8 %v63
    %v116 = vunpack.c.0.s8 %v64
    %v117 = vunpack.c.0.s8 %v65
    %v118 = vunpack.c.0.s8 %v66
    %v119 = vunpack.c.0.s8 %v67
    %v120 = vunpack.c.0.s8 %v68
    %v121 = vunpack.c.0.s8 %v69
    %v122 = vunpack.c.0.s8 %v70
    %v123 = vunpack.c.0.s8 %v71
    %v124 = vunpack.c.0.s8 %v72
    %v125 = vunpack.c.0.s8 %v73
    %v126 = vunpack.c.0.s8 %v74
    %v127 = vunpack.c.0.s8 %v75
    %v128 = vunpack.c.0.s8 %v76
    %v129 = vunpack.c.0.s8 %v77
    %v130 = vunpack.c.0.s8 %v78
    %v131 = vunpack.c.0.s8 %v79
    %v132 = vunpack.c.0.s8 %v80
    %v133 = vunpack.c.0.s8 %v81
    %v134 = vunpack.c.0.s8 %v82
    %v135 = vunpack.c.0.s8 %v83
    %v136 = vunpack.c.0.s8 %v84
    %v137 = vunpack.c.0.s8 %v85
    %v138 = vunpack.c.0.s8 %v86
    %v139 = vunpack.c.0.s8 %v87
    %v140 = vunpack.c.0.s8 %v88
    %v141 = vunpack.c.0.s8 %v89
    %v142 = vunpack.c.0.s8 %v90
    %v143 = vunpack.c.0.s8 %v91
    %v144 = vand.u32 %v92, 255
    %v145 = vand.u32 %v93, 255
    %v146 = vand.u32 %v94, 255
    %v147 = vand.u32 %v95, 255
    %v148 = vand.u32 %v96, 255
    %v149 = vand.u32 %v97, 255
    %v150 = vand.u32 %v98, 255
    %v151 = vand.u32 %v99, 255
    %v152 = vand.u32 %v100, 255
    %v153 = vand.u32 %v101, 255
    %v154 = vand.u32 %v102, 255
    %v155 = vand.u32 %v103, 255
    %v156 = vand.u32 %v104, 255
    %v157 = vand.u32 %v105, 255
    %v158 = vand.u32 %v106, 255
    %v159 = vand.u32 %v107, 255
    %v160 = vand.u32 %v108, 255
    %v161 = vand.u32 %v109, 255
    %v162 = vand.u32 %v110, 255
    %v163 = vand.u32 %v111, 255
    %v164 = vand.u32 %v112, 255
    %v165 = vand.u32 %v113, 255
    %v166 = vand.u32 %v114, 255
    %v167 = vand.u32 %v115, 255
    %v168 = vand.u32 %v116, 255
    %v169 = vand.u32 %v117, 255
    %v170 = vand.u32 %v118, 255
    %v171 = vand.u32 %v119, 255
    %v172 = vand.u32 %v120, 255
    %v173 = vand.u32 %v121, 255
    %v174 = vand.u32 %v122, 255
    %v175 = vand.u32 %v123, 255
    %v176 = vand.u32 %v124, 255
    %v177 = vand.u32 %v125, 255
    %v178 = vand.u32 %v126, 255
    %v179 = vand.u32 %v127, 255
    %v180 = vand.u32 %v128, 255
    %v181 = vand.u32 %v129, 255
    %v182 = vand.u32 %v130, 255
    %v183 = vand.u32 %v131, 255
    %v184 = vand.u32 %v132, 255
    %v185 = vand.u32 %v133, 255
    %v186 = vand.u32 %v134, 255
    %v187 = vand.u32 %v135, 255
    %v188 = vand.u32 %v136, 255
    %v189 = vand.u32 %v137, 255
    %v190 = vand.u32 %v138, 255
    %v191 = vand.u32 %v139, 255
    %v192 = vand.u32 %v140, 255
    %v193 = vand.u32 %v141, 255
    %v194 = vand.u32 %v142, 255
    %v195 = vand.u32 %v143, 255
    %v196 = vcvt.s32.f32 %v144
    %v197 = vcvt.s32.f32 %v145
    %v198 = vcvt.s32.f32 %v146
    %v199 = vcvt.s32.f32 %v147
    %v200 = vcvt.s32.f32 %v148
    %v201 = vcvt.s32.f32 %v149
    %v202 = vcvt.s32.f32 %v150
    %v203 = vcvt.s32.f32 %v151
    %v204 = vcvt.s32.f32 %v152
    %v205 = vcvt.s32.f32 %v153
    %v206 = vcvt.s32.f32 %v154
    %v207 = vcvt.s32.f32 %v155
    %v208 = vcvt.s32.f32 %v156
    %v209 = vcvt.s32.f32 %v157
    %v210 = vcvt.s32.f32 %v158
    %v211 = vcvt.s32.f32 %v159
    %v212 = vcvt.s32.f32 %v160
    %v213 = vcvt.s32.f32 %v161
    %v214 = vcvt.s32.f32 %v162
    %v215 = vcvt.s32.f32 %v163
    %v216 = vcvt.s32.f32 %v164
    %v217 = vcvt.s32.f32 %v165
    %v218 = vcvt.s32.f32 %v166
    %v219 = vcvt.s32.f32 %v167
    %v220 = vcvt.s32.f32 %v168
    %v221 = vcvt.s32.f32 %v169
    %v222 = vcvt.s32.f32 %v170
    %v223 = vcvt.s32.f32 %v171
    %v224 = vcvt.s32.f32 %v172
    %v225 = vcvt.s32.f32 %v173
    %v226 = vcvt.s32.f32 %v174
    %v227 = vcvt.s32.f32 %v175
    %v228 = vcvt.s32.f32 %v176
    %v229 = vcvt.s32.f32 %v177
    %v230 = vcvt.s32.f32 %v178
    %v231 = vcvt.s32.f32 %v179
    %v232 = vcvt.s32.f32 %v180
    %v233 = vcvt.s32.f32 %v181
    %v234 = vcvt.s32.f32 %v182
    %v235 = vcvt.s32.f32 %v183
    %v236 = vcvt.s32.f32 %v184
    %v237 = vcvt.s32.f32 %v185
    %v238 = vcvt.s32.f32 %v186
    %v239 = vcvt.s32.f32 %v187
    %v240 = vcvt.s32.f32 %v188
    %v241 = vcvt.s32.f32 %v189
    %v242 = vcvt.s32.f32 %v190
    %v243 = vcvt.s32.f32 %v191
    %v244 = vcvt.s32.f32 %v192
    %v245 = vcvt.s32.f32 %v193
    %v246 = vcvt.s32.f32 %v194
    %v247 = vcvt.s32.f32 %v195
    %v248 = vmul.f32 %v196, 0.00390625
    %v249 = vmul.f32 %v197, 0.00390625
    %v250 = vmul.f32 %v198, 0.00390625
    %v251 = vmul.f32 %v199, 0.00390625
    %v252 = vmul.f32 %v200, 0.00390625
    %v253 = vmul.f32 %v201, 0.00390625
    %v254 = vmul.f32 %v202, 0.00390625
    %v255 = vmul.f32 %v203, 0.00390625
    %v256 = vmul.f32 %v204, 0.00390625
    %v257 = vmul.f32 %v205, 0.00390625
    %v258 = vmul.f32 %v206, 0.00390625
    %v259 = vmul.f32 %v207, 0.00390625
    %v260 = vmul.f32 %v208, 0.00390625
    %v261 = vmul.f32 %v209, 0.00390625
    %v262 = vmul.f32 %v210, 0.00390625
    %v263 = vmul.f32 %v211, 0.00390625
    %v264 = vmul.f32 %v212, 0.00390625
    %v265 = vmul.f32 %v213, 0.00390625
    %v266 = vmul.f32 %v214, 0.00390625
    %v267 = vmul.f32 %v215, 0.00390625
    %v268 = vmul.f32 %v216, 0.00390625
    %v269 = vmul.f32 %v217, 0.00390625
    %v270 = vmul.f32 %v218, 0.00390625
    %v271 = vmul.f32 %v219, 0.00390625
    %v272 = vmul.f32 %v220, 0.00390625
    %v273 = vmul.f32 %v221, 0.00390625
    %v274 = vmul.f32 %v222, 0.00390625
    %v275 = vmul.f32 %v223, 0.00390625
    %v276 = vmul.f32 %v224, 0.00390625
    %v277 = vmul.f32 %v225, 0.00390625
    %v278 = vmul.f32 %v226, 0.00390625
    %v279 = vmul.f32 %v227, 0.00390625
    %v280 = vmul.f32 %v228, 0.00390625
    %v281 = vmul.f32 %v229, 0.00390625
    %v282 = vmul.f32 %v230, 0.00390625
    %v283 = vmul.f32 %v231, 0.00390625
    %v284 = vmul.f32 %v232, 0.00390625
    %v285 = vmul.f32 %v233, 0.00390625
    %v286 = vmul.f32 %v234, 0.00390625
    %v287 = vmul.f32 %v235, 0.00390625
    %v288 = vmul.f32 %v236, 0.00390625
    %v289 = vmul.f32 %v237, 0.00390625
    %v290 = vmul.f32 %v238, 0.00390625
    %v291 = vmul.f32 %v239, 0.00390625
    %v292 = vmul.f32 %v240, 0.00390625
    %v293 = vmul.f32 %v241, 0.00390625
    %v294 = vmul.f32 %v242, 0.00390625
    %v295 = vmul.f32 %v243, 0.00390625
    %v296 = vmul.f32 %v244, 0.00390625
    %v297 = vmul.f32 %v245, 0.00390625
    %v298 = vmul.f32 %v246, 0.00390625
    %v299 = vmul.f32 %v247, 0.00390625
    %v348 = vcombine.high %v248, %v248
    %v349 = vcombine.high %v250, %v250
    %v350 = vcombine.high %v252, %v252
    %v351 = vcombine.high %v254, %v254
    %v352 = vcombine.high %v256, %v256
    %v353 = vcombine.high %v258, %v258
    %v354 = vcombine.high %v260, %v260
    %v355 = vcombine.high %v262, %v262
    %v356 = vcombine.high %v264, %v264
    %v357 = vcombine.high %v266, %v266
    %v358 = vcombine.high %v268, %v268
    %v359 = vcombine.high %v270, %v270
    %v360 = vcombine.high %v274, %v274
    %v361 = vcombine.high %v276, %v276
    %v362 = vcombine.high %v278, %v278
    %v363 = vcombine.high %v280, %v280
    %v364 = vcombine.high %v282, %v282
    %v365 = vcombine.high %v284, %v284
    %v366 = vcombine.high %v286, %v286
    %v367 = vcombine.high %v288, %v288
    %v368 = vcombine.high %v290, %v290
    %v369 = vcombine.high %v292, %v292
    %v370 = vcombine.high %v294, %v294
    %v371 = vcombine.high %v296, %v296
    %v372 = vcombine.low %v248, %v348
    %v373 = vcombine.low %v249, %v250
    %v374 = vcombine.low %v349, %v251
    %v375 = vcombine.low %v252, %v350
    %v376 = vcombine.low %v253, %v254
    %v377 = vcombine.low %v351, %v255
    %v378 = vcombine.low %v256, %v352
    %v379 = vcombine.low %v257, %v258
    %v380 = vcombine.low %v353, %v259
    %v381 = vcombine.low %v260, %v354
    %v382 = vcombine.low %v261, %v262
    %v383 = vcombine.low %v355, %v263
    %v384 = vcombine.low %v264, %v356
    %v385 = vcombine.low %v265, %v266
    %v386 = vcombine.low %v357, %v267
    %v387 = vcombine.low %v268, %v358
    %v388 = vcombine.low %v269, %v270
    %v389 = vcombine.low %v359, %v271
    %v390 = vcombine.low %v274, %v360
    %v391 = vcombine.low %v275, %v276
    %v392 = vcombine.low %v361, %v277
    %v393 = vcombine.low %v278, %v362
    %v394 = vcombine.low %v279, %v280
    %v395 = vcombine.low %v363, %v281
    %v396 = vcombine.low %v282, %v364
    %v397 = vcombine.low %v283, %v284
    %v398 = vcombine.low %v365, %v285
    %v399 = vcombine.low %v286, %v366
    %v400 = vcombine.low %v287, %v288
    %v401 = vcombine.low %v367, %v289
    %v402 = vcombine.low %v290, %v368
    %v403 = vcombine.low %v291, %v292
    %v404 = vcombine.low %v369, %v293
    %v405 = vcombine.low %v294, %v370
    %v406 = vcombine.low %v295, %v296
    %v407 = vcombine.low %v371, %v297
    %v444 = vpack.c.bf16 %v373, %v372
    %v445 = vpack.c.bf16 %v375, %v374
    %v446 = vpack.c.bf16 %v377, %v376
    %v447 = vpack.c.bf16 %v379, %v378
    %v448 = vpack.c.bf16 %v381, %v380
    %v449 = vpack.c.bf16 %v383, %v382
    %v450 = vpack.c.bf16 %v385, %v384
    %v451 = vpack.c.bf16 %v387, %v386
    %v452 = vpack.c.bf16 %v389, %v388
    %v453 = vpack.c.bf16 %v391, %v390
    %v454 = vpack.c.bf16 %v393, %v392
    %v455 = vpack.c.bf16 %v395, %v394
    %v456 = vpack.c.bf16 %v397, %v396
    %v457 = vpack.c.bf16 %v399, %v398
    %v458 = vpack.c.bf16 %v401, %v400
    %v459 = vpack.c.bf16 %v403, %v402
    %v460 = vpack.c.bf16 %v405, %v404
    %v461 = vpack.c.bf16 %v407, %v406
    %v462 = vld [vmem:[%s1] sm:$0xf]
    %v463 = vld [vmem:[%s1 + $0x4] sm:$0xf]
    %v464 = vld [vmem:[%s1 + $0x8] sm:$0xf]
    %v465 = vld [vmem:[%s1 + $0xc] sm:$0xf]
    %v466 = vld [vmem:[%s1 + $0x10] sm:$0xf]
    %v467 = vld [vmem:[%s1 + $0x14] sm:$0xf]
    %v468 = vld [vmem:[%s1 + $0x18] sm:$0xf]
    %v469 = vld [vmem:[%s1 + $0x1c] sm:$0xf]
    %v470 = vcombine.high %v249, %v249
    %v471 = vcombine.high %v251, %v251
    %v472 = vcombine.high %v253, %v253
    %v473 = vcombine.high %v255, %v255
    %v474 = vcombine.high %v257, %v257
    %v475 = vcombine.high %v259, %v259
    %v476 = vcombine.high %v261, %v261
    %v477 = vcombine.high %v263, %v263
    %v478 = vcombine.high %v265, %v265
    %v479 = vcombine.high %v267, %v267
    %v480 = vcombine.high %v269, %v269
    %v481 = vcombine.high %v271, %v271
    %v482 = vcombine.high %v275, %v275
    %v483 = vcombine.high %v277, %v277
    %v484 = vcombine.high %v279, %v279
    %v485 = vcombine.high %v281, %v281
    %v486 = vcombine.high %v283, %v283
    %v487 = vcombine.high %v285, %v285
    %v488 = vcombine.high %v287, %v287
    %v489 = vcombine.high %v289, %v289
    %v490 = vcombine.high %v291, %v291
    %v491 = vcombine.high %v293, %v293
    %v492 = vcombine.high %v295, %v295
    %v493 = vcombine.high %v297, %v297
    %vm494 = vcmask 1042432
    %vm495 = vcmask 1046532
    %vm496 = vmor %vm494, %vm495
    %v497 = vrot.slane %v248, 5
    %v498 = vrot.slane %v497, 4
    %v499 = vrot.slane %v348, 5
    %v500 = vsel %vm496, %v498, %v499
    %v501 = vrot.slane %v499, 4
    %v502 = vrot.slane %v249, 5
    %v503 = vsel %vm496, %v501, %v502
    %v504 = vrot.slane %v502, 4
    %v505 = vrot.slane %v470, 5
    %v506 = vsel %vm496, %v504, %v505
    %v507 = vrot.slane %v250, 5
    %v508 = vrot.slane %v507, 4
    %v509 = vrot.slane %v349, 5
    %v510 = vsel %vm496, %v508, %v509
    %v511 = vrot.slane %v509, 4
    %v512 = vrot.slane %v251, 5
    %v513 = vsel %vm496, %v511, %v512
    %v514 = vrot.slane %v512, 4
    %v515 = vrot.slane %v471, 5
    %v516 = vsel %vm496, %v514, %v515
    %v517 = vrot.slane %v252, 5
    %v518 = vrot.slane %v517, 4
    %v519 = vrot.slane %v350, 5
    %v520 = vsel %vm496, %v518, %v519
    %v521 = vrot.slane %v519, 4
    %v522 = vrot.slane %v253, 5
    %v523 = vsel %vm496, %v521, %v522
    %v524 = vrot.slane %v522, 4
    %v525 = vrot.slane %v472, 5
    %v526 = vsel %vm496, %v524, %v525
    %v527 = vrot.slane %v254, 5
    %v528 = vrot.slane %v527, 4
    %v529 = vrot.slane %v351, 5
    %v530 = vsel %vm496, %v528, %v529
    %v531 = vrot.slane %v529, 4
    %v532 = vrot.slane %v255, 5
    %v533 = vsel %vm496, %v531, %v532
    %v534 = vrot.slane %v532, 4
    %v535 = vrot.slane %v473, 5
    %v536 = vsel %vm496, %v534, %v535
    %v537 = vrot.slane %v256, 5
    %v538 = vrot.slane %v537, 4
    %v539 = vrot.slane %v352, 5
    %v540 = vsel %vm496, %v538, %v539
    %v541 = vrot.slane %v539, 4
    %v542 = vrot.slane %v257, 5
    %v543 = vsel %vm496, %v541, %v542
    %v544 = vrot.slane %v542, 4
    %v545 = vrot.slane %v474, 5
    %v546 = vsel %vm496, %v544, %v545
    %v547 = vrot.slane %v258, 5
    %v548 = vrot.slane %v547, 4
    %v549 = vrot.slane %v353, 5
    %v550 = vsel %vm496, %v548, %v549
    %v551 = vrot.slane %v549, 4
    %v552 = vrot.slane %v259, 5
    %v553 = vsel %vm496, %v551, %v552
    %v554 = vrot.slane %v552, 4
    %v555 = vrot.slane %v475, 5
    %v556 = vsel %vm496, %v554, %v555
    %v557 = vrot.slane %v260, 5
    %v558 = vrot.slane %v557, 4
    %v559 = vrot.slane %v354, 5
    %v560 = vsel %vm496, %v558, %v559
    %v561 = vrot.slane %v559, 4
    %v562 = vrot.slane %v261, 5
    %v563 = vsel %vm496, %v561, %v562
    %v564 = vrot.slane %v562, 4
    %v565 = vrot.slane %v476, 5
    %v566 = vsel %vm496, %v564, %v565
    %v567 = vrot.slane %v262, 5
    %v568 = vrot.slane %v567, 4
    %v569 = vrot.slane %v355, 5
    %v570 = vsel %vm496, %v568, %v569
    %v571 = vrot.slane %v569, 4
    %v572 = vrot.slane %v263, 5
    %v573 = vsel %vm496, %v571, %v572
    %v574 = vrot.slane %v572, 4
    %v575 = vrot.slane %v477, 5
    %v576 = vsel %vm496, %v574, %v575
    %v577 = vrot.slane %v264, 5
    %v578 = vrot.slane %v577, 4
    %v579 = vrot.slane %v356, 5
    %v580 = vsel %vm496, %v578, %v579
    %v581 = vrot.slane %v579, 4
    %v582 = vrot.slane %v265, 5
    %v583 = vsel %vm496, %v581, %v582
    %v584 = vrot.slane %v582, 4
    %v585 = vrot.slane %v478, 5
    %v586 = vsel %vm496, %v584, %v585
    %v587 = vrot.slane %v266, 5
    %v588 = vrot.slane %v587, 4
    %v589 = vrot.slane %v357, 5
    %v590 = vsel %vm496, %v588, %v589
    %v591 = vrot.slane %v589, 4
    %v592 = vrot.slane %v267, 5
    %v593 = vsel %vm496, %v591, %v592
    %v594 = vrot.slane %v592, 4
    %v595 = vrot.slane %v479, 5
    %v596 = vsel %vm496, %v594, %v595
    %v597 = vrot.slane %v268, 5
    %v598 = vrot.slane %v597, 4
    %v599 = vrot.slane %v358, 5
    %v600 = vsel %vm496, %v598, %v599
    %v601 = vrot.slane %v599, 4
    %v602 = vrot.slane %v269, 5
    %v603 = vsel %vm496, %v601, %v602
    %v604 = vrot.slane %v602, 4
    %v605 = vrot.slane %v480, 5
    %v606 = vsel %vm496, %v604, %v605
    %v607 = vrot.slane %v270, 5
    %v608 = vrot.slane %v607, 4
    %v609 = vrot.slane %v359, 5
    %v610 = vsel %vm496, %v608, %v609
    %v611 = vrot.slane %v609, 4
    %v612 = vrot.slane %v271, 5
    %v613 = vsel %vm496, %v611, %v612
    %v614 = vrot.slane %v612, 4
    %v615 = vrot.slane %v481, 5
    %v616 = vsel %vm496, %v614, %v615
    %v617 = vrot.slane %v274, 5
    %v618 = vrot.slane %v617, 4
    %v619 = vrot.slane %v360, 5
    %v620 = vsel %vm496, %v618, %v619
    %v621 = vrot.slane %v619, 4
    %v622 = vrot.slane %v275, 5
    %v623 = vsel %vm496, %v621, %v622
    %v624 = vrot.slane %v622, 4
    %v625 = vrot.slane %v482, 5
    %v626 = vsel %vm496, %v624, %v625
    %v627 = vrot.slane %v276, 5
    %v628 = vrot.slane %v627, 4
    %v629 = vrot.slane %v361, 5
    %v630 = vsel %vm496, %v628, %v629
    %v631 = vrot.slane %v629, 4
    %v632 = vrot.slane %v277, 5
    %v633 = vsel %vm496, %v631, %v632
    %v634 = vrot.slane %v632, 4
    %v635 = vrot.slane %v483, 5
    %v636 = vsel %vm496, %v634, %v635
    %v637 = vrot.slane %v278, 5
    %v638 = vrot.slane %v637, 4
    %v639 = vrot.slane %v362, 5
    %v640 = vsel %vm496, %v638, %v639
    %v641 = vrot.slane %v639, 4
    %v642 = vrot.slane %v279, 5
    %v643 = vsel %vm496, %v641, %v642
    %v644 = vrot.slane %v642, 4
    %v645 = vrot.slane %v484, 5
    %v646 = vsel %vm496, %v644, %v645
    %v647 = vrot.slane %v280, 5
    %v648 = vrot.slane %v647, 4
    %v649 = vrot.slane %v363, 5
    %v650 = vsel %vm496, %v648, %v649
    %v651 = vrot.slane %v649, 4
    %v652 = vrot.slane %v281, 5
    %v653 = vsel %vm496, %v651, %v652
    %v654 = vrot.slane %v652, 4
    %v655 = vrot.slane %v485, 5
    %v656 = vsel %vm496, %v654, %v655
    %v657 = vrot.slane %v282, 5
    %v658 = vrot.slane %v657, 4
    %v659 = vrot.slane %v364, 5
    %v660 = vsel %vm496, %v658, %v659
    %v661 = vrot.slane %v659, 4
    %v662 = vrot.slane %v283, 5
    %v663 = vsel %vm496, %v661, %v662
    %v664 = vrot.slane %v662, 4
    %v665 = vrot.slane %v486, 5
    %v666 = vsel %vm496, %v664, %v665
    %v667 = vrot.slane %v284, 5
    %v668 = vrot.slane %v667, 4
    %v669 = vrot.slane %v365, 5
    %v670 = vsel %vm496, %v668, %v669
    %v671 = vrot.slane %v669, 4
    %v672 = vrot.slane %v285, 5
    %v673 = vsel %vm496, %v671, %v672
    %v674 = vrot.slane %v672, 4
    %v675 = vrot.slane %v487, 5
    %v676 = vsel %vm496, %v674, %v675
    %v677 = vrot.slane %v286, 5
    %v678 = vrot.slane %v677, 4
    %v679 = vrot.slane %v366, 5
    %v680 = vsel %vm496, %v678, %v679
    %v681 = vrot.slane %v679, 4
    %v682 = vrot.slane %v287, 5
    %v683 = vsel %vm496, %v681, %v682
    %v684 = vrot.slane %v682, 4
    %v685 = vrot.slane %v488, 5
    %v686 = vsel %vm496, %v684, %v685
    %v687 = vrot.slane %v288, 5
    %v688 = vrot.slane %v687, 4
    %v689 = vrot.slane %v367, 5
    %v690 = vsel %vm496, %v688, %v689
    %v691 = vrot.slane %v689, 4
    %v692 = vrot.slane %v289, 5
    %v693 = vsel %vm496, %v691, %v692
    %v694 = vrot.slane %v692, 4
    %v695 = vrot.slane %v489, 5
    %v696 = vsel %vm496, %v694, %v695
    %v697 = vrot.slane %v290, 5
    %v698 = vrot.slane %v697, 4
    %v699 = vrot.slane %v368, 5
    %v700 = vsel %vm496, %v698, %v699
    %v701 = vrot.slane %v699, 4
    %v702 = vrot.slane %v291, 5
    %v703 = vsel %vm496, %v701, %v702
    %v704 = vrot.slane %v702, 4
    %v705 = vrot.slane %v490, 5
    %v706 = vsel %vm496, %v704, %v705
    %v707 = vrot.slane %v292, 5
    %v708 = vrot.slane %v707, 4
    %v709 = vrot.slane %v369, 5
    %v710 = vsel %vm496, %v708, %v709
    %v711 = vrot.slane %v709, 4
    %v712 = vrot.slane %v293, 5
    %v713 = vsel %vm496, %v711, %v712
    %v714 = vrot.slane %v712, 4
    %v715 = vrot.slane %v491, 5
    %v716 = vsel %vm496, %v714, %v715
    %v717 = vrot.slane %v294, 5
    %v718 = vrot.slane %v717, 4
    %v719 = vrot.slane %v370, 5
    %v720 = vsel %vm496, %v718, %v719
    %v721 = vrot.slane %v719, 4
    %v722 = vrot.slane %v295, 5
    %v723 = vsel %vm496, %v721, %v722
    %v724 = vrot.slane %v722, 4
    %v725 = vrot.slane %v492, 5
    %v726 = vsel %vm496, %v724, %v725
    %v727 = vrot.slane %v296, 5
    %v728 = vrot.slane %v727, 4
    %v729 = vrot.slane %v371, 5
    %v730 = vsel %vm496, %v728, %v729
    %v731 = vrot.slane %v729, 4
    %v732 = vrot.slane %v297, 5
    %v733 = vsel %vm496, %v731, %v732
    %v734 = vrot.slane %v732, 4
    %v735 = vrot.slane %v493, 5
    %v736 = vsel %vm496, %v734, %v735
    %v737 = vcombine.low %v500, %v503
    %v738 = vcombine.low %v506, %v510
    %v739 = vcombine.low %v513, %v516
    %v740 = vcombine.low %v520, %v523
    %v741 = vcombine.low %v526, %v530
    %v742 = vcombine.low %v533, %v536
    %v743 = vcombine.low %v540, %v543
    %v744 = vcombine.low %v546, %v550
    %v745 = vcombine.low %v553, %v556
    %v746 = vcombine.low %v560, %v563
    %v747 = vcombine.low %v566, %v570
    %v748 = vcombine.low %v573, %v576
    %v749 = vcombine.low %v580, %v583
    %v750 = vcombine.low %v586, %v590
    %v751 = vcombine.low %v593, %v596
    %v752 = vcombine.low %v600, %v603
    %v753 = vcombine.low %v606, %v610
    %v754 = vcombine.low %v613, %v616
    %v755 = vcombine.low %v620, %v623
    %v756 = vcombine.low %v626, %v630
    %v757 = vcombine.low %v633, %v636
    %v758 = vcombine.low %v640, %v643
    %v759 = vcombine.low %v646, %v650
    %v760 = vcombine.low %v653, %v656
    %v761 = vcombine.low %v660, %v663
    %v762 = vcombine.low %v666, %v670
    %v763 = vcombine.low %v673, %v676
    %v764 = vcombine.low %v680, %v683
    %v765 = vcombine.low %v686, %v690
    %v766 = vcombine.low %v693, %v696
    %v767 = vcombine.low %v700, %v703
    %v768 = vcombine.low %v706, %v710
    %v769 = vcombine.low %v713, %v716
    %v770 = vcombine.low %v720, %v723
    %v771 = vcombine.low %v726, %v730
    %v772 = vcombine.low %v733, %v736
    %v809 = vpack.c.bf16 %v738, %v737
    %v810 = vpack.c.bf16 %v740, %v739
    %v811 = vpack.c.bf16 %v742, %v741
    %v812 = vpack.c.bf16 %v744, %v743
    %v813 = vpack.c.bf16 %v746, %v745
    %v814 = vpack.c.bf16 %v748, %v747
    %v815 = vpack.c.bf16 %v750, %v749
    %v816 = vpack.c.bf16 %v752, %v751
    %v817 = vpack.c.bf16 %v754, %v753
    %v818 = vpack.c.bf16 %v756, %v755
    %v819 = vpack.c.bf16 %v758, %v757
    %v820 = vpack.c.bf16 %v760, %v759
    %v821 = vpack.c.bf16 %v762, %v761
    %v822 = vpack.c.bf16 %v764, %v763
    %v823 = vpack.c.bf16 %v766, %v765
    %v824 = vpack.c.bf16 %v768, %v767
    %v825 = vpack.c.bf16 %v770, %v769
    %v826 = vpack.c.bf16 %v772, %v771
    %s827 = scalar_lea.vmem %s1, 32
    %v828 = vld [vmem:[%s827] sm:$0xf]
    %v829 = vld [vmem:[%s827 + $0x4] sm:$0xf]
    %v830 = vld [vmem:[%s827 + $0x8] sm:$0xf]
    %v831 = vld [vmem:[%s827 + $0xc] sm:$0xf]
    %v832 = vld [vmem:[%s827 + $0x10] sm:$0xf]
    %v833 = vld [vmem:[%s827 + $0x14] sm:$0xf]
    %v834 = vld [vmem:[%s827 + $0x18] sm:$0xf]
    %v835 = vld [vmem:[%s827 + $0x1c] sm:$0xf]
    %v844 = vunpack.c.l.b16 %v828
    %v845 = vunpack.c.l.b16 %v829
    %v846 = vunpack.c.l.b16 %v830
    %v847 = vunpack.c.l.b16 %v831
    %v848 = vunpack.c.l.b16 %v832
    %v849 = vunpack.c.l.b16 %v833
    %v850 = vunpack.c.l.b16 %v834
    %v851 = vunpack.c.l.b16 %v835
    %v852 = vpack.c.b16 %v845, %v844
    %v853 = vpack.c.b16 %v847, %v846
    %v854 = vpack.c.b16 %v849, %v848
    %v855 = vpack.c.b16 %v851, %v850
    %vm860 = vcmask 523264
    %v862 = vsel %vm860, %v809, 0
    %v865 = vsel %vm860, %v810, 0
    %v868 = vsel %vm860, %v811, 0
    %v871 = vsel %vm860, %v812, 0
    %v874 = vsel %vm860, %v813, 0
    %v877 = vsel %vm860, %v814, 0
    %v880 = vsel %vm860, %v815, 0
    %v883 = vsel %vm860, %v816, 0
    %v886 = vsel %vm860, %v817, 0
    %v889 = vsel %vm860, %v818, 0
    %v892 = vsel %vm860, %v819, 0
    %v895 = vsel %vm860, %v820, 0
    %v898 = vsel %vm860, %v821, 0
    %v901 = vsel %vm860, %v822, 0
    %v904 = vsel %vm860, %v823, 0
    %v907 = vsel %vm860, %v824, 0
    %v910 = vsel %vm860, %v825, 0
    %v913 = vsel %vm860, %v826, 0
    %915 = vmatprep.subr.bf16.mxu0 0
    %916 = vmatpush1.bf16.msra.mxu0 %v852
    %917 = vmatprep.subr.bf16.mxu0 0
    %918 = vmatpush1.bf16.msra.mxu0 %v853
    %919 = vmatprep.subr.bf16.mxu0 0
    %920 = vmatpush1.bf16.msra.mxu0 %v854
    %921 = vmatprep.subr.bf16.mxu0 0
    %922 = vmatpush1.bf16.msra.mxu0 %v855
    %923 = vmatprep.subr.bf16.mxu0 0
    %924 = vmatpush1.bf16.msra.mxu0 0
    %925 = vmatprep.subr.bf16.mxu0 0
    %926 = vmatpush1.bf16.msra.mxu0 0
    %927 = vmatprep.subr.bf16.mxu0 0
    %928 = vmatpush1.bf16.msra.mxu0 0
    %929 = vmatprep.subr.bf16.mxu0 0
    %930 = vmatpush1.bf16.msra.mxu0 0
    %931 = vmatprep.subr.bf16.mxu0 0
    %932 = vmatpush1.bf16.msra.mxu0 0
    %933 = vmatprep.subr.bf16.mxu0 0
    %934 = vmatpush1.bf16.msra.mxu0 0
    %935 = vmatprep.subr.bf16.mxu0 0
    %936 = vmatpush1.bf16.msra.mxu0 0
    %937 = vmatprep.subr.bf16.mxu0 0
    %938 = vmatpush1.bf16.msra.mxu0 0
    %939 = vmatprep.subr.bf16.mxu0 0
    %940 = vmatpush1.bf16.msra.mxu0 0
    %941 = vmatprep.subr.bf16.mxu0 0
    %942 = vmatpush1.bf16.msra.mxu0 0
    %943 = vmatprep.subr.bf16.mxu0 0
    %944 = vmatpush1.bf16.msra.mxu0 0
    %945 = vmatprep.subr.bf16.mxu0 0
    %946 = vmatpush1.bf16.msra.mxu0 0
    %947 = vmatprep.mubr.bf16.mxu0 0
    %948 = vmatmul.mubr.bf16.gmra.mrb[0].mxu0 %v862
    %v949 = vpop.f32.mrb[0].mxu0
    %v950 = vadd.f32 0.0, %v949
    %v951 = vpop.f32.mrb[0].mxu0
    %v952 = vpop.f32.mrb[0].mxu0
    %v953 = vadd.f32 0.0, %v952
    %v954 = vpop.f32.mrb[0].mxu0
    %955 = vmatprep.mubr.bf16.mxu0 0
    %956 = vmatmul.mubr.bf16.gmra.mrb[0].mxu0 %v865
    %v957 = vpop.f32.mrb[0].mxu0
    %v958 = vadd.f32 0.0, %v957
    %v959 = vpop.f32.mrb[0].mxu0
    %v960 = vpop.f32.mrb[0].mxu0
    %v961 = vadd.f32 0.0, %v960
    %v962 = vpop.f32.mrb[0].mxu0
    %963 = vmatprep.mubr.bf16.mxu0 0
    %964 = vmatmul.mubr.bf16.gmra.mrb[0].mxu0 %v868
    %v965 = vpop.f32.mrb[0].mxu0
    %v966 = vadd.f32 0.0, %v965
    %v967 = vpop.f32.mrb[0].mxu0
    %v968 = vpop.f32.mrb[0].mxu0
    %v969 = vadd.f32 0.0, %v968
    %v970 = vpop.f32.mrb[0].mxu0
    %971 = vmatprep.mubr.bf16.mxu0 0
    %972 = vmatmul.mubr.bf16.gmra.mrb[0].mxu0 %v871
    %v973 = vpop.f32.mrb[0].mxu0
    %v974 = vadd.f32 0.0, %v973
    %v975 = vpop.f32.mrb[0].mxu0
    %v976 = vpop.f32.mrb[0].mxu0
    %v977 = vadd.f32 0.0, %v976
    %v978 = vpop.f32.mrb[0].mxu0
    %979 = vmatprep.mubr.bf16.mxu0 0
    %980 = vmatmul.mubr.bf16.gmra.mrb[0].mxu0 %v874
    %v981 = vpop.f32.mrb[0].mxu0
    %v982 = vadd.f32 0.0, %v981
    %v983 = vpop.f32.mrb[0].mxu0
    %v984 = vpop.f32.mrb[0].mxu0
    %v985 = vadd.f32 0.0, %v984
    %v986 = vpop.f32.mrb[0].mxu0
    %987 = vmatprep.mubr.bf16.mxu0 0
    %988 = vmatmul.mubr.bf16.gmra.mrb[0].mxu0 %v877
    %v989 = vpop.f32.mrb[0].mxu0
    %v990 = vadd.f32 0.0, %v989
    %v991 = vpop.f32.mrb[0].mxu0
    %v992 = vpop.f32.mrb[0].mxu0
    %v993 = vadd.f32 0.0, %v992
    %v994 = vpop.f32.mrb[0].mxu0
    %995 = vmatprep.mubr.bf16.mxu0 0
    %996 = vmatmul.mubr.bf16.gmra.mrb[0].mxu0 %v880
    %v997 = vpop.f32.mrb[0].mxu0
    %v998 = vadd.f32 0.0, %v997
    %v999 = vpop.f32.mrb[0].mxu0
    %v1000 = vpop.f32.mrb[0].mxu0
    %v1001 = vadd.f32 0.0, %v1000
    %v1002 = vpop.f32.mrb[0].mxu0
    %1003 = vmatprep.mubr.bf16.mxu0 0
    %1004 = vmatmul.mubr.bf16.gmra.mrb[0].mxu0 %v883
    %v1005 = vpop.f32.mrb[0].mxu0
    %v1006 = vadd.f32 0.0, %v1005
    %v1007 = vpop.f32.mrb[0].mxu0
    %v1008 = vpop.f32.mrb[0].mxu0
    %v1009 = vadd.f32 0.0, %v1008
    %v1010 = vpop.f32.mrb[0].mxu0
    %1011 = vmatprep.mubr.bf16.mxu0 0
    %1012 = vmatmul.mubr.bf16.gmra.mrb[0].mxu0 %v886
    %v1013 = vpop.f32.mrb[0].mxu0
    %v1014 = vadd.f32 0.0, %v1013
    %v1015 = vpop.f32.mrb[0].mxu0
    %v1016 = vpop.f32.mrb[0].mxu0
    %v1017 = vadd.f32 0.0, %v1016
    %v1018 = vpop.f32.mrb[0].mxu0
    %1019 = vmatprep.mubr.bf16.mxu0 0
    %1020 = vmatmul.mubr.bf16.gmra.mrb[0].mxu0 %v889
    %v1021 = vpop.f32.mrb[0].mxu0
    %v1022 = vadd.f32 0.0, %v1021
    %v1023 = vpop.f32.mrb[0].mxu0
    %v1024 = vpop.f32.mrb[0].mxu0
    %v1025 = vadd.f32 0.0, %v1024
    %v1026 = vpop.f32.mrb[0].mxu0
    %1027 = vmatprep.mubr.bf16.mxu0 0
    %1028 = vmatmul.mubr.bf16.gmra.mrb[0].mxu0 %v892
    %v1029 = vpop.f32.mrb[0].mxu0
    %v1030 = vadd.f32 0.0, %v1029
    %v1031 = vpop.f32.mrb[0].mxu0
    %v1032 = vpop.f32.mrb[0].mxu0
    %v1033 = vadd.f32 0.0, %v1032
    %v1034 = vpop.f32.mrb[0].mxu0
    %1035 = vmatprep.mubr.bf16.mxu0 0
    %1036 = vmatmul.mubr.bf16.gmra.mrb[0].mxu0 %v895
    %v1037 = vpop.f32.mrb[0].mxu0
    %v1038 = vadd.f32 0.0, %v1037
    %v1039 = vpop.f32.mrb[0].mxu0
    %v1040 = vpop.f32.mrb[0].mxu0
    %v1041 = vadd.f32 0.0, %v1040
    %v1042 = vpop.f32.mrb[0].mxu0
    %1043 = vmatprep.mubr.bf16.mxu0 0
    %1044 = vmatmul.mubr.bf16.gmra.mrb[0].mxu0 %v898
    %v1045 = vpop.f32.mrb[0].mxu0
    %v1046 = vadd.f32 0.0, %v1045
    %v1047 = vpop.f32.mrb[0].mxu0
    %v1048 = vpop.f32.mrb[0].mxu0
    %v1049 = vadd.f32 0.0, %v1048
    %v1050 = vpop.f32.mrb[0].mxu0
    %1051 = vmatprep.mubr.bf16.mxu0 0
    %1052 = vmatmul.mubr.bf16.gmra.mrb[0].mxu0 %v901
    %v1053 = vpop.f32.mrb[0].mxu0
    %v1054 = vadd.f32 0.0, %v1053
    %v1055 = vpop.f32.mrb[0].mxu0
    %v1056 = vpop.f32.mrb[0].mxu0
    %v1057 = vadd.f32 0.0, %v1056
    %v1058 = vpop.f32.mrb[0].mxu0
    %1059 = vmatprep.mubr.bf16.mxu0 0
    %1060 = vmatmul.mubr.bf16.gmra.mrb[0].mxu0 %v904
    %v1061 = vpop.f32.mrb[0].mxu0
    %v1062 = vadd.f32 0.0, %v1061
    %v1063 = vpop.f32.mrb[0].mxu0
    %v1064 = vpop.f32.mrb[0].mxu0
    %v1065 = vadd.f32 0.0, %v1064
    %v1066 = vpop.f32.mrb[0].mxu0
    %1067 = vmatprep.mubr.bf16.mxu0 0
    %1068 = vmatmul.mubr.bf16.gmra.mrb[0].mxu0 %v907
    %v1069 = vpop.f32.mrb[0].mxu0
    %v1070 = vadd.f32 0.0, %v1069
    %v1071 = vpop.f32.mrb[0].mxu0
    %v1072 = vpop.f32.mrb[0].mxu0
    %v1073 = vadd.f32 0.0, %v1072
    %v1074 = vpop.f32.mrb[0].mxu0
    %1075 = vmatprep.mubr.bf16.mxu0 0
    %1076 = vmatmul.mubr.bf16.gmra.mrb[0].mxu0 %v910
    %v1077 = vpop.f32.mrb[0].mxu0
    %v1078 = vadd.f32 0.0, %v1077
    %v1079 = vpop.f32.mrb[0].mxu0
    %v1080 = vpop.f32.mrb[0].mxu0
    %v1081 = vadd.f32 0.0, %v1080
    %v1082 = vpop.f32.mrb[0].mxu0
    %1083 = vmatprep.mubr.bf16.mxu0 0
    %1084 = vmatmul.mubr.bf16.gmra.mrb[0].mxu0 %v913
    %v1085 = vpop.f32.mrb[0].mxu0
    %v1086 = vadd.f32 0.0, %v1085
    %v1087 = vpop.f32.mrb[0].mxu0
    %v1088 = vpop.f32.mrb[0].mxu0
    %v1089 = vadd.f32 0.0, %v1088
    %v1090 = vpop.f32.mrb[0].mxu0
    %1091 = vdwg.mxu0
    %v1100 = vunpack.c.l.b16 %v462
    %v1101 = vunpack.c.l.b16 %v463
    %v1102 = vunpack.c.l.b16 %v464
    %v1103 = vunpack.c.l.b16 %v465
    %v1104 = vunpack.c.l.b16 %v466
    %v1105 = vunpack.c.l.b16 %v467
    %v1106 = vunpack.c.l.b16 %v468
    %v1107 = vunpack.c.l.b16 %v469
    %v1108 = vpack.c.b16 %v1101, %v1100
    %v1109 = vpack.c.b16 %v1103, %v1102
    %v1110 = vpack.c.b16 %v1105, %v1104
    %v1111 = vpack.c.b16 %v1107, %v1106
    %v1117 = vsel %vm860, %v444, 0
    %v1120 = vsel %vm860, %v445, 0
    %v1123 = vsel %vm860, %v446, 0
    %v1126 = vsel %vm860, %v447, 0
    %v1129 = vsel %vm860, %v448, 0
    %v1132 = vsel %vm860, %v449, 0
    %v1135 = vsel %vm860, %v450, 0
    %v1138 = vsel %vm860, %v451, 0
    %v1141 = vsel %vm860, %v452, 0
    %v1144 = vsel %vm860, %v453, 0
    %v1147 = vsel %vm860, %v454, 0
    %v1150 = vsel %vm860, %v455, 0
    %v1153 = vsel %vm860, %v456, 0
    %v1156 = vsel %vm860, %v457, 0
    %v1159 = vsel %vm860, %v458, 0
    %v1162 = vsel %vm860, %v459, 0
    %v1165 = vsel %vm860, %v460, 0
    %v1168 = vsel %vm860, %v461, 0
    %1170 = vmatprep.subr.bf16.mxu0 0
    %1171 = vmatpush1.bf16.msra.mxu0 %v1108
    %1172 = vmatprep.subr.bf16.mxu0 0
    %1173 = vmatpush1.bf16.msra.mxu0 %v1109
    %1174 = vmatprep.subr.bf16.mxu0 0
    %1175 = vmatpush1.bf16.msra.mxu0 %v1110
    %1176 = vmatprep.subr.bf16.mxu0 0
    %1177 = vmatpush1.bf16.msra.mxu0 %v1111
    %1178 = vmatprep.subr.bf16.mxu0 0
    %1179 = vmatpush1.bf16.msra.mxu0 0
    %1180 = vmatprep.subr.bf16.mxu0 0
    %1181 = vmatpush1.bf16.msra.mxu0 0
    %1182 = vmatprep.subr.bf16.mxu0 0
    %1183 = vmatpush1.bf16.msra.mxu0 0
    %1184 = vmatprep.subr.bf16.mxu0 0
    %1185 = vmatpush1.bf16.msra.mxu0 0
    %1186 = vmatprep.subr.bf16.mxu0 0
    %1187 = vmatpush1.bf16.msra.mxu0 0
    %1188 = vmatprep.subr.bf16.mxu0 0
    %1189 = vmatpush1.bf16.msra.mxu0 0
    %1190 = vmatprep.subr.bf16.mxu0 0
    %1191 = vmatpush1.bf16.msra.mxu0 0
    %1192 = vmatprep.subr.bf16.mxu0 0
    %1193 = vmatpush1.bf16.msra.mxu0 0
    %1194 = vmatprep.subr.bf16.mxu0 0
    %1195 = vmatpush1.bf16.msra.mxu0 0
    %1196 = vmatprep.subr.bf16.mxu0 0
    %1197 = vmatpush1.bf16.msra.mxu0 0
    %1198 = vmatprep.subr.bf16.mxu0 0
    %1199 = vmatpush1.bf16.msra.mxu0 0
    %1200 = vmatprep.subr.bf16.mxu0 0
    %1201 = vmatpush1.bf16.msra.mxu0 0
    %1202 = vmatprep.mubr.bf16.mxu0 0
    %1203 = vmatmul.mubr.bf16.gmra.mrb[0].mxu0 %v1117
    %v1204 = vpop.f32.mrb[0].mxu0
    %v1205 = vadd.f32 %v950, %v1204
    %v1206 = vpop.f32.mrb[0].mxu0
    %v1207 = vpop.f32.mrb[0].mxu0
    %v1208 = vadd.f32 %v953, %v1207
    %v1209 = vpop.f32.mrb[0].mxu0
    %1210 = vmatprep.mubr.bf16.mxu0 0
    %1211 = vmatmul.mubr.bf16.gmra.mrb[0].mxu0 %v1120
    %v1212 = vpop.f32.mrb[0].mxu0
    %v1213 = vadd.f32 %v958, %v1212
    %v1214 = vpop.f32.mrb[0].mxu0
    %v1215 = vpop.f32.mrb[0].mxu0
    %v1216 = vadd.f32 %v961, %v1215
    %v1217 = vpop.f32.mrb[0].mxu0
    %1218 = vmatprep.mubr.bf16.mxu0 0
    %1219 = vmatmul.mubr.bf16.gmra.mrb[0].mxu0 %v1123
    %v1220 = vpop.f32.mrb[0].mxu0
    %v1221 = vadd.f32 %v966, %v1220
    %v1222 = vpop.f32.mrb[0].mxu0
    %v1223 = vpop.f32.mrb[0].mxu0
    %v1224 = vadd.f32 %v969, %v1223
    %v1225 = vpop.f32.mrb[0].mxu0
    %1226 = vmatprep.mubr.bf16.mxu0 0
    %1227 = vmatmul.mubr.bf16.gmra.mrb[0].mxu0 %v1126
    %v1228 = vpop.f32.mrb[0].mxu0
    %v1229 = vadd.f32 %v974, %v1228
    %v1230 = vpop.f32.mrb[0].mxu0
    %v1231 = vpop.f32.mrb[0].mxu0
    %v1232 = vadd.f32 %v977, %v1231
    %v1233 = vpop.f32.mrb[0].mxu0
    %1234 = vmatprep.mubr.bf16.mxu0 0
    %1235 = vmatmul.mubr.bf16.gmra.mrb[0].mxu0 %v1129
    %v1236 = vpop.f32.mrb[0].mxu0
    %v1237 = vadd.f32 %v982, %v1236
    %v1238 = vpop.f32.mrb[0].mxu0
    %v1239 = vpop.f32.mrb[0].mxu0
    %v1240 = vadd.f32 %v985, %v1239
    %v1241 = vpop.f32.mrb[0].mxu0
    %1242 = vmatprep.mubr.bf16.mxu0 0
    %1243 = vmatmul.mubr.bf16.gmra.mrb[0].mxu0 %v1132
    %v1244 = vpop.f32.mrb[0].mxu0
    %v1245 = vadd.f32 %v990, %v1244
    %v1246 = vpop.f32.mrb[0].mxu0
    %v1247 = vpop.f32.mrb[0].mxu0
    %v1248 = vadd.f32 %v993, %v1247
    %v1249 = vpop.f32.mrb[0].mxu0
    %1250 = vmatprep.mubr.bf16.mxu0 0
    %1251 = vmatmul.mubr.bf16.gmra.mrb[0].mxu0 %v1135
    %v1252 = vpop.f32.mrb[0].mxu0
    %v1253 = vadd.f32 %v998, %v1252
    %v1254 = vpop.f32.mrb[0].mxu0
    %v1255 = vpop.f32.mrb[0].mxu0
    %v1256 = vadd.f32 %v1001, %v1255
    %v1257 = vpop.f32.mrb[0].mxu0
    %1258 = vmatprep.mubr.bf16.mxu0 0
    %1259 = vmatmul.mubr.bf16.gmra.mrb[0].mxu0 %v1138
    %v1260 = vpop.f32.mrb[0].mxu0
    %v1261 = vadd.f32 %v1006, %v1260
    %v1262 = vpop.f32.mrb[0].mxu0
    %v1263 = vpop.f32.mrb[0].mxu0
    %v1264 = vadd.f32 %v1009, %v1263
    %v1265 = vpop.f32.mrb[0].mxu0
    %1266 = vmatprep.mubr.bf16.mxu0 0
    %1267 = vmatmul.mubr.bf16.gmra.mrb[0].mxu0 %v1141
    %v1268 = vpop.f32.mrb[0].mxu0
    %v1269 = vadd.f32 %v1014, %v1268
    %v1270 = vpop.f32.mrb[0].mxu0
    %v1271 = vpop.f32.mrb[0].mxu0
    %v1272 = vadd.f32 %v1017, %v1271
    %v1273 = vpop.f32.mrb[0].mxu0
    %1274 = vmatprep.mubr.bf16.mxu0 0
    %1275 = vmatmul.mubr.bf16.gmra.mrb[0].mxu0 %v1144
    %v1276 = vpop.f32.mrb[0].mxu0
    %v1277 = vadd.f32 %v1022, %v1276
    %v1278 = vpop.f32.mrb[0].mxu0
    %v1279 = vpop.f32.mrb[0].mxu0
    %v1280 = vadd.f32 %v1025, %v1279
    %v1281 = vpop.f32.mrb[0].mxu0
    %1282 = vmatprep.mubr.bf16.mxu0 0
    %1283 = vmatmul.mubr.bf16.gmra.mrb[0].mxu0 %v1147
    %v1284 = vpop.f32.mrb[0].mxu0
    %v1285 = vadd.f32 %v1030, %v1284
    %v1286 = vpop.f32.mrb[0].mxu0
    %v1287 = vpop.f32.mrb[0].mxu0
    %v1288 = vadd.f32 %v1033, %v1287
    %v1289 = vpop.f32.mrb[0].mxu0
    %1290 = vmatprep.mubr.bf16.mxu0 0
    %1291 = vmatmul.mubr.bf16.gmra.mrb[0].mxu0 %v1150
    %v1292 = vpop.f32.mrb[0].mxu0
    %v1293 = vadd.f32 %v1038, %v1292
    %v1294 = vpop.f32.mrb[0].mxu0
    %v1295 = vpop.f32.mrb[0].mxu0
    %v1296 = vadd.f32 %v1041, %v1295
    %v1297 = vpop.f32.mrb[0].mxu0
    %1298 = vmatprep.mubr.bf16.mxu0 0
    %1299 = vmatmul.mubr.bf16.gmra.mrb[0].mxu0 %v1153
    %v1300 = vpop.f32.mrb[0].mxu0
    %v1301 = vadd.f32 %v1046, %v1300
    %v1302 = vpop.f32.mrb[0].mxu0
    %v1303 = vpop.f32.mrb[0].mxu0
    %v1304 = vadd.f32 %v1049, %v1303
    %v1305 = vpop.f32.mrb[0].mxu0
    %1306 = vmatprep.mubr.bf16.mxu0 0
    %1307 = vmatmul.mubr.bf16.gmra.mrb[0].mxu0 %v1156
    %v1308 = vpop.f32.mrb[0].mxu0
    %v1309 = vadd.f32 %v1054, %v1308
    %v1310 = vpop.f32.mrb[0].mxu0
    %v1311 = vpop.f32.mrb[0].mxu0
    %v1312 = vadd.f32 %v1057, %v1311
    %v1313 = vpop.f32.mrb[0].mxu0
    %1314 = vmatprep.mubr.bf16.mxu0 0
    %1315 = vmatmul.mubr.bf16.gmra.mrb[0].mxu0 %v1159
    %v1316 = vpop.f32.mrb[0].mxu0
    %v1317 = vadd.f32 %v1062, %v1316
    %v1318 = vpop.f32.mrb[0].mxu0
    %v1319 = vpop.f32.mrb[0].mxu0
    %v1320 = vadd.f32 %v1065, %v1319
    %v1321 = vpop.f32.mrb[0].mxu0
    %1322 = vmatprep.mubr.bf16.mxu0 0
    %1323 = vmatmul.mubr.bf16.gmra.mrb[0].mxu0 %v1162
    %v1324 = vpop.f32.mrb[0].mxu0
    %v1325 = vadd.f32 %v1070, %v1324
    %v1326 = vpop.f32.mrb[0].mxu0
    %v1327 = vpop.f32.mrb[0].mxu0
    %v1328 = vadd.f32 %v1073, %v1327
    %v1329 = vpop.f32.mrb[0].mxu0
    %1330 = vmatprep.mubr.bf16.mxu0 0
    %1331 = vmatmul.mubr.bf16.gmra.mrb[0].mxu0 %v1165
    %v1332 = vpop.f32.mrb[0].mxu0
    %v1333 = vadd.f32 %v1078, %v1332
    %v1334 = vpop.f32.mrb[0].mxu0
    %v1335 = vpop.f32.mrb[0].mxu0
    %v1336 = vadd.f32 %v1081, %v1335
    %v1337 = vpop.f32.mrb[0].mxu0
    %1338 = vmatprep.mubr.bf16.mxu0 0
    %1339 = vmatmul.mubr.bf16.gmra.mrb[0].mxu0 %v1168
    %v1340 = vpop.f32.mrb[0].mxu0
    %v1341 = vadd.f32 %v1086, %v1340
    %v1342 = vpop.f32.mrb[0].mxu0
    %v1343 = vpop.f32.mrb[0].mxu0
    %v1344 = vadd.f32 %v1089, %v1343
    %v1345 = vpop.f32.mrb[0].mxu0
    %1346 = vdwg.mxu0
    %v1351 = vcombine.high %v272, %v272
    %v1352 = vcombine.high %v298, %v298
    %v1353 = vcombine.low %v250, %v349
    %v1354 = vcombine.low %v251, %v252
    %v1355 = vcombine.low %v350, %v253
    %v1356 = vcombine.low %v254, %v351
    %v1357 = vcombine.low %v255, %v256
    %v1358 = vcombine.low %v352, %v257
    %v1359 = vcombine.low %v258, %v353
    %v1360 = vcombine.low %v259, %v260
    %v1361 = vcombine.low %v354, %v261
    %v1362 = vcombine.low %v262, %v355
    %v1363 = vcombine.low %v263, %v264
    %v1364 = vcombine.low %v356, %v265
    %v1365 = vcombine.low %v266, %v357
    %v1366 = vcombine.low %v267, %v268
    %v1367 = vcombine.low %v358, %v269
    %v1368 = vcombine.low %v270, %v359
    %v1369 = vcombine.low %v271, %v272
    %v1370 = vcombine.low %v1351, %v273
    %v1371 = vcombine.low %v276, %v361
    %v1372 = vcombine.low %v277, %v278
    %v1373 = vcombine.low %v362, %v279
    %v1374 = vcombine.low %v280, %v363
    %v1375 = vcombine.low %v281, %v282
    %v1376 = vcombine.low %v364, %v283
    %v1377 = vcombine.low %v284, %v365
    %v1378 = vcombine.low %v285, %v286
    %v1379 = vcombine.low %v366, %v287
    %v1380 = vcombine.low %v288, %v367
    %v1381 = vcombine.low %v289, %v290
    %v1382 = vcombine.low %v368, %v291
    %v1383 = vcombine.low %v292, %v369
    %v1384 = vcombine.low %v293, %v294
    %v1385 = vcombine.low %v370, %v295
    %v1386 = vcombine.low %v296, %v371
    %v1387 = vcombine.low %v297, %v298
    %v1388 = vcombine.low %v1352, %v299
    %v1425 = vpack.c.bf16 %v1354, %v1353
    %v1426 = vpack.c.bf16 %v1356, %v1355
    %v1427 = vpack.c.bf16 %v1358, %v1357
    %v1428 = vpack.c.bf16 %v1360, %v1359
    %v1429 = vpack.c.bf16 %v1362, %v1361
    %v1430 = vpack.c.bf16 %v1364, %v1363
    %v1431 = vpack.c.bf16 %v1366, %v1365
    %v1432 = vpack.c.bf16 %v1368, %v1367
    %v1433 = vpack.c.bf16 %v1370, %v1369
    %v1434 = vpack.c.bf16 %v1372, %v1371
    %v1435 = vpack.c.bf16 %v1374, %v1373
    %v1436 = vpack.c.bf16 %v1376, %v1375
    %v1437 = vpack.c.bf16 %v1378, %v1377
    %v1438 = vpack.c.bf16 %v1380, %v1379
    %v1439 = vpack.c.bf16 %v1382, %v1381
    %v1440 = vpack.c.bf16 %v1384, %v1383
    %v1441 = vpack.c.bf16 %v1386, %v1385
    %v1442 = vpack.c.bf16 %v1388, %v1387
    %s1443 = scalar_lea.vmem %s1, 64
    %v1444 = vld [vmem:[%s1443] sm:$0xf]
    %v1445 = vld [vmem:[%s1443 + $0x4] sm:$0xf]
    %v1446 = vld [vmem:[%s1443 + $0x8] sm:$0xf]
    %v1447 = vld [vmem:[%s1443 + $0xc] sm:$0xf]
    %v1448 = vld [vmem:[%s1443 + $0x10] sm:$0xf]
    %v1449 = vld [vmem:[%s1443 + $0x14] sm:$0xf]
    %v1450 = vld [vmem:[%s1443 + $0x18] sm:$0xf]
    %v1451 = vld [vmem:[%s1443 + $0x1c] sm:$0xf]
    %v1460 = vunpack.c.l.b16 %v1444
    %v1461 = vunpack.c.l.b16 %v1445
    %v1462 = vunpack.c.l.b16 %v1446
    %v1463 = vunpack.c.l.b16 %v1447
    %v1464 = vunpack.c.l.b16 %v1448
    %v1465 = vunpack.c.l.b16 %v1449
    %v1466 = vunpack.c.l.b16 %v1450
    %v1467 = vunpack.c.l.b16 %v1451
    %v1468 = vpack.c.b16 %v1461, %v1460
    %v1469 = vpack.c.b16 %v1463, %v1462
    %v1470 = vpack.c.b16 %v1465, %v1464
    %v1471 = vpack.c.b16 %v1467, %v1466
    %v1477 = vsel %vm860, %v1425, 0
    %v1480 = vsel %vm860, %v1426, 0
    %v1483 = vsel %vm860, %v1427, 0
    %v1486 = vsel %vm860, %v1428, 0
    %v1489 = vsel %vm860, %v1429, 0
    %v1492 = vsel %vm860, %v1430, 0
    %v1495 = vsel %vm860, %v1431, 0
    %v1498 = vsel %vm860, %v1432, 0
    %v1501 = vsel %vm860, %v1433, 0
    %v1504 = vsel %vm860, %v1434, 0
    %v1507 = vsel %vm860, %v1435, 0
    %v1510 = vsel %vm860, %v1436, 0
    %v1513 = vsel %vm860, %v1437, 0
    %v1516 = vsel %vm860, %v1438, 0
    %v1519 = vsel %vm860, %v1439, 0
    %v1522 = vsel %vm860, %v1440, 0
    %v1525 = vsel %vm860, %v1441, 0
    %v1528 = vsel %vm860, %v1442, 0
    %1530 = vmatprep.subr.bf16.mxu0 0
    %1531 = vmatpush1.bf16.msra.mxu0 %v1468
    %1532 = vmatprep.subr.bf16.mxu0 0
    %1533 = vmatpush1.bf16.msra.mxu0 %v1469
    %1534 = vmatprep.subr.bf16.mxu0 0
    %1535 = vmatpush1.bf16.msra.mxu0 %v1470
    %1536 = vmatprep.subr.bf16.mxu0 0
    %1537 = vmatpush1.bf16.msra.mxu0 %v1471
    %1538 = vmatprep.subr.bf16.mxu0 0
    %1539 = vmatpush1.bf16.msra.mxu0 0
    %1540 = vmatprep.subr.bf16.mxu0 0
    %1541 = vmatpush1.bf16.msra.mxu0 0
    %1542 = vmatprep.subr.bf16.mxu0 0
    %1543 = vmatpush1.bf16.msra.mxu0 0
    %1544 = vmatprep.subr.bf16.mxu0 0
    %1545 = vmatpush1.bf16.msra.mxu0 0
    %1546 = vmatprep.subr.bf16.mxu0 0
    %1547 = vmatpush1.bf16.msra.mxu0 0
    %1548 = vmatprep.subr.bf16.mxu0 0
    %1549 = vmatpush1.bf16.msra.mxu0 0
    %1550 = vmatprep.subr.bf16.mxu0 0
    %1551 = vmatpush1.bf16.msra.mxu0 0
    %1552 = vmatprep.subr.bf16.mxu0 0
    %1553 = vmatpush1.bf16.msra.mxu0 0
    %1554 = vmatprep.subr.bf16.mxu0 0
    %1555 = vmatpush1.bf16.msra.mxu0 0
    %1556 = vmatprep.subr.bf16.mxu0 0
    %1557 = vmatpush1.bf16.msra.mxu0 0
    %1558 = vmatprep.subr.bf16.mxu0 0
    %1559 = vmatpush1.bf16.msra.mxu0 0
    %1560 = vmatprep.subr.bf16.mxu0 0
    %1561 = vmatpush1.bf16.msra.mxu0 0
    %1562 = vmatprep.mubr.bf16.mxu0 0
    %1563 = vmatmul.mubr.bf16.gmra.mrb[0].mxu0 %v1477
    %v1564 = vpop.f32.mrb[0].mxu0
    %v1565 = vadd.f32 0.0, %v1564
    %v1566 = vpop.f32.mrb[0].mxu0
    %v1567 = vpop.f32.mrb[0].mxu0
    %v1568 = vadd.f32 0.0, %v1567
    %v1569 = vpop.f32.mrb[0].mxu0
    %1570 = vmatprep.mubr.bf16.mxu0 0
    %1571 = vmatmul.mubr.bf16.gmra.mrb[0].mxu0 %v1480
    %v1572 = vpop.f32.mrb[0].mxu0
    %v1573 = vadd.f32 0.0, %v1572
    %v1574 = vpop.f32.mrb[0].mxu0
    %v1575 = vpop.f32.mrb[0].mxu0
    %v1576 = vadd.f32 0.0, %v1575
    %v1577 = vpop.f32.mrb[0].mxu0
    %1578 = vmatprep.mubr.bf16.mxu0 0
    %1579 = vmatmul.mubr.bf16.gmra.mrb[0].mxu0 %v1483
    %v1580 = vpop.f32.mrb[0].mxu0
    %v1581 = vadd.f32 0.0, %v1580
    %v1582 = vpop.f32.mrb[0].mxu0
    %v1583 = vpop.f32.mrb[0].mxu0
    %v1584 = vadd.f32 0.0, %v1583
    %v1585 = vpop.f32.mrb[0].mxu0
    %1586 = vmatprep.mubr.bf16.mxu0 0
    %1587 = vmatmul.mubr.bf16.gmra.mrb[0].mxu0 %v1486
    %v1588 = vpop.f32.mrb[0].mxu0
    %v1589 = vadd.f32 0.0, %v1588
    %v1590 = vpop.f32.mrb[0].mxu0
    %v1591 = vpop.f32.mrb[0].mxu0
    %v1592 = vadd.f32 0.0, %v1591
    %v1593 = vpop.f32.mrb[0].mxu0
    %1594 = vmatprep.mubr.bf16.mxu0 0
    %1595 = vmatmul.mubr.bf16.gmra.mrb[0].mxu0 %v1489
    %v1596 = vpop.f32.mrb[0].mxu0
    %v1597 = vadd.f32 0.0, %v1596
    %v1598 = vpop.f32.mrb[0].mxu0
    %v1599 = vpop.f32.mrb[0].mxu0
    %v1600 = vadd.f32 0.0, %v1599
    %v1601 = vpop.f32.mrb[0].mxu0
    %1602 = vmatprep.mubr.bf16.mxu0 0
    %1603 = vmatmul.mubr.bf16.gmra.mrb[0].mxu0 %v1492
    %v1604 = vpop.f32.mrb[0].mxu0
    %v1605 = vadd.f32 0.0, %v1604
    %v1606 = vpop.f32.mrb[0].mxu0
    %v1607 = vpop.f32.mrb[0].mxu0
    %v1608 = vadd.f32 0.0, %v1607
    %v1609 = vpop.f32.mrb[0].mxu0
    %1610 = vmatprep.mubr.bf16.mxu0 0
    %1611 = vmatmul.mubr.bf16.gmra.mrb[0].mxu0 %v1495
    %v1612 = vpop.f32.mrb[0].mxu0
    %v1613 = vadd.f32 0.0, %v1612
    %v1614 = vpop.f32.mrb[0].mxu0
    %v1615 = vpop.f32.mrb[0].mxu0
    %v1616 = vadd.f32 0.0, %v1615
    %v1617 = vpop.f32.mrb[0].mxu0
    %1618 = vmatprep.mubr.bf16.mxu0 0
    %1619 = vmatmul.mubr.bf16.gmra.mrb[0].mxu0 %v1498
    %v1620 = vpop.f32.mrb[0].mxu0
    %v1621 = vadd.f32 0.0, %v1620
    %v1622 = vpop.f32.mrb[0].mxu0
    %v1623 = vpop.f32.mrb[0].mxu0
    %v1624 = vadd.f32 0.0, %v1623
    %v1625 = vpop.f32.mrb[0].mxu0
    %1626 = vmatprep.mubr.bf16.mxu0 0
    %1627 = vmatmul.mubr.bf16.gmra.mrb[0].mxu0 %v1501
    %v1628 = vpop.f32.mrb[0].mxu0
    %v1629 = vadd.f32 0.0, %v1628
    %v1630 = vpop.f32.mrb[0].mxu0
    %v1631 = vpop.f32.mrb[0].mxu0
    %v1632 = vadd.f32 0.0, %v1631
    %v1633 = vpop.f32.mrb[0].mxu0
    %1634 = vmatprep.mubr.bf16.mxu0 0
    %1635 = vmatmul.mubr.bf16.gmra.mrb[0].mxu0 %v1504
    %v1636 = vpop.f32.mrb[0].mxu0
    %v1637 = vadd.f32 0.0, %v1636
    %v1638 = vpop.f32.mrb[0].mxu0
    %v1639 = vpop.f32.mrb[0].mxu0
    %v1640 = vadd.f32 0.0, %v1639
    %v1641 = vpop.f32.mrb[0].mxu0
    %1642 = vmatprep.mubr.bf16.mxu0 0
    %1643 = vmatmul.mubr.bf16.gmra.mrb[0].mxu0 %v1507
    %v1644 = vpop.f32.mrb[0].mxu0
    %v1645 = vadd.f32 0.0, %v1644
    %v1646 = vpop.f32.mrb[0].mxu0
    %v1647 = vpop.f32.mrb[0].mxu0
    %v1648 = vadd.f32 0.0, %v1647
    %v1649 = vpop.f32.mrb[0].mxu0
    %1650 = vmatprep.mubr.bf16.mxu0 0
    %1651 = vmatmul.mubr.bf16.gmra.mrb[0].mxu0 %v1510
    %v1652 = vpop.f32.mrb[0].mxu0
    %v1653 = vadd.f32 0.0, %v1652
    %v1654 = vpop.f32.mrb[0].mxu0
    %v1655 = vpop.f32.mrb[0].mxu0
    %v1656 = vadd.f32 0.0, %v1655
    %v1657 = vpop.f32.mrb[0].mxu0
    %1658 = vmatprep.mubr.bf16.mxu0 0
    %1659 = vmatmul.mubr.bf16.gmra.mrb[0].mxu0 %v1513
    %v1660 = vpop.f32.mrb[0].mxu0
    %v1661 = vadd.f32 0.0, %v1660
    %v1662 = vpop.f32.mrb[0].mxu0
    %v1663 = vpop.f32.mrb[0].mxu0
    %v1664 = vadd.f32 0.0, %v1663
    %v1665 = vpop.f32.mrb[0].mxu0
    %1666 = vmatprep.mubr.bf16.mxu0 0
    %1667 = vmatmul.mubr.bf16.gmra.mrb[0].mxu0 %v1516
    %v1668 = vpop.f32.mrb[0].mxu0
    %v1669 = vadd.f32 0.0, %v1668
    %v1670 = vpop.f32.mrb[0].mxu0
    %v1671 = vpop.f32.mrb[0].mxu0
    %v1672 = vadd.f32 0.0, %v1671
    %v1673 = vpop.f32.mrb[0].mxu0
    %1674 = vmatprep.mubr.bf16.mxu0 0
    %1675 = vmatmul.mubr.bf16.gmra.mrb[0].mxu0 %v1519
    %v1676 = vpop.f32.mrb[0].mxu0
    %v1677 = vadd.f32 0.0, %v1676
    %v1678 = vpop.f32.mrb[0].mxu0
    %v1679 = vpop.f32.mrb[0].mxu0
    %v1680 = vadd.f32 0.0, %v1679
    %v1681 = vpop.f32.mrb[0].mxu0
    %1682 = vmatprep.mubr.bf16.mxu0 0
    %1683 = vmatmul.mubr.bf16.gmra.mrb[0].mxu0 %v1522
    %v1684 = vpop.f32.mrb[0].mxu0
    %v1685 = vadd.f32 0.0, %v1684
    %v1686 = vpop.f32.mrb[0].mxu0
    %v1687 = vpop.f32.mrb[0].mxu0
    %v1688 = vadd.f32 0.0, %v1687
    %v1689 = vpop.f32.mrb[0].mxu0
    %1690 = vmatprep.mubr.bf16.mxu0 0
    %1691 = vmatmul.mubr.bf16.gmra.mrb[0].mxu0 %v1525
    %v1692 = vpop.f32.mrb[0].mxu0
    %v1693 = vadd.f32 0.0, %v1692
    %v1694 = vpop.f32.mrb[0].mxu0
    %v1695 = vpop.f32.mrb[0].mxu0
    %v1696 = vadd.f32 0.0, %v1695
    %v1697 = vpop.f32.mrb[0].mxu0
    %1698 = vmatprep.mubr.bf16.mxu0 0
    %1699 = vmatmul.mubr.bf16.gmra.mrb[0].mxu0 %v1528
    %v1700 = vpop.f32.mrb[0].mxu0
    %v1701 = vadd.f32 0.0, %v1700
    %v1702 = vpop.f32.mrb[0].mxu0
    %v1703 = vpop.f32.mrb[0].mxu0
    %v1704 = vadd.f32 0.0, %v1703
    %v1705 = vpop.f32.mrb[0].mxu0
    %1706 = vdwg.mxu0
    %v1707 = vadd.f32 %v1205, %v1565
    %v1708 = vadd.f32 %v1208, %v1568
    %v1709 = vadd.f32 %v1213, %v1573
    %v1710 = vadd.f32 %v1216, %v1576
    %v1711 = vadd.f32 %v1221, %v1581
    %v1712 = vadd.f32 %v1224, %v1584
    %v1713 = vadd.f32 %v1229, %v1589
    %v1714 = vadd.f32 %v1232, %v1592
    %v1715 = vadd.f32 %v1237, %v1597
    %v1716 = vadd.f32 %v1240, %v1600
    %v1717 = vadd.f32 %v1245, %v1605
    %v1718 = vadd.f32 %v1248, %v1608
    %v1719 = vadd.f32 %v1253, %v1613
    %v1720 = vadd.f32 %v1256, %v1616
    %v1721 = vadd.f32 %v1261, %v1621
    %v1722 = vadd.f32 %v1264, %v1624
    %v1723 = vadd.f32 %v1269, %v1629
    %v1724 = vadd.f32 %v1272, %v1632
    %v1725 = vadd.f32 %v1277, %v1637
    %v1726 = vadd.f32 %v1280, %v1640
    %v1727 = vadd.f32 %v1285, %v1645
    %v1728 = vadd.f32 %v1288, %v1648
    %v1729 = vadd.f32 %v1293, %v1653
    %v1730 = vadd.f32 %v1296, %v1656
    %v1731 = vadd.f32 %v1301, %v1661
    %v1732 = vadd.f32 %v1304, %v1664
    %v1733 = vadd.f32 %v1309, %v1669
    %v1734 = vadd.f32 %v1312, %v1672
    %v1735 = vadd.f32 %v1317, %v1677
    %v1736 = vadd.f32 %v1320, %v1680
    %v1737 = vadd.f32 %v1325, %v1685
    %v1738 = vadd.f32 %v1328, %v1688
    %v1739 = vadd.f32 %v1333, %v1693
    %v1740 = vadd.f32 %v1336, %v1696
    %v1741 = vadd.f32 %v1341, %v1701
    %v1742 = vadd.f32 %v1344, %v1704
    %v1743 = vcombine.high %v273, %v273
    %v1744 = vcombine.high %v299, %v299
    %v1745 = vrot.slane %v272, 5
    %v1746 = vrot.slane %v1745, 4
    %v1747 = vrot.slane %v1351, 5
    %v1748 = vsel %vm496, %v1746, %v1747
    %v1749 = vrot.slane %v1747, 4
    %v1750 = vrot.slane %v273, 5
    %v1751 = vsel %vm496, %v1749, %v1750
    %v1752 = vrot.slane %v1750, 4
    %v1753 = vrot.slane %v1743, 5
    %v1754 = vsel %vm496, %v1752, %v1753
    %v1755 = vrot.slane %v298, 5
    %v1756 = vrot.slane %v1755, 4
    %v1757 = vrot.slane %v1352, 5
    %v1758 = vsel %vm496, %v1756, %v1757
    %v1759 = vrot.slane %v1757, 4
    %v1760 = vrot.slane %v299, 5
    %v1761 = vsel %vm496, %v1759, %v1760
    %v1762 = vrot.slane %v1760, 4
    %v1763 = vrot.slane %v1744, 5
    %v1764 = vsel %vm496, %v1762, %v1763
    %v1765 = vcombine.low %v510, %v513
    %v1766 = vcombine.low %v516, %v520
    %v1767 = vcombine.low %v523, %v526
    %v1768 = vcombine.low %v530, %v533
    %v1769 = vcombine.low %v536, %v540
    %v1770 = vcombine.low %v543, %v546
    %v1771 = vcombine.low %v550, %v553
    %v1772 = vcombine.low %v556, %v560
    %v1773 = vcombine.low %v563, %v566
    %v1774 = vcombine.low %v570, %v573
    %v1775 = vcombine.low %v576, %v580
    %v1776 = vcombine.low %v583, %v586
    %v1777 = vcombine.low %v590, %v593
    %v1778 = vcombine.low %v596, %v600
    %v1779 = vcombine.low %v603, %v606
    %v1780 = vcombine.low %v610, %v613
    %v1781 = vcombine.low %v616, %v1748
    %v1782 = vcombine.low %v1751, %v1754
    %v1783 = vcombine.low %v630, %v633
    %v1784 = vcombine.low %v636, %v640
    %v1785 = vcombine.low %v643, %v646
    %v1786 = vcombine.low %v650, %v653
    %v1787 = vcombine.low %v656, %v660
    %v1788 = vcombine.low %v663, %v666
    %v1789 = vcombine.low %v670, %v673
    %v1790 = vcombine.low %v676, %v680
    %v1791 = vcombine.low %v683, %v686
    %v1792 = vcombine.low %v690, %v693
    %v1793 = vcombine.low %v696, %v700
    %v1794 = vcombine.low %v703, %v706
    %v1795 = vcombine.low %v710, %v713
    %v1796 = vcombine.low %v716, %v720
    %v1797 = vcombine.low %v723, %v726
    %v1798 = vcombine.low %v730, %v733
    %v1799 = vcombine.low %v736, %v1758
    %v1800 = vcombine.low %v1761, %v1764
    %v1837 = vpack.c.bf16 %v1766, %v1765
    %v1838 = vpack.c.bf16 %v1768, %v1767
    %v1839 = vpack.c.bf16 %v1770, %v1769
    %v1840 = vpack.c.bf16 %v1772, %v1771
    %v1841 = vpack.c.bf16 %v1774, %v1773
    %v1842 = vpack.c.bf16 %v1776, %v1775
    %v1843 = vpack.c.bf16 %v1778, %v1777
    %v1844 = vpack.c.bf16 %v1780, %v1779
    %v1845 = vpack.c.bf16 %v1782, %v1781
    %v1846 = vpack.c.bf16 %v1784, %v1783
    %v1847 = vpack.c.bf16 %v1786, %v1785
    %v1848 = vpack.c.bf16 %v1788, %v1787
    %v1849 = vpack.c.bf16 %v1790, %v1789
    %v1850 = vpack.c.bf16 %v1792, %v1791
    %v1851 = vpack.c.bf16 %v1794, %v1793
    %v1852 = vpack.c.bf16 %v1796, %v1795
    %v1853 = vpack.c.bf16 %v1798, %v1797
    %v1854 = vpack.c.bf16 %v1800, %v1799
    %s1855 = scalar_lea.vmem %s1, 96
    %v1856 = vld [vmem:[%s1855] sm:$0xf]
    %v1857 = vld [vmem:[%s1855 + $0x4] sm:$0xf]
    %v1858 = vld [vmem:[%s1855 + $0x8] sm:$0xf]
    %v1859 = vld [vmem:[%s1855 + $0xc] sm:$0xf]
    %v1860 = vld [vmem:[%s1855 + $0x10] sm:$0xf]
    %v1861 = vld [vmem:[%s1855 + $0x14] sm:$0xf]
    %v1862 = vld [vmem:[%s1855 + $0x18] sm:$0xf]
    %v1863 = vld [vmem:[%s1855 + $0x1c] sm:$0xf]
    %v1872 = vunpack.c.l.b16 %v1856
    %v1873 = vunpack.c.l.b16 %v1857
    %v1874 = vunpack.c.l.b16 %v1858
    %v1875 = vunpack.c.l.b16 %v1859
    %v1876 = vunpack.c.l.b16 %v1860
    %v1877 = vunpack.c.l.b16 %v1861
    %v1878 = vunpack.c.l.b16 %v1862
    %v1879 = vunpack.c.l.b16 %v1863
    %v1880 = vpack.c.b16 %v1873, %v1872
    %v1881 = vpack.c.b16 %v1875, %v1874
    %v1882 = vpack.c.b16 %v1877, %v1876
    %v1883 = vpack.c.b16 %v1879, %v1878
    %v1889 = vsel %vm860, %v1837, 0
    %v1892 = vsel %vm860, %v1838, 0
    %v1895 = vsel %vm860, %v1839, 0
    %v1898 = vsel %vm860, %v1840, 0
    %v1901 = vsel %vm860, %v1841, 0
    %v1904 = vsel %vm860, %v1842, 0
    %v1907 = vsel %vm860, %v1843, 0
    %v1910 = vsel %vm860, %v1844, 0
    %v1913 = vsel %vm860, %v1845, 0
    %v1916 = vsel %vm860, %v1846, 0
    %v1919 = vsel %vm860, %v1847, 0
    %v1922 = vsel %vm860, %v1848, 0
    %v1925 = vsel %vm860, %v1849, 0
    %v1928 = vsel %vm860, %v1850, 0
    %v1931 = vsel %vm860, %v1851, 0
    %v1934 = vsel %vm860, %v1852, 0
    %v1937 = vsel %vm860, %v1853, 0
    %v1940 = vsel %vm860, %v1854, 0
    %1942 = vmatprep.subr.bf16.mxu0 0
    %1943 = vmatpush1.bf16.msra.mxu0 %v1880
    %1944 = vmatprep.subr.bf16.mxu0 0
    %1945 = vmatpush1.bf16.msra.mxu0 %v1881
    %1946 = vmatprep.subr.bf16.mxu0 0
    %1947 = vmatpush1.bf16.msra.mxu0 %v1882
    %1948 = vmatprep.subr.bf16.mxu0 0
    %1949 = vmatpush1.bf16.msra.mxu0 %v1883
    %1950 = vmatprep.subr.bf16.mxu0 0
    %1951 = vmatpush1.bf16.msra.mxu0 0
    %1952 = vmatprep.subr.bf16.mxu0 0
    %1953 = vmatpush1.bf16.msra.mxu0 0
    %1954 = vmatprep.subr.bf16.mxu0 0
    %1955 = vmatpush1.bf16.msra.mxu0 0
    %1956 = vmatprep.subr.bf16.mxu0 0
    %1957 = vmatpush1.bf16.msra.mxu0 0
    %1958 = vmatprep.subr.bf16.mxu0 0
    %1959 = vmatpush1.bf16.msra.mxu0 0
    %1960 = vmatprep.subr.bf16.mxu0 0
    %1961 = vmatpush1.bf16.msra.mxu0 0
    %1962 = vmatprep.subr.bf16.mxu0 0
    %1963 = vmatpush1.bf16.msra.mxu0 0
    %1964 = vmatprep.subr.bf16.mxu0 0
    %1965 = vmatpush1.bf16.msra.mxu0 0
    %1966 = vmatprep.subr.bf16.mxu0 0
    %1967 = vmatpush1.bf16.msra.mxu0 0
    %1968 = vmatprep.subr.bf16.mxu0 0
    %1969 = vmatpush1.bf16.msra.mxu0 0
    %1970 = vmatprep.subr.bf16.mxu0 0
    %1971 = vmatpush1.bf16.msra.mxu0 0
    %1972 = vmatprep.subr.bf16.mxu0 0
    %1973 = vmatpush1.bf16.msra.mxu0 0
    %1974 = vmatprep.mubr.bf16.mxu0 0
    %1975 = vmatmul.mubr.bf16.gmra.mrb[0].mxu0 %v1889
    %v1976 = vpop.f32.mrb[0].mxu0
    %v1977 = vadd.f32 0.0, %v1976
    %v1978 = vpop.f32.mrb[0].mxu0
    %v1979 = vpop.f32.mrb[0].mxu0
    %v1980 = vadd.f32 0.0, %v1979
    %v1981 = vpop.f32.mrb[0].mxu0
    %1982 = vmatprep.mubr.bf16.mxu0 0
    %1983 = vmatmul.mubr.bf16.gmra.mrb[0].mxu0 %v1892
    %v1984 = vpop.f32.mrb[0].mxu0
    %v1985 = vadd.f32 0.0, %v1984
    %v1986 = vpop.f32.mrb[0].mxu0
    %v1987 = vpop.f32.mrb[0].mxu0
    %v1988 = vadd.f32 0.0, %v1987
    %v1989 = vpop.f32.mrb[0].mxu0
    %1990 = vmatprep.mubr.bf16.mxu0 0
    %1991 = vmatmul.mubr.bf16.gmra.mrb[0].mxu0 %v1895
    %v1992 = vpop.f32.mrb[0].mxu0
    %v1993 = vadd.f32 0.0, %v1992
    %v1994 = vpop.f32.mrb[0].mxu0
    %v1995 = vpop.f32.mrb[0].mxu0
    %v1996 = vadd.f32 0.0, %v1995
    %v1997 = vpop.f32.mrb[0].mxu0
    %1998 = vmatprep.mubr.bf16.mxu0 0
    %1999 = vmatmul.mubr.bf16.gmra.mrb[0].mxu0 %v1898
    %v2000 = vpop.f32.mrb[0].mxu0
    %v2001 = vadd.f32 0.0, %v2000
    %v2002 = vpop.f32.mrb[0].mxu0
    %v2003 = vpop.f32.mrb[0].mxu0
    %v2004 = vadd.f32 0.0, %v2003
    %v2005 = vpop.f32.mrb[0].mxu0
    %2006 = vmatprep.mubr.bf16.mxu0 0
    %2007 = vmatmul.mubr.bf16.gmra.mrb[0].mxu0 %v1901
    %v2008 = vpop.f32.mrb[0].mxu0
    %v2009 = vadd.f32 0.0, %v2008
    %v2010 = vpop.f32.mrb[0].mxu0
    %v2011 = vpop.f32.mrb[0].mxu0
    %v2012 = vadd.f32 0.0, %v2011
    %v2013 = vpop.f32.mrb[0].mxu0
    %2014 = vmatprep.mubr.bf16.mxu0 0
    %2015 = vmatmul.mubr.bf16.gmra.mrb[0].mxu0 %v1904
    %v2016 = vpop.f32.mrb[0].mxu0
    %v2017 = vadd.f32 0.0, %v2016
    %v2018 = vpop.f32.mrb[0].mxu0
    %v2019 = vpop.f32.mrb[0].mxu0
    %v2020 = vadd.f32 0.0, %v2019
    %v2021 = vpop.f32.mrb[0].mxu0
    %2022 = vmatprep.mubr.bf16.mxu0 0
    %2023 = vmatmul.mubr.bf16.gmra.mrb[0].mxu0 %v1907
    %v2024 = vpop.f32.mrb[0].mxu0
    %v2025 = vadd.f32 0.0, %v2024
    %v2026 = vpop.f32.mrb[0].mxu0
    %v2027 = vpop.f32.mrb[0].mxu0
    %v2028 = vadd.f32 0.0, %v2027
    %v2029 = vpop.f32.mrb[0].mxu0
    %2030 = vmatprep.mubr.bf16.mxu0 0
    %2031 = vmatmul.mubr.bf16.gmra.mrb[0].mxu0 %v1910
    %v2032 = vpop.f32.mrb[0].mxu0
    %v2033 = vadd.f32 0.0, %v2032
    %v2034 = vpop.f32.mrb[0].mxu0
    %v2035 = vpop.f32.mrb[0].mxu0
    %v2036 = vadd.f32 0.0, %v2035
    %v2037 = vpop.f32.mrb[0].mxu0
    %2038 = vmatprep.mubr.bf16.mxu0 0
    %2039 = vmatmul.mubr.bf16.gmra.mrb[0].mxu0 %v1913
    %v2040 = vpop.f32.mrb[0].mxu0
    %v2041 = vadd.f32 0.0, %v2040
    %v2042 = vpop.f32.mrb[0].mxu0
    %v2043 = vpop.f32.mrb[0].mxu0
    %v2044 = vadd.f32 0.0, %v2043
    %v2045 = vpop.f32.mrb[0].mxu0
    %2046 = vmatprep.mubr.bf16.mxu0 0
    %2047 = vmatmul.mubr.bf16.gmra.mrb[0].mxu0 %v1916
    %v2048 = vpop.f32.mrb[0].mxu0
    %v2049 = vadd.f32 0.0, %v2048
    %v2050 = vpop.f32.mrb[0].mxu0
    %v2051 = vpop.f32.mrb[0].mxu0
    %v2052 = vadd.f32 0.0, %v2051
    %v2053 = vpop.f32.mrb[0].mxu0
    %2054 = vmatprep.mubr.bf16.mxu0 0
    %2055 = vmatmul.mubr.bf16.gmra.mrb[0].mxu0 %v1919
    %v2056 = vpop.f32.mrb[0].mxu0
    %v2057 = vadd.f32 0.0, %v2056
    %v2058 = vpop.f32.mrb[0].mxu0
    %v2059 = vpop.f32.mrb[0].mxu0
    %v2060 = vadd.f32 0.0, %v2059
    %v2061 = vpop.f32.mrb[0].mxu0
    %2062 = vmatprep.mubr.bf16.mxu0 0
    %2063 = vmatmul.mubr.bf16.gmra.mrb[0].mxu0 %v1922
    %v2064 = vpop.f32.mrb[0].mxu0
    %v2065 = vadd.f32 0.0, %v2064
    %v2066 = vpop.f32.mrb[0].mxu0
    %v2067 = vpop.f32.mrb[0].mxu0
    %v2068 = vadd.f32 0.0, %v2067
    %v2069 = vpop.f32.mrb[0].mxu0
    %2070 = vmatprep.mubr.bf16.mxu0 0
    %2071 = vmatmul.mubr.bf16.gmra.mrb[0].mxu0 %v1925
    %v2072 = vpop.f32.mrb[0].mxu0
    %v2073 = vadd.f32 0.0, %v2072
    %v2074 = vpop.f32.mrb[0].mxu0
    %v2075 = vpop.f32.mrb[0].mxu0
    %v2076 = vadd.f32 0.0, %v2075
    %v2077 = vpop.f32.mrb[0].mxu0
    %2078 = vmatprep.mubr.bf16.mxu0 0
    %2079 = vmatmul.mubr.bf16.gmra.mrb[0].mxu0 %v1928
    %v2080 = vpop.f32.mrb[0].mxu0
    %v2081 = vadd.f32 0.0, %v2080
    %v2082 = vpop.f32.mrb[0].mxu0
    %v2083 = vpop.f32.mrb[0].mxu0
    %v2084 = vadd.f32 0.0, %v2083
    %v2085 = vpop.f32.mrb[0].mxu0
    %2086 = vmatprep.mubr.bf16.mxu0 0
    %2087 = vmatmul.mubr.bf16.gmra.mrb[0].mxu0 %v1931
    %v2088 = vpop.f32.mrb[0].mxu0
    %v2089 = vadd.f32 0.0, %v2088
    %v2090 = vpop.f32.mrb[0].mxu0
    %v2091 = vpop.f32.mrb[0].mxu0
    %v2092 = vadd.f32 0.0, %v2091
    %v2093 = vpop.f32.mrb[0].mxu0
    %2094 = vmatprep.mubr.bf16.mxu0 0
    %2095 = vmatmul.mubr.bf16.gmra.mrb[0].mxu0 %v1934
    %v2096 = vpop.f32.mrb[0].mxu0
    %v2097 = vadd.f32 0.0, %v2096
    %v2098 = vpop.f32.mrb[0].mxu0
    %v2099 = vpop.f32.mrb[0].mxu0
    %v2100 = vadd.f32 0.0, %v2099
    %v2101 = vpop.f32.mrb[0].mxu0
    %2102 = vmatprep.mubr.bf16.mxu0 0
    %2103 = vmatmul.mubr.bf16.gmra.mrb[0].mxu0 %v1937
    %v2104 = vpop.f32.mrb[0].mxu0
    %v2105 = vadd.f32 0.0, %v2104
    %v2106 = vpop.f32.mrb[0].mxu0
    %v2107 = vpop.f32.mrb[0].mxu0
    %v2108 = vadd.f32 0.0, %v2107
    %v2109 = vpop.f32.mrb[0].mxu0
    %2110 = vmatprep.mubr.bf16.mxu0 0
    %2111 = vmatmul.mubr.bf16.gmra.mrb[0].mxu0 %v1940
    %v2112 = vpop.f32.mrb[0].mxu0
    %v2113 = vadd.f32 0.0, %v2112
    %v2114 = vpop.f32.mrb[0].mxu0
    %v2115 = vpop.f32.mrb[0].mxu0
    %v2116 = vadd.f32 0.0, %v2115
    %v2117 = vpop.f32.mrb[0].mxu0
    %2118 = vdwg.mxu0
    %v2119 = vadd.f32 %v1707, %v1977
    %v2120 = vadd.f32 %v1708, %v1980
    %v2121 = vadd.f32 %v1709, %v1985
    %v2122 = vadd.f32 %v1710, %v1988
    %v2123 = vadd.f32 %v1711, %v1993
    %v2124 = vadd.f32 %v1712, %v1996
    %v2125 = vadd.f32 %v1713, %v2001
    %v2126 = vadd.f32 %v1714, %v2004
    %v2127 = vadd.f32 %v1715, %v2009
    %v2128 = vadd.f32 %v1716, %v2012
    %v2129 = vadd.f32 %v1717, %v2017
    %v2130 = vadd.f32 %v1718, %v2020
    %v2131 = vadd.f32 %v1719, %v2025
    %v2132 = vadd.f32 %v1720, %v2028
    %v2133 = vadd.f32 %v1721, %v2033
    %v2134 = vadd.f32 %v1722, %v2036
    %v2135 = vadd.f32 %v1723, %v2041
    %v2136 = vadd.f32 %v1724, %v2044
    %v2137 = vadd.f32 %v1725, %v2049
    %v2138 = vadd.f32 %v1726, %v2052
    %v2139 = vadd.f32 %v1727, %v2057
    %v2140 = vadd.f32 %v1728, %v2060
    %v2141 = vadd.f32 %v1729, %v2065
    %v2142 = vadd.f32 %v1730, %v2068
    %v2143 = vadd.f32 %v1731, %v2073
    %v2144 = vadd.f32 %v1732, %v2076
    %v2145 = vadd.f32 %v1733, %v2081
    %v2146 = vadd.f32 %v1734, %v2084
    %v2147 = vadd.f32 %v1735, %v2089
    %v2148 = vadd.f32 %v1736, %v2092
    %v2149 = vadd.f32 %v1737, %v2097
    %v2150 = vadd.f32 %v1738, %v2100
    %v2151 = vadd.f32 %v1739, %v2105
    %v2152 = vadd.f32 %v1740, %v2108
    %v2153 = vadd.f32 %v1741, %v2113
    %v2154 = vadd.f32 %v1742, %v2116
    %v2155 = vld [vmem:[%s2] sm:$0x1]
    %v2157 = vlaneseq
    %v2158 = vshrl.u32 %v2157, 7
    %v2159 = vsub.s32 0, %v2158
    %v2160 = vrot.slane %v2155, %v2159
    %v2162 = vadd.f32 %v2119, %v2160
    %v2163 = vadd.f32 %v2120, %v2160
    %v2164 = vadd.f32 %v2121, %v2160
    %v2165 = vadd.f32 %v2122, %v2160
    %v2166 = vadd.f32 %v2123, %v2160
    %v2167 = vadd.f32 %v2124, %v2160
    %v2168 = vadd.f32 %v2125, %v2160
    %v2169 = vadd.f32 %v2126, %v2160
    %v2170 = vadd.f32 %v2127, %v2160
    %v2171 = vadd.f32 %v2128, %v2160
    %v2172 = vadd.f32 %v2129, %v2160
    %v2173 = vadd.f32 %v2130, %v2160
    %v2174 = vadd.f32 %v2131, %v2160
    %v2175 = vadd.f32 %v2132, %v2160
    %v2176 = vadd.f32 %v2133, %v2160
    %v2177 = vadd.f32 %v2134, %v2160
    %v2178 = vadd.f32 %v2135, %v2160
    %v2179 = vadd.f32 %v2136, %v2160
    %v2180 = vadd.f32 %v2137, %v2160
    %v2181 = vadd.f32 %v2138, %v2160
    %v2182 = vadd.f32 %v2139, %v2160
    %v2183 = vadd.f32 %v2140, %v2160
    %v2184 = vadd.f32 %v2141, %v2160
    %v2185 = vadd.f32 %v2142, %v2160
    %v2186 = vadd.f32 %v2143, %v2160
    %v2187 = vadd.f32 %v2144, %v2160
    %v2188 = vadd.f32 %v2145, %v2160
    %v2189 = vadd.f32 %v2146, %v2160
    %v2190 = vadd.f32 %v2147, %v2160
    %v2191 = vadd.f32 %v2148, %v2160
    %v2192 = vadd.f32 %v2149, %v2160
    %v2193 = vadd.f32 %v2150, %v2160
    %v2194 = vadd.f32 %v2151, %v2160
    %v2195 = vadd.f32 %v2152, %v2160
    %v2196 = vadd.f32 %v2153, %v2160
    %v2197 = vadd.f32 %v2154, %v2160
    %v2198 = vmax.f32 %v2162, 0.0
    %v2199 = vmax.f32 %v2163, 0.0
    %v2200 = vmax.f32 %v2164, 0.0
    %v2201 = vmax.f32 %v2165, 0.0
    %v2202 = vmax.f32 %v2166, 0.0
    %v2203 = vmax.f32 %v2167, 0.0
    %v2204 = vmax.f32 %v2168, 0.0
    %v2205 = vmax.f32 %v2169, 0.0
    %v2206 = vmax.f32 %v2170, 0.0
    %v2207 = vmax.f32 %v2171, 0.0
    %v2208 = vmax.f32 %v2172, 0.0
    %v2209 = vmax.f32 %v2173, 0.0
    %v2210 = vmax.f32 %v2174, 0.0
    %v2211 = vmax.f32 %v2175, 0.0
    %v2212 = vmax.f32 %v2176, 0.0
    %v2213 = vmax.f32 %v2177, 0.0
    %v2214 = vmax.f32 %v2178, 0.0
    %v2215 = vmax.f32 %v2179, 0.0
    %v2216 = vmax.f32 %v2180, 0.0
    %v2217 = vmax.f32 %v2181, 0.0
    %v2218 = vmax.f32 %v2182, 0.0
    %v2219 = vmax.f32 %v2183, 0.0
    %v2220 = vmax.f32 %v2184, 0.0
    %v2221 = vmax.f32 %v2185, 0.0
    %v2222 = vmax.f32 %v2186, 0.0
    %v2223 = vmax.f32 %v2187, 0.0
    %v2224 = vmax.f32 %v2188, 0.0
    %v2225 = vmax.f32 %v2189, 0.0
    %v2226 = vmax.f32 %v2190, 0.0
    %v2227 = vmax.f32 %v2191, 0.0
    %v2228 = vmax.f32 %v2192, 0.0
    %v2229 = vmax.f32 %v2193, 0.0
    %v2230 = vmax.f32 %v2194, 0.0
    %v2231 = vmax.f32 %v2195, 0.0
    %v2232 = vmax.f32 %v2196, 0.0
    %v2233 = vmax.f32 %v2197, 0.0
    %v2270 = vcombine.high %v2198, %v2198
    %v2271 = vcombine.high %v2199, %v2199
    %v2272 = vcombine.high %v2200, %v2200
    %v2273 = vcombine.high %v2201, %v2201
    %v2274 = vcombine.high %v2202, %v2202
    %v2275 = vcombine.high %v2203, %v2203
    %v2276 = vcombine.high %v2204, %v2204
    %v2277 = vcombine.high %v2205, %v2205
    %v2278 = vcombine.high %v2206, %v2206
    %v2279 = vcombine.high %v2207, %v2207
    %v2280 = vcombine.high %v2208, %v2208
    %v2281 = vcombine.high %v2209, %v2209
    %v2282 = vcombine.high %v2210, %v2210
    %v2283 = vcombine.high %v2211, %v2211
    %v2284 = vcombine.high %v2212, %v2212
    %v2285 = vcombine.high %v2213, %v2213
    %v2286 = vcombine.high %v2214, %v2214
    %v2287 = vcombine.high %v2215, %v2215
    %v2288 = vcombine.high %v2216, %v2216
    %v2289 = vcombine.high %v2217, %v2217
    %v2290 = vcombine.high %v2218, %v2218
    %v2291 = vcombine.high %v2219, %v2219
    %v2292 = vcombine.high %v2220, %v2220
    %v2293 = vcombine.high %v2221, %v2221
    %v2294 = vcombine.high %v2222, %v2222
    %v2295 = vcombine.high %v2223, %v2223
    %v2296 = vcombine.high %v2224, %v2224
    %v2297 = vcombine.high %v2225, %v2225
    %v2298 = vcombine.high %v2226, %v2226
    %v2299 = vcombine.high %v2227, %v2227
    %v2300 = vcombine.high %v2228, %v2228
    %v2301 = vcombine.high %v2229, %v2229
    %v2302 = vcombine.high %v2230, %v2230
    %v2303 = vcombine.high %v2231, %v2231
    %v2304 = vcombine.high %v2232, %v2232
    %v2305 = vcombine.high %v2233, %v2233
    %v2307 = vunpack.c.l.s4 1983009808
    %v2308 = vunpack.c.0.s8 %v2307
    %v2309 = vlaneseq
    %v2310 = vshrl.u32 %v2309, 7
    %v2311 = vsub.s32 %v2308, %v2310
    %v2312 = vrot.slane %v2198, %v2311
    %v2313 = vcombine.high %v2312, %v2312
    %v2315 = vunpack.c.l.s4 1983009808
    %v2316 = vunpack.c.0.s8 %v2315
    %v2317 = vlaneseq
    %v2318 = vshrl.u32 %v2317, 7
    %v2319 = vsub.s32 %v2316, %v2318
    %v2320 = vrot.slane %v2270, %v2319
    %v2321 = vcombine.high %v2320, %v2320
    %v2323 = vunpack.c.l.s4 1983009808
    %v2324 = vunpack.c.0.s8 %v2323
    %v2325 = vlaneseq
    %v2326 = vshrl.u32 %v2325, 7
    %v2327 = vsub.s32 %v2324, %v2326
    %v2328 = vrot.slane %v2199, %v2327
    %v2329 = vcombine.high %v2328, %v2328
    %v2331 = vunpack.c.l.s4 1983009808
    %v2332 = vunpack.c.0.s8 %v2331
    %v2333 = vlaneseq
    %v2334 = vshrl.u32 %v2333, 7
    %v2335 = vsub.s32 %v2332, %v2334
    %v2336 = vrot.slane %v2201, %v2335
    %v2337 = vcombine.high %v2336, %v2336
    %v2339 = vunpack.c.l.s4 1983009808
    %v2340 = vunpack.c.0.s8 %v2339
    %v2341 = vlaneseq
    %v2342 = vshrl.u32 %v2341, 7
    %v2343 = vsub.s32 %v2340, %v2342
    %v2344 = vrot.slane %v2273, %v2343
    %v2345 = vcombine.high %v2344, %v2344
    %v2347 = vunpack.c.l.s4 1983009808
    %v2348 = vunpack.c.0.s8 %v2347
    %v2349 = vlaneseq
    %v2350 = vshrl.u32 %v2349, 7
    %v2351 = vsub.s32 %v2348, %v2350
    %v2352 = vrot.slane %v2202, %v2351
    %v2353 = vcombine.high %v2352, %v2352
    %v2355 = vunpack.c.l.s4 1983009808
    %v2356 = vunpack.c.0.s8 %v2355
    %v2357 = vlaneseq
    %v2358 = vshrl.u32 %v2357, 7
    %v2359 = vsub.s32 %v2356, %v2358
    %v2360 = vrot.slane %v2204, %v2359
    %v2361 = vcombine.high %v2360, %v2360
    %v2363 = vunpack.c.l.s4 1983009808
    %v2364 = vunpack.c.0.s8 %v2363
    %v2365 = vlaneseq
    %v2366 = vshrl.u32 %v2365, 7
    %v2367 = vsub.s32 %v2364, %v2366
    %v2368 = vrot.slane %v2276, %v2367
    %v2369 = vcombine.high %v2368, %v2368
    %v2371 = vunpack.c.l.s4 1983009808
    %v2372 = vunpack.c.0.s8 %v2371
    %v2373 = vlaneseq
    %v2374 = vshrl.u32 %v2373, 7
    %v2375 = vsub.s32 %v2372, %v2374
    %v2376 = vrot.slane %v2205, %v2375
    %v2377 = vcombine.high %v2376, %v2376
    %v2379 = vunpack.c.l.s4 1983009808
    %v2380 = vunpack.c.0.s8 %v2379
    %v2381 = vlaneseq
    %v2382 = vshrl.u32 %v2381, 7
    %v2383 = vsub.s32 %v2380, %v2382
    %v2384 = vrot.slane %v2207, %v2383
    %v2385 = vcombine.high %v2384, %v2384
    %v2387 = vunpack.c.l.s4 1983009808
    %v2388 = vunpack.c.0.s8 %v2387
    %v2389 = vlaneseq
    %v2390 = vshrl.u32 %v2389, 7
    %v2391 = vsub.s32 %v2388, %v2390
    %v2392 = vrot.slane %v2279, %v2391
    %v2393 = vcombine.high %v2392, %v2392
    %v2395 = vunpack.c.l.s4 1983009808
    %v2396 = vunpack.c.0.s8 %v2395
    %v2397 = vlaneseq
    %v2398 = vshrl.u32 %v2397, 7
    %v2399 = vsub.s32 %v2396, %v2398
    %v2400 = vrot.slane %v2208, %v2399
    %v2401 = vcombine.high %v2400, %v2400
    %v2403 = vunpack.c.l.s4 1983009808
    %v2404 = vunpack.c.0.s8 %v2403
    %v2405 = vlaneseq
    %v2406 = vshrl.u32 %v2405, 7
    %v2407 = vsub.s32 %v2404, %v2406
    %v2408 = vrot.slane %v2210, %v2407
    %v2409 = vcombine.high %v2408, %v2408
    %v2411 = vunpack.c.l.s4 1983009808
    %v2412 = vunpack.c.0.s8 %v2411
    %v2413 = vlaneseq
    %v2414 = vshrl.u32 %v2413, 7
    %v2415 = vsub.s32 %v2412, %v2414
    %v2416 = vrot.slane %v2282, %v2415
    %v2417 = vcombine.high %v2416, %v2416
    %v2419 = vunpack.c.l.s4 1983009808
    %v2420 = vunpack.c.0.s8 %v2419
    %v2421 = vlaneseq
    %v2422 = vshrl.u32 %v2421, 7
    %v2423 = vsub.s32 %v2420, %v2422
    %v2424 = vrot.slane %v2211, %v2423
    %v2425 = vcombine.high %v2424, %v2424
    %v2427 = vunpack.c.l.s4 1983009808
    %v2428 = vunpack.c.0.s8 %v2427
    %v2429 = vlaneseq
    %v2430 = vshrl.u32 %v2429, 7
    %v2431 = vsub.s32 %v2428, %v2430
    %v2432 = vrot.slane %v2213, %v2431
    %v2433 = vcombine.high %v2432, %v2432
    %v2435 = vunpack.c.l.s4 1983009808
    %v2436 = vunpack.c.0.s8 %v2435
    %v2437 = vlaneseq
    %v2438 = vshrl.u32 %v2437, 7
    %v2439 = vsub.s32 %v2436, %v2438
    %v2440 = vrot.slane %v2285, %v2439
    %v2441 = vcombine.high %v2440, %v2440
    %v2443 = vunpack.c.l.s4 1983009808
    %v2444 = vunpack.c.0.s8 %v2443
    %v2445 = vlaneseq
    %v2446 = vshrl.u32 %v2445, 7
    %v2447 = vsub.s32 %v2444, %v2446
    %v2448 = vrot.slane %v2214, %v2447
    %v2449 = vcombine.high %v2448, %v2448
    %v2451 = vunpack.c.l.s4 1983009808
    %v2452 = vunpack.c.0.s8 %v2451
    %v2453 = vlaneseq
    %v2454 = vshrl.u32 %v2453, 7
    %v2455 = vsub.s32 %v2452, %v2454
    %v2456 = vrot.slane %v2216, %v2455
    %v2457 = vcombine.high %v2456, %v2456
    %v2459 = vunpack.c.l.s4 1983009808
    %v2460 = vunpack.c.0.s8 %v2459
    %v2461 = vlaneseq
    %v2462 = vshrl.u32 %v2461, 7
    %v2463 = vsub.s32 %v2460, %v2462
    %v2464 = vrot.slane %v2288, %v2463
    %v2465 = vcombine.high %v2464, %v2464
    %v2467 = vunpack.c.l.s4 1983009808
    %v2468 = vunpack.c.0.s8 %v2467
    %v2469 = vlaneseq
    %v2470 = vshrl.u32 %v2469, 7
    %v2471 = vsub.s32 %v2468, %v2470
    %v2472 = vrot.slane %v2217, %v2471
    %v2473 = vcombine.high %v2472, %v2472
    %v2475 = vunpack.c.l.s4 1983009808
    %v2476 = vunpack.c.0.s8 %v2475
    %v2477 = vlaneseq
    %v2478 = vshrl.u32 %v2477, 7
    %v2479 = vsub.s32 %v2476, %v2478
    %v2480 = vrot.slane %v2219, %v2479
    %v2481 = vcombine.high %v2480, %v2480
    %v2483 = vunpack.c.l.s4 1983009808
    %v2484 = vunpack.c.0.s8 %v2483
    %v2485 = vlaneseq
    %v2486 = vshrl.u32 %v2485, 7
    %v2487 = vsub.s32 %v2484, %v2486
    %v2488 = vrot.slane %v2291, %v2487
    %v2489 = vcombine.high %v2488, %v2488
    %v2491 = vunpack.c.l.s4 1983009808
    %v2492 = vunpack.c.0.s8 %v2491
    %v2493 = vlaneseq
    %v2494 = vshrl.u32 %v2493, 7
    %v2495 = vsub.s32 %v2492, %v2494
    %v2496 = vrot.slane %v2220, %v2495
    %v2497 = vcombine.high %v2496, %v2496
    %v2499 = vunpack.c.l.s4 1983009808
    %v2500 = vunpack.c.0.s8 %v2499
    %v2501 = vlaneseq
    %v2502 = vshrl.u32 %v2501, 7
    %v2503 = vsub.s32 %v2500, %v2502
    %v2504 = vrot.slane %v2222, %v2503
    %v2505 = vcombine.high %v2504, %v2504
    %v2507 = vunpack.c.l.s4 1983009808
    %v2508 = vunpack.c.0.s8 %v2507
    %v2509 = vlaneseq
    %v2510 = vshrl.u32 %v2509, 7
    %v2511 = vsub.s32 %v2508, %v2510
    %v2512 = vrot.slane %v2294, %v2511
    %v2513 = vcombine.high %v2512, %v2512
    %v2515 = vunpack.c.l.s4 1983009808
    %v2516 = vunpack.c.0.s8 %v2515
    %v2517 = vlaneseq
    %v2518 = vshrl.u32 %v2517, 7
    %v2519 = vsub.s32 %v2516, %v2518
    %v2520 = vrot.slane %v2223, %v2519
    %v2521 = vcombine.high %v2520, %v2520
    %v2523 = vunpack.c.l.s4 1983009808
    %v2524 = vunpack.c.0.s8 %v2523
    %v2525 = vlaneseq
    %v2526 = vshrl.u32 %v2525, 7
    %v2527 = vsub.s32 %v2524, %v2526
    %v2528 = vrot.slane %v2225, %v2527
    %v2529 = vcombine.high %v2528, %v2528
    %v2531 = vunpack.c.l.s4 1983009808
    %v2532 = vunpack.c.0.s8 %v2531
    %v2533 = vlaneseq
    %v2534 = vshrl.u32 %v2533, 7
    %v2535 = vsub.s32 %v2532, %v2534
    %v2536 = vrot.slane %v2297, %v2535
    %v2537 = vcombine.high %v2536, %v2536
    %v2539 = vunpack.c.l.s4 1983009808
    %v2540 = vunpack.c.0.s8 %v2539
    %v2541 = vlaneseq
    %v2542 = vshrl.u32 %v2541, 7
    %v2543 = vsub.s32 %v2540, %v2542
    %v2544 = vrot.slane %v2226, %v2543
    %v2545 = vcombine.high %v2544, %v2544
    %v2547 = vunpack.c.l.s4 1983009808
    %v2548 = vunpack.c.0.s8 %v2547
    %v2549 = vlaneseq
    %v2550 = vshrl.u32 %v2549, 7
    %v2551 = vsub.s32 %v2548, %v2550
    %v2552 = vrot.slane %v2228, %v2551
    %v2553 = vcombine.high %v2552, %v2552
    %v2555 = vunpack.c.l.s4 1983009808
    %v2556 = vunpack.c.0.s8 %v2555
    %v2557 = vlaneseq
    %v2558 = vshrl.u32 %v2557, 7
    %v2559 = vsub.s32 %v2556, %v2558
    %v2560 = vrot.slane %v2300, %v2559
    %v2561 = vcombine.high %v2560, %v2560
    %v2563 = vunpack.c.l.s4 1983009808
    %v2564 = vunpack.c.0.s8 %v2563
    %v2565 = vlaneseq
    %v2566 = vshrl.u32 %v2565, 7
    %v2567 = vsub.s32 %v2564, %v2566
    %v2568 = vrot.slane %v2229, %v2567
    %v2569 = vcombine.high %v2568, %v2568
    %v2571 = vunpack.c.l.s4 1983009808
    %v2572 = vunpack.c.0.s8 %v2571
    %v2573 = vlaneseq
    %v2574 = vshrl.u32 %v2573, 7
    %v2575 = vsub.s32 %v2572, %v2574
    %v2576 = vrot.slane %v2231, %v2575
    %v2577 = vcombine.high %v2576, %v2576
    %v2579 = vunpack.c.l.s4 1983009808
    %v2580 = vunpack.c.0.s8 %v2579
    %v2581 = vlaneseq
    %v2582 = vshrl.u32 %v2581, 7
    %v2583 = vsub.s32 %v2580, %v2582
    %v2584 = vrot.slane %v2303, %v2583
    %v2585 = vcombine.high %v2584, %v2584
    %v2587 = vunpack.c.l.s4 1983009808
    %v2588 = vunpack.c.0.s8 %v2587
    %v2589 = vlaneseq
    %v2590 = vshrl.u32 %v2589, 7
    %v2591 = vsub.s32 %v2588, %v2590
    %v2592 = vrot.slane %v2232, %v2591
    %v2593 = vcombine.high %v2592, %v2592
    %v2595 = vunpack.c.l.s4 1983009808
    %v2596 = vunpack.c.0.s8 %v2595
    %v2597 = vlaneseq
    %v2598 = vshrl.u32 %v2597, 7
    %v2599 = vsub.s32 %v2596, %v2598
    %v2600 = vrot.slane %v2271, %v2599
    %v2601 = vcombine.high %v2600, %v2600
    %v2603 = vunpack.c.l.s4 1983009808
    %v2604 = vunpack.c.0.s8 %v2603
    %v2605 = vlaneseq
    %v2606 = vshrl.u32 %v2605, 7
    %v2607 = vsub.s32 %v2604, %v2606
    %v2608 = vrot.slane %v2200, %v2607
    %v2609 = vcombine.high %v2608, %v2608
    %v2611 = vunpack.c.l.s4 1983009808
    %v2612 = vunpack.c.0.s8 %v2611
    %v2613 = vlaneseq
    %v2614 = vshrl.u32 %v2613, 7
    %v2615 = vsub.s32 %v2612, %v2614
    %v2616 = vrot.slane %v2272, %v2615
    %v2617 = vcombine.high %v2616, %v2616
    %v2619 = vunpack.c.l.s4 1983009808
    %v2620 = vunpack.c.0.s8 %v2619
    %v2621 = vlaneseq
    %v2622 = vshrl.u32 %v2621, 7
    %v2623 = vsub.s32 %v2620, %v2622
    %v2624 = vrot.slane %v2274, %v2623
    %v2625 = vcombine.high %v2624, %v2624
    %v2627 = vunpack.c.l.s4 1983009808
    %v2628 = vunpack.c.0.s8 %v2627
    %v2629 = vlaneseq
    %v2630 = vshrl.u32 %v2629, 7
    %v2631 = vsub.s32 %v2628, %v2630
    %v2632 = vrot.slane %v2203, %v2631
    %v2633 = vcombine.high %v2632, %v2632
    %v2635 = vunpack.c.l.s4 1983009808
    %v2636 = vunpack.c.0.s8 %v2635
    %v2637 = vlaneseq
    %v2638 = vshrl.u32 %v2637, 7
    %v2639 = vsub.s32 %v2636, %v2638
    %v2640 = vrot.slane %v2275, %v2639
    %v2641 = vcombine.high %v2640, %v2640
    %v2643 = vunpack.c.l.s4 1983009808
    %v2644 = vunpack.c.0.s8 %v2643
    %v2645 = vlaneseq
    %v2646 = vshrl.u32 %v2645, 7
    %v2647 = vsub.s32 %v2644, %v2646
    %v2648 = vrot.slane %v2277, %v2647
    %v2649 = vcombine.high %v2648, %v2648
    %v2651 = vunpack.c.l.s4 1983009808
    %v2652 = vunpack.c.0.s8 %v2651
    %v2653 = vlaneseq
    %v2654 = vshrl.u32 %v2653, 7
    %v2655 = vsub.s32 %v2652, %v2654
    %v2656 = vrot.slane %v2206, %v2655
    %v2657 = vcombine.high %v2656, %v2656
    %v2659 = vunpack.c.l.s4 1983009808
    %v2660 = vunpack.c.0.s8 %v2659
    %v2661 = vlaneseq
    %v2662 = vshrl.u32 %v2661, 7
    %v2663 = vsub.s32 %v2660, %v2662
    %v2664 = vrot.slane %v2278, %v2663
    %v2665 = vcombine.high %v2664, %v2664
    %v2667 = vunpack.c.l.s4 1983009808
    %v2668 = vunpack.c.0.s8 %v2667
    %v2669 = vlaneseq
    %v2670 = vshrl.u32 %v2669, 7
    %v2671 = vsub.s32 %v2668, %v2670
    %v2672 = vrot.slane %v2280, %v2671
    %v2673 = vcombine.high %v2672, %v2672
    %v2675 = vunpack.c.l.s4 1983009808
    %v2676 = vunpack.c.0.s8 %v2675
    %v2677 = vlaneseq
    %v2678 = vshrl.u32 %v2677, 7
    %v2679 = vsub.s32 %v2676, %v2678
    %v2680 = vrot.slane %v2209, %v2679
    %v2681 = vcombine.high %v2680, %v2680
    %v2683 = vunpack.c.l.s4 1983009808
    %v2684 = vunpack.c.0.s8 %v2683
    %v2685 = vlaneseq
    %v2686 = vshrl.u32 %v2685, 7
    %v2687 = vsub.s32 %v2684, %v2686
    %v2688 = vrot.slane %v2281, %v2687
    %v2689 = vcombine.high %v2688, %v2688
    %v2691 = vunpack.c.l.s4 1983009808
    %v2692 = vunpack.c.0.s8 %v2691
    %v2693 = vlaneseq
    %v2694 = vshrl.u32 %v2693, 7
    %v2695 = vsub.s32 %v2692, %v2694
    %v2696 = vrot.slane %v2283, %v2695
    %v2697 = vcombine.high %v2696, %v2696
    %v2699 = vunpack.c.l.s4 1983009808
    %v2700 = vunpack.c.0.s8 %v2699
    %v2701 = vlaneseq
    %v2702 = vshrl.u32 %v2701, 7
    %v2703 = vsub.s32 %v2700, %v2702
    %v2704 = vrot.slane %v2212, %v2703
    %v2705 = vcombine.high %v2704, %v2704
    %v2707 = vunpack.c.l.s4 1983009808
    %v2708 = vunpack.c.0.s8 %v2707
    %v2709 = vlaneseq
    %v2710 = vshrl.u32 %v2709, 7
    %v2711 = vsub.s32 %v2708, %v2710
    %v2712 = vrot.slane %v2284, %v2711
    %v2713 = vcombine.high %v2712, %v2712
    %v2715 = vunpack.c.l.s4 1983009808
    %v2716 = vunpack.c.0.s8 %v2715
    %v2717 = vlaneseq
    %v2718 = vshrl.u32 %v2717, 7
    %v2719 = vsub.s32 %v2716, %v2718
    %v2720 = vrot.slane %v2286, %v2719
    %v2721 = vcombine.high %v2720, %v2720
    %v2723 = vunpack.c.l.s4 1983009808
    %v2724 = vunpack.c.0.s8 %v2723
    %v2725 = vlaneseq
    %v2726 = vshrl.u32 %v2725, 7
    %v2727 = vsub.s32 %v2724, %v2726
    %v2728 = vrot.slane %v2215, %v2727
    %v2729 = vcombine.high %v2728, %v2728
    %v2731 = vunpack.c.l.s4 1983009808
    %v2732 = vunpack.c.0.s8 %v2731
    %v2733 = vlaneseq
    %v2734 = vshrl.u32 %v2733, 7
    %v2735 = vsub.s32 %v2732, %v2734
    %v2736 = vrot.slane %v2287, %v2735
    %v2737 = vcombine.high %v2736, %v2736
    %v2739 = vunpack.c.l.s4 1983009808
    %v2740 = vunpack.c.0.s8 %v2739
    %v2741 = vlaneseq
    %v2742 = vshrl.u32 %v2741, 7
    %v2743 = vsub.s32 %v2740, %v2742
    %v2744 = vrot.slane %v2289, %v2743
    %v2745 = vcombine.high %v2744, %v2744
    %v2747 = vunpack.c.l.s4 1983009808
    %v2748 = vunpack.c.0.s8 %v2747
    %v2749 = vlaneseq
    %v2750 = vshrl.u32 %v2749, 7
    %v2751 = vsub.s32 %v2748, %v2750
    %v2752 = vrot.slane %v2218, %v2751
    %v2753 = vcombine.high %v2752, %v2752
    %v2755 = vunpack.c.l.s4 1983009808
    %v2756 = vunpack.c.0.s8 %v2755
    %v2757 = vlaneseq
    %v2758 = vshrl.u32 %v2757, 7
    %v2759 = vsub.s32 %v2756, %v2758
    %v2760 = vrot.slane %v2290, %v2759
    %v2761 = vcombine.high %v2760, %v2760
    %v2763 = vunpack.c.l.s4 1983009808
    %v2764 = vunpack.c.0.s8 %v2763
    %v2765 = vlaneseq
    %v2766 = vshrl.u32 %v2765, 7
    %v2767 = vsub.s32 %v2764, %v2766
    %v2768 = vrot.slane %v2292, %v2767
    %v2769 = vcombine.high %v2768, %v2768
    %v2771 = vunpack.c.l.s4 1983009808
    %v2772 = vunpack.c.0.s8 %v2771
    %v2773 = vlaneseq
    %v2774 = vshrl.u32 %v2773, 7
    %v2775 = vsub.s32 %v2772, %v2774
    %v2776 = vrot.slane %v2221, %v2775
    %v2777 = vcombine.high %v2776, %v2776
    %v2779 = vunpack.c.l.s4 1983009808
    %v2780 = vunpack.c.0.s8 %v2779
    %v2781 = vlaneseq
    %v2782 = vshrl.u32 %v2781, 7
    %v2783 = vsub.s32 %v2780, %v2782
    %v2784 = vrot.slane %v2293, %v2783
    %v2785 = vcombine.high %v2784, %v2784
    %v2787 = vunpack.c.l.s4 1983009808
    %v2788 = vunpack.c.0.s8 %v2787
    %v2789 = vlaneseq
    %v2790 = vshrl.u32 %v2789, 7
    %v2791 = vsub.s32 %v2788, %v2790
    %v2792 = vrot.slane %v2295, %v2791
    %v2793 = vcombine.high %v2792, %v2792
    %v2795 = vunpack.c.l.s4 1983009808
    %v2796 = vunpack.c.0.s8 %v2795
    %v2797 = vlaneseq
    %v2798 = vshrl.u32 %v2797, 7
    %v2799 = vsub.s32 %v2796, %v2798
    %v2800 = vrot.slane %v2224, %v2799
    %v2801 = vcombine.high %v2800, %v2800
    %v2803 = vunpack.c.l.s4 1983009808
    %v2804 = vunpack.c.0.s8 %v2803
    %v2805 = vlaneseq
    %v2806 = vshrl.u32 %v2805, 7
    %v2807 = vsub.s32 %v2804, %v2806
    %v2808 = vrot.slane %v2296, %v2807
    %v2809 = vcombine.high %v2808, %v2808
    %v2811 = vunpack.c.l.s4 1983009808
    %v2812 = vunpack.c.0.s8 %v2811
    %v2813 = vlaneseq
    %v2814 = vshrl.u32 %v2813, 7
    %v2815 = vsub.s32 %v2812, %v2814
    %v2816 = vrot.slane %v2298, %v2815
    %v2817 = vcombine.high %v2816, %v2816
    %v2819 = vunpack.c.l.s4 1983009808
    %v2820 = vunpack.c.0.s8 %v2819
    %v2821 = vlaneseq
    %v2822 = vshrl.u32 %v2821, 7
    %v2823 = vsub.s32 %v2820, %v2822
    %v2824 = vrot.slane %v2227, %v2823
    %v2825 = vcombine.high %v2824, %v2824
    %v2827 = vunpack.c.l.s4 1983009808
    %v2828 = vunpack.c.0.s8 %v2827
    %v2829 = vlaneseq
    %v2830 = vshrl.u32 %v2829, 7
    %v2831 = vsub.s32 %v2828, %v2830
    %v2832 = vrot.slane %v2299, %v2831
    %v2833 = vcombine.high %v2832, %v2832
    %v2835 = vunpack.c.l.s4 1983009808
    %v2836 = vunpack.c.0.s8 %v2835
    %v2837 = vlaneseq
    %v2838 = vshrl.u32 %v2837, 7
    %v2839 = vsub.s32 %v2836, %v2838
    %v2840 = vrot.slane %v2301, %v2839
    %v2841 = vcombine.high %v2840, %v2840
    %v2843 = vunpack.c.l.s4 1983009808
    %v2844 = vunpack.c.0.s8 %v2843
    %v2845 = vlaneseq
    %v2846 = vshrl.u32 %v2845, 7
    %v2847 = vsub.s32 %v2844, %v2846
    %v2848 = vrot.slane %v2230, %v2847
    %v2849 = vcombine.high %v2848, %v2848
    %v2851 = vunpack.c.l.s4 1983009808
    %v2852 = vunpack.c.0.s8 %v2851
    %v2853 = vlaneseq
    %v2854 = vshrl.u32 %v2853, 7
    %v2855 = vsub.s32 %v2852, %v2854
    %v2856 = vrot.slane %v2302, %v2855
    %v2857 = vcombine.high %v2856, %v2856
    %v2859 = vunpack.c.l.s4 1983009808
    %v2860 = vunpack.c.0.s8 %v2859
    %v2861 = vlaneseq
    %v2862 = vshrl.u32 %v2861, 7
    %v2863 = vsub.s32 %v2860, %v2862
    %v2864 = vrot.slane %v2304, %v2863
    %v2865 = vcombine.high %v2864, %v2864
    %v2867 = vunpack.c.l.s4 1983009808
    %v2868 = vunpack.c.0.s8 %v2867
    %v2869 = vlaneseq
    %v2870 = vshrl.u32 %v2869, 7
    %v2871 = vsub.s32 %v2868, %v2870
    %v2872 = vrot.slane %v2233, %v2871
    %v2873 = vcombine.high %v2872, %v2872
    %v2875 = vunpack.c.l.s4 1983009808
    %v2876 = vunpack.c.0.s8 %v2875
    %v2877 = vlaneseq
    %v2878 = vshrl.u32 %v2877, 7
    %v2879 = vsub.s32 %v2876, %v2878
    %v2880 = vrot.slane %v2305, %v2879
    %v2881 = vcombine.high %v2880, %v2880
    %v2882 = vlaneseq
    %v2883 = vshrl.u32 %v2882, 7
    %v2884 = vsub.s32 0, %v2883
    %v2885 = vrot.slane %v2312, %v2884
    %v2886 = vlaneseq
    %v2887 = vshrl.u32 %v2886, 7
    %v2888 = vsub.s32 0, %v2887
    %v2889 = vrot.slane %v2313, %v2888
    %v2890 = vlaneseq
    %v2891 = vshrl.u32 %v2890, 7
    %v2892 = vsub.s32 0, %v2891
    %v2893 = vrot.slane %v2320, %v2892
    %v2894 = vlaneseq
    %v2895 = vshrl.u32 %v2894, 7
    %v2896 = vsub.s32 0, %v2895
    %v2897 = vrot.slane %v2321, %v2896
    %v2898 = vlaneseq
    %v2899 = vshrl.u32 %v2898, 7
    %v2900 = vsub.s32 0, %v2899
    %v2901 = vrot.slane %v2328, %v2900
    %v2902 = vlaneseq
    %v2903 = vshrl.u32 %v2902, 7
    %v2904 = vsub.s32 0, %v2903
    %v2905 = vrot.slane %v2329, %v2904
    %v2906 = vlaneseq
    %v2907 = vshrl.u32 %v2906, 7
    %v2908 = vsub.s32 0, %v2907
    %v2909 = vrot.slane %v2336, %v2908
    %v2910 = vlaneseq
    %v2911 = vshrl.u32 %v2910, 7
    %v2912 = vsub.s32 0, %v2911
    %v2913 = vrot.slane %v2337, %v2912
    %v2914 = vlaneseq
    %v2915 = vshrl.u32 %v2914, 7
    %v2916 = vsub.s32 0, %v2915
    %v2917 = vrot.slane %v2344, %v2916
    %v2918 = vlaneseq
    %v2919 = vshrl.u32 %v2918, 7
    %v2920 = vsub.s32 0, %v2919
    %v2921 = vrot.slane %v2345, %v2920
    %v2922 = vlaneseq
    %v2923 = vshrl.u32 %v2922, 7
    %v2924 = vsub.s32 0, %v2923
    %v2925 = vrot.slane %v2352, %v2924
    %v2926 = vlaneseq
    %v2927 = vshrl.u32 %v2926, 7
    %v2928 = vsub.s32 0, %v2927
    %v2929 = vrot.slane %v2353, %v2928
    %v2930 = vlaneseq
    %v2931 = vshrl.u32 %v2930, 7
    %v2932 = vsub.s32 0, %v2931
    %v2933 = vrot.slane %v2360, %v2932
    %v2934 = vlaneseq
    %v2935 = vshrl.u32 %v2934, 7
    %v2936 = vsub.s32 0, %v2935
    %v2937 = vrot.slane %v2361, %v2936
    %v2938 = vlaneseq
    %v2939 = vshrl.u32 %v2938, 7
    %v2940 = vsub.s32 0, %v2939
    %v2941 = vrot.slane %v2368, %v2940
    %v2942 = vlaneseq
    %v2943 = vshrl.u32 %v2942, 7
    %v2944 = vsub.s32 0, %v2943
    %v2945 = vrot.slane %v2369, %v2944
    %v2946 = vlaneseq
    %v2947 = vshrl.u32 %v2946, 7
    %v2948 = vsub.s32 0, %v2947
    %v2949 = vrot.slane %v2376, %v2948
    %v2950 = vlaneseq
    %v2951 = vshrl.u32 %v2950, 7
    %v2952 = vsub.s32 0, %v2951
    %v2953 = vrot.slane %v2377, %v2952
    %v2954 = vlaneseq
    %v2955 = vshrl.u32 %v2954, 7
    %v2956 = vsub.s32 0, %v2955
    %v2957 = vrot.slane %v2384, %v2956
    %v2958 = vlaneseq
    %v2959 = vshrl.u32 %v2958, 7
    %v2960 = vsub.s32 0, %v2959
    %v2961 = vrot.slane %v2385, %v2960
    %v2962 = vlaneseq
    %v2963 = vshrl.u32 %v2962, 7
    %v2964 = vsub.s32 0, %v2963
    %v2965 = vrot.slane %v2392, %v2964
    %v2966 = vlaneseq
    %v2967 = vshrl.u32 %v2966, 7
    %v2968 = vsub.s32 0, %v2967
    %v2969 = vrot.slane %v2393, %v2968
    %v2970 = vlaneseq
    %v2971 = vshrl.u32 %v2970, 7
    %v2972 = vsub.s32 0, %v2971
    %v2973 = vrot.slane %v2400, %v2972
    %v2974 = vlaneseq
    %v2975 = vshrl.u32 %v2974, 7
    %v2976 = vsub.s32 0, %v2975
    %v2977 = vrot.slane %v2401, %v2976
    %v2978 = vlaneseq
    %v2979 = vshrl.u32 %v2978, 7
    %v2980 = vsub.s32 0, %v2979
    %v2981 = vrot.slane %v2408, %v2980
    %v2982 = vlaneseq
    %v2983 = vshrl.u32 %v2982, 7
    %v2984 = vsub.s32 0, %v2983
    %v2985 = vrot.slane %v2409, %v2984
    %v2986 = vlaneseq
    %v2987 = vshrl.u32 %v2986, 7
    %v2988 = vsub.s32 0, %v2987
    %v2989 = vrot.slane %v2416, %v2988
    %v2990 = vlaneseq
    %v2991 = vshrl.u32 %v2990, 7
    %v2992 = vsub.s32 0, %v2991
    %v2993 = vrot.slane %v2417, %v2992
    %v2994 = vlaneseq
    %v2995 = vshrl.u32 %v2994, 7
    %v2996 = vsub.s32 0, %v2995
    %v2997 = vrot.slane %v2424, %v2996
    %v2998 = vlaneseq
    %v2999 = vshrl.u32 %v2998, 7
    %v3000 = vsub.s32 0, %v2999
    %v3001 = vrot.slane %v2425, %v3000
    %v3002 = vlaneseq
    %v3003 = vshrl.u32 %v3002, 7
    %v3004 = vsub.s32 0, %v3003
    %v3005 = vrot.slane %v2432, %v3004
    %v3006 = vlaneseq
    %v3007 = vshrl.u32 %v3006, 7
    %v3008 = vsub.s32 0, %v3007
    %v3009 = vrot.slane %v2433, %v3008
    %v3010 = vlaneseq
    %v3011 = vshrl.u32 %v3010, 7
    %v3012 = vsub.s32 0, %v3011
    %v3013 = vrot.slane %v2440, %v3012
    %v3014 = vlaneseq
    %v3015 = vshrl.u32 %v3014, 7
    %v3016 = vsub.s32 0, %v3015
    %v3017 = vrot.slane %v2441, %v3016
    %v3018 = vlaneseq
    %v3019 = vshrl.u32 %v3018, 7
    %v3020 = vsub.s32 0, %v3019
    %v3021 = vrot.slane %v2448, %v3020
    %v3022 = vlaneseq
    %v3023 = vshrl.u32 %v3022, 7
    %v3024 = vsub.s32 0, %v3023
    %v3025 = vrot.slane %v2449, %v3024
    %v3026 = vlaneseq
    %v3027 = vshrl.u32 %v3026, 7
    %v3028 = vsub.s32 0, %v3027
    %v3029 = vrot.slane %v2456, %v3028
    %v3030 = vlaneseq
    %v3031 = vshrl.u32 %v3030, 7
    %v3032 = vsub.s32 0, %v3031
    %v3033 = vrot.slane %v2457, %v3032
    %v3034 = vlaneseq
    %v3035 = vshrl.u32 %v3034, 7
    %v3036 = vsub.s32 0, %v3035
    %v3037 = vrot.slane %v2464, %v3036
    %v3038 = vlaneseq
    %v3039 = vshrl.u32 %v3038, 7
    %v3040 = vsub.s32 0, %v3039
    %v3041 = vrot.slane %v2465, %v3040
    %v3042 = vlaneseq
    %v3043 = vshrl.u32 %v3042, 7
    %v3044 = vsub.s32 0, %v3043
    %v3045 = vrot.slane %v2472, %v3044
    %v3046 = vlaneseq
    %v3047 = vshrl.u32 %v3046, 7
    %v3048 = vsub.s32 0, %v3047
    %v3049 = vrot.slane %v2473, %v3048
    %v3050 = vlaneseq
    %v3051 = vshrl.u32 %v3050, 7
    %v3052 = vsub.s32 0, %v3051
    %v3053 = vrot.slane %v2480, %v3052
    %v3054 = vlaneseq
    %v3055 = vshrl.u32 %v3054, 7
    %v3056 = vsub.s32 0, %v3055
    %v3057 = vrot.slane %v2481, %v3056
    %v3058 = vlaneseq
    %v3059 = vshrl.u32 %v3058, 7
    %v3060 = vsub.s32 0, %v3059
    %v3061 = vrot.slane %v2488, %v3060
    %v3062 = vlaneseq
    %v3063 = vshrl.u32 %v3062, 7
    %v3064 = vsub.s32 0, %v3063
    %v3065 = vrot.slane %v2489, %v3064
    %v3066 = vlaneseq
    %v3067 = vshrl.u32 %v3066, 7
    %v3068 = vsub.s32 0, %v3067
    %v3069 = vrot.slane %v2496, %v3068
    %v3070 = vlaneseq
    %v3071 = vshrl.u32 %v3070, 7
    %v3072 = vsub.s32 0, %v3071
    %v3073 = vrot.slane %v2497, %v3072
    %v3074 = vlaneseq
    %v3075 = vshrl.u32 %v3074, 7
    %v3076 = vsub.s32 0, %v3075
    %v3077 = vrot.slane %v2504, %v3076
    %v3078 = vlaneseq
    %v3079 = vshrl.u32 %v3078, 7
    %v3080 = vsub.s32 0, %v3079
    %v3081 = vrot.slane %v2505, %v3080
    %v3082 = vlaneseq
    %v3083 = vshrl.u32 %v3082, 7
    %v3084 = vsub.s32 0, %v3083
    %v3085 = vrot.slane %v2512, %v3084
    %v3086 = vlaneseq
    %v3087 = vshrl.u32 %v3086, 7
    %v3088 = vsub.s32 0, %v3087
    %v3089 = vrot.slane %v2513, %v3088
    %v3090 = vlaneseq
    %v3091 = vshrl.u32 %v3090, 7
    %v3092 = vsub.s32 0, %v3091
    %v3093 = vrot.slane %v2520, %v3092
    %v3094 = vlaneseq
    %v3095 = vshrl.u32 %v3094, 7
    %v3096 = vsub.s32 0, %v3095
    %v3097 = vrot.slane %v2521, %v3096
    %v3098 = vlaneseq
    %v3099 = vshrl.u32 %v3098, 7
    %v3100 = vsub.s32 0, %v3099
    %v3101 = vrot.slane %v2528, %v3100
    %v3102 = vlaneseq
    %v3103 = vshrl.u32 %v3102, 7
    %v3104 = vsub.s32 0, %v3103
    %v3105 = vrot.slane %v2529, %v3104
    %v3106 = vlaneseq
    %v3107 = vshrl.u32 %v3106, 7
    %v3108 = vsub.s32 0, %v3107
    %v3109 = vrot.slane %v2536, %v3108
    %v3110 = vlaneseq
    %v3111 = vshrl.u32 %v3110, 7
    %v3112 = vsub.s32 0, %v3111
    %v3113 = vrot.slane %v2537, %v3112
    %v3114 = vlaneseq
    %v3115 = vshrl.u32 %v3114, 7
    %v3116 = vsub.s32 0, %v3115
    %v3117 = vrot.slane %v2544, %v3116
    %v3118 = vlaneseq
    %v3119 = vshrl.u32 %v3118, 7
    %v3120 = vsub.s32 0, %v3119
    %v3121 = vrot.slane %v2545, %v3120
    %v3122 = vlaneseq
    %v3123 = vshrl.u32 %v3122, 7
    %v3124 = vsub.s32 0, %v3123
    %v3125 = vrot.slane %v2552, %v3124
    %v3126 = vlaneseq
    %v3127 = vshrl.u32 %v3126, 7
    %v3128 = vsub.s32 0, %v3127
    %v3129 = vrot.slane %v2553, %v3128
    %v3130 = vlaneseq
    %v3131 = vshrl.u32 %v3130, 7
    %v3132 = vsub.s32 0, %v3131
    %v3133 = vrot.slane %v2560, %v3132
    %v3134 = vlaneseq
    %v3135 = vshrl.u32 %v3134, 7
    %v3136 = vsub.s32 0, %v3135
    %v3137 = vrot.slane %v2561, %v3136
    %v3138 = vlaneseq
    %v3139 = vshrl.u32 %v3138, 7
    %v3140 = vsub.s32 0, %v3139
    %v3141 = vrot.slane %v2568, %v3140
    %v3142 = vlaneseq
    %v3143 = vshrl.u32 %v3142, 7
    %v3144 = vsub.s32 0, %v3143
    %v3145 = vrot.slane %v2569, %v3144
    %v3146 = vlaneseq
    %v3147 = vshrl.u32 %v3146, 7
    %v3148 = vsub.s32 0, %v3147
    %v3149 = vrot.slane %v2576, %v3148
    %v3150 = vlaneseq
    %v3151 = vshrl.u32 %v3150, 7
    %v3152 = vsub.s32 0, %v3151
    %v3153 = vrot.slane %v2577, %v3152
    %v3154 = vlaneseq
    %v3155 = vshrl.u32 %v3154, 7
    %v3156 = vsub.s32 0, %v3155
    %v3157 = vrot.slane %v2584, %v3156
    %v3158 = vlaneseq
    %v3159 = vshrl.u32 %v3158, 7
    %v3160 = vsub.s32 0, %v3159
    %v3161 = vrot.slane %v2585, %v3160
    %v3162 = vlaneseq
    %v3163 = vshrl.u32 %v3162, 7
    %v3164 = vsub.s32 0, %v3163
    %v3165 = vrot.slane %v2592, %v3164
    %v3166 = vlaneseq
    %v3167 = vshrl.u32 %v3166, 7
    %v3168 = vsub.s32 0, %v3167
    %v3169 = vrot.slane %v2593, %v3168
    %vm3170 = vcmask 1041409
    %v3171 = vsel %vm3170, %v2889, %v2885
    %vm3172 = vcmask 1042434
    %v3173 = vsel %vm3172, %v2893, %v3171
    %vm3174 = vcmask 1043459
    %v3175 = vsel %vm3174, %v2897, %v3173
    %vm3176 = vcmask 1044484
    %v3177 = vsel %vm3176, %v2901, %v3175
    %vm3178 = vcmask 1045509
    %v3179 = vsel %vm3178, %v2905, %v3177
    %v3180 = vsel %vm3170, %v2913, %v2909
    %v3181 = vsel %vm3172, %v2917, %v3180
    %v3182 = vsel %vm3174, %v2921, %v3181
    %v3183 = vsel %vm3176, %v2925, %v3182
    %v3184 = vsel %vm3178, %v2929, %v3183
    %v3185 = vsel %vm3170, %v2937, %v2933
    %v3186 = vsel %vm3172, %v2941, %v3185
    %v3187 = vsel %vm3174, %v2945, %v3186
    %v3188 = vsel %vm3176, %v2949, %v3187
    %v3189 = vsel %vm3178, %v2953, %v3188
    %v3190 = vsel %vm3170, %v2961, %v2957
    %v3191 = vsel %vm3172, %v2965, %v3190
    %v3192 = vsel %vm3174, %v2969, %v3191
    %v3193 = vsel %vm3176, %v2973, %v3192
    %v3194 = vsel %vm3178, %v2977, %v3193
    %v3195 = vsel %vm3170, %v2985, %v2981
    %v3196 = vsel %vm3172, %v2989, %v3195
    %v3197 = vsel %vm3174, %v2993, %v3196
    %v3198 = vsel %vm3176, %v2997, %v3197
    %v3199 = vsel %vm3178, %v3001, %v3198
    %v3200 = vsel %vm3170, %v3009, %v3005
    %v3201 = vsel %vm3172, %v3013, %v3200
    %v3202 = vsel %vm3174, %v3017, %v3201
    %v3203 = vsel %vm3176, %v3021, %v3202
    %v3204 = vsel %vm3178, %v3025, %v3203
    %v3205 = vsel %vm3170, %v3033, %v3029
    %v3206 = vsel %vm3172, %v3037, %v3205
    %v3207 = vsel %vm3174, %v3041, %v3206
    %v3208 = vsel %vm3176, %v3045, %v3207
    %v3209 = vsel %vm3178, %v3049, %v3208
    %v3210 = vsel %vm3170, %v3057, %v3053
    %v3211 = vsel %vm3172, %v3061, %v3210
    %v3212 = vsel %vm3174, %v3065, %v3211
    %v3213 = vsel %vm3176, %v3069, %v3212
    %v3214 = vsel %vm3178, %v3073, %v3213
    %v3215 = vsel %vm3170, %v3081, %v3077
    %v3216 = vsel %vm3172, %v3085, %v3215
    %v3217 = vsel %vm3174, %v3089, %v3216
    %v3218 = vsel %vm3176, %v3093, %v3217
    %v3219 = vsel %vm3178, %v3097, %v3218
    %v3220 = vsel %vm3170, %v3105, %v3101
    %v3221 = vsel %vm3172, %v3109, %v3220
    %v3222 = vsel %vm3174, %v3113, %v3221
    %v3223 = vsel %vm3176, %v3117, %v3222
    %v3224 = vsel %vm3178, %v3121, %v3223
    %v3225 = vsel %vm3170, %v3129, %v3125
    %v3226 = vsel %vm3172, %v3133, %v3225
    %v3227 = vsel %vm3174, %v3137, %v3226
    %v3228 = vsel %vm3176, %v3141, %v3227
    %v3229 = vsel %vm3178, %v3145, %v3228
    %v3230 = vsel %vm3170, %v3153, %v3149
    %v3231 = vsel %vm3172, %v3157, %v3230
    %v3232 = vsel %vm3174, %v3161, %v3231
    %v3233 = vsel %vm3176, %v3165, %v3232
    %v3234 = vsel %vm3178, %v3169, %v3233
    %v3247 = vlaneseq
    %v3248 = vshrl.u32 %v3247, 7
    %v3249 = vsub.s32 1, %v3248
    %v3250 = vrot.slane %v2312, %v3249
    %v3251 = vlaneseq
    %v3252 = vshrl.u32 %v3251, 7
    %v3253 = vsub.s32 1, %v3252
    %v3254 = vrot.slane %v2313, %v3253
    %v3255 = vlaneseq
    %v3256 = vshrl.u32 %v3255, 7
    %v3257 = vsub.s32 1, %v3256
    %v3258 = vrot.slane %v2320, %v3257
    %v3259 = vlaneseq
    %v3260 = vshrl.u32 %v3259, 7
    %v3261 = vsub.s32 1, %v3260
    %v3262 = vrot.slane %v2321, %v3261
    %v3263 = vlaneseq
    %v3264 = vshrl.u32 %v3263, 7
    %v3265 = vsub.s32 1, %v3264
    %v3266 = vrot.slane %v2328, %v3265
    %v3267 = vlaneseq
    %v3268 = vshrl.u32 %v3267, 7
    %v3269 = vsub.s32 1, %v3268
    %v3270 = vrot.slane %v2329, %v3269
    %v3271 = vlaneseq
    %v3272 = vshrl.u32 %v3271, 7
    %v3273 = vsub.s32 1, %v3272
    %v3274 = vrot.slane %v2336, %v3273
    %v3275 = vlaneseq
    %v3276 = vshrl.u32 %v3275, 7
    %v3277 = vsub.s32 1, %v3276
    %v3278 = vrot.slane %v2337, %v3277
    %v3279 = vlaneseq
    %v3280 = vshrl.u32 %v3279, 7
    %v3281 = vsub.s32 1, %v3280
    %v3282 = vrot.slane %v2344, %v3281
    %v3283 = vlaneseq
    %v3284 = vshrl.u32 %v3283, 7
    %v3285 = vsub.s32 1, %v3284
    %v3286 = vrot.slane %v2345, %v3285
    %v3287 = vlaneseq
    %v3288 = vshrl.u32 %v3287, 7
    %v3289 = vsub.s32 1, %v3288
    %v3290 = vrot.slane %v2352, %v3289
    %v3291 = vlaneseq
    %v3292 = vshrl.u32 %v3291, 7
    %v3293 = vsub.s32 1, %v3292
    %v3294 = vrot.slane %v2353, %v3293
    %v3295 = vlaneseq
    %v3296 = vshrl.u32 %v3295, 7
    %v3297 = vsub.s32 1, %v3296
    %v3298 = vrot.slane %v2360, %v3297
    %v3299 = vlaneseq
    %v3300 = vshrl.u32 %v3299, 7
    %v3301 = vsub.s32 1, %v3300
    %v3302 = vrot.slane %v2361, %v3301
    %v3303 = vlaneseq
    %v3304 = vshrl.u32 %v3303, 7
    %v3305 = vsub.s32 1, %v3304
    %v3306 = vrot.slane %v2368, %v3305
    %v3307 = vlaneseq
    %v3308 = vshrl.u32 %v3307, 7
    %v3309 = vsub.s32 1, %v3308
    %v3310 = vrot.slane %v2369, %v3309
    %v3311 = vlaneseq
    %v3312 = vshrl.u32 %v3311, 7
    %v3313 = vsub.s32 1, %v3312
    %v3314 = vrot.slane %v2376, %v3313
    %v3315 = vlaneseq
    %v3316 = vshrl.u32 %v3315, 7
    %v3317 = vsub.s32 1, %v3316
    %v3318 = vrot.slane %v2377, %v3317
    %v3319 = vlaneseq
    %v3320 = vshrl.u32 %v3319, 7
    %v3321 = vsub.s32 1, %v3320
    %v3322 = vrot.slane %v2384, %v3321
    %v3323 = vlaneseq
    %v3324 = vshrl.u32 %v3323, 7
    %v3325 = vsub.s32 1, %v3324
    %v3326 = vrot.slane %v2385, %v3325
    %v3327 = vlaneseq
    %v3328 = vshrl.u32 %v3327, 7
    %v3329 = vsub.s32 1, %v3328
    %v3330 = vrot.slane %v2392, %v3329
    %v3331 = vlaneseq
    %v3332 = vshrl.u32 %v3331, 7
    %v3333 = vsub.s32 1, %v3332
    %v3334 = vrot.slane %v2393, %v3333
    %v3335 = vlaneseq
    %v3336 = vshrl.u32 %v3335, 7
    %v3337 = vsub.s32 1, %v3336
    %v3338 = vrot.slane %v2400, %v3337
    %v3339 = vlaneseq
    %v3340 = vshrl.u32 %v3339, 7
    %v3341 = vsub.s32 1, %v3340
    %v3342 = vrot.slane %v2401, %v3341
    %v3343 = vlaneseq
    %v3344 = vshrl.u32 %v3343, 7
    %v3345 = vsub.s32 1, %v3344
    %v3346 = vrot.slane %v2408, %v3345
    %v3347 = vlaneseq
    %v3348 = vshrl.u32 %v3347, 7
    %v3349 = vsub.s32 1, %v3348
    %v3350 = vrot.slane %v2409, %v3349
    %v3351 = vlaneseq
    %v3352 = vshrl.u32 %v3351, 7
    %v3353 = vsub.s32 1, %v3352
    %v3354 = vrot.slane %v2416, %v3353
    %v3355 = vlaneseq
    %v3356 = vshrl.u32 %v3355, 7
    %v3357 = vsub.s32 1, %v3356
    %v3358 = vrot.slane %v2417, %v3357
    %v3359 = vlaneseq
    %v3360 = vshrl.u32 %v3359, 7
    %v3361 = vsub.s32 1, %v3360
    %v3362 = vrot.slane %v2424, %v3361
    %v3363 = vlaneseq
    %v3364 = vshrl.u32 %v3363, 7
    %v3365 = vsub.s32 1, %v3364
    %v3366 = vrot.slane %v2425, %v3365
    %v3367 = vlaneseq
    %v3368 = vshrl.u32 %v3367, 7
    %v3369 = vsub.s32 1, %v3368
    %v3370 = vrot.slane %v2432, %v3369
    %v3371 = vlaneseq
    %v3372 = vshrl.u32 %v3371, 7
    %v3373 = vsub.s32 1, %v3372
    %v3374 = vrot.slane %v2433, %v3373
    %v3375 = vlaneseq
    %v3376 = vshrl.u32 %v3375, 7
    %v3377 = vsub.s32 1, %v3376
    %v3378 = vrot.slane %v2440, %v3377
    %v3379 = vlaneseq
    %v3380 = vshrl.u32 %v3379, 7
    %v3381 = vsub.s32 1, %v3380
    %v3382 = vrot.slane %v2441, %v3381
    %v3383 = vlaneseq
    %v3384 = vshrl.u32 %v3383, 7
    %v3385 = vsub.s32 1, %v3384
    %v3386 = vrot.slane %v2448, %v3385
    %v3387 = vlaneseq
    %v3388 = vshrl.u32 %v3387, 7
    %v3389 = vsub.s32 1, %v3388
    %v3390 = vrot.slane %v2449, %v3389
    %v3391 = vlaneseq
    %v3392 = vshrl.u32 %v3391, 7
    %v3393 = vsub.s32 1, %v3392
    %v3394 = vrot.slane %v2456, %v3393
    %v3395 = vlaneseq
    %v3396 = vshrl.u32 %v3395, 7
    %v3397 = vsub.s32 1, %v3396
    %v3398 = vrot.slane %v2457, %v3397
    %v3399 = vlaneseq
    %v3400 = vshrl.u32 %v3399, 7
    %v3401 = vsub.s32 1, %v3400
    %v3402 = vrot.slane %v2464, %v3401
    %v3403 = vlaneseq
    %v3404 = vshrl.u32 %v3403, 7
    %v3405 = vsub.s32 1, %v3404
    %v3406 = vrot.slane %v2465, %v3405
    %v3407 = vlaneseq
    %v3408 = vshrl.u32 %v3407, 7
    %v3409 = vsub.s32 1, %v3408
    %v3410 = vrot.slane %v2472, %v3409
    %v3411 = vlaneseq
    %v3412 = vshrl.u32 %v3411, 7
    %v3413 = vsub.s32 1, %v3412
    %v3414 = vrot.slane %v2473, %v3413
    %v3415 = vlaneseq
    %v3416 = vshrl.u32 %v3415, 7
    %v3417 = vsub.s32 1, %v3416
    %v3418 = vrot.slane %v2480, %v3417
    %v3419 = vlaneseq
    %v3420 = vshrl.u32 %v3419, 7
    %v3421 = vsub.s32 1, %v3420
    %v3422 = vrot.slane %v2481, %v3421
    %v3423 = vlaneseq
    %v3424 = vshrl.u32 %v3423, 7
    %v3425 = vsub.s32 1, %v3424
    %v3426 = vrot.slane %v2488, %v3425
    %v3427 = vlaneseq
    %v3428 = vshrl.u32 %v3427, 7
    %v3429 = vsub.s32 1, %v3428
    %v3430 = vrot.slane %v2489, %v3429
    %v3431 = vlaneseq
    %v3432 = vshrl.u32 %v3431, 7
    %v3433 = vsub.s32 1, %v3432
    %v3434 = vrot.slane %v2496, %v3433
    %v3435 = vlaneseq
    %v3436 = vshrl.u32 %v3435, 7
    %v3437 = vsub.s32 1, %v3436
    %v3438 = vrot.slane %v2497, %v3437
    %v3439 = vlaneseq
    %v3440 = vshrl.u32 %v3439, 7
    %v3441 = vsub.s32 1, %v3440
    %v3442 = vrot.slane %v2504, %v3441
    %v3443 = vlaneseq
    %v3444 = vshrl.u32 %v3443, 7
    %v3445 = vsub.s32 1, %v3444
    %v3446 = vrot.slane %v2505, %v3445
    %v3447 = vlaneseq
    %v3448 = vshrl.u32 %v3447, 7
    %v3449 = vsub.s32 1, %v3448
    %v3450 = vrot.slane %v2512, %v3449
    %v3451 = vlaneseq
    %v3452 = vshrl.u32 %v3451, 7
    %v3453 = vsub.s32 1, %v3452
    %v3454 = vrot.slane %v2513, %v3453
    %v3455 = vlaneseq
    %v3456 = vshrl.u32 %v3455, 7
    %v3457 = vsub.s32 1, %v3456
    %v3458 = vrot.slane %v2520, %v3457
    %v3459 = vlaneseq
    %v3460 = vshrl.u32 %v3459, 7
    %v3461 = vsub.s32 1, %v3460
    %v3462 = vrot.slane %v2521, %v3461
    %v3463 = vlaneseq
    %v3464 = vshrl.u32 %v3463, 7
    %v3465 = vsub.s32 1, %v3464
    %v3466 = vrot.slane %v2528, %v3465
    %v3467 = vlaneseq
    %v3468 = vshrl.u32 %v3467, 7
    %v3469 = vsub.s32 1, %v3468
    %v3470 = vrot.slane %v2529, %v3469
    %v3471 = vlaneseq
    %v3472 = vshrl.u32 %v3471, 7
    %v3473 = vsub.s32 1, %v3472
    %v3474 = vrot.slane %v2536, %v3473
    %v3475 = vlaneseq
    %v3476 = vshrl.u32 %v3475, 7
    %v3477 = vsub.s32 1, %v3476
    %v3478 = vrot.slane %v2537, %v3477
    %v3479 = vlaneseq
    %v3480 = vshrl.u32 %v3479, 7
    %v3481 = vsub.s32 1, %v3480
    %v3482 = vrot.slane %v2544, %v3481
    %v3483 = vlaneseq
    %v3484 = vshrl.u32 %v3483, 7
    %v3485 = vsub.s32 1, %v3484
    %v3486 = vrot.slane %v2545, %v3485
    %v3487 = vlaneseq
    %v3488 = vshrl.u32 %v3487, 7
    %v3489 = vsub.s32 1, %v3488
    %v3490 = vrot.slane %v2552, %v3489
    %v3491 = vlaneseq
    %v3492 = vshrl.u32 %v3491, 7
    %v3493 = vsub.s32 1, %v3492
    %v3494 = vrot.slane %v2553, %v3493
    %v3495 = vlaneseq
    %v3496 = vshrl.u32 %v3495, 7
    %v3497 = vsub.s32 1, %v3496
    %v3498 = vrot.slane %v2560, %v3497
    %v3499 = vlaneseq
    %v3500 = vshrl.u32 %v3499, 7
    %v3501 = vsub.s32 1, %v3500
    %v3502 = vrot.slane %v2561, %v3501
    %v3503 = vlaneseq
    %v3504 = vshrl.u32 %v3503, 7
    %v3505 = vsub.s32 1, %v3504
    %v3506 = vrot.slane %v2568, %v3505
    %v3507 = vlaneseq
    %v3508 = vshrl.u32 %v3507, 7
    %v3509 = vsub.s32 1, %v3508
    %v3510 = vrot.slane %v2569, %v3509
    %v3511 = vlaneseq
    %v3512 = vshrl.u32 %v3511, 7
    %v3513 = vsub.s32 1, %v3512
    %v3514 = vrot.slane %v2576, %v3513
    %v3515 = vlaneseq
    %v3516 = vshrl.u32 %v3515, 7
    %v3517 = vsub.s32 1, %v3516
    %v3518 = vrot.slane %v2577, %v3517
    %v3519 = vlaneseq
    %v3520 = vshrl.u32 %v3519, 7
    %v3521 = vsub.s32 1, %v3520
    %v3522 = vrot.slane %v2584, %v3521
    %v3523 = vlaneseq
    %v3524 = vshrl.u32 %v3523, 7
    %v3525 = vsub.s32 1, %v3524
    %v3526 = vrot.slane %v2585, %v3525
    %v3527 = vlaneseq
    %v3528 = vshrl.u32 %v3527, 7
    %v3529 = vsub.s32 1, %v3528
    %v3530 = vrot.slane %v2592, %v3529
    %v3531 = vlaneseq
    %v3532 = vshrl.u32 %v3531, 7
    %v3533 = vsub.s32 1, %v3532
    %v3534 = vrot.slane %v2593, %v3533
    %v3535 = vsel %vm3170, %v3254, %v3250
    %v3536 = vsel %vm3172, %v3258, %v3535
    %v3537 = vsel %vm3174, %v3262, %v3536
    %v3538 = vsel %vm3176, %v3266, %v3537
    %v3539 = vsel %vm3178, %v3270, %v3538
    %v3540 = vsel %vm3170, %v3278, %v3274
    %v3541 = vsel %vm3172, %v3282, %v3540
    %v3542 = vsel %vm3174, %v3286, %v3541
    %v3543 = vsel %vm3176, %v3290, %v3542
    %v3544 = vsel %vm3178, %v3294, %v3543
    %v3545 = vsel %vm3170, %v3302, %v3298
    %v3546 = vsel %vm3172, %v3306, %v3545
    %v3547 = vsel %vm3174, %v3310, %v3546
    %v3548 = vsel %vm3176, %v3314, %v3547
    %v3549 = vsel %vm3178, %v3318, %v3548
    %v3550 = vsel %vm3170, %v3326, %v3322
    %v3551 = vsel %vm3172, %v3330, %v3550
    %v3552 = vsel %vm3174, %v3334, %v3551
    %v3553 = vsel %vm3176, %v3338, %v3552
    %v3554 = vsel %vm3178, %v3342, %v3553
    %v3555 = vsel %vm3170, %v3350, %v3346
    %v3556 = vsel %vm3172, %v3354, %v3555
    %v3557 = vsel %vm3174, %v3358, %v3556
    %v3558 = vsel %vm3176, %v3362, %v3557
    %v3559 = vsel %vm3178, %v3366, %v3558
    %v3560 = vsel %vm3170, %v3374, %v3370
    %v3561 = vsel %vm3172, %v3378, %v3560
    %v3562 = vsel %vm3174, %v3382, %v3561
    %v3563 = vsel %vm3176, %v3386, %v3562
    %v3564 = vsel %vm3178, %v3390, %v3563
    %v3565 = vsel %vm3170, %v3398, %v3394
    %v3566 = vsel %vm3172, %v3402, %v3565
    %v3567 = vsel %vm3174, %v3406, %v3566
    %v3568 = vsel %vm3176, %v3410, %v3567
    %v3569 = vsel %vm3178, %v3414, %v3568
    %v3570 = vsel %vm3170, %v3422, %v3418
    %v3571 = vsel %vm3172, %v3426, %v3570
    %v3572 = vsel %vm3174, %v3430, %v3571
    %v3573 = vsel %vm3176, %v3434, %v3572
    %v3574 = vsel %vm3178, %v3438, %v3573
    %v3575 = vsel %vm3170, %v3446, %v3442
    %v3576 = vsel %vm3172, %v3450, %v3575
    %v3577 = vsel %vm3174, %v3454, %v3576
    %v3578 = vsel %vm3176, %v3458, %v3577
    %v3579 = vsel %vm3178, %v3462, %v3578
    %v3580 = vsel %vm3170, %v3470, %v3466
    %v3581 = vsel %vm3172, %v3474, %v3580
    %v3582 = vsel %vm3174, %v3478, %v3581
    %v3583 = vsel %vm3176, %v3482, %v3582
    %v3584 = vsel %vm3178, %v3486, %v3583
    %v3585 = vsel %vm3170, %v3494, %v3490
    %v3586 = vsel %vm3172, %v3498, %v3585
    %v3587 = vsel %vm3174, %v3502, %v3586
    %v3588 = vsel %vm3176, %v3506, %v3587
    %v3589 = vsel %vm3178, %v3510, %v3588
    %v3590 = vsel %vm3170, %v3518, %v3514
    %v3591 = vsel %vm3172, %v3522, %v3590
    %v3592 = vsel %vm3174, %v3526, %v3591
    %v3593 = vsel %vm3176, %v3530, %v3592
    %v3594 = vsel %vm3178, %v3534, %v3593
    %3595 = vrot.lane.b32.xlu0 %v3539, 32
    %v3596 = vpop.permute.xlu0 %3595
    %3597 = vrot.lane.b32.xlu0 %v3544, 32
    %v3598 = vpop.permute.xlu0 %3597
    %3599 = vrot.lane.b32.xlu0 %v3549, 32
    %v3600 = vpop.permute.xlu0 %3599
    %3601 = vrot.lane.b32.xlu0 %v3554, 32
    %v3602 = vpop.permute.xlu0 %3601
    %3603 = vrot.lane.b32.xlu0 %v3559, 32
    %v3604 = vpop.permute.xlu0 %3603
    %3605 = vrot.lane.b32.xlu0 %v3564, 32
    %v3606 = vpop.permute.xlu0 %3605
    %3607 = vrot.lane.b32.xlu0 %v3569, 32
    %v3608 = vpop.permute.xlu0 %3607
    %3609 = vrot.lane.b32.xlu0 %v3574, 32
    %v3610 = vpop.permute.xlu0 %3609
    %3611 = vrot.lane.b32.xlu0 %v3579, 32
    %v3612 = vpop.permute.xlu0 %3611
    %3613 = vrot.lane.b32.xlu0 %v3584, 32
    %v3614 = vpop.permute.xlu0 %3613
    %3615 = vrot.lane.b32.xlu0 %v3589, 32
    %v3616 = vpop.permute.xlu0 %3615
    %3617 = vrot.lane.b32.xlu0 %v3594, 32
    %v3618 = vpop.permute.xlu0 %3617
    %v3631 = vlaneseq
    %v3632 = vshrl.u32 %v3631, 7
    %v3633 = vsub.s32 0, %v3632
    %v3634 = vrot.slane %v2600, %v3633
    %v3635 = vlaneseq
    %v3636 = vshrl.u32 %v3635, 7
    %v3637 = vsub.s32 0, %v3636
    %v3638 = vrot.slane %v2601, %v3637
    %v3639 = vlaneseq
    %v3640 = vshrl.u32 %v3639, 7
    %v3641 = vsub.s32 0, %v3640
    %v3642 = vrot.slane %v2608, %v3641
    %v3643 = vlaneseq
    %v3644 = vshrl.u32 %v3643, 7
    %v3645 = vsub.s32 0, %v3644
    %v3646 = vrot.slane %v2609, %v3645
    %v3647 = vlaneseq
    %v3648 = vshrl.u32 %v3647, 7
    %v3649 = vsub.s32 0, %v3648
    %v3650 = vrot.slane %v2616, %v3649
    %v3651 = vlaneseq
    %v3652 = vshrl.u32 %v3651, 7
    %v3653 = vsub.s32 0, %v3652
    %v3654 = vrot.slane %v2617, %v3653
    %v3655 = vlaneseq
    %v3656 = vshrl.u32 %v3655, 7
    %v3657 = vsub.s32 0, %v3656
    %v3658 = vrot.slane %v2624, %v3657
    %v3659 = vlaneseq
    %v3660 = vshrl.u32 %v3659, 7
    %v3661 = vsub.s32 0, %v3660
    %v3662 = vrot.slane %v2625, %v3661
    %v3663 = vlaneseq
    %v3664 = vshrl.u32 %v3663, 7
    %v3665 = vsub.s32 0, %v3664
    %v3666 = vrot.slane %v2632, %v3665
    %v3667 = vlaneseq
    %v3668 = vshrl.u32 %v3667, 7
    %v3669 = vsub.s32 0, %v3668
    %v3670 = vrot.slane %v2633, %v3669
    %v3671 = vlaneseq
    %v3672 = vshrl.u32 %v3671, 7
    %v3673 = vsub.s32 0, %v3672
    %v3674 = vrot.slane %v2640, %v3673
    %v3675 = vlaneseq
    %v3676 = vshrl.u32 %v3675, 7
    %v3677 = vsub.s32 0, %v3676
    %v3678 = vrot.slane %v2641, %v3677
    %v3679 = vlaneseq
    %v3680 = vshrl.u32 %v3679, 7
    %v3681 = vsub.s32 0, %v3680
    %v3682 = vrot.slane %v2648, %v3681
    %v3683 = vlaneseq
    %v3684 = vshrl.u32 %v3683, 7
    %v3685 = vsub.s32 0, %v3684
    %v3686 = vrot.slane %v2649, %v3685
    %v3687 = vlaneseq
    %v3688 = vshrl.u32 %v3687, 7
    %v3689 = vsub.s32 0, %v3688
    %v3690 = vrot.slane %v2656, %v3689
    %v3691 = vlaneseq
    %v3692 = vshrl.u32 %v3691, 7
    %v3693 = vsub.s32 0, %v3692
    %v3694 = vrot.slane %v2657, %v3693
    %v3695 = vlaneseq
    %v3696 = vshrl.u32 %v3695, 7
    %v3697 = vsub.s32 0, %v3696
    %v3698 = vrot.slane %v2664, %v3697
    %v3699 = vlaneseq
    %v3700 = vshrl.u32 %v3699, 7
    %v3701 = vsub.s32 0, %v3700
    %v3702 = vrot.slane %v2665, %v3701
    %v3703 = vlaneseq
    %v3704 = vshrl.u32 %v3703, 7
    %v3705 = vsub.s32 0, %v3704
    %v3706 = vrot.slane %v2672, %v3705
    %v3707 = vlaneseq
    %v3708 = vshrl.u32 %v3707, 7
    %v3709 = vsub.s32 0, %v3708
    %v3710 = vrot.slane %v2673, %v3709
    %v3711 = vlaneseq
    %v3712 = vshrl.u32 %v3711, 7
    %v3713 = vsub.s32 0, %v3712
    %v3714 = vrot.slane %v2680, %v3713
    %v3715 = vlaneseq
    %v3716 = vshrl.u32 %v3715, 7
    %v3717 = vsub.s32 0, %v3716
    %v3718 = vrot.slane %v2681, %v3717
    %v3719 = vlaneseq
    %v3720 = vshrl.u32 %v3719, 7
    %v3721 = vsub.s32 0, %v3720
    %v3722 = vrot.slane %v2688, %v3721
    %v3723 = vlaneseq
    %v3724 = vshrl.u32 %v3723, 7
    %v3725 = vsub.s32 0, %v3724
    %v3726 = vrot.slane %v2689, %v3725
    %v3727 = vlaneseq
    %v3728 = vshrl.u32 %v3727, 7
    %v3729 = vsub.s32 0, %v3728
    %v3730 = vrot.slane %v2696, %v3729
    %v3731 = vlaneseq
    %v3732 = vshrl.u32 %v3731, 7
    %v3733 = vsub.s32 0, %v3732
    %v3734 = vrot.slane %v2697, %v3733
    %v3735 = vlaneseq
    %v3736 = vshrl.u32 %v3735, 7
    %v3737 = vsub.s32 0, %v3736
    %v3738 = vrot.slane %v2704, %v3737
    %v3739 = vlaneseq
    %v3740 = vshrl.u32 %v3739, 7
    %v3741 = vsub.s32 0, %v3740
    %v3742 = vrot.slane %v2705, %v3741
    %v3743 = vlaneseq
    %v3744 = vshrl.u32 %v3743, 7
    %v3745 = vsub.s32 0, %v3744
    %v3746 = vrot.slane %v2712, %v3745
    %v3747 = vlaneseq
    %v3748 = vshrl.u32 %v3747, 7
    %v3749 = vsub.s32 0, %v3748
    %v3750 = vrot.slane %v2713, %v3749
    %v3751 = vlaneseq
    %v3752 = vshrl.u32 %v3751, 7
    %v3753 = vsub.s32 0, %v3752
    %v3754 = vrot.slane %v2720, %v3753
    %v3755 = vlaneseq
    %v3756 = vshrl.u32 %v3755, 7
    %v3757 = vsub.s32 0, %v3756
    %v3758 = vrot.slane %v2721, %v3757
    %v3759 = vlaneseq
    %v3760 = vshrl.u32 %v3759, 7
    %v3761 = vsub.s32 0, %v3760
    %v3762 = vrot.slane %v2728, %v3761
    %v3763 = vlaneseq
    %v3764 = vshrl.u32 %v3763, 7
    %v3765 = vsub.s32 0, %v3764
    %v3766 = vrot.slane %v2729, %v3765
    %v3767 = vlaneseq
    %v3768 = vshrl.u32 %v3767, 7
    %v3769 = vsub.s32 0, %v3768
    %v3770 = vrot.slane %v2736, %v3769
    %v3771 = vlaneseq
    %v3772 = vshrl.u32 %v3771, 7
    %v3773 = vsub.s32 0, %v3772
    %v3774 = vrot.slane %v2737, %v3773
    %v3775 = vlaneseq
    %v3776 = vshrl.u32 %v3775, 7
    %v3777 = vsub.s32 0, %v3776
    %v3778 = vrot.slane %v2744, %v3777
    %v3779 = vlaneseq
    %v3780 = vshrl.u32 %v3779, 7
    %v3781 = vsub.s32 0, %v3780
    %v3782 = vrot.slane %v2745, %v3781
    %v3783 = vlaneseq
    %v3784 = vshrl.u32 %v3783, 7
    %v3785 = vsub.s32 0, %v3784
    %v3786 = vrot.slane %v2752, %v3785
    %v3787 = vlaneseq
    %v3788 = vshrl.u32 %v3787, 7
    %v3789 = vsub.s32 0, %v3788
    %v3790 = vrot.slane %v2753, %v3789
    %v3791 = vlaneseq
    %v3792 = vshrl.u32 %v3791, 7
    %v3793 = vsub.s32 0, %v3792
    %v3794 = vrot.slane %v2760, %v3793
    %v3795 = vlaneseq
    %v3796 = vshrl.u32 %v3795, 7
    %v3797 = vsub.s32 0, %v3796
    %v3798 = vrot.slane %v2761, %v3797
    %v3799 = vlaneseq
    %v3800 = vshrl.u32 %v3799, 7
    %v3801 = vsub.s32 0, %v3800
    %v3802 = vrot.slane %v2768, %v3801
    %v3803 = vlaneseq
    %v3804 = vshrl.u32 %v3803, 7
    %v3805 = vsub.s32 0, %v3804
    %v3806 = vrot.slane %v2769, %v3805
    %v3807 = vlaneseq
    %v3808 = vshrl.u32 %v3807, 7
    %v3809 = vsub.s32 0, %v3808
    %v3810 = vrot.slane %v2776, %v3809
    %v3811 = vlaneseq
    %v3812 = vshrl.u32 %v3811, 7
    %v3813 = vsub.s32 0, %v3812
    %v3814 = vrot.slane %v2777, %v3813
    %v3815 = vlaneseq
    %v3816 = vshrl.u32 %v3815, 7
    %v3817 = vsub.s32 0, %v3816
    %v3818 = vrot.slane %v2784, %v3817
    %v3819 = vlaneseq
    %v3820 = vshrl.u32 %v3819, 7
    %v3821 = vsub.s32 0, %v3820
    %v3822 = vrot.slane %v2785, %v3821
    %v3823 = vlaneseq
    %v3824 = vshrl.u32 %v3823, 7
    %v3825 = vsub.s32 0, %v3824
    %v3826 = vrot.slane %v2792, %v3825
    %v3827 = vlaneseq
    %v3828 = vshrl.u32 %v3827, 7
    %v3829 = vsub.s32 0, %v3828
    %v3830 = vrot.slane %v2793, %v3829
    %v3831 = vlaneseq
    %v3832 = vshrl.u32 %v3831, 7
    %v3833 = vsub.s32 0, %v3832
    %v3834 = vrot.slane %v2800, %v3833
    %v3835 = vlaneseq
    %v3836 = vshrl.u32 %v3835, 7
    %v3837 = vsub.s32 0, %v3836
    %v3838 = vrot.slane %v2801, %v3837
    %v3839 = vlaneseq
    %v3840 = vshrl.u32 %v3839, 7
    %v3841 = vsub.s32 0, %v3840
    %v3842 = vrot.slane %v2808, %v3841
    %v3843 = vlaneseq
    %v3844 = vshrl.u32 %v3843, 7
    %v3845 = vsub.s32 0, %v3844
    %v3846 = vrot.slane %v2809, %v3845
    %v3847 = vlaneseq
    %v3848 = vshrl.u32 %v3847, 7
    %v3849 = vsub.s32 0, %v3848
    %v3850 = vrot.slane %v2816, %v3849
    %v3851 = vlaneseq
    %v3852 = vshrl.u32 %v3851, 7
    %v3853 = vsub.s32 0, %v3852
    %v3854 = vrot.slane %v2817, %v3853
    %v3855 = vlaneseq
    %v3856 = vshrl.u32 %v3855, 7
    %v3857 = vsub.s32 0, %v3856
    %v3858 = vrot.slane %v2824, %v3857
    %v3859 = vlaneseq
    %v3860 = vshrl.u32 %v3859, 7
    %v3861 = vsub.s32 0, %v3860
    %v3862 = vrot.slane %v2825, %v3861
    %v3863 = vlaneseq
    %v3864 = vshrl.u32 %v3863, 7
    %v3865 = vsub.s32 0, %v3864
    %v3866 = vrot.slane %v2832, %v3865
    %v3867 = vlaneseq
    %v3868 = vshrl.u32 %v3867, 7
    %v3869 = vsub.s32 0, %v3868
    %v3870 = vrot.slane %v2833, %v3869
    %v3871 = vlaneseq
    %v3872 = vshrl.u32 %v3871, 7
    %v3873 = vsub.s32 0, %v3872
    %v3874 = vrot.slane %v2840, %v3873
    %v3875 = vlaneseq
    %v3876 = vshrl.u32 %v3875, 7
    %v3877 = vsub.s32 0, %v3876
    %v3878 = vrot.slane %v2841, %v3877
    %v3879 = vlaneseq
    %v3880 = vshrl.u32 %v3879, 7
    %v3881 = vsub.s32 0, %v3880
    %v3882 = vrot.slane %v2848, %v3881
    %v3883 = vlaneseq
    %v3884 = vshrl.u32 %v3883, 7
    %v3885 = vsub.s32 0, %v3884
    %v3886 = vrot.slane %v2849, %v3885
    %v3887 = vlaneseq
    %v3888 = vshrl.u32 %v3887, 7
    %v3889 = vsub.s32 0, %v3888
    %v3890 = vrot.slane %v2856, %v3889
    %v3891 = vlaneseq
    %v3892 = vshrl.u32 %v3891, 7
    %v3893 = vsub.s32 0, %v3892
    %v3894 = vrot.slane %v2857, %v3893
    %v3895 = vlaneseq
    %v3896 = vshrl.u32 %v3895, 7
    %v3897 = vsub.s32 0, %v3896
    %v3898 = vrot.slane %v2864, %v3897
    %v3899 = vlaneseq
    %v3900 = vshrl.u32 %v3899, 7
    %v3901 = vsub.s32 0, %v3900
    %v3902 = vrot.slane %v2865, %v3901
    %v3903 = vlaneseq
    %v3904 = vshrl.u32 %v3903, 7
    %v3905 = vsub.s32 0, %v3904
    %v3906 = vrot.slane %v2872, %v3905
    %v3907 = vlaneseq
    %v3908 = vshrl.u32 %v3907, 7
    %v3909 = vsub.s32 0, %v3908
    %v3910 = vrot.slane %v2873, %v3909
    %v3911 = vlaneseq
    %v3912 = vshrl.u32 %v3911, 7
    %v3913 = vsub.s32 0, %v3912
    %v3914 = vrot.slane %v2880, %v3913
    %v3915 = vlaneseq
    %v3916 = vshrl.u32 %v3915, 7
    %v3917 = vsub.s32 0, %v3916
    %v3918 = vrot.slane %v2881, %v3917
    %v3919 = vsel %vm3170, %v3638, %v3634
    %v3920 = vsel %vm3172, %v3642, %v3919
    %v3921 = vsel %vm3174, %v3646, %v3920
    %v3922 = vsel %vm3176, %v3650, %v3921
    %v3923 = vsel %vm3178, %v3654, %v3922
    %v3924 = vsel %vm3170, %v3662, %v3658
    %v3925 = vsel %vm3172, %v3666, %v3924
    %v3926 = vsel %vm3174, %v3670, %v3925
    %v3927 = vsel %vm3176, %v3674, %v3926
    %v3928 = vsel %vm3178, %v3678, %v3927
    %v3929 = vsel %vm3170, %v3686, %v3682
    %v3930 = vsel %vm3172, %v3690, %v3929
    %v3931 = vsel %vm3174, %v3694, %v3930
    %v3932 = vsel %vm3176, %v3698, %v3931
    %v3933 = vsel %vm3178, %v3702, %v3932
    %v3934 = vsel %vm3170, %v3710, %v3706
    %v3935 = vsel %vm3172, %v3714, %v3934
    %v3936 = vsel %vm3174, %v3718, %v3935
    %v3937 = vsel %vm3176, %v3722, %v3936
    %v3938 = vsel %vm3178, %v3726, %v3937
    %v3939 = vsel %vm3170, %v3734, %v3730
    %v3940 = vsel %vm3172, %v3738, %v3939
    %v3941 = vsel %vm3174, %v3742, %v3940
    %v3942 = vsel %vm3176, %v3746, %v3941
    %v3943 = vsel %vm3178, %v3750, %v3942
    %v3944 = vsel %vm3170, %v3758, %v3754
    %v3945 = vsel %vm3172, %v3762, %v3944
    %v3946 = vsel %vm3174, %v3766, %v3945
    %v3947 = vsel %vm3176, %v3770, %v3946
    %v3948 = vsel %vm3178, %v3774, %v3947
    %v3949 = vsel %vm3170, %v3782, %v3778
    %v3950 = vsel %vm3172, %v3786, %v3949
    %v3951 = vsel %vm3174, %v3790, %v3950
    %v3952 = vsel %vm3176, %v3794, %v3951
    %v3953 = vsel %vm3178, %v3798, %v3952
    %v3954 = vsel %vm3170, %v3806, %v3802
    %v3955 = vsel %vm3172, %v3810, %v3954
    %v3956 = vsel %vm3174, %v3814, %v3955
    %v3957 = vsel %vm3176, %v3818, %v3956
    %v3958 = vsel %vm3178, %v3822, %v3957
    %v3959 = vsel %vm3170, %v3830, %v3826
    %v3960 = vsel %vm3172, %v3834, %v3959
    %v3961 = vsel %vm3174, %v3838, %v3960
    %v3962 = vsel %vm3176, %v3842, %v3961
    %v3963 = vsel %vm3178, %v3846, %v3962
    %v3964 = vsel %vm3170, %v3854, %v3850
    %v3965 = vsel %vm3172, %v3858, %v3964
    %v3966 = vsel %vm3174, %v3862, %v3965
    %v3967 = vsel %vm3176, %v3866, %v3966
    %v3968 = vsel %vm3178, %v3870, %v3967
    %v3969 = vsel %vm3170, %v3878, %v3874
    %v3970 = vsel %vm3172, %v3882, %v3969
    %v3971 = vsel %vm3174, %v3886, %v3970
    %v3972 = vsel %vm3176, %v3890, %v3971
    %v3973 = vsel %vm3178, %v3894, %v3972
    %v3974 = vsel %vm3170, %v3902, %v3898
    %v3975 = vsel %vm3172, %v3906, %v3974
    %v3976 = vsel %vm3174, %v3910, %v3975
    %v3977 = vsel %vm3176, %v3914, %v3976
    %v3978 = vsel %vm3178, %v3918, %v3977
    %3979 = vrot.lane.b32.xlu0 %v3923, 64
    %v3980 = vpop.permute.xlu0 %3979
    %3981 = vrot.lane.b32.xlu0 %v3928, 64
    %v3982 = vpop.permute.xlu0 %3981
    %3983 = vrot.lane.b32.xlu0 %v3933, 64
    %v3984 = vpop.permute.xlu0 %3983
    %3985 = vrot.lane.b32.xlu0 %v3938, 64
    %v3986 = vpop.permute.xlu0 %3985
    %3987 = vrot.lane.b32.xlu0 %v3943, 64
    %v3988 = vpop.permute.xlu0 %3987
    %3989 = vrot.lane.b32.xlu0 %v3948, 64
    %v3990 = vpop.permute.xlu0 %3989
    %3991 = vrot.lane.b32.xlu0 %v3953, 64
    %v3992 = vpop.permute.xlu0 %3991
    %3993 = vrot.lane.b32.xlu0 %v3958, 64
    %v3994 = vpop.permute.xlu0 %3993
    %3995 = vrot.lane.b32.xlu0 %v3963, 64
    %v3996 = vpop.permute.xlu0 %3995
    %3997 = vrot.lane.b32.xlu0 %v3968, 64
    %v3998 = vpop.permute.xlu0 %3997
    %3999 = vrot.lane.b32.xlu0 %v3973, 64
    %v4000 = vpop.permute.xlu0 %3999
    %4001 = vrot.lane.b32.xlu0 %v3978, 64
    %v4002 = vpop.permute.xlu0 %4001
    %v4015 = vlaneseq
    %v4016 = vshrl.u32 %v4015, 7
    %v4017 = vsub.s32 1, %v4016
    %v4018 = vrot.slane %v2600, %v4017
    %v4019 = vlaneseq
    %v4020 = vshrl.u32 %v4019, 7
    %v4021 = vsub.s32 1, %v4020
    %v4022 = vrot.slane %v2601, %v4021
    %v4023 = vlaneseq
    %v4024 = vshrl.u32 %v4023, 7
    %v4025 = vsub.s32 1, %v4024
    %v4026 = vrot.slane %v2608, %v4025
    %v4027 = vlaneseq
    %v4028 = vshrl.u32 %v4027, 7
    %v4029 = vsub.s32 1, %v4028
    %v4030 = vrot.slane %v2609, %v4029
    %v4031 = vlaneseq
    %v4032 = vshrl.u32 %v4031, 7
    %v4033 = vsub.s32 1, %v4032
    %v4034 = vrot.slane %v2616, %v4033
    %v4035 = vlaneseq
    %v4036 = vshrl.u32 %v4035, 7
    %v4037 = vsub.s32 1, %v4036
    %v4038 = vrot.slane %v2617, %v4037
    %v4039 = vlaneseq
    %v4040 = vshrl.u32 %v4039, 7
    %v4041 = vsub.s32 1, %v4040
    %v4042 = vrot.slane %v2624, %v4041
    %v4043 = vlaneseq
    %v4044 = vshrl.u32 %v4043, 7
    %v4045 = vsub.s32 1, %v4044
    %v4046 = vrot.slane %v2625, %v4045
    %v4047 = vlaneseq
    %v4048 = vshrl.u32 %v4047, 7
    %v4049 = vsub.s32 1, %v4048
    %v4050 = vrot.slane %v2632, %v4049
    %v4051 = vlaneseq
    %v4052 = vshrl.u32 %v4051, 7
    %v4053 = vsub.s32 1, %v4052
    %v4054 = vrot.slane %v2633, %v4053
    %v4055 = vlaneseq
    %v4056 = vshrl.u32 %v4055, 7
    %v4057 = vsub.s32 1, %v4056
    %v4058 = vrot.slane %v2640, %v4057
    %v4059 = vlaneseq
    %v4060 = vshrl.u32 %v4059, 7
    %v4061 = vsub.s32 1, %v4060
    %v4062 = vrot.slane %v2641, %v4061
    %v4063 = vlaneseq
    %v4064 = vshrl.u32 %v4063, 7
    %v4065 = vsub.s32 1, %v4064
    %v4066 = vrot.slane %v2648, %v4065
    %v4067 = vlaneseq
    %v4068 = vshrl.u32 %v4067, 7
    %v4069 = vsub.s32 1, %v4068
    %v4070 = vrot.slane %v2649, %v4069
    %v4071 = vlaneseq
    %v4072 = vshrl.u32 %v4071, 7
    %v4073 = vsub.s32 1, %v4072
    %v4074 = vrot.slane %v2656, %v4073
    %v4075 = vlaneseq
    %v4076 = vshrl.u32 %v4075, 7
    %v4077 = vsub.s32 1, %v4076
    %v4078 = vrot.slane %v2657, %v4077
    %v4079 = vlaneseq
    %v4080 = vshrl.u32 %v4079, 7
    %v4081 = vsub.s32 1, %v4080
    %v4082 = vrot.slane %v2664, %v4081
    %v4083 = vlaneseq
    %v4084 = vshrl.u32 %v4083, 7
    %v4085 = vsub.s32 1, %v4084
    %v4086 = vrot.slane %v2665, %v4085
    %v4087 = vlaneseq
    %v4088 = vshrl.u32 %v4087, 7
    %v4089 = vsub.s32 1, %v4088
    %v4090 = vrot.slane %v2672, %v4089
    %v4091 = vlaneseq
    %v4092 = vshrl.u32 %v4091, 7
    %v4093 = vsub.s32 1, %v4092
    %v4094 = vrot.slane %v2673, %v4093
    %v4095 = vlaneseq
    %v4096 = vshrl.u32 %v4095, 7
    %v4097 = vsub.s32 1, %v4096
    %v4098 = vrot.slane %v2680, %v4097
    %v4099 = vlaneseq
    %v4100 = vshrl.u32 %v4099, 7
    %v4101 = vsub.s32 1, %v4100
    %v4102 = vrot.slane %v2681, %v4101
    %v4103 = vlaneseq
    %v4104 = vshrl.u32 %v4103, 7
    %v4105 = vsub.s32 1, %v4104
    %v4106 = vrot.slane %v2688, %v4105
    %v4107 = vlaneseq
    %v4108 = vshrl.u32 %v4107, 7
    %v4109 = vsub.s32 1, %v4108
    %v4110 = vrot.slane %v2689, %v4109
    %v4111 = vlaneseq
    %v4112 = vshrl.u32 %v4111, 7
    %v4113 = vsub.s32 1, %v4112
    %v4114 = vrot.slane %v2696, %v4113
    %v4115 = vlaneseq
    %v4116 = vshrl.u32 %v4115, 7
    %v4117 = vsub.s32 1, %v4116
    %v4118 = vrot.slane %v2697, %v4117
    %v4119 = vlaneseq
    %v4120 = vshrl.u32 %v4119, 7
    %v4121 = vsub.s32 1, %v4120
    %v4122 = vrot.slane %v2704, %v4121
    %v4123 = vlaneseq
    %v4124 = vshrl.u32 %v4123, 7
    %v4125 = vsub.s32 1, %v4124
    %v4126 = vrot.slane %v2705, %v4125
    %v4127 = vlaneseq
    %v4128 = vshrl.u32 %v4127, 7
    %v4129 = vsub.s32 1, %v4128
    %v4130 = vrot.slane %v2712, %v4129
    %v4131 = vlaneseq
    %v4132 = vshrl.u32 %v4131, 7
    %v4133 = vsub.s32 1, %v4132
    %v4134 = vrot.slane %v2713, %v4133
    %v4135 = vlaneseq
    %v4136 = vshrl.u32 %v4135, 7
    %v4137 = vsub.s32 1, %v4136
    %v4138 = vrot.slane %v2720, %v4137
    %v4139 = vlaneseq
    %v4140 = vshrl.u32 %v4139, 7
    %v4141 = vsub.s32 1, %v4140
    %v4142 = vrot.slane %v2721, %v4141
    %v4143 = vlaneseq
    %v4144 = vshrl.u32 %v4143, 7
    %v4145 = vsub.s32 1, %v4144
    %v4146 = vrot.slane %v2728, %v4145
    %v4147 = vlaneseq
    %v4148 = vshrl.u32 %v4147, 7
    %v4149 = vsub.s32 1, %v4148
    %v4150 = vrot.slane %v2729, %v4149
    %v4151 = vlaneseq
    %v4152 = vshrl.u32 %v4151, 7
    %v4153 = vsub.s32 1, %v4152
    %v4154 = vrot.slane %v2736, %v4153
    %v4155 = vlaneseq
    %v4156 = vshrl.u32 %v4155, 7
    %v4157 = vsub.s32 1, %v4156
    %v4158 = vrot.slane %v2737, %v4157
    %v4159 = vlaneseq
    %v4160 = vshrl.u32 %v4159, 7
    %v4161 = vsub.s32 1, %v4160
    %v4162 = vrot.slane %v2744, %v4161
    %v4163 = vlaneseq
    %v4164 = vshrl.u32 %v4163, 7
    %v4165 = vsub.s32 1, %v4164
    %v4166 = vrot.slane %v2745, %v4165
    %v4167 = vlaneseq
    %v4168 = vshrl.u32 %v4167, 7
    %v4169 = vsub.s32 1, %v4168
    %v4170 = vrot.slane %v2752, %v4169
    %v4171 = vlaneseq
    %v4172 = vshrl.u32 %v4171, 7
    %v4173 = vsub.s32 1, %v4172
    %v4174 = vrot.slane %v2753, %v4173
    %v4175 = vlaneseq
    %v4176 = vshrl.u32 %v4175, 7
    %v4177 = vsub.s32 1, %v4176
    %v4178 = vrot.slane %v2760, %v4177
    %v4179 = vlaneseq
    %v4180 = vshrl.u32 %v4179, 7
    %v4181 = vsub.s32 1, %v4180
    %v4182 = vrot.slane %v2761, %v4181
    %v4183 = vlaneseq
    %v4184 = vshrl.u32 %v4183, 7
    %v4185 = vsub.s32 1, %v4184
    %v4186 = vrot.slane %v2768, %v4185
    %v4187 = vlaneseq
    %v4188 = vshrl.u32 %v4187, 7
    %v4189 = vsub.s32 1, %v4188
    %v4190 = vrot.slane %v2769, %v4189
    %v4191 = vlaneseq
    %v4192 = vshrl.u32 %v4191, 7
    %v4193 = vsub.s32 1, %v4192
    %v4194 = vrot.slane %v2776, %v4193
    %v4195 = vlaneseq
    %v4196 = vshrl.u32 %v4195, 7
    %v4197 = vsub.s32 1, %v4196
    %v4198 = vrot.slane %v2777, %v4197
    %v4199 = vlaneseq
    %v4200 = vshrl.u32 %v4199, 7
    %v4201 = vsub.s32 1, %v4200
    %v4202 = vrot.slane %v2784, %v4201
    %v4203 = vlaneseq
    %v4204 = vshrl.u32 %v4203, 7
    %v4205 = vsub.s32 1, %v4204
    %v4206 = vrot.slane %v2785, %v4205
    %v4207 = vlaneseq
    %v4208 = vshrl.u32 %v4207, 7
    %v4209 = vsub.s32 1, %v4208
    %v4210 = vrot.slane %v2792, %v4209
    %v4211 = vlaneseq
    %v4212 = vshrl.u32 %v4211, 7
    %v4213 = vsub.s32 1, %v4212
    %v4214 = vrot.slane %v2793, %v4213
    %v4215 = vlaneseq
    %v4216 = vshrl.u32 %v4215, 7
    %v4217 = vsub.s32 1, %v4216
    %v4218 = vrot.slane %v2800, %v4217
    %v4219 = vlaneseq
    %v4220 = vshrl.u32 %v4219, 7
    %v4221 = vsub.s32 1, %v4220
    %v4222 = vrot.slane %v2801, %v4221
    %v4223 = vlaneseq
    %v4224 = vshrl.u32 %v4223, 7
    %v4225 = vsub.s32 1, %v4224
    %v4226 = vrot.slane %v2808, %v4225
    %v4227 = vlaneseq
    %v4228 = vshrl.u32 %v4227, 7
    %v4229 = vsub.s32 1, %v4228
    %v4230 = vrot.slane %v2809, %v4229
    %v4231 = vlaneseq
    %v4232 = vshrl.u32 %v4231, 7
    %v4233 = vsub.s32 1, %v4232
    %v4234 = vrot.slane %v2816, %v4233
    %v4235 = vlaneseq
    %v4236 = vshrl.u32 %v4235, 7
    %v4237 = vsub.s32 1, %v4236
    %v4238 = vrot.slane %v2817, %v4237
    %v4239 = vlaneseq
    %v4240 = vshrl.u32 %v4239, 7
    %v4241 = vsub.s32 1, %v4240
    %v4242 = vrot.slane %v2824, %v4241
    %v4243 = vlaneseq
    %v4244 = vshrl.u32 %v4243, 7
    %v4245 = vsub.s32 1, %v4244
    %v4246 = vrot.slane %v2825, %v4245
    %v4247 = vlaneseq
    %v4248 = vshrl.u32 %v4247, 7
    %v4249 = vsub.s32 1, %v4248
    %v4250 = vrot.slane %v2832, %v4249
    %v4251 = vlaneseq
    %v4252 = vshrl.u32 %v4251, 7
    %v4253 = vsub.s32 1, %v4252
    %v4254 = vrot.slane %v2833, %v4253
    %v4255 = vlaneseq
    %v4256 = vshrl.u32 %v4255, 7
    %v4257 = vsub.s32 1, %v4256
    %v4258 = vrot.slane %v2840, %v4257
    %v4259 = vlaneseq
    %v4260 = vshrl.u32 %v4259, 7
    %v4261 = vsub.s32 1, %v4260
    %v4262 = vrot.slane %v2841, %v4261
    %v4263 = vlaneseq
    %v4264 = vshrl.u32 %v4263, 7
    %v4265 = vsub.s32 1, %v4264
    %v4266 = vrot.slane %v2848, %v4265
    %v4267 = vlaneseq
    %v4268 = vshrl.u32 %v4267, 7
    %v4269 = vsub.s32 1, %v4268
    %v4270 = vrot.slane %v2849, %v4269
    %v4271 = vlaneseq
    %v4272 = vshrl.u32 %v4271, 7
    %v4273 = vsub.s32 1, %v4272
    %v4274 = vrot.slane %v2856, %v4273
    %v4275 = vlaneseq
    %v4276 = vshrl.u32 %v4275, 7
    %v4277 = vsub.s32 1, %v4276
    %v4278 = vrot.slane %v2857, %v4277
    %v4279 = vlaneseq
    %v4280 = vshrl.u32 %v4279, 7
    %v4281 = vsub.s32 1, %v4280
    %v4282 = vrot.slane %v2864, %v4281
    %v4283 = vlaneseq
    %v4284 = vshrl.u32 %v4283, 7
    %v4285 = vsub.s32 1, %v4284
    %v4286 = vrot.slane %v2865, %v4285
    %v4287 = vlaneseq
    %v4288 = vshrl.u32 %v4287, 7
    %v4289 = vsub.s32 1, %v4288
    %v4290 = vrot.slane %v2872, %v4289
    %v4291 = vlaneseq
    %v4292 = vshrl.u32 %v4291, 7
    %v4293 = vsub.s32 1, %v4292
    %v4294 = vrot.slane %v2873, %v4293
    %v4295 = vlaneseq
    %v4296 = vshrl.u32 %v4295, 7
    %v4297 = vsub.s32 1, %v4296
    %v4298 = vrot.slane %v2880, %v4297
    %v4299 = vlaneseq
    %v4300 = vshrl.u32 %v4299, 7
    %v4301 = vsub.s32 1, %v4300
    %v4302 = vrot.slane %v2881, %v4301
    %v4303 = vsel %vm3170, %v4022, %v4018
    %v4304 = vsel %vm3172, %v4026, %v4303
    %v4305 = vsel %vm3174, %v4030, %v4304
    %v4306 = vsel %vm3176, %v4034, %v4305
    %v4307 = vsel %vm3178, %v4038, %v4306
    %v4308 = vsel %vm3170, %v4046, %v4042
    %v4309 = vsel %vm3172, %v4050, %v4308
    %v4310 = vsel %vm3174, %v4054, %v4309
    %v4311 = vsel %vm3176, %v4058, %v4310
    %v4312 = vsel %vm3178, %v4062, %v4311
    %v4313 = vsel %vm3170, %v4070, %v4066
    %v4314 = vsel %vm3172, %v4074, %v4313
    %v4315 = vsel %vm3174, %v4078, %v4314
    %v4316 = vsel %vm3176, %v4082, %v4315
    %v4317 = vsel %vm3178, %v4086, %v4316
    %v4318 = vsel %vm3170, %v4094, %v4090
    %v4319 = vsel %vm3172, %v4098, %v4318
    %v4320 = vsel %vm3174, %v4102, %v4319
    %v4321 = vsel %vm3176, %v4106, %v4320
    %v4322 = vsel %vm3178, %v4110, %v4321
    %v4323 = vsel %vm3170, %v4118, %v4114
    %v4324 = vsel %vm3172, %v4122, %v4323
    %v4325 = vsel %vm3174, %v4126, %v4324
    %v4326 = vsel %vm3176, %v4130, %v4325
    %v4327 = vsel %vm3178, %v4134, %v4326
    %v4328 = vsel %vm3170, %v4142, %v4138
    %v4329 = vsel %vm3172, %v4146, %v4328
    %v4330 = vsel %vm3174, %v4150, %v4329
    %v4331 = vsel %vm3176, %v4154, %v4330
    %v4332 = vsel %vm3178, %v4158, %v4331
    %v4333 = vsel %vm3170, %v4166, %v4162
    %v4334 = vsel %vm3172, %v4170, %v4333
    %v4335 = vsel %vm3174, %v4174, %v4334
    %v4336 = vsel %vm3176, %v4178, %v4335
    %v4337 = vsel %vm3178, %v4182, %v4336
    %v4338 = vsel %vm3170, %v4190, %v4186
    %v4339 = vsel %vm3172, %v4194, %v4338
    %v4340 = vsel %vm3174, %v4198, %v4339
    %v4341 = vsel %vm3176, %v4202, %v4340
    %v4342 = vsel %vm3178, %v4206, %v4341
    %v4343 = vsel %vm3170, %v4214, %v4210
    %v4344 = vsel %vm3172, %v4218, %v4343
    %v4345 = vsel %vm3174, %v4222, %v4344
    %v4346 = vsel %vm3176, %v4226, %v4345
    %v4347 = vsel %vm3178, %v4230, %v4346
    %v4348 = vsel %vm3170, %v4238, %v4234
    %v4349 = vsel %vm3172, %v4242, %v4348
    %v4350 = vsel %vm3174, %v4246, %v4349
    %v4351 = vsel %vm3176, %v4250, %v4350
    %v4352 = vsel %vm3178, %v4254, %v4351
    %v4353 = vsel %vm3170, %v4262, %v4258
    %v4354 = vsel %vm3172, %v4266, %v4353
    %v4355 = vsel %vm3174, %v4270, %v4354
    %v4356 = vsel %vm3176, %v4274, %v4355
    %v4357 = vsel %vm3178, %v4278, %v4356
    %v4358 = vsel %vm3170, %v4286, %v4282
    %v4359 = vsel %vm3172, %v4290, %v4358
    %v4360 = vsel %vm3174, %v4294, %v4359
    %v4361 = vsel %vm3176, %v4298, %v4360
    %v4362 = vsel %vm3178, %v4302, %v4361
    %4363 = vrot.lane.b32.xlu0 %v4307, 96
    %v4364 = vpop.permute.xlu0 %4363
    %4365 = vrot.lane.b32.xlu0 %v4312, 96
    %v4366 = vpop.permute.xlu0 %4365
    %4367 = vrot.lane.b32.xlu0 %v4317, 96
    %v4368 = vpop.permute.xlu0 %4367
    %4369 = vrot.lane.b32.xlu0 %v4322, 96
    %v4370 = vpop.permute.xlu0 %4369
    %4371 = vrot.lane.b32.xlu0 %v4327, 96
    %v4372 = vpop.permute.xlu0 %4371
    %4373 = vrot.lane.b32.xlu0 %v4332, 96
    %v4374 = vpop.permute.xlu0 %4373
    %4375 = vrot.lane.b32.xlu0 %v4337, 96
    %v4376 = vpop.permute.xlu0 %4375
    %4377 = vrot.lane.b32.xlu0 %v4342, 96
    %v4378 = vpop.permute.xlu0 %4377
    %4379 = vrot.lane.b32.xlu0 %v4347, 96
    %v4380 = vpop.permute.xlu0 %4379
    %4381 = vrot.lane.b32.xlu0 %v4352, 96
    %v4382 = vpop.permute.xlu0 %4381
    %4383 = vrot.lane.b32.xlu0 %v4357, 96
    %v4384 = vpop.permute.xlu0 %4383
    %4385 = vrot.lane.b32.xlu0 %v4362, 96
    %v4386 = vpop.permute.xlu0 %4385
    %vm4399 = vcmask 261120
    %v4400 = vsel %vm4399, %v3179, %v3596
    %v4401 = vsel %vm4399, %v3184, %v3598
    %v4402 = vsel %vm4399, %v3189, %v3600
    %v4403 = vsel %vm4399, %v3194, %v3602
    %v4404 = vsel %vm4399, %v3199, %v3604
    %v4405 = vsel %vm4399, %v3204, %v3606
    %v4406 = vsel %vm4399, %v3209, %v3608
    %v4407 = vsel %vm4399, %v3214, %v3610
    %v4408 = vsel %vm4399, %v3219, %v3612
    %v4409 = vsel %vm4399, %v3224, %v3614
    %v4410 = vsel %vm4399, %v3229, %v3616
    %v4411 = vsel %vm4399, %v3234, %v3618
    %v4412 = vsel %vm860, %v4400, %v3980
    %v4413 = vsel %vm860, %v4401, %v3982
    %v4414 = vsel %vm860, %v4402, %v3984
    %v4415 = vsel %vm860, %v4403, %v3986
    %v4416 = vsel %vm860, %v4404, %v3988
    %v4417 = vsel %vm860, %v4405, %v3990
    %v4418 = vsel %vm860, %v4406, %v3992
    %v4419 = vsel %vm860, %v4407, %v3994
    %v4420 = vsel %vm860, %v4408, %v3996
    %v4421 = vsel %vm860, %v4409, %v3998
    %v4422 = vsel %vm860, %v4410, %v4000
    %v4423 = vsel %vm860, %v4411, %v4002
    %vm4424 = vcmask 785408
    %v4425 = vsel %vm4424, %v4412, %v4364
    %v4426 = vsel %vm4424, %v4413, %v4366
    %v4427 = vsel %vm4424, %v4414, %v4368
    %v4428 = vsel %vm4424, %v4415, %v4370
    %v4429 = vsel %vm4424, %v4416, %v4372
    %v4430 = vsel %vm4424, %v4417, %v4374
    %v4431 = vsel %vm4424, %v4418, %v4376
    %v4432 = vsel %vm4424, %v4419, %v4378
    %v4433 = vsel %vm4424, %v4420, %v4380
    %v4434 = vsel %vm4424, %v4421, %v4382
    %v4435 = vsel %vm4424, %v4422, %v4384
    %v4436 = vsel %vm4424, %v4423, %v4386
    %v4447 = vcombine.high %v4425, %v4425
    %v4449 = vunpack.c.l.s4 1966171168
    %v4450 = vunpack.c.0.s8 %v4449
    %v4451 = vlaneseq
    %v4452 = vshrl.u32 %v4451, 7
    %v4453 = vsub.s32 %v4450, %v4452
    %v4454 = vrot.slane %v4425, %v4453
    %v4456 = vunpack.c.l.s4 1966171168
    %v4457 = vunpack.c.0.s8 %v4456
    %v4458 = vlaneseq
    %v4459 = vshrl.u32 %v4458, 7
    %v4460 = vsub.s32 %v4457, %v4459
    %v4461 = vrot.slane %v4447, %v4460
    %v4462 = vcombine.high %v4454, %v4454
    %v4464 = vunpack.c.l.s4 1966171168
    %v4465 = vunpack.c.0.s8 %v4464
    %v4466 = vlaneseq
    %v4467 = vshrl.u32 %v4466, 7
    %v4468 = vsub.s32 %v4465, %v4467
    %v4469 = vrot.slane %v4454, %v4468
    %v4471 = vunpack.c.l.s4 1966171168
    %v4472 = vunpack.c.0.s8 %v4471
    %v4473 = vlaneseq
    %v4474 = vshrl.u32 %v4473, 7
    %v4475 = vsub.s32 %v4472, %v4474
    %v4476 = vrot.slane %v4461, %v4475
    %v4478 = vunpack.c.l.s4 1966171168
    %v4479 = vunpack.c.0.s8 %v4478
    %v4480 = vlaneseq
    %v4481 = vshrl.u32 %v4480, 7
    %v4482 = vsub.s32 %v4479, %v4481
    %v4483 = vrot.slane %v4462, %v4482
    %v4484 = vcombine.high %v4469, %v4469
    %v4485 = vcombine.high %v4483, %v4483
    %v4486 = vcombine.high %v4426, %v4426
    %v4488 = vunpack.c.l.s4 1966171168
    %v4489 = vunpack.c.0.s8 %v4488
    %v4490 = vlaneseq
    %v4491 = vshrl.u32 %v4490, 7
    %v4492 = vsub.s32 %v4489, %v4491
    %v4493 = vrot.slane %v4426, %v4492
    %v4495 = vunpack.c.l.s4 1966171168
    %v4496 = vunpack.c.0.s8 %v4495
    %v4497 = vlaneseq
    %v4498 = vshrl.u32 %v4497, 7
    %v4499 = vsub.s32 %v4496, %v4498
    %v4500 = vrot.slane %v4486, %v4499
    %v4501 = vcombine.high %v4493, %v4493
    %v4503 = vunpack.c.l.s4 1966171168
    %v4504 = vunpack.c.0.s8 %v4503
    %v4505 = vlaneseq
    %v4506 = vshrl.u32 %v4505, 7
    %v4507 = vsub.s32 %v4504, %v4506
    %v4508 = vrot.slane %v4493, %v4507
    %v4510 = vunpack.c.l.s4 1966171168
    %v4511 = vunpack.c.0.s8 %v4510
    %v4512 = vlaneseq
    %v4513 = vshrl.u32 %v4512, 7
    %v4514 = vsub.s32 %v4511, %v4513
    %v4515 = vrot.slane %v4500, %v4514
    %v4517 = vunpack.c.l.s4 1966171168
    %v4518 = vunpack.c.0.s8 %v4517
    %v4519 = vlaneseq
    %v4520 = vshrl.u32 %v4519, 7
    %v4521 = vsub.s32 %v4518, %v4520
    %v4522 = vrot.slane %v4501, %v4521
    %v4523 = vcombine.high %v4508, %v4508
    %v4524 = vcombine.high %v4522, %v4522
    %v4525 = vcombine.high %v4427, %v4427
    %v4527 = vunpack.c.l.s4 1966171168
    %v4528 = vunpack.c.0.s8 %v4527
    %v4529 = vlaneseq
    %v4530 = vshrl.u32 %v4529, 7
    %v4531 = vsub.s32 %v4528, %v4530
    %v4532 = vrot.slane %v4427, %v4531
    %v4534 = vunpack.c.l.s4 1966171168
    %v4535 = vunpack.c.0.s8 %v4534
    %v4536 = vlaneseq
    %v4537 = vshrl.u32 %v4536, 7
    %v4538 = vsub.s32 %v4535, %v4537
    %v4539 = vrot.slane %v4525, %v4538
    %v4540 = vcombine.high %v4532, %v4532
    %v4542 = vunpack.c.l.s4 1966171168
    %v4543 = vunpack.c.0.s8 %v4542
    %v4544 = vlaneseq
    %v4545 = vshrl.u32 %v4544, 7
    %v4546 = vsub.s32 %v4543, %v4545
    %v4547 = vrot.slane %v4532, %v4546
    %v4549 = vunpack.c.l.s4 1966171168
    %v4550 = vunpack.c.0.s8 %v4549
    %v4551 = vlaneseq
    %v4552 = vshrl.u32 %v4551, 7
    %v4553 = vsub.s32 %v4550, %v4552
    %v4554 = vrot.slane %v4539, %v4553
    %v4556 = vunpack.c.l.s4 1966171168
    %v4557 = vunpack.c.0.s8 %v4556
    %v4558 = vlaneseq
    %v4559 = vshrl.u32 %v4558, 7
    %v4560 = vsub.s32 %v4557, %v4559
    %v4561 = vrot.slane %v4540, %v4560
    %v4562 = vcombine.high %v4547, %v4547
    %v4563 = vcombine.high %v4561, %v4561
    %v4564 = vcombine.high %v4428, %v4428
    %v4566 = vunpack.c.l.s4 1966171168
    %v4567 = vunpack.c.0.s8 %v4566
    %v4568 = vlaneseq
    %v4569 = vshrl.u32 %v4568, 7
    %v4570 = vsub.s32 %v4567, %v4569
    %v4571 = vrot.slane %v4428, %v4570
    %v4573 = vunpack.c.l.s4 1966171168
    %v4574 = vunpack.c.0.s8 %v4573
    %v4575 = vlaneseq
    %v4576 = vshrl.u32 %v4575, 7
    %v4577 = vsub.s32 %v4574, %v4576
    %v4578 = vrot.slane %v4564, %v4577
    %v4579 = vcombine.high %v4571, %v4571
    %v4581 = vunpack.c.l.s4 1966171168
    %v4582 = vunpack.c.0.s8 %v4581
    %v4583 = vlaneseq
    %v4584 = vshrl.u32 %v4583, 7
    %v4585 = vsub.s32 %v4582, %v4584
    %v4586 = vrot.slane %v4571, %v4585
    %v4588 = vunpack.c.l.s4 1966171168
    %v4589 = vunpack.c.0.s8 %v4588
    %v4590 = vlaneseq
    %v4591 = vshrl.u32 %v4590, 7
    %v4592 = vsub.s32 %v4589, %v4591
    %v4593 = vrot.slane %v4578, %v4592
    %v4595 = vunpack.c.l.s4 1966171168
    %v4596 = vunpack.c.0.s8 %v4595
    %v4597 = vlaneseq
    %v4598 = vshrl.u32 %v4597, 7
    %v4599 = vsub.s32 %v4596, %v4598
    %v4600 = vrot.slane %v4579, %v4599
    %v4601 = vcombine.high %v4586, %v4586
    %v4602 = vcombine.high %v4600, %v4600
    %v4603 = vcombine.high %v4429, %v4429
    %v4605 = vunpack.c.l.s4 1966171168
    %v4606 = vunpack.c.0.s8 %v4605
    %v4607 = vlaneseq
    %v4608 = vshrl.u32 %v4607, 7
    %v4609 = vsub.s32 %v4606, %v4608
    %v4610 = vrot.slane %v4429, %v4609
    %v4612 = vunpack.c.l.s4 1966171168
    %v4613 = vunpack.c.0.s8 %v4612
    %v4614 = vlaneseq
    %v4615 = vshrl.u32 %v4614, 7
    %v4616 = vsub.s32 %v4613, %v4615
    %v4617 = vrot.slane %v4603, %v4616
    %v4618 = vcombine.high %v4610, %v4610
    %v4620 = vunpack.c.l.s4 1966171168
    %v4621 = vunpack.c.0.s8 %v4620
    %v4622 = vlaneseq
    %v4623 = vshrl.u32 %v4622, 7
    %v4624 = vsub.s32 %v4621, %v4623
    %v4625 = vrot.slane %v4610, %v4624
    %v4627 = vunpack.c.l.s4 1966171168
    %v4628 = vunpack.c.0.s8 %v4627
    %v4629 = vlaneseq
    %v4630 = vshrl.u32 %v4629, 7
    %v4631 = vsub.s32 %v4628, %v4630
    %v4632 = vrot.slane %v4617, %v4631
    %v4634 = vunpack.c.l.s4 1966171168
    %v4635 = vunpack.c.0.s8 %v4634
    %v4636 = vlaneseq
    %v4637 = vshrl.u32 %v4636, 7
    %v4638 = vsub.s32 %v4635, %v4637
    %v4639 = vrot.slane %v4618, %v4638
    %v4640 = vcombine.high %v4625, %v4625
    %v4641 = vcombine.high %v4639, %v4639
    %v4642 = vcombine.high %v4431, %v4431
    %v4644 = vunpack.c.l.s4 1966171168
    %v4645 = vunpack.c.0.s8 %v4644
    %v4646 = vlaneseq
    %v4647 = vshrl.u32 %v4646, 7
    %v4648 = vsub.s32 %v4645, %v4647
    %v4649 = vrot.slane %v4431, %v4648
    %v4651 = vunpack.c.l.s4 1966171168
    %v4652 = vunpack.c.0.s8 %v4651
    %v4653 = vlaneseq
    %v4654 = vshrl.u32 %v4653, 7
    %v4655 = vsub.s32 %v4652, %v4654
    %v4656 = vrot.slane %v4642, %v4655
    %v4657 = vcombine.high %v4649, %v4649
    %v4659 = vunpack.c.l.s4 1966171168
    %v4660 = vunpack.c.0.s8 %v4659
    %v4661 = vlaneseq
    %v4662 = vshrl.u32 %v4661, 7
    %v4663 = vsub.s32 %v4660, %v4662
    %v4664 = vrot.slane %v4649, %v4663
    %v4666 = vunpack.c.l.s4 1966171168
    %v4667 = vunpack.c.0.s8 %v4666
    %v4668 = vlaneseq
    %v4669 = vshrl.u32 %v4668, 7
    %v4670 = vsub.s32 %v4667, %v4669
    %v4671 = vrot.slane %v4656, %v4670
    %v4673 = vunpack.c.l.s4 1966171168
    %v4674 = vunpack.c.0.s8 %v4673
    %v4675 = vlaneseq
    %v4676 = vshrl.u32 %v4675, 7
    %v4677 = vsub.s32 %v4674, %v4676
    %v4678 = vrot.slane %v4657, %v4677
    %v4679 = vcombine.high %v4664, %v4664
    %v4680 = vcombine.high %v4678, %v4678
    %v4681 = vcombine.high %v4432, %v4432
    %v4683 = vunpack.c.l.s4 1966171168
    %v4684 = vunpack.c.0.s8 %v4683
    %v4685 = vlaneseq
    %v4686 = vshrl.u32 %v4685, 7
    %v4687 = vsub.s32 %v4684, %v4686
    %v4688 = vrot.slane %v4432, %v4687
    %v4690 = vunpack.c.l.s4 1966171168
    %v4691 = vunpack.c.0.s8 %v4690
    %v4692 = vlaneseq
    %v4693 = vshrl.u32 %v4692, 7
    %v4694 = vsub.s32 %v4691, %v4693
    %v4695 = vrot.slane %v4681, %v4694
    %v4696 = vcombine.high %v4688, %v4688
    %v4698 = vunpack.c.l.s4 1966171168
    %v4699 = vunpack.c.0.s8 %v4698
    %v4700 = vlaneseq
    %v4701 = vshrl.u32 %v4700, 7
    %v4702 = vsub.s32 %v4699, %v4701
    %v4703 = vrot.slane %v4688, %v4702
    %v4705 = vunpack.c.l.s4 1966171168
    %v4706 = vunpack.c.0.s8 %v4705
    %v4707 = vlaneseq
    %v4708 = vshrl.u32 %v4707, 7
    %v4709 = vsub.s32 %v4706, %v4708
    %v4710 = vrot.slane %v4695, %v4709
    %v4712 = vunpack.c.l.s4 1966171168
    %v4713 = vunpack.c.0.s8 %v4712
    %v4714 = vlaneseq
    %v4715 = vshrl.u32 %v4714, 7
    %v4716 = vsub.s32 %v4713, %v4715
    %v4717 = vrot.slane %v4696, %v4716
    %v4718 = vcombine.high %v4703, %v4703
    %v4719 = vcombine.high %v4717, %v4717
    %v4720 = vcombine.high %v4433, %v4433
    %v4722 = vunpack.c.l.s4 1966171168
    %v4723 = vunpack.c.0.s8 %v4722
    %v4724 = vlaneseq
    %v4725 = vshrl.u32 %v4724, 7
    %v4726 = vsub.s32 %v4723, %v4725
    %v4727 = vrot.slane %v4433, %v4726
    %v4729 = vunpack.c.l.s4 1966171168
    %v4730 = vunpack.c.0.s8 %v4729
    %v4731 = vlaneseq
    %v4732 = vshrl.u32 %v4731, 7
    %v4733 = vsub.s32 %v4730, %v4732
    %v4734 = vrot.slane %v4720, %v4733
    %v4735 = vcombine.high %v4727, %v4727
    %v4737 = vunpack.c.l.s4 1966171168
    %v4738 = vunpack.c.0.s8 %v4737
    %v4739 = vlaneseq
    %v4740 = vshrl.u32 %v4739, 7
    %v4741 = vsub.s32 %v4738, %v4740
    %v4742 = vrot.slane %v4727, %v4741
    %v4744 = vunpack.c.l.s4 1966171168
    %v4745 = vunpack.c.0.s8 %v4744
    %v4746 = vlaneseq
    %v4747 = vshrl.u32 %v4746, 7
    %v4748 = vsub.s32 %v4745, %v4747
    %v4749 = vrot.slane %v4734, %v4748
    %v4751 = vunpack.c.l.s4 1966171168
    %v4752 = vunpack.c.0.s8 %v4751
    %v4753 = vlaneseq
    %v4754 = vshrl.u32 %v4753, 7
    %v4755 = vsub.s32 %v4752, %v4754
    %v4756 = vrot.slane %v4735, %v4755
    %v4757 = vcombine.high %v4742, %v4742
    %v4758 = vcombine.high %v4756, %v4756
    %v4759 = vcombine.high %v4434, %v4434
    %v4761 = vunpack.c.l.s4 1966171168
    %v4762 = vunpack.c.0.s8 %v4761
    %v4763 = vlaneseq
    %v4764 = vshrl.u32 %v4763, 7
    %v4765 = vsub.s32 %v4762, %v4764
    %v4766 = vrot.slane %v4434, %v4765
    %v4768 = vunpack.c.l.s4 1966171168
    %v4769 = vunpack.c.0.s8 %v4768
    %v4770 = vlaneseq
    %v4771 = vshrl.u32 %v4770, 7
    %v4772 = vsub.s32 %v4769, %v4771
    %v4773 = vrot.slane %v4759, %v4772
    %v4774 = vcombine.high %v4766, %v4766
    %v4776 = vunpack.c.l.s4 1966171168
    %v4777 = vunpack.c.0.s8 %v4776
    %v4778 = vlaneseq
    %v4779 = vshrl.u32 %v4778, 7
    %v4780 = vsub.s32 %v4777, %v4779
    %v4781 = vrot.slane %v4766, %v4780
    %v4783 = vunpack.c.l.s4 1966171168
    %v4784 = vunpack.c.0.s8 %v4783
    %v4785 = vlaneseq
    %v4786 = vshrl.u32 %v4785, 7
    %v4787 = vsub.s32 %v4784, %v4786
    %v4788 = vrot.slane %v4773, %v4787
    %v4790 = vunpack.c.l.s4 1966171168
    %v4791 = vunpack.c.0.s8 %v4790
    %v4792 = vlaneseq
    %v4793 = vshrl.u32 %v4792, 7
    %v4794 = vsub.s32 %v4791, %v4793
    %v4795 = vrot.slane %v4774, %v4794
    %v4796 = vcombine.high %v4781, %v4781
    %v4797 = vcombine.high %v4795, %v4795
    %v4798 = vcombine.high %v4435, %v4435
    %v4800 = vunpack.c.l.s4 1966171168
    %v4801 = vunpack.c.0.s8 %v4800
    %v4802 = vlaneseq
    %v4803 = vshrl.u32 %v4802, 7
    %v4804 = vsub.s32 %v4801, %v4803
    %v4805 = vrot.slane %v4435, %v4804
    %v4807 = vunpack.c.l.s4 1966171168
    %v4808 = vunpack.c.0.s8 %v4807
    %v4809 = vlaneseq
    %v4810 = vshrl.u32 %v4809, 7
    %v4811 = vsub.s32 %v4808, %v4810
    %v4812 = vrot.slane %v4798, %v4811
    %v4813 = vcombine.high %v4805, %v4805
    %v4815 = vunpack.c.l.s4 1966171168
    %v4816 = vunpack.c.0.s8 %v4815
    %v4817 = vlaneseq
    %v4818 = vshrl.u32 %v4817, 7
    %v4819 = vsub.s32 %v4816, %v4818
    %v4820 = vrot.slane %v4805, %v4819
    %v4822 = vunpack.c.l.s4 1966171168
    %v4823 = vunpack.c.0.s8 %v4822
    %v4824 = vlaneseq
    %v4825 = vshrl.u32 %v4824, 7
    %v4826 = vsub.s32 %v4823, %v4825
    %v4827 = vrot.slane %v4812, %v4826
    %v4829 = vunpack.c.l.s4 1966171168
    %v4830 = vunpack.c.0.s8 %v4829
    %v4831 = vlaneseq
    %v4832 = vshrl.u32 %v4831, 7
    %v4833 = vsub.s32 %v4830, %v4832
    %v4834 = vrot.slane %v4813, %v4833
    %v4835 = vcombine.high %v4820, %v4820
    %v4836 = vcombine.high %v4834, %v4834
    %v4837 = vcombine.low %v4469, %v4483
    %v4838 = vcombine.low %v4484, %v4485
    %v4839 = vcombine.low %v4476, %v4508
    %v4840 = vcombine.low %v4522, %v4523
    %v4842 = vunpack.c.l.s4 1966171168
    %v4843 = vunpack.c.0.s8 %v4842
    %v4844 = vlaneseq
    %v4845 = vshrl.u32 %v4844, 7
    %v4846 = vsub.s32 %v4843, %v4845
    %v4847 = vrot.slane %v4837, %v4846
    %v4849 = vunpack.c.l.s4 1966171168
    %v4850 = vunpack.c.0.s8 %v4849
    %v4851 = vlaneseq
    %v4852 = vshrl.u32 %v4851, 7
    %v4853 = vsub.s32 %v4850, %v4852
    %v4854 = vrot.slane %v4838, %v4853
    %v4856 = vunpack.c.l.s4 1966171168
    %v4857 = vunpack.c.0.s8 %v4856
    %v4858 = vlaneseq
    %v4859 = vshrl.u32 %v4858, 7
    %v4860 = vsub.s32 %v4857, %v4859
    %v4861 = vrot.slane %v4839, %v4860
    %v4863 = vunpack.c.l.s4 1966171168
    %v4864 = vunpack.c.0.s8 %v4863
    %v4865 = vlaneseq
    %v4866 = vshrl.u32 %v4865, 7
    %v4867 = vsub.s32 %v4864, %v4866
    %v4868 = vrot.slane %v4840, %v4867
    %v4869 = vcombine.low %v4847, %v4854
    %v4870 = vcombine.low %v4861, %v4868
    %v4872 = vunpack.c.l.s4 1966171168
    %v4873 = vunpack.c.0.s8 %v4872
    %v4874 = vlaneseq
    %v4875 = vshrl.u32 %v4874, 7
    %v4876 = vsub.s32 %v4873, %v4875
    %v4877 = vrot.slane %v4869, %v4876
    %v4879 = vunpack.c.l.s4 1966171168
    %v4880 = vunpack.c.0.s8 %v4879
    %v4881 = vlaneseq
    %v4882 = vshrl.u32 %v4881, 7
    %v4883 = vsub.s32 %v4880, %v4882
    %v4884 = vrot.slane %v4870, %v4883
    %v4885 = vcombine.low %v4877, %v4884
    %v4886 = vcombine.low %v4524, %v4515
    %v4887 = vcombine.low %v4547, %v4561
    %v4888 = vcombine.low %v4562, %v4563
    %v4889 = vcombine.low %v4554, %v4586
    %v4891 = vunpack.c.l.s4 1966171168
    %v4892 = vunpack.c.0.s8 %v4891
    %v4893 = vlaneseq
    %v4894 = vshrl.u32 %v4893, 7
    %v4895 = vsub.s32 %v4892, %v4894
    %v4896 = vrot.slane %v4886, %v4895
    %v4898 = vunpack.c.l.s4 1966171168
    %v4899 = vunpack.c.0.s8 %v4898
    %v4900 = vlaneseq
    %v4901 = vshrl.u32 %v4900, 7
    %v4902 = vsub.s32 %v4899, %v4901
    %v4903 = vrot.slane %v4887, %v4902
    %v4905 = vunpack.c.l.s4 1966171168
    %v4906 = vunpack.c.0.s8 %v4905
    %v4907 = vlaneseq
    %v4908 = vshrl.u32 %v4907, 7
    %v4909 = vsub.s32 %v4906, %v4908
    %v4910 = vrot.slane %v4888, %v4909
    %v4912 = vunpack.c.l.s4 1966171168
    %v4913 = vunpack.c.0.s8 %v4912
    %v4914 = vlaneseq
    %v4915 = vshrl.u32 %v4914, 7
    %v4916 = vsub.s32 %v4913, %v4915
    %v4917 = vrot.slane %v4889, %v4916
    %v4918 = vcombine.low %v4896, %v4903
    %v4919 = vcombine.low %v4910, %v4917
    %v4921 = vunpack.c.l.s4 1966171168
    %v4922 = vunpack.c.0.s8 %v4921
    %v4923 = vlaneseq
    %v4924 = vshrl.u32 %v4923, 7
    %v4925 = vsub.s32 %v4922, %v4924
    %v4926 = vrot.slane %v4918, %v4925
    %v4928 = vunpack.c.l.s4 1966171168
    %v4929 = vunpack.c.0.s8 %v4928
    %v4930 = vlaneseq
    %v4931 = vshrl.u32 %v4930, 7
    %v4932 = vsub.s32 %v4929, %v4931
    %v4933 = vrot.slane %v4919, %v4932
    %v4934 = vcombine.low %v4926, %v4933
    %v4935 = vcombine.low %v4600, %v4601
    %v4936 = vcombine.low %v4602, %v4593
    %v4937 = vcombine.low %v4625, %v4639
    %v4938 = vcombine.low %v4640, %v4641
    %v4940 = vunpack.c.l.s4 1966171168
    %v4941 = vunpack.c.0.s8 %v4940
    %v4942 = vlaneseq
    %v4943 = vshrl.u32 %v4942, 7
    %v4944 = vsub.s32 %v4941, %v4943
    %v4945 = vrot.slane %v4935, %v4944
    %v4947 = vunpack.c.l.s4 1966171168
    %v4948 = vunpack.c.0.s8 %v4947
    %v4949 = vlaneseq
    %v4950 = vshrl.u32 %v4949, 7
    %v4951 = vsub.s32 %v4948, %v4950
    %v4952 = vrot.slane %v4936, %v4951
    %v4954 = vunpack.c.l.s4 1966171168
    %v4955 = vunpack.c.0.s8 %v4954
    %v4956 = vlaneseq
    %v4957 = vshrl.u32 %v4956, 7
    %v4958 = vsub.s32 %v4955, %v4957
    %v4959 = vrot.slane %v4937, %v4958
    %v4961 = vunpack.c.l.s4 1966171168
    %v4962 = vunpack.c.0.s8 %v4961
    %v4963 = vlaneseq
    %v4964 = vshrl.u32 %v4963, 7
    %v4965 = vsub.s32 %v4962, %v4964
    %v4966 = vrot.slane %v4938, %v4965
    %v4967 = vcombine.low %v4945, %v4952
    %v4968 = vcombine.low %v4959, %v4966
    %v4970 = vunpack.c.l.s4 1966171168
    %v4971 = vunpack.c.0.s8 %v4970
    %v4972 = vlaneseq
    %v4973 = vshrl.u32 %v4972, 7
    %v4974 = vsub.s32 %v4971, %v4973
    %v4975 = vrot.slane %v4967, %v4974
    %v4977 = vunpack.c.l.s4 1966171168
    %v4978 = vunpack.c.0.s8 %v4977
    %v4979 = vlaneseq
    %v4980 = vshrl.u32 %v4979, 7
    %v4981 = vsub.s32 %v4978, %v4980
    %v4982 = vrot.slane %v4968, %v4981
    %v4983 = vcombine.low %v4975, %v4982
    %v4984 = vcombine.low %v4632, %v4664
    %v4985 = vcombine.low %v4678, %v4679
    %v4986 = vcombine.low %v4680, %v4671
    %v4987 = vcombine.low %v4703, %v4717
    %v4989 = vunpack.c.l.s4 1966171168
    %v4990 = vunpack.c.0.s8 %v4989
    %v4991 = vlaneseq
    %v4992 = vshrl.u32 %v4991, 7
    %v4993 = vsub.s32 %v4990, %v4992
    %v4994 = vrot.slane %v4984, %v4993
    %v4996 = vunpack.c.l.s4 1966171168
    %v4997 = vunpack.c.0.s8 %v4996
    %v4998 = vlaneseq
    %v4999 = vshrl.u32 %v4998, 7
    %v5000 = vsub.s32 %v4997, %v4999
    %v5001 = vrot.slane %v4985, %v5000
    %v5003 = vunpack.c.l.s4 1966171168
    %v5004 = vunpack.c.0.s8 %v5003
    %v5005 = vlaneseq
    %v5006 = vshrl.u32 %v5005, 7
    %v5007 = vsub.s32 %v5004, %v5006
    %v5008 = vrot.slane %v4986, %v5007
    %v5010 = vunpack.c.l.s4 1966171168
    %v5011 = vunpack.c.0.s8 %v5010
    %v5012 = vlaneseq
    %v5013 = vshrl.u32 %v5012, 7
    %v5014 = vsub.s32 %v5011, %v5013
    %v5015 = vrot.slane %v4987, %v5014
    %v5016 = vcombine.low %v4994, %v5001
    %v5017 = vcombine.low %v5008, %v5015
    %v5019 = vunpack.c.l.s4 1966171168
    %v5020 = vunpack.c.0.s8 %v5019
    %v5021 = vlaneseq
    %v5022 = vshrl.u32 %v5021, 7
    %v5023 = vsub.s32 %v5020, %v5022
    %v5024 = vrot.slane %v5016, %v5023
    %v5026 = vunpack.c.l.s4 1966171168
    %v5027 = vunpack.c.0.s8 %v5026
    %v5028 = vlaneseq
    %v5029 = vshrl.u32 %v5028, 7
    %v5030 = vsub.s32 %v5027, %v5029
    %v5031 = vrot.slane %v5017, %v5030
    %v5032 = vcombine.low %v5024, %v5031
    %v5033 = vcombine.low %v4718, %v4719
    %v5034 = vcombine.low %v4710, %v4742
    %v5035 = vcombine.low %v4756, %v4757
    %v5036 = vcombine.low %v4758, %v4749
    %v5038 = vunpack.c.l.s4 1966171168
    %v5039 = vunpack.c.0.s8 %v5038
    %v5040 = vlaneseq
    %v5041 = vshrl.u32 %v5040, 7
    %v5042 = vsub.s32 %v5039, %v5041
    %v5043 = vrot.slane %v5033, %v5042
    %v5045 = vunpack.c.l.s4 1966171168
    %v5046 = vunpack.c.0.s8 %v5045
    %v5047 = vlaneseq
    %v5048 = vshrl.u32 %v5047, 7
    %v5049 = vsub.s32 %v5046, %v5048
    %v5050 = vrot.slane %v5034, %v5049
    %v5052 = vunpack.c.l.s4 1966171168
    %v5053 = vunpack.c.0.s8 %v5052
    %v5054 = vlaneseq
    %v5055 = vshrl.u32 %v5054, 7
    %v5056 = vsub.s32 %v5053, %v5055
    %v5057 = vrot.slane %v5035, %v5056
    %v5059 = vunpack.c.l.s4 1966171168
    %v5060 = vunpack.c.0.s8 %v5059
    %v5061 = vlaneseq
    %v5062 = vshrl.u32 %v5061, 7
    %v5063 = vsub.s32 %v5060, %v5062
    %v5064 = vrot.slane %v5036, %v5063
    %v5065 = vcombine.low %v5043, %v5050
    %v5066 = vcombine.low %v5057, %v5064
    %v5068 = vunpack.c.l.s4 1966171168
    %v5069 = vunpack.c.0.s8 %v5068
    %v5070 = vlaneseq
    %v5071 = vshrl.u32 %v5070, 7
    %v5072 = vsub.s32 %v5069, %v5071
    %v5073 = vrot.slane %v5065, %v5072
    %v5075 = vunpack.c.l.s4 1966171168
    %v5076 = vunpack.c.0.s8 %v5075
    %v5077 = vlaneseq
    %v5078 = vshrl.u32 %v5077, 7
    %v5079 = vsub.s32 %v5076, %v5078
    %v5080 = vrot.slane %v5066, %v5079
    %v5081 = vcombine.low %v5073, %v5080
    %v5082 = vcombine.low %v4781, %v4795
    %v5083 = vcombine.low %v4796, %v4797
    %v5084 = vcombine.low %v4788, %v4820
    %v5085 = vcombine.low %v4834, %v4835
    %v5087 = vunpack.c.l.s4 1966171168
    %v5088 = vunpack.c.0.s8 %v5087
    %v5089 = vlaneseq
    %v5090 = vshrl.u32 %v5089, 7
    %v5091 = vsub.s32 %v5088, %v5090
    %v5092 = vrot.slane %v5082, %v5091
    %v5094 = vunpack.c.l.s4 1966171168
    %v5095 = vunpack.c.0.s8 %v5094
    %v5096 = vlaneseq
    %v5097 = vshrl.u32 %v5096, 7
    %v5098 = vsub.s32 %v5095, %v5097
    %v5099 = vrot.slane %v5083, %v5098
    %v5101 = vunpack.c.l.s4 1966171168
    %v5102 = vunpack.c.0.s8 %v5101
    %v5103 = vlaneseq
    %v5104 = vshrl.u32 %v5103, 7
    %v5105 = vsub.s32 %v5102, %v5104
    %v5106 = vrot.slane %v5084, %v5105
    %v5108 = vunpack.c.l.s4 1966171168
    %v5109 = vunpack.c.0.s8 %v5108
    %v5110 = vlaneseq
    %v5111 = vshrl.u32 %v5110, 7
    %v5112 = vsub.s32 %v5109, %v5111
    %v5113 = vrot.slane %v5085, %v5112
    %v5114 = vcombine.low %v5092, %v5099
    %v5115 = vcombine.low %v5106, %v5113
    %v5117 = vunpack.c.l.s4 1966171168
    %v5118 = vunpack.c.0.s8 %v5117
    %v5119 = vlaneseq
    %v5120 = vshrl.u32 %v5119, 7
    %v5121 = vsub.s32 %v5118, %v5120
    %v5122 = vrot.slane %v5114, %v5121
    %v5124 = vunpack.c.l.s4 1966171168
    %v5125 = vunpack.c.0.s8 %v5124
    %v5126 = vlaneseq
    %v5127 = vshrl.u32 %v5126, 7
    %v5128 = vsub.s32 %v5125, %v5127
    %v5129 = vrot.slane %v5115, %v5128
    %v5130 = vcombine.low %v5122, %v5129
    %v5131 = vcombine.low %v4836, %v4827
    %v5133 = vunpack.c.l.s4 1966171168
    %v5134 = vunpack.c.0.s8 %v5133
    %v5135 = vlaneseq
    %v5136 = vshrl.u32 %v5135, 7
    %v5137 = vsub.s32 %v5134, %v5136
    %v5138 = vrot.slane %v5131, %v5137
    %v5140 = vunpack.c.l.s4 1966171168
    %v5141 = vunpack.c.0.s8 %v5140
    %v5142 = vlaneseq
    %v5143 = vshrl.u32 %v5142, 7
    %v5144 = vsub.s32 %v5141, %v5143
    %v5145 = vrot.slane %v5138, %v5144
    %v5153 = vpack.c.bf16 %v4934, %v4885
    %v5154 = vpack.c.bf16 %v5032, %v4983
    %v5155 = vpack.c.bf16 %v5130, %v5081
    %v5156 = vpack.c.bf16 %v5145, %v5145
    %v5157 = vld [vmem:[%s3] sm:$0xf]
    %v5158 = vld [vmem:[%s3 + $0x4] sm:$0xf]
    %v5159 = vld [vmem:[%s3 + $0x8] sm:$0xf]
    %v5160 = vld [vmem:[%s3 + $0xc] sm:$0xf]
    %v5161 = vld [vmem:[%s3 + $0x10] sm:$0xf]
    %v5162 = vld [vmem:[%s3 + $0x14] sm:$0xf]
    %v5163 = vld [vmem:[%s3 + $0x18] sm:$0xf]
    %v5164 = vld [vmem:[%s3 + $0x1c] sm:$0xf]
    %v5165 = vld [vmem:[%s3 + $0x20] sm:$0xf]
    %v5166 = vld [vmem:[%s3 + $0x24] sm:$0xf]
    %v5167 = vld [vmem:[%s3 + $0x28] sm:$0xf]
    %v5168 = vld [vmem:[%s3 + $0x2c] sm:$0xf]
    %v5169 = vld [vmem:[%s3 + $0x30] sm:$0xf]
    %v5170 = vld [vmem:[%s3 + $0x34] sm:$0xf]
    %v5171 = vld [vmem:[%s3 + $0x38] sm:$0xf]
    %v5172 = vld [vmem:[%s3 + $0x3c] sm:$0xf]
    %v5173 = vcombine.high %v4461, %v4461
    %v5175 = vunpack.c.l.s4 1966171168
    %v5176 = vunpack.c.0.s8 %v5175
    %v5177 = vlaneseq
    %v5178 = vshrl.u32 %v5177, 7
    %v5179 = vsub.s32 %v5176, %v5178
    %v5180 = vrot.slane %v5173, %v5179
    %v5181 = vcombine.high %v4500, %v4500
    %v5183 = vunpack.c.l.s4 1966171168
    %v5184 = vunpack.c.0.s8 %v5183
    %v5185 = vlaneseq
    %v5186 = vshrl.u32 %v5185, 7
    %v5187 = vsub.s32 %v5184, %v5186
    %v5188 = vrot.slane %v5181, %v5187
    %v5189 = vcombine.high %v4539, %v4539
    %v5191 = vunpack.c.l.s4 1966171168
    %v5192 = vunpack.c.0.s8 %v5191
    %v5193 = vlaneseq
    %v5194 = vshrl.u32 %v5193, 7
    %v5195 = vsub.s32 %v5192, %v5194
    %v5196 = vrot.slane %v5189, %v5195
    %v5197 = vcombine.high %v4578, %v4578
    %v5199 = vunpack.c.l.s4 1966171168
    %v5200 = vunpack.c.0.s8 %v5199
    %v5201 = vlaneseq
    %v5202 = vshrl.u32 %v5201, 7
    %v5203 = vsub.s32 %v5200, %v5202
    %v5204 = vrot.slane %v5197, %v5203
    %v5205 = vcombine.high %v4617, %v4617
    %v5207 = vunpack.c.l.s4 1966171168
    %v5208 = vunpack.c.0.s8 %v5207
    %v5209 = vlaneseq
    %v5210 = vshrl.u32 %v5209, 7
    %v5211 = vsub.s32 %v5208, %v5210
    %v5212 = vrot.slane %v5205, %v5211
    %v5213 = vcombine.high %v4656, %v4656
    %v5215 = vunpack.c.l.s4 1966171168
    %v5216 = vunpack.c.0.s8 %v5215
    %v5217 = vlaneseq
    %v5218 = vshrl.u32 %v5217, 7
    %v5219 = vsub.s32 %v5216, %v5218
    %v5220 = vrot.slane %v5213, %v5219
    %v5221 = vcombine.high %v4695, %v4695
    %v5223 = vunpack.c.l.s4 1966171168
    %v5224 = vunpack.c.0.s8 %v5223
    %v5225 = vlaneseq
    %v5226 = vshrl.u32 %v5225, 7
    %v5227 = vsub.s32 %v5224, %v5226
    %v5228 = vrot.slane %v5221, %v5227
    %v5229 = vcombine.high %v4734, %v4734
    %v5231 = vunpack.c.l.s4 1966171168
    %v5232 = vunpack.c.0.s8 %v5231
    %v5233 = vlaneseq
    %v5234 = vshrl.u32 %v5233, 7
    %v5235 = vsub.s32 %v5232, %v5234
    %v5236 = vrot.slane %v5229, %v5235
    %v5237 = vcombine.high %v4773, %v4773
    %v5239 = vunpack.c.l.s4 1966171168
    %v5240 = vunpack.c.0.s8 %v5239
    %v5241 = vlaneseq
    %v5242 = vshrl.u32 %v5241, 7
    %v5243 = vsub.s32 %v5240, %v5242
    %v5244 = vrot.slane %v5237, %v5243
    %v5245 = vcombine.high %v4812, %v4812
    %v5247 = vunpack.c.l.s4 1966171168
    %v5248 = vunpack.c.0.s8 %v5247
    %v5249 = vlaneseq
    %v5250 = vshrl.u32 %v5249, 7
    %v5251 = vsub.s32 %v5248, %v5250
    %v5252 = vrot.slane %v5245, %v5251
    %v5253 = vcombine.low %v4483, %v4484
    %v5254 = vcombine.low %v4485, %v4476
    %v5255 = vcombine.low %v5180, %v4522
    %v5256 = vcombine.low %v4523, %v4524
    %v5258 = vunpack.c.l.s4 1966171168
    %v5259 = vunpack.c.0.s8 %v5258
    %v5260 = vlaneseq
    %v5261 = vshrl.u32 %v5260, 7
    %v5262 = vsub.s32 %v5259, %v5261
    %v5263 = vrot.slane %v5253, %v5262
    %v5265 = vunpack.c.l.s4 1966171168
    %v5266 = vunpack.c.0.s8 %v5265
    %v5267 = vlaneseq
    %v5268 = vshrl.u32 %v5267, 7
    %v5269 = vsub.s32 %v5266, %v5268
    %v5270 = vrot.slane %v5254, %v5269
    %v5272 = vunpack.c.l.s4 1966171168
    %v5273 = vunpack.c.0.s8 %v5272
    %v5274 = vlaneseq
    %v5275 = vshrl.u32 %v5274, 7
    %v5276 = vsub.s32 %v5273, %v5275
    %v5277 = vrot.slane %v5255, %v5276
    %v5279 = vunpack.c.l.s4 1966171168
    %v5280 = vunpack.c.0.s8 %v5279
    %v5281 = vlaneseq
    %v5282 = vshrl.u32 %v5281, 7
    %v5283 = vsub.s32 %v5280, %v5282
    %v5284 = vrot.slane %v5256, %v5283
    %v5285 = vcombine.low %v5263, %v5270
    %v5286 = vcombine.low %v5277, %v5284
    %v5288 = vunpack.c.l.s4 1966171168
    %v5289 = vunpack.c.0.s8 %v5288
    %v5290 = vlaneseq
    %v5291 = vshrl.u32 %v5290, 7
    %v5292 = vsub.s32 %v5289, %v5291
    %v5293 = vrot.slane %v5285, %v5292
    %v5295 = vunpack.c.l.s4 1966171168
    %v5296 = vunpack.c.0.s8 %v5295
    %v5297 = vlaneseq
    %v5298 = vshrl.u32 %v5297, 7
    %v5299 = vsub.s32 %v5296, %v5298
    %v5300 = vrot.slane %v5286, %v5299
    %v5301 = vcombine.low %v5293, %v5300
    %v5302 = vcombine.low %v4515, %v5188
    %v5303 = vcombine.low %v4561, %v4562
    %v5304 = vcombine.low %v4563, %v4554
    %v5305 = vcombine.low %v5196, %v4600
    %v5307 = vunpack.c.l.s4 1966171168
    %v5308 = vunpack.c.0.s8 %v5307
    %v5309 = vlaneseq
    %v5310 = vshrl.u32 %v5309, 7
    %v5311 = vsub.s32 %v5308, %v5310
    %v5312 = vrot.slane %v5302, %v5311
    %v5314 = vunpack.c.l.s4 1966171168
    %v5315 = vunpack.c.0.s8 %v5314
    %v5316 = vlaneseq
    %v5317 = vshrl.u32 %v5316, 7
    %v5318 = vsub.s32 %v5315, %v5317
    %v5319 = vrot.slane %v5303, %v5318
    %v5321 = vunpack.c.l.s4 1966171168
    %v5322 = vunpack.c.0.s8 %v5321
    %v5323 = vlaneseq
    %v5324 = vshrl.u32 %v5323, 7
    %v5325 = vsub.s32 %v5322, %v5324
    %v5326 = vrot.slane %v5304, %v5325
    %v5328 = vunpack.c.l.s4 1966171168
    %v5329 = vunpack.c.0.s8 %v5328
    %v5330 = vlaneseq
    %v5331 = vshrl.u32 %v5330, 7
    %v5332 = vsub.s32 %v5329, %v5331
    %v5333 = vrot.slane %v5305, %v5332
    %v5334 = vcombine.low %v5312, %v5319
    %v5335 = vcombine.low %v5326, %v5333
    %v5337 = vunpack.c.l.s4 1966171168
    %v5338 = vunpack.c.0.s8 %v5337
    %v5339 = vlaneseq
    %v5340 = vshrl.u32 %v5339, 7
    %v5341 = vsub.s32 %v5338, %v5340
    %v5342 = vrot.slane %v5334, %v5341
    %v5344 = vunpack.c.l.s4 1966171168
    %v5345 = vunpack.c.0.s8 %v5344
    %v5346 = vlaneseq
    %v5347 = vshrl.u32 %v5346, 7
    %v5348 = vsub.s32 %v5345, %v5347
    %v5349 = vrot.slane %v5335, %v5348
    %v5350 = vcombine.low %v5342, %v5349
    %v5351 = vcombine.low %v4601, %v4602
    %v5352 = vcombine.low %v4593, %v5204
    %v5353 = vcombine.low %v4639, %v4640
    %v5354 = vcombine.low %v4641, %v4632
    %v5356 = vunpack.c.l.s4 1966171168
    %v5357 = vunpack.c.0.s8 %v5356
    %v5358 = vlaneseq
    %v5359 = vshrl.u32 %v5358, 7
    %v5360 = vsub.s32 %v5357, %v5359
    %v5361 = vrot.slane %v5351, %v5360
    %v5363 = vunpack.c.l.s4 1966171168
    %v5364 = vunpack.c.0.s8 %v5363
    %v5365 = vlaneseq
    %v5366 = vshrl.u32 %v5365, 7
    %v5367 = vsub.s32 %v5364, %v5366
    %v5368 = vrot.slane %v5352, %v5367
    %v5370 = vunpack.c.l.s4 1966171168
    %v5371 = vunpack.c.0.s8 %v5370
    %v5372 = vlaneseq
    %v5373 = vshrl.u32 %v5372, 7
    %v5374 = vsub.s32 %v5371, %v5373
    %v5375 = vrot.slane %v5353, %v5374
    %v5377 = vunpack.c.l.s4 1966171168
    %v5378 = vunpack.c.0.s8 %v5377
    %v5379 = vlaneseq
    %v5380 = vshrl.u32 %v5379, 7
    %v5381 = vsub.s32 %v5378, %v5380
    %v5382 = vrot.slane %v5354, %v5381
    %v5383 = vcombine.low %v5361, %v5368
    %v5384 = vcombine.low %v5375, %v5382
    %v5386 = vunpack.c.l.s4 1966171168
    %v5387 = vunpack.c.0.s8 %v5386
    %v5388 = vlaneseq
    %v5389 = vshrl.u32 %v5388, 7
    %v5390 = vsub.s32 %v5387, %v5389
    %v5391 = vrot.slane %v5383, %v5390
    %v5393 = vunpack.c.l.s4 1966171168
    %v5394 = vunpack.c.0.s8 %v5393
    %v5395 = vlaneseq
    %v5396 = vshrl.u32 %v5395, 7
    %v5397 = vsub.s32 %v5394, %v5396
    %v5398 = vrot.slane %v5384, %v5397
    %v5399 = vcombine.low %v5391, %v5398
    %v5400 = vcombine.low %v5212, %v4678
    %v5401 = vcombine.low %v4679, %v4680
    %v5402 = vcombine.low %v4671, %v5220
    %v5403 = vcombine.low %v4717, %v4718
    %v5405 = vunpack.c.l.s4 1966171168
    %v5406 = vunpack.c.0.s8 %v5405
    %v5407 = vlaneseq
    %v5408 = vshrl.u32 %v5407, 7
    %v5409 = vsub.s32 %v5406, %v5408
    %v5410 = vrot.slane %v5400, %v5409
    %v5412 = vunpack.c.l.s4 1966171168
    %v5413 = vunpack.c.0.s8 %v5412
    %v5414 = vlaneseq
    %v5415 = vshrl.u32 %v5414, 7
    %v5416 = vsub.s32 %v5413, %v5415
    %v5417 = vrot.slane %v5401, %v5416
    %v5419 = vunpack.c.l.s4 1966171168
    %v5420 = vunpack.c.0.s8 %v5419
    %v5421 = vlaneseq
    %v5422 = vshrl.u32 %v5421, 7
    %v5423 = vsub.s32 %v5420, %v5422
    %v5424 = vrot.slane %v5402, %v5423
    %v5426 = vunpack.c.l.s4 1966171168
    %v5427 = vunpack.c.0.s8 %v5426
    %v5428 = vlaneseq
    %v5429 = vshrl.u32 %v5428, 7
    %v5430 = vsub.s32 %v5427, %v5429
    %v5431 = vrot.slane %v5403, %v5430
    %v5432 = vcombine.low %v5410, %v5417
    %v5433 = vcombine.low %v5424, %v5431
    %v5435 = vunpack.c.l.s4 1966171168
    %v5436 = vunpack.c.0.s8 %v5435
    %v5437 = vlaneseq
    %v5438 = vshrl.u32 %v5437, 7
    %v5439 = vsub.s32 %v5436, %v5438
    %v5440 = vrot.slane %v5432, %v5439
    %v5442 = vunpack.c.l.s4 1966171168
    %v5443 = vunpack.c.0.s8 %v5442
    %v5444 = vlaneseq
    %v5445 = vshrl.u32 %v5444, 7
    %v5446 = vsub.s32 %v5443, %v5445
    %v5447 = vrot.slane %v5433, %v5446
    %v5448 = vcombine.low %v5440, %v5447
    %v5449 = vcombine.low %v4719, %v4710
    %v5450 = vcombine.low %v5228, %v4756
    %v5451 = vcombine.low %v4757, %v4758
    %v5452 = vcombine.low %v4749, %v5236
    %v5454 = vunpack.c.l.s4 1966171168
    %v5455 = vunpack.c.0.s8 %v5454
    %v5456 = vlaneseq
    %v5457 = vshrl.u32 %v5456, 7
    %v5458 = vsub.s32 %v5455, %v5457
    %v5459 = vrot.slane %v5449, %v5458
    %v5461 = vunpack.c.l.s4 1966171168
    %v5462 = vunpack.c.0.s8 %v5461
    %v5463 = vlaneseq
    %v5464 = vshrl.u32 %v5463, 7
    %v5465 = vsub.s32 %v5462, %v5464
    %v5466 = vrot.slane %v5450, %v5465
    %v5468 = vunpack.c.l.s4 1966171168
    %v5469 = vunpack.c.0.s8 %v5468
    %v5470 = vlaneseq
    %v5471 = vshrl.u32 %v5470, 7
    %v5472 = vsub.s32 %v5469, %v5471
    %v5473 = vrot.slane %v5451, %v5472
    %v5475 = vunpack.c.l.s4 1966171168
    %v5476 = vunpack.c.0.s8 %v5475
    %v5477 = vlaneseq
    %v5478 = vshrl.u32 %v5477, 7
    %v5479 = vsub.s32 %v5476, %v5478
    %v5480 = vrot.slane %v5452, %v5479
    %v5481 = vcombine.low %v5459, %v5466
    %v5482 = vcombine.low %v5473, %v5480
    %v5484 = vunpack.c.l.s4 1966171168
    %v5485 = vunpack.c.0.s8 %v5484
    %v5486 = vlaneseq
    %v5487 = vshrl.u32 %v5486, 7
    %v5488 = vsub.s32 %v5485, %v5487
    %v5489 = vrot.slane %v5481, %v5488
    %v5491 = vunpack.c.l.s4 1966171168
    %v5492 = vunpack.c.0.s8 %v5491
    %v5493 = vlaneseq
    %v5494 = vshrl.u32 %v5493, 7
    %v5495 = vsub.s32 %v5492, %v5494
    %v5496 = vrot.slane %v5482, %v5495
    %v5497 = vcombine.low %v5489, %v5496
    %v5498 = vcombine.low %v4795, %v4796
    %v5499 = vcombine.low %v4797, %v4788
    %v5500 = vcombine.low %v5244, %v4834
    %v5501 = vcombine.low %v4835, %v4836
    %v5503 = vunpack.c.l.s4 1966171168
    %v5504 = vunpack.c.0.s8 %v5503
    %v5505 = vlaneseq
    %v5506 = vshrl.u32 %v5505, 7
    %v5507 = vsub.s32 %v5504, %v5506
    %v5508 = vrot.slane %v5498, %v5507
    %v5510 = vunpack.c.l.s4 1966171168
    %v5511 = vunpack.c.0.s8 %v5510
    %v5512 = vlaneseq
    %v5513 = vshrl.u32 %v5512, 7
    %v5514 = vsub.s32 %v5511, %v5513
    %v5515 = vrot.slane %v5499, %v5514
    %v5517 = vunpack.c.l.s4 1966171168
    %v5518 = vunpack.c.0.s8 %v5517
    %v5519 = vlaneseq
    %v5520 = vshrl.u32 %v5519, 7
    %v5521 = vsub.s32 %v5518, %v5520
    %v5522 = vrot.slane %v5500, %v5521
    %v5524 = vunpack.c.l.s4 1966171168
    %v5525 = vunpack.c.0.s8 %v5524
    %v5526 = vlaneseq
    %v5527 = vshrl.u32 %v5526, 7
    %v5528 = vsub.s32 %v5525, %v5527
    %v5529 = vrot.slane %v5501, %v5528
    %v5530 = vcombine.low %v5508, %v5515
    %v5531 = vcombine.low %v5522, %v5529
    %v5533 = vunpack.c.l.s4 1966171168
    %v5534 = vunpack.c.0.s8 %v5533
    %v5535 = vlaneseq
    %v5536 = vshrl.u32 %v5535, 7
    %v5537 = vsub.s32 %v5534, %v5536
    %v5538 = vrot.slane %v5530, %v5537
    %v5540 = vunpack.c.l.s4 1966171168
    %v5541 = vunpack.c.0.s8 %v5540
    %v5542 = vlaneseq
    %v5543 = vshrl.u32 %v5542, 7
    %v5544 = vsub.s32 %v5541, %v5543
    %v5545 = vrot.slane %v5531, %v5544
    %v5546 = vcombine.low %v5538, %v5545
    %v5547 = vcombine.low %v4827, %v5252
    %v5549 = vunpack.c.l.s4 1966171168
    %v5550 = vunpack.c.0.s8 %v5549
    %v5551 = vlaneseq
    %v5552 = vshrl.u32 %v5551, 7
    %v5553 = vsub.s32 %v5550, %v5552
    %v5554 = vrot.slane %v5547, %v5553
    %v5556 = vunpack.c.l.s4 1966171168
    %v5557 = vunpack.c.0.s8 %v5556
    %v5558 = vlaneseq
    %v5559 = vshrl.u32 %v5558, 7
    %v5560 = vsub.s32 %v5557, %v5559
    %v5561 = vrot.slane %v5554, %v5560
    %v5569 = vpack.c.bf16 %v5350, %v5301
    %v5570 = vpack.c.bf16 %v5448, %v5399
    %v5571 = vpack.c.bf16 %v5546, %v5497
    %v5572 = vpack.c.bf16 %v5561, %v5561
    %s5573 = scalar_lea.vmem %s3, 64
    %v5574 = vld [vmem:[%s5573] sm:$0xf]
    %v5575 = vld [vmem:[%s5573 + $0x4] sm:$0xf]
    %v5576 = vld [vmem:[%s5573 + $0x8] sm:$0xf]
    %v5577 = vld [vmem:[%s5573 + $0xc] sm:$0xf]
    %v5578 = vld [vmem:[%s5573 + $0x10] sm:$0xf]
    %v5579 = vld [vmem:[%s5573 + $0x14] sm:$0xf]
    %v5580 = vld [vmem:[%s5573 + $0x18] sm:$0xf]
    %v5581 = vld [vmem:[%s5573 + $0x1c] sm:$0xf]
    %v5582 = vld [vmem:[%s5573 + $0x20] sm:$0xf]
    %v5583 = vld [vmem:[%s5573 + $0x24] sm:$0xf]
    %v5584 = vld [vmem:[%s5573 + $0x28] sm:$0xf]
    %v5585 = vld [vmem:[%s5573 + $0x2c] sm:$0xf]
    %v5586 = vld [vmem:[%s5573 + $0x30] sm:$0xf]
    %v5587 = vld [vmem:[%s5573 + $0x34] sm:$0xf]
    %v5588 = vld [vmem:[%s5573 + $0x38] sm:$0xf]
    %v5589 = vld [vmem:[%s5573 + $0x3c] sm:$0xf]
    %v5606 = vunpack.c.l.b16 %v5574
    %v5607 = vunpack.c.l.b16 %v5575
    %v5608 = vunpack.c.l.b16 %v5576
    %v5609 = vunpack.c.l.b16 %v5577
    %v5610 = vunpack.c.l.b16 %v5578
    %v5611 = vunpack.c.l.b16 %v5579
    %v5612 = vunpack.c.l.b16 %v5580
    %v5613 = vunpack.c.l.b16 %v5581
    %v5614 = vunpack.c.l.b16 %v5582
    %v5615 = vunpack.c.l.b16 %v5583
    %v5616 = vunpack.c.l.b16 %v5584
    %v5617 = vunpack.c.l.b16 %v5585
    %v5618 = vunpack.c.l.b16 %v5586
    %v5619 = vunpack.c.l.b16 %v5587
    %v5620 = vunpack.c.l.b16 %v5588
    %v5621 = vunpack.c.l.b16 %v5589
    %v5622 = vpack.c.b16 %v5607, %v5606
    %v5623 = vpack.c.b16 %v5609, %v5608
    %v5624 = vpack.c.b16 %v5611, %v5610
    %v5625 = vpack.c.b16 %v5613, %v5612
    %v5626 = vpack.c.b16 %v5615, %v5614
    %v5627 = vpack.c.b16 %v5617, %v5616
    %v5628 = vpack.c.b16 %v5619, %v5618
    %v5629 = vpack.c.b16 %v5621, %v5620
    %5638 = vmatprep.subr.bf16.mxu0 0
    %5639 = vmatpush1.bf16.msra.mxu0 %v5622
    %5640 = vmatprep.subr.bf16.mxu0 0
    %5641 = vmatpush1.bf16.msra.mxu0 %v5623
    %5642 = vmatprep.subr.bf16.mxu0 0
    %5643 = vmatpush1.bf16.msra.mxu0 %v5624
    %5644 = vmatprep.subr.bf16.mxu0 0
    %5645 = vmatpush1.bf16.msra.mxu0 %v5625
    %5646 = vmatprep.subr.bf16.mxu0 0
    %5647 = vmatpush1.bf16.msra.mxu0 %v5626
    %5648 = vmatprep.subr.bf16.mxu0 0
    %5649 = vmatpush1.bf16.msra.mxu0 %v5627
    %5650 = vmatprep.subr.bf16.mxu0 0
    %5651 = vmatpush1.bf16.msra.mxu0 %v5628
    %5652 = vmatprep.subr.bf16.mxu0 0
    %5653 = vmatpush1.bf16.msra.mxu0 %v5629
    %5654 = vmatprep.subr.bf16.mxu0 0
    %5655 = vmatpush1.bf16.msra.mxu0 0
    %5656 = vmatprep.subr.bf16.mxu0 0
    %5657 = vmatpush1.bf16.msra.mxu0 0
    %5658 = vmatprep.subr.bf16.mxu0 0
    %5659 = vmatpush1.bf16.msra.mxu0 0
    %5660 = vmatprep.subr.bf16.mxu0 0
    %5661 = vmatpush1.bf16.msra.mxu0 0
    %5662 = vmatprep.subr.bf16.mxu0 0
    %5663 = vmatpush1.bf16.msra.mxu0 0
    %5664 = vmatprep.subr.bf16.mxu0 0
    %5665 = vmatpush1.bf16.msra.mxu0 0
    %5666 = vmatprep.subr.bf16.mxu0 0
    %5667 = vmatpush1.bf16.msra.mxu0 0
    %5668 = vmatprep.subr.bf16.mxu0 0
    %5669 = vmatpush1.bf16.msra.mxu0 0
    %5670 = vmatprep.mubr.bf16.mxu0 0
    %5671 = vmatmul.mubr.bf16.gmra.mrb[0].mxu0 %v5569
    %v5672 = vpop.f32.mrb[0].mxu0
    %v5673 = vadd.f32 0.0, %v5672
    %v5674 = vpop.f32.mrb[0].mxu0
    %v5675 = vpop.f32.mrb[0].mxu0
    %v5676 = vadd.f32 0.0, %v5675
    %v5677 = vpop.f32.mrb[0].mxu0
    %5678 = vmatprep.mubr.bf16.mxu0 0
    %5679 = vmatmul.mubr.bf16.gmra.mrb[0].mxu0 %v5570
    %v5680 = vpop.f32.mrb[0].mxu0
    %v5681 = vadd.f32 0.0, %v5680
    %v5682 = vpop.f32.mrb[0].mxu0
    %v5683 = vpop.f32.mrb[0].mxu0
    %v5684 = vadd.f32 0.0, %v5683
    %v5685 = vpop.f32.mrb[0].mxu0
    %5686 = vmatprep.mubr.bf16.mxu0 0
    %5687 = vmatmul.mubr.bf16.gmra.mrb[0].mxu0 %v5571
    %v5688 = vpop.f32.mrb[0].mxu0
    %v5689 = vadd.f32 0.0, %v5688
    %v5690 = vpop.f32.mrb[0].mxu0
    %v5691 = vpop.f32.mrb[0].mxu0
    %v5692 = vadd.f32 0.0, %v5691
    %v5693 = vpop.f32.mrb[0].mxu0
    %5694 = vmatprep.mubr.bf16.mxu0 0
    %5695 = vmatmul.mubr.bf16.gmra.mrb[0].mxu0 %v5572
    %v5696 = vpop.f32.mrb[0].mxu0
    %v5697 = vadd.f32 0.0, %v5696
    %v5698 = vpop.f32.mrb[0].mxu0
    %v5699 = vpop.f32.mrb[0].mxu0
    %v5700 = vpop.f32.mrb[0].mxu0
    %5701 = vdwg.mxu0
    %v5718 = vunpack.c.l.b16 %v5157
    %v5719 = vunpack.c.l.b16 %v5158
    %v5720 = vunpack.c.l.b16 %v5159
    %v5721 = vunpack.c.l.b16 %v5160
    %v5722 = vunpack.c.l.b16 %v5161
    %v5723 = vunpack.c.l.b16 %v5162
    %v5724 = vunpack.c.l.b16 %v5163
    %v5725 = vunpack.c.l.b16 %v5164
    %v5726 = vunpack.c.l.b16 %v5165
    %v5727 = vunpack.c.l.b16 %v5166
    %v5728 = vunpack.c.l.b16 %v5167
    %v5729 = vunpack.c.l.b16 %v5168
    %v5730 = vunpack.c.l.b16 %v5169
    %v5731 = vunpack.c.l.b16 %v5170
    %v5732 = vunpack.c.l.b16 %v5171
    %v5733 = vunpack.c.l.b16 %v5172
    %v5734 = vpack.c.b16 %v5719, %v5718
    %v5735 = vpack.c.b16 %v5721, %v5720
    %v5736 = vpack.c.b16 %v5723, %v5722
    %v5737 = vpack.c.b16 %v5725, %v5724
    %v5738 = vpack.c.b16 %v5727, %v5726
    %v5739 = vpack.c.b16 %v5729, %v5728
    %v5740 = vpack.c.b16 %v5731, %v5730
    %v5741 = vpack.c.b16 %v5733, %v5732
    %5750 = vmatprep.subr.bf16.mxu0 0
    %5751 = vmatpush1.bf16.msra.mxu0 %v5734
    %5752 = vmatprep.subr.bf16.mxu0 0
    %5753 = vmatpush1.bf16.msra.mxu0 %v5735
    %5754 = vmatprep.subr.bf16.mxu0 0
    %5755 = vmatpush1.bf16.msra.mxu0 %v5736
    %5756 = vmatprep.subr.bf16.mxu0 0
    %5757 = vmatpush1.bf16.msra.mxu0 %v5737
    %5758 = vmatprep.subr.bf16.mxu0 0
    %5759 = vmatpush1.bf16.msra.mxu0 %v5738
    %5760 = vmatprep.subr.bf16.mxu0 0
    %5761 = vmatpush1.bf16.msra.mxu0 %v5739
    %5762 = vmatprep.subr.bf16.mxu0 0
    %5763 = vmatpush1.bf16.msra.mxu0 %v5740
    %5764 = vmatprep.subr.bf16.mxu0 0
    %5765 = vmatpush1.bf16.msra.mxu0 %v5741
    %5766 = vmatprep.subr.bf16.mxu0 0
    %5767 = vmatpush1.bf16.msra.mxu0 0
    %5768 = vmatprep.subr.bf16.mxu0 0
    %5769 = vmatpush1.bf16.msra.mxu0 0
    %5770 = vmatprep.subr.bf16.mxu0 0
    %5771 = vmatpush1.bf16.msra.mxu0 0
    %5772 = vmatprep.subr.bf16.mxu0 0
    %5773 = vmatpush1.bf16.msra.mxu0 0
    %5774 = vmatprep.subr.bf16.mxu0 0
    %5775 = vmatpush1.bf16.msra.mxu0 0
    %5776 = vmatprep.subr.bf16.mxu0 0
    %5777 = vmatpush1.bf16.msra.mxu0 0
    %5778 = vmatprep.subr.bf16.mxu0 0
    %5779 = vmatpush1.bf16.msra.mxu0 0
    %5780 = vmatprep.subr.bf16.mxu0 0
    %5781 = vmatpush1.bf16.msra.mxu0 0
    %5782 = vmatprep.mubr.bf16.mxu0 0
    %5783 = vmatmul.mubr.bf16.gmra.mrb[0].mxu0 %v5153
    %v5784 = vpop.f32.mrb[0].mxu0
    %v5785 = vadd.f32 %v5673, %v5784
    %v5786 = vpop.f32.mrb[0].mxu0
    %v5787 = vpop.f32.mrb[0].mxu0
    %v5788 = vadd.f32 %v5676, %v5787
    %v5789 = vpop.f32.mrb[0].mxu0
    %5790 = vmatprep.mubr.bf16.mxu0 0
    %5791 = vmatmul.mubr.bf16.gmra.mrb[0].mxu0 %v5154
    %v5792 = vpop.f32.mrb[0].mxu0
    %v5793 = vadd.f32 %v5681, %v5792
    %v5794 = vpop.f32.mrb[0].mxu0
    %v5795 = vpop.f32.mrb[0].mxu0
    %v5796 = vadd.f32 %v5684, %v5795
    %v5797 = vpop.f32.mrb[0].mxu0
    %5798 = vmatprep.mubr.bf16.mxu0 0
    %5799 = vmatmul.mubr.bf16.gmra.mrb[0].mxu0 %v5155
    %v5800 = vpop.f32.mrb[0].mxu0
    %v5801 = vadd.f32 %v5689, %v5800
    %v5802 = vpop.f32.mrb[0].mxu0
    %v5803 = vpop.f32.mrb[0].mxu0
    %v5804 = vadd.f32 %v5692, %v5803
    %v5805 = vpop.f32.mrb[0].mxu0
    %5806 = vmatprep.mubr.bf16.mxu0 0
    %5807 = vmatmul.mubr.bf16.gmra.mrb[0].mxu0 %v5156
    %v5808 = vpop.f32.mrb[0].mxu0
    %v5809 = vadd.f32 %v5697, %v5808
    %v5810 = vpop.f32.mrb[0].mxu0
    %v5811 = vpop.f32.mrb[0].mxu0
    %v5812 = vpop.f32.mrb[0].mxu0
    %5813 = vdwg.mxu0
    %v5816 = vcombine.high %v4430, %v4430
    %v5818 = vunpack.c.l.s4 1966171168
    %v5819 = vunpack.c.0.s8 %v5818
    %v5820 = vlaneseq
    %v5821 = vshrl.u32 %v5820, 7
    %v5822 = vsub.s32 %v5819, %v5821
    %v5823 = vrot.slane %v4430, %v5822
    %v5825 = vunpack.c.l.s4 1966171168
    %v5826 = vunpack.c.0.s8 %v5825
    %v5827 = vlaneseq
    %v5828 = vshrl.u32 %v5827, 7
    %v5829 = vsub.s32 %v5826, %v5828
    %v5830 = vrot.slane %v5816, %v5829
    %v5831 = vcombine.high %v5823, %v5823
    %v5833 = vunpack.c.l.s4 1966171168
    %v5834 = vunpack.c.0.s8 %v5833
    %v5835 = vlaneseq
    %v5836 = vshrl.u32 %v5835, 7
    %v5837 = vsub.s32 %v5834, %v5836
    %v5838 = vrot.slane %v5823, %v5837
    %v5840 = vunpack.c.l.s4 1966171168
    %v5841 = vunpack.c.0.s8 %v5840
    %v5842 = vlaneseq
    %v5843 = vshrl.u32 %v5842, 7
    %v5844 = vsub.s32 %v5841, %v5843
    %v5845 = vrot.slane %v5830, %v5844
    %v5847 = vunpack.c.l.s4 1966171168
    %v5848 = vunpack.c.0.s8 %v5847
    %v5849 = vlaneseq
    %v5850 = vshrl.u32 %v5849, 7
    %v5851 = vsub.s32 %v5848, %v5850
    %v5852 = vrot.slane %v5831, %v5851
    %v5853 = vcombine.high %v5838, %v5838
    %v5854 = vcombine.high %v5852, %v5852
    %v5855 = vcombine.high %v4436, %v4436
    %v5857 = vunpack.c.l.s4 1966171168
    %v5858 = vunpack.c.0.s8 %v5857
    %v5859 = vlaneseq
    %v5860 = vshrl.u32 %v5859, 7
    %v5861 = vsub.s32 %v5858, %v5860
    %v5862 = vrot.slane %v4436, %v5861
    %v5864 = vunpack.c.l.s4 1966171168
    %v5865 = vunpack.c.0.s8 %v5864
    %v5866 = vlaneseq
    %v5867 = vshrl.u32 %v5866, 7
    %v5868 = vsub.s32 %v5865, %v5867
    %v5869 = vrot.slane %v5855, %v5868
    %v5870 = vcombine.high %v5862, %v5862
    %v5872 = vunpack.c.l.s4 1966171168
    %v5873 = vunpack.c.0.s8 %v5872
    %v5874 = vlaneseq
    %v5875 = vshrl.u32 %v5874, 7
    %v5876 = vsub.s32 %v5873, %v5875
    %v5877 = vrot.slane %v5862, %v5876
    %v5879 = vunpack.c.l.s4 1966171168
    %v5880 = vunpack.c.0.s8 %v5879
    %v5881 = vlaneseq
    %v5882 = vshrl.u32 %v5881, 7
    %v5883 = vsub.s32 %v5880, %v5882
    %v5884 = vrot.slane %v5869, %v5883
    %v5886 = vunpack.c.l.s4 1966171168
    %v5887 = vunpack.c.0.s8 %v5886
    %v5888 = vlaneseq
    %v5889 = vshrl.u32 %v5888, 7
    %v5890 = vsub.s32 %v5887, %v5889
    %v5891 = vrot.slane %v5870, %v5890
    %v5892 = vcombine.high %v5877, %v5877
    %v5893 = vcombine.high %v5891, %v5891
    %v5894 = vcombine.low %v4508, %v4522
    %v5895 = vcombine.low %v4515, %v4547
    %v5897 = vunpack.c.l.s4 1966171168
    %v5898 = vunpack.c.0.s8 %v5897
    %v5899 = vlaneseq
    %v5900 = vshrl.u32 %v5899, 7
    %v5901 = vsub.s32 %v5898, %v5900
    %v5902 = vrot.slane %v5894, %v5901
    %v5904 = vunpack.c.l.s4 1966171168
    %v5905 = vunpack.c.0.s8 %v5904
    %v5906 = vlaneseq
    %v5907 = vshrl.u32 %v5906, 7
    %v5908 = vsub.s32 %v5905, %v5907
    %v5909 = vrot.slane %v5895, %v5908
    %v5910 = vcombine.low %v5902, %v5284
    %v5911 = vcombine.low %v5909, %v5319
    %v5913 = vunpack.c.l.s4 1966171168
    %v5914 = vunpack.c.0.s8 %v5913
    %v5915 = vlaneseq
    %v5916 = vshrl.u32 %v5915, 7
    %v5917 = vsub.s32 %v5914, %v5916
    %v5918 = vrot.slane %v5910, %v5917
    %v5920 = vunpack.c.l.s4 1966171168
    %v5921 = vunpack.c.0.s8 %v5920
    %v5922 = vlaneseq
    %v5923 = vshrl.u32 %v5922, 7
    %v5924 = vsub.s32 %v5921, %v5923
    %v5925 = vrot.slane %v5911, %v5924
    %v5926 = vcombine.low %v5918, %v5925
    %v5927 = vcombine.low %v4586, %v4600
    %v5928 = vcombine.low %v4593, %v4625
    %v5930 = vunpack.c.l.s4 1966171168
    %v5931 = vunpack.c.0.s8 %v5930
    %v5932 = vlaneseq
    %v5933 = vshrl.u32 %v5932, 7
    %v5934 = vsub.s32 %v5931, %v5933
    %v5935 = vrot.slane %v5927, %v5934
    %v5937 = vunpack.c.l.s4 1966171168
    %v5938 = vunpack.c.0.s8 %v5937
    %v5939 = vlaneseq
    %v5940 = vshrl.u32 %v5939, 7
    %v5941 = vsub.s32 %v5938, %v5940
    %v5942 = vrot.slane %v5928, %v5941
    %v5943 = vcombine.low %v5326, %v5935
    %v5944 = vcombine.low %v5361, %v5942
    %v5946 = vunpack.c.l.s4 1966171168
    %v5947 = vunpack.c.0.s8 %v5946
    %v5948 = vlaneseq
    %v5949 = vshrl.u32 %v5948, 7
    %v5950 = vsub.s32 %v5947, %v5949
    %v5951 = vrot.slane %v5943, %v5950
    %v5953 = vunpack.c.l.s4 1966171168
    %v5954 = vunpack.c.0.s8 %v5953
    %v5955 = vlaneseq
    %v5956 = vshrl.u32 %v5955, 7
    %v5957 = vsub.s32 %v5954, %v5956
    %v5958 = vrot.slane %v5944, %v5957
    %v5959 = vcombine.low %v5951, %v5958
    %v5960 = vcombine.low %v5838, %v5852
    %v5961 = vcombine.low %v5853, %v5854
    %v5963 = vunpack.c.l.s4 1966171168
    %v5964 = vunpack.c.0.s8 %v5963
    %v5965 = vlaneseq
    %v5966 = vshrl.u32 %v5965, 7
    %v5967 = vsub.s32 %v5964, %v5966
    %v5968 = vrot.slane %v5960, %v5967
    %v5970 = vunpack.c.l.s4 1966171168
    %v5971 = vunpack.c.0.s8 %v5970
    %v5972 = vlaneseq
    %v5973 = vshrl.u32 %v5972, 7
    %v5974 = vsub.s32 %v5971, %v5973
    %v5975 = vrot.slane %v5961, %v5974
    %v5976 = vcombine.low %v5968, %v5975
    %v5978 = vunpack.c.l.s4 1966171168
    %v5979 = vunpack.c.0.s8 %v5978
    %v5980 = vlaneseq
    %v5981 = vshrl.u32 %v5980, 7
    %v5982 = vsub.s32 %v5979, %v5981
    %v5983 = vrot.slane %v5976, %v5982
    %v5984 = vcombine.low %v5398, %v5983
    %v5985 = vcombine.low %v5845, %v4703
    %v5986 = vcombine.low %v4742, %v4756
    %v5988 = vunpack.c.l.s4 1966171168
    %v5989 = vunpack.c.0.s8 %v5988
    %v5990 = vlaneseq
    %v5991 = vshrl.u32 %v5990, 7
    %v5992 = vsub.s32 %v5989, %v5991
    %v5993 = vrot.slane %v5985, %v5992
    %v5995 = vunpack.c.l.s4 1966171168
    %v5996 = vunpack.c.0.s8 %v5995
    %v5997 = vlaneseq
    %v5998 = vshrl.u32 %v5997, 7
    %v5999 = vsub.s32 %v5996, %v5998
    %v6000 = vrot.slane %v5986, %v5999
    %v6001 = vcombine.low %v5993, %v5431
    %v6002 = vcombine.low %v5459, %v6000
    %v6004 = vunpack.c.l.s4 1966171168
    %v6005 = vunpack.c.0.s8 %v6004
    %v6006 = vlaneseq
    %v6007 = vshrl.u32 %v6006, 7
    %v6008 = vsub.s32 %v6005, %v6007
    %v6009 = vrot.slane %v6001, %v6008
    %v6011 = vunpack.c.l.s4 1966171168
    %v6012 = vunpack.c.0.s8 %v6011
    %v6013 = vlaneseq
    %v6014 = vshrl.u32 %v6013, 7
    %v6015 = vsub.s32 %v6012, %v6014
    %v6016 = vrot.slane %v6002, %v6015
    %v6017 = vcombine.low %v6009, %v6016
    %v6018 = vcombine.low %v4749, %v4781
    %v6020 = vunpack.c.l.s4 1966171168
    %v6021 = vunpack.c.0.s8 %v6020
    %v6022 = vlaneseq
    %v6023 = vshrl.u32 %v6022, 7
    %v6024 = vsub.s32 %v6021, %v6023
    %v6025 = vrot.slane %v6018, %v6024
    %v6026 = vcombine.low %v5473, %v6025
    %v6028 = vunpack.c.l.s4 1966171168
    %v6029 = vunpack.c.0.s8 %v6028
    %v6030 = vlaneseq
    %v6031 = vshrl.u32 %v6030, 7
    %v6032 = vsub.s32 %v6029, %v6031
    %v6033 = vrot.slane %v6026, %v6032
    %v6034 = vcombine.low %v6033, %v5538
    %v6035 = vcombine.low %v4820, %v4834
    %v6036 = vcombine.low %v4827, %v5877
    %v6037 = vcombine.low %v5891, %v5892
    %v6039 = vunpack.c.l.s4 1966171168
    %v6040 = vunpack.c.0.s8 %v6039
    %v6041 = vlaneseq
    %v6042 = vshrl.u32 %v6041, 7
    %v6043 = vsub.s32 %v6040, %v6042
    %v6044 = vrot.slane %v6035, %v6043
    %v6046 = vunpack.c.l.s4 1966171168
    %v6047 = vunpack.c.0.s8 %v6046
    %v6048 = vlaneseq
    %v6049 = vshrl.u32 %v6048, 7
    %v6050 = vsub.s32 %v6047, %v6049
    %v6051 = vrot.slane %v6036, %v6050
    %v6053 = vunpack.c.l.s4 1966171168
    %v6054 = vunpack.c.0.s8 %v6053
    %v6055 = vlaneseq
    %v6056 = vshrl.u32 %v6055, 7
    %v6057 = vsub.s32 %v6054, %v6056
    %v6058 = vrot.slane %v6037, %v6057
    %v6059 = vcombine.low %v6044, %v5529
    %v6060 = vcombine.low %v6051, %v6058
    %v6062 = vunpack.c.l.s4 1966171168
    %v6063 = vunpack.c.0.s8 %v6062
    %v6064 = vlaneseq
    %v6065 = vshrl.u32 %v6064, 7
    %v6066 = vsub.s32 %v6063, %v6065
    %v6067 = vrot.slane %v6059, %v6066
    %v6069 = vunpack.c.l.s4 1966171168
    %v6070 = vunpack.c.0.s8 %v6069
    %v6071 = vlaneseq
    %v6072 = vshrl.u32 %v6071, 7
    %v6073 = vsub.s32 %v6070, %v6072
    %v6074 = vrot.slane %v6060, %v6073
    %v6075 = vcombine.low %v6067, %v6074
    %v6076 = vcombine.low %v5893, %v5884
    %v6078 = vunpack.c.l.s4 1966171168
    %v6079 = vunpack.c.0.s8 %v6078
    %v6080 = vlaneseq
    %v6081 = vshrl.u32 %v6080, 7
    %v6082 = vsub.s32 %v6079, %v6081
    %v6083 = vrot.slane %v6076, %v6082
    %v6085 = vunpack.c.l.s4 1966171168
    %v6086 = vunpack.c.0.s8 %v6085
    %v6087 = vlaneseq
    %v6088 = vshrl.u32 %v6087, 7
    %v6089 = vsub.s32 %v6086, %v6088
    %v6090 = vrot.slane %v6083, %v6089
    %v6098 = vpack.c.bf16 %v5959, %v5926
    %v6099 = vpack.c.bf16 %v6017, %v5984
    %v6100 = vpack.c.bf16 %v6075, %v6034
    %v6101 = vpack.c.bf16 %v6090, %v6090
    %s6102 = scalar_lea.vmem %s3, 128
    %v6103 = vld [vmem:[%s6102] sm:$0xf]
    %v6104 = vld [vmem:[%s6102 + $0x4] sm:$0xf]
    %v6105 = vld [vmem:[%s6102 + $0x8] sm:$0xf]
    %v6106 = vld [vmem:[%s6102 + $0xc] sm:$0xf]
    %v6107 = vld [vmem:[%s6102 + $0x10] sm:$0xf]
    %v6108 = vld [vmem:[%s6102 + $0x14] sm:$0xf]
    %v6109 = vld [vmem:[%s6102 + $0x18] sm:$0xf]
    %v6110 = vld [vmem:[%s6102 + $0x1c] sm:$0xf]
    %v6111 = vld [vmem:[%s6102 + $0x20] sm:$0xf]
    %v6112 = vld [vmem:[%s6102 + $0x24] sm:$0xf]
    %v6113 = vld [vmem:[%s6102 + $0x28] sm:$0xf]
    %v6114 = vld [vmem:[%s6102 + $0x2c] sm:$0xf]
    %v6115 = vld [vmem:[%s6102 + $0x30] sm:$0xf]
    %v6116 = vld [vmem:[%s6102 + $0x34] sm:$0xf]
    %v6117 = vld [vmem:[%s6102 + $0x38] sm:$0xf]
    %v6118 = vld [vmem:[%s6102 + $0x3c] sm:$0xf]
    %v6135 = vunpack.c.l.b16 %v6103
    %v6136 = vunpack.c.l.b16 %v6104
    %v6137 = vunpack.c.l.b16 %v6105
    %v6138 = vunpack.c.l.b16 %v6106
    %v6139 = vunpack.c.l.b16 %v6107
    %v6140 = vunpack.c.l.b16 %v6108
    %v6141 = vunpack.c.l.b16 %v6109
    %v6142 = vunpack.c.l.b16 %v6110
    %v6143 = vunpack.c.l.b16 %v6111
    %v6144 = vunpack.c.l.b16 %v6112
    %v6145 = vunpack.c.l.b16 %v6113
    %v6146 = vunpack.c.l.b16 %v6114
    %v6147 = vunpack.c.l.b16 %v6115
    %v6148 = vunpack.c.l.b16 %v6116
    %v6149 = vunpack.c.l.b16 %v6117
    %v6150 = vunpack.c.l.b16 %v6118
    %v6151 = vpack.c.b16 %v6136, %v6135
    %v6152 = vpack.c.b16 %v6138, %v6137
    %v6153 = vpack.c.b16 %v6140, %v6139
    %v6154 = vpack.c.b16 %v6142, %v6141
    %v6155 = vpack.c.b16 %v6144, %v6143
    %v6156 = vpack.c.b16 %v6146, %v6145
    %v6157 = vpack.c.b16 %v6148, %v6147
    %v6158 = vpack.c.b16 %v6150, %v6149
    %6167 = vmatprep.subr.bf16.mxu0 0
    %6168 = vmatpush1.bf16.msra.mxu0 %v6151
    %6169 = vmatprep.subr.bf16.mxu0 0
    %6170 = vmatpush1.bf16.msra.mxu0 %v6152
    %6171 = vmatprep.subr.bf16.mxu0 0
    %6172 = vmatpush1.bf16.msra.mxu0 %v6153
    %6173 = vmatprep.subr.bf16.mxu0 0
    %6174 = vmatpush1.bf16.msra.mxu0 %v6154
    %6175 = vmatprep.subr.bf16.mxu0 0
    %6176 = vmatpush1.bf16.msra.mxu0 %v6155
    %6177 = vmatprep.subr.bf16.mxu0 0
    %6178 = vmatpush1.bf16.msra.mxu0 %v6156
    %6179 = vmatprep.subr.bf16.mxu0 0
    %6180 = vmatpush1.bf16.msra.mxu0 %v6157
    %6181 = vmatprep.subr.bf16.mxu0 0
    %6182 = vmatpush1.bf16.msra.mxu0 %v6158
    %6183 = vmatprep.subr.bf16.mxu0 0
    %6184 = vmatpush1.bf16.msra.mxu0 0
    %6185 = vmatprep.subr.bf16.mxu0 0
    %6186 = vmatpush1.bf16.msra.mxu0 0
    %6187 = vmatprep.subr.bf16.mxu0 0
    %6188 = vmatpush1.bf16.msra.mxu0 0
    %6189 = vmatprep.subr.bf16.mxu0 0
    %6190 = vmatpush1.bf16.msra.mxu0 0
    %6191 = vmatprep.subr.bf16.mxu0 0
    %6192 = vmatpush1.bf16.msra.mxu0 0
    %6193 = vmatprep.subr.bf16.mxu0 0
    %6194 = vmatpush1.bf16.msra.mxu0 0
    %6195 = vmatprep.subr.bf16.mxu0 0
    %6196 = vmatpush1.bf16.msra.mxu0 0
    %6197 = vmatprep.subr.bf16.mxu0 0
    %6198 = vmatpush1.bf16.msra.mxu0 0
    %6199 = vmatprep.mubr.bf16.mxu0 0
    %6200 = vmatmul.mubr.bf16.gmra.mrb[0].mxu0 %v6098
    %v6201 = vpop.f32.mrb[0].mxu0
    %v6202 = vadd.f32 0.0, %v6201
    %v6203 = vpop.f32.mrb[0].mxu0
    %v6204 = vpop.f32.mrb[0].mxu0
    %v6205 = vadd.f32 0.0, %v6204
    %v6206 = vpop.f32.mrb[0].mxu0
    %6207 = vmatprep.mubr.bf16.mxu0 0
    %6208 = vmatmul.mubr.bf16.gmra.mrb[0].mxu0 %v6099
    %v6209 = vpop.f32.mrb[0].mxu0
    %v6210 = vadd.f32 0.0, %v6209
    %v6211 = vpop.f32.mrb[0].mxu0
    %v6212 = vpop.f32.mrb[0].mxu0
    %v6213 = vadd.f32 0.0, %v6212
    %v6214 = vpop.f32.mrb[0].mxu0
    %6215 = vmatprep.mubr.bf16.mxu0 0
    %6216 = vmatmul.mubr.bf16.gmra.mrb[0].mxu0 %v6100
    %v6217 = vpop.f32.mrb[0].mxu0
    %v6218 = vadd.f32 0.0, %v6217
    %v6219 = vpop.f32.mrb[0].mxu0
    %v6220 = vpop.f32.mrb[0].mxu0
    %v6221 = vadd.f32 0.0, %v6220
    %v6222 = vpop.f32.mrb[0].mxu0
    %6223 = vmatprep.mubr.bf16.mxu0 0
    %6224 = vmatmul.mubr.bf16.gmra.mrb[0].mxu0 %v6101
    %v6225 = vpop.f32.mrb[0].mxu0
    %v6226 = vadd.f32 0.0, %v6225
    %v6227 = vpop.f32.mrb[0].mxu0
    %v6228 = vpop.f32.mrb[0].mxu0
    %v6229 = vpop.f32.mrb[0].mxu0
    %6230 = vdwg.mxu0
    %v6231 = vadd.f32 %v5785, %v6202
    %v6232 = vadd.f32 %v5788, %v6205
    %v6233 = vadd.f32 %v5793, %v6210
    %v6234 = vadd.f32 %v5796, %v6213
    %v6235 = vadd.f32 %v5801, %v6218
    %v6236 = vadd.f32 %v5804, %v6221
    %v6237 = vadd.f32 %v5809, %v6226
    %v6238 = vcombine.high %v5830, %v5830
    %v6240 = vunpack.c.l.s4 1966171168
    %v6241 = vunpack.c.0.s8 %v6240
    %v6242 = vlaneseq
    %v6243 = vshrl.u32 %v6242, 7
    %v6244 = vsub.s32 %v6241, %v6243
    %v6245 = vrot.slane %v6238, %v6244
    %v6246 = vcombine.high %v5869, %v5869
    %v6248 = vunpack.c.l.s4 1966171168
    %v6249 = vunpack.c.0.s8 %v6248
    %v6250 = vlaneseq
    %v6251 = vshrl.u32 %v6250, 7
    %v6252 = vsub.s32 %v6249, %v6251
    %v6253 = vrot.slane %v6246, %v6252
    %v6254 = vcombine.low %v5188, %v4561
    %v6256 = vunpack.c.l.s4 1966171168
    %v6257 = vunpack.c.0.s8 %v6256
    %v6258 = vlaneseq
    %v6259 = vshrl.u32 %v6258, 7
    %v6260 = vsub.s32 %v6257, %v6259
    %v6261 = vrot.slane %v6254, %v6260
    %v6262 = vcombine.low %v4868, %v4896
    %v6263 = vcombine.low %v6261, %v4910
    %v6265 = vunpack.c.l.s4 1966171168
    %v6266 = vunpack.c.0.s8 %v6265
    %v6267 = vlaneseq
    %v6268 = vshrl.u32 %v6267, 7
    %v6269 = vsub.s32 %v6266, %v6268
    %v6270 = vrot.slane %v6262, %v6269
    %v6272 = vunpack.c.l.s4 1966171168
    %v6273 = vunpack.c.0.s8 %v6272
    %v6274 = vlaneseq
    %v6275 = vshrl.u32 %v6274, 7
    %v6276 = vsub.s32 %v6273, %v6275
    %v6277 = vrot.slane %v6263, %v6276
    %v6278 = vcombine.low %v6270, %v6277
    %v6279 = vcombine.low %v4554, %v5196
    %v6280 = vcombine.low %v5204, %v4639
    %v6282 = vunpack.c.l.s4 1966171168
    %v6283 = vunpack.c.0.s8 %v6282
    %v6284 = vlaneseq
    %v6285 = vshrl.u32 %v6284, 7
    %v6286 = vsub.s32 %v6283, %v6285
    %v6287 = vrot.slane %v6279, %v6286
    %v6289 = vunpack.c.l.s4 1966171168
    %v6290 = vunpack.c.0.s8 %v6289
    %v6291 = vlaneseq
    %v6292 = vshrl.u32 %v6291, 7
    %v6293 = vsub.s32 %v6290, %v6292
    %v6294 = vrot.slane %v6280, %v6293
    %v6295 = vcombine.low %v6287, %v4945
    %v6296 = vcombine.low %v4952, %v6294
    %v6298 = vunpack.c.l.s4 1966171168
    %v6299 = vunpack.c.0.s8 %v6298
    %v6300 = vlaneseq
    %v6301 = vshrl.u32 %v6300, 7
    %v6302 = vsub.s32 %v6299, %v6301
    %v6303 = vrot.slane %v6295, %v6302
    %v6305 = vunpack.c.l.s4 1966171168
    %v6306 = vunpack.c.0.s8 %v6305
    %v6307 = vlaneseq
    %v6308 = vshrl.u32 %v6307, 7
    %v6309 = vsub.s32 %v6306, %v6308
    %v6310 = vrot.slane %v6296, %v6309
    %v6311 = vcombine.low %v6303, %v6310
    %v6312 = vcombine.low %v4632, %v5212
    %v6313 = vcombine.low %v5852, %v5853
    %v6314 = vcombine.low %v5854, %v5845
    %v6316 = vunpack.c.l.s4 1966171168
    %v6317 = vunpack.c.0.s8 %v6316
    %v6318 = vlaneseq
    %v6319 = vshrl.u32 %v6318, 7
    %v6320 = vsub.s32 %v6317, %v6319
    %v6321 = vrot.slane %v6312, %v6320
    %v6323 = vunpack.c.l.s4 1966171168
    %v6324 = vunpack.c.0.s8 %v6323
    %v6325 = vlaneseq
    %v6326 = vshrl.u32 %v6325, 7
    %v6327 = vsub.s32 %v6324, %v6326
    %v6328 = vrot.slane %v6313, %v6327
    %v6330 = vunpack.c.l.s4 1966171168
    %v6331 = vunpack.c.0.s8 %v6330
    %v6332 = vlaneseq
    %v6333 = vshrl.u32 %v6332, 7
    %v6334 = vsub.s32 %v6331, %v6333
    %v6335 = vrot.slane %v6314, %v6334
    %v6336 = vcombine.low %v4966, %v6321
    %v6337 = vcombine.low %v6328, %v6335
    %v6339 = vunpack.c.l.s4 1966171168
    %v6340 = vunpack.c.0.s8 %v6339
    %v6341 = vlaneseq
    %v6342 = vshrl.u32 %v6341, 7
    %v6343 = vsub.s32 %v6340, %v6342
    %v6344 = vrot.slane %v6336, %v6343
    %v6346 = vunpack.c.l.s4 1966171168
    %v6347 = vunpack.c.0.s8 %v6346
    %v6348 = vlaneseq
    %v6349 = vshrl.u32 %v6348, 7
    %v6350 = vsub.s32 %v6347, %v6349
    %v6351 = vrot.slane %v6337, %v6350
    %v6352 = vcombine.low %v6344, %v6351
    %v6353 = vcombine.low %v6245, %v4717
    %v6354 = vcombine.low %v4710, %v5228
    %v6356 = vunpack.c.l.s4 1966171168
    %v6357 = vunpack.c.0.s8 %v6356
    %v6358 = vlaneseq
    %v6359 = vshrl.u32 %v6358, 7
    %v6360 = vsub.s32 %v6357, %v6359
    %v6361 = vrot.slane %v6353, %v6360
    %v6363 = vunpack.c.l.s4 1966171168
    %v6364 = vunpack.c.0.s8 %v6363
    %v6365 = vlaneseq
    %v6366 = vshrl.u32 %v6365, 7
    %v6367 = vsub.s32 %v6364, %v6366
    %v6368 = vrot.slane %v6354, %v6367
    %v6369 = vcombine.low %v6361, %v5043
    %v6370 = vcombine.low %v6368, %v5057
    %v6372 = vunpack.c.l.s4 1966171168
    %v6373 = vunpack.c.0.s8 %v6372
    %v6374 = vlaneseq
    %v6375 = vshrl.u32 %v6374, 7
    %v6376 = vsub.s32 %v6373, %v6375
    %v6377 = vrot.slane %v6369, %v6376
    %v6379 = vunpack.c.l.s4 1966171168
    %v6380 = vunpack.c.0.s8 %v6379
    %v6381 = vlaneseq
    %v6382 = vshrl.u32 %v6381, 7
    %v6383 = vsub.s32 %v6380, %v6382
    %v6384 = vrot.slane %v6370, %v6383
    %v6385 = vcombine.low %v6377, %v6384
    %v6386 = vcombine.low %v5236, %v4795
    %v6387 = vcombine.low %v4788, %v5244
    %v6389 = vunpack.c.l.s4 1966171168
    %v6390 = vunpack.c.0.s8 %v6389
    %v6391 = vlaneseq
    %v6392 = vshrl.u32 %v6391, 7
    %v6393 = vsub.s32 %v6390, %v6392
    %v6394 = vrot.slane %v6386, %v6393
    %v6396 = vunpack.c.l.s4 1966171168
    %v6397 = vunpack.c.0.s8 %v6396
    %v6398 = vlaneseq
    %v6399 = vshrl.u32 %v6398, 7
    %v6400 = vsub.s32 %v6397, %v6399
    %v6401 = vrot.slane %v6387, %v6400
    %v6402 = vcombine.low %v5064, %v6394
    %v6403 = vcombine.low %v5099, %v6401
    %v6405 = vunpack.c.l.s4 1966171168
    %v6406 = vunpack.c.0.s8 %v6405
    %v6407 = vlaneseq
    %v6408 = vshrl.u32 %v6407, 7
    %v6409 = vsub.s32 %v6406, %v6408
    %v6410 = vrot.slane %v6402, %v6409
    %v6412 = vunpack.c.l.s4 1966171168
    %v6413 = vunpack.c.0.s8 %v6412
    %v6414 = vlaneseq
    %v6415 = vshrl.u32 %v6414, 7
    %v6416 = vsub.s32 %v6413, %v6415
    %v6417 = vrot.slane %v6403, %v6416
    %v6418 = vcombine.low %v6410, %v6417
    %v6419 = vcombine.low %v5252, %v5891
    %v6420 = vcombine.low %v5892, %v5893
    %v6422 = vunpack.c.l.s4 1966171168
    %v6423 = vunpack.c.0.s8 %v6422
    %v6424 = vlaneseq
    %v6425 = vshrl.u32 %v6424, 7
    %v6426 = vsub.s32 %v6423, %v6425
    %v6427 = vrot.slane %v6419, %v6426
    %v6429 = vunpack.c.l.s4 1966171168
    %v6430 = vunpack.c.0.s8 %v6429
    %v6431 = vlaneseq
    %v6432 = vshrl.u32 %v6431, 7
    %v6433 = vsub.s32 %v6430, %v6432
    %v6434 = vrot.slane %v6420, %v6433
    %v6435 = vcombine.low %v5113, %v5138
    %v6436 = vcombine.low %v6427, %v6434
    %v6438 = vunpack.c.l.s4 1966171168
    %v6439 = vunpack.c.0.s8 %v6438
    %v6440 = vlaneseq
    %v6441 = vshrl.u32 %v6440, 7
    %v6442 = vsub.s32 %v6439, %v6441
    %v6443 = vrot.slane %v6435, %v6442
    %v6445 = vunpack.c.l.s4 1966171168
    %v6446 = vunpack.c.0.s8 %v6445
    %v6447 = vlaneseq
    %v6448 = vshrl.u32 %v6447, 7
    %v6449 = vsub.s32 %v6446, %v6448
    %v6450 = vrot.slane %v6436, %v6449
    %v6451 = vcombine.low %v6443, %v6450
    %v6452 = vcombine.low %v5884, %v6253
    %v6454 = vunpack.c.l.s4 1966171168
    %v6455 = vunpack.c.0.s8 %v6454
    %v6456 = vlaneseq
    %v6457 = vshrl.u32 %v6456, 7
    %v6458 = vsub.s32 %v6455, %v6457
    %v6459 = vrot.slane %v6452, %v6458
    %v6461 = vunpack.c.l.s4 1966171168
    %v6462 = vunpack.c.0.s8 %v6461
    %v6463 = vlaneseq
    %v6464 = vshrl.u32 %v6463, 7
    %v6465 = vsub.s32 %v6462, %v6464
    %v6466 = vrot.slane %v6459, %v6465
    %v6474 = vpack.c.bf16 %v6311, %v6278
    %v6475 = vpack.c.bf16 %v6385, %v6352
    %v6476 = vpack.c.bf16 %v6451, %v6418
    %v6477 = vpack.c.bf16 %v6466, %v6466
    %s6478 = scalar_lea.vmem %s3, 192
    %v6479 = vld [vmem:[%s6478] sm:$0xf]
    %v6480 = vld [vmem:[%s6478 + $0x4] sm:$0xf]
    %v6481 = vld [vmem:[%s6478 + $0x8] sm:$0xf]
    %v6482 = vld [vmem:[%s6478 + $0xc] sm:$0xf]
    %v6483 = vld [vmem:[%s6478 + $0x10] sm:$0xf]
    %v6484 = vld [vmem:[%s6478 + $0x14] sm:$0xf]
    %v6485 = vld [vmem:[%s6478 + $0x18] sm:$0xf]
    %v6486 = vld [vmem:[%s6478 + $0x1c] sm:$0xf]
    %v6487 = vld [vmem:[%s6478 + $0x20] sm:$0xf]
    %v6488 = vld [vmem:[%s6478 + $0x24] sm:$0xf]
    %v6489 = vld [vmem:[%s6478 + $0x28] sm:$0xf]
    %v6490 = vld [vmem:[%s6478 + $0x2c] sm:$0xf]
    %v6491 = vld [vmem:[%s6478 + $0x30] sm:$0xf]
    %v6492 = vld [vmem:[%s6478 + $0x34] sm:$0xf]
    %v6493 = vld [vmem:[%s6478 + $0x38] sm:$0xf]
    %v6494 = vld [vmem:[%s6478 + $0x3c] sm:$0xf]
    %v6511 = vunpack.c.l.b16 %v6479
    %v6512 = vunpack.c.l.b16 %v6480
    %v6513 = vunpack.c.l.b16 %v6481
    %v6514 = vunpack.c.l.b16 %v6482
    %v6515 = vunpack.c.l.b16 %v6483
    %v6516 = vunpack.c.l.b16 %v6484
    %v6517 = vunpack.c.l.b16 %v6485
    %v6518 = vunpack.c.l.b16 %v6486
    %v6519 = vunpack.c.l.b16 %v6487
    %v6520 = vunpack.c.l.b16 %v6488
    %v6521 = vunpack.c.l.b16 %v6489
    %v6522 = vunpack.c.l.b16 %v6490
    %v6523 = vunpack.c.l.b16 %v6491
    %v6524 = vunpack.c.l.b16 %v6492
    %v6525 = vunpack.c.l.b16 %v6493
    %v6526 = vunpack.c.l.b16 %v6494
    %v6527 = vpack.c.b16 %v6512, %v6511
    %v6528 = vpack.c.b16 %v6514, %v6513
    %v6529 = vpack.c.b16 %v6516, %v6515
    %v6530 = vpack.c.b16 %v6518, %v6517
    %v6531 = vpack.c.b16 %v6520, %v6519
    %v6532 = vpack.c.b16 %v6522, %v6521
    %v6533 = vpack.c.b16 %v6524, %v6523
    %v6534 = vpack.c.b16 %v6526, %v6525
    %6543 = vmatprep.subr.bf16.mxu0 0
    %6544 = vmatpush1.bf16.msra.mxu0 %v6527
    %6545 = vmatprep.subr.bf16.mxu0 0
    %6546 = vmatpush1.bf16.msra.mxu0 %v6528
    %6547 = vmatprep.subr.bf16.mxu0 0
    %6548 = vmatpush1.bf16.msra.mxu0 %v6529
    %6549 = vmatprep.subr.bf16.mxu0 0
    %6550 = vmatpush1.bf16.msra.mxu0 %v6530
    %6551 = vmatprep.subr.bf16.mxu0 0
    %6552 = vmatpush1.bf16.msra.mxu0 %v6531
    %6553 = vmatprep.subr.bf16.mxu0 0
    %6554 = vmatpush1.bf16.msra.mxu0 %v6532
    %6555 = vmatprep.subr.bf16.mxu0 0
    %6556 = vmatpush1.bf16.msra.mxu0 %v6533
    %6557 = vmatprep.subr.bf16.mxu0 0
    %6558 = vmatpush1.bf16.msra.mxu0 %v6534
    %6559 = vmatprep.subr.bf16.mxu0 0
    %6560 = vmatpush1.bf16.msra.mxu0 0
    %6561 = vmatprep.subr.bf16.mxu0 0
    %6562 = vmatpush1.bf16.msra.mxu0 0
    %6563 = vmatprep.subr.bf16.mxu0 0
    %6564 = vmatpush1.bf16.msra.mxu0 0
    %6565 = vmatprep.subr.bf16.mxu0 0
    %6566 = vmatpush1.bf16.msra.mxu0 0
    %6567 = vmatprep.subr.bf16.mxu0 0
    %6568 = vmatpush1.bf16.msra.mxu0 0
    %6569 = vmatprep.subr.bf16.mxu0 0
    %6570 = vmatpush1.bf16.msra.mxu0 0
    %6571 = vmatprep.subr.bf16.mxu0 0
    %6572 = vmatpush1.bf16.msra.mxu0 0
    %6573 = vmatprep.subr.bf16.mxu0 0
    %6574 = vmatpush1.bf16.msra.mxu0 0
    %6575 = vmatprep.mubr.bf16.mxu0 0
    %6576 = vmatmul.mubr.bf16.gmra.mrb[0].mxu0 %v6474
    %v6577 = vpop.f32.mrb[0].mxu0
    %v6578 = vadd.f32 0.0, %v6577
    %v6579 = vpop.f32.mrb[0].mxu0
    %v6580 = vpop.f32.mrb[0].mxu0
    %v6581 = vadd.f32 0.0, %v6580
    %v6582 = vpop.f32.mrb[0].mxu0
    %6583 = vmatprep.mubr.bf16.mxu0 0
    %6584 = vmatmul.mubr.bf16.gmra.mrb[0].mxu0 %v6475
    %v6585 = vpop.f32.mrb[0].mxu0
    %v6586 = vadd.f32 0.0, %v6585
    %v6587 = vpop.f32.mrb[0].mxu0
    %v6588 = vpop.f32.mrb[0].mxu0
    %v6589 = vadd.f32 0.0, %v6588
    %v6590 = vpop.f32.mrb[0].mxu0
    %6591 = vmatprep.mubr.bf16.mxu0 0
    %6592 = vmatmul.mubr.bf16.gmra.mrb[0].mxu0 %v6476
    %v6593 = vpop.f32.mrb[0].mxu0
    %v6594 = vadd.f32 0.0, %v6593
    %v6595 = vpop.f32.mrb[0].mxu0
    %v6596 = vpop.f32.mrb[0].mxu0
    %v6597 = vadd.f32 0.0, %v6596
    %v6598 = vpop.f32.mrb[0].mxu0
    %6599 = vmatprep.mubr.bf16.mxu0 0
    %6600 = vmatmul.mubr.bf16.gmra.mrb[0].mxu0 %v6477
    %v6601 = vpop.f32.mrb[0].mxu0
    %v6602 = vadd.f32 0.0, %v6601
    %v6603 = vpop.f32.mrb[0].mxu0
    %v6604 = vpop.f32.mrb[0].mxu0
    %v6605 = vpop.f32.mrb[0].mxu0
    %6606 = vdwg.mxu0
    %v6607 = vadd.f32 %v6231, %v6578
    %v6608 = vadd.f32 %v6232, %v6581
    %v6609 = vadd.f32 %v6233, %v6586
    %v6610 = vadd.f32 %v6234, %v6589
    %v6611 = vadd.f32 %v6235, %v6594
    %v6612 = vadd.f32 %v6236, %v6597
    %v6613 = vadd.f32 %v6237, %v6602
    %v6614 = vld [vmem:[%s4] sm:$0x1]
    %v6616 = vlaneseq
    %v6617 = vshrl.u32 %v6616, 7
    %v6618 = vsub.s32 0, %v6617
    %v6619 = vrot.slane %v6614, %v6618
    %v6621 = vadd.f32 %v6607, %v6619
    %v6622 = vadd.f32 %v6608, %v6619
    %v6623 = vadd.f32 %v6609, %v6619
    %v6624 = vadd.f32 %v6610, %v6619
    %v6625 = vadd.f32 %v6611, %v6619
    %v6626 = vadd.f32 %v6612, %v6619
    %v6627 = vadd.f32 %v6613, %v6619
    %v6628 = vmax.f32 %v6621, 0.0
    %v6629 = vmax.f32 %v6622, 0.0
    %v6630 = vmax.f32 %v6623, 0.0
    %v6631 = vmax.f32 %v6624, 0.0
    %v6632 = vmax.f32 %v6625, 0.0
    %v6633 = vmax.f32 %v6626, 0.0
    %v6634 = vmax.f32 %v6627, 0.0
    %v6642 = vcombine.high %v6628, %v6628
    %v6644 = vunpack.c.l.s4 1966171168
    %v6645 = vunpack.c.0.s8 %v6644
    %v6646 = vlaneseq
    %v6647 = vshrl.u32 %v6646, 7
    %v6648 = vsub.s32 %v6645, %v6647
    %v6649 = vrot.slane %v6628, %v6648
    %v6651 = vunpack.c.l.s4 1966171168
    %v6652 = vunpack.c.0.s8 %v6651
    %v6653 = vlaneseq
    %v6654 = vshrl.u32 %v6653, 7
    %v6655 = vsub.s32 %v6652, %v6654
    %v6656 = vrot.slane %v6642, %v6655
    %v6657 = vcombine.high %v6649, %v6649
    %v6658 = vcombine.high %v6656, %v6656
    %v6660 = vunpack.c.l.s4 1966171168
    %v6661 = vunpack.c.0.s8 %v6660
    %v6662 = vlaneseq
    %v6663 = vshrl.u32 %v6662, 7
    %v6664 = vsub.s32 %v6661, %v6663
    %v6665 = vrot.slane %v6649, %v6664
    %v6667 = vunpack.c.l.s4 1966171168
    %v6668 = vunpack.c.0.s8 %v6667
    %v6669 = vlaneseq
    %v6670 = vshrl.u32 %v6669, 7
    %v6671 = vsub.s32 %v6668, %v6670
    %v6672 = vrot.slane %v6656, %v6671
    %v6674 = vunpack.c.l.s4 1966171168
    %v6675 = vunpack.c.0.s8 %v6674
    %v6676 = vlaneseq
    %v6677 = vshrl.u32 %v6676, 7
    %v6678 = vsub.s32 %v6675, %v6677
    %v6679 = vrot.slane %v6657, %v6678
    %v6681 = vunpack.c.l.s4 1966171168
    %v6682 = vunpack.c.0.s8 %v6681
    %v6683 = vlaneseq
    %v6684 = vshrl.u32 %v6683, 7
    %v6685 = vsub.s32 %v6682, %v6684
    %v6686 = vrot.slane %v6658, %v6685
    %v6687 = vcombine.high %v6665, %v6665
    %v6688 = vcombine.high %v6672, %v6672
    %v6689 = vcombine.high %v6679, %v6679
    %v6690 = vcombine.high %v6686, %v6686
    %v6691 = vcombine.high %v6629, %v6629
    %v6693 = vunpack.c.l.s4 1966171168
    %v6694 = vunpack.c.0.s8 %v6693
    %v6695 = vlaneseq
    %v6696 = vshrl.u32 %v6695, 7
    %v6697 = vsub.s32 %v6694, %v6696
    %v6698 = vrot.slane %v6629, %v6697
    %v6700 = vunpack.c.l.s4 1966171168
    %v6701 = vunpack.c.0.s8 %v6700
    %v6702 = vlaneseq
    %v6703 = vshrl.u32 %v6702, 7
    %v6704 = vsub.s32 %v6701, %v6703
    %v6705 = vrot.slane %v6691, %v6704
    %v6706 = vcombine.high %v6698, %v6698
    %v6707 = vcombine.high %v6705, %v6705
    %v6709 = vunpack.c.l.s4 1966171168
    %v6710 = vunpack.c.0.s8 %v6709
    %v6711 = vlaneseq
    %v6712 = vshrl.u32 %v6711, 7
    %v6713 = vsub.s32 %v6710, %v6712
    %v6714 = vrot.slane %v6698, %v6713
    %v6716 = vunpack.c.l.s4 1966171168
    %v6717 = vunpack.c.0.s8 %v6716
    %v6718 = vlaneseq
    %v6719 = vshrl.u32 %v6718, 7
    %v6720 = vsub.s32 %v6717, %v6719
    %v6721 = vrot.slane %v6705, %v6720
    %v6723 = vunpack.c.l.s4 1966171168
    %v6724 = vunpack.c.0.s8 %v6723
    %v6725 = vlaneseq
    %v6726 = vshrl.u32 %v6725, 7
    %v6727 = vsub.s32 %v6724, %v6726
    %v6728 = vrot.slane %v6706, %v6727
    %v6730 = vunpack.c.l.s4 1966171168
    %v6731 = vunpack.c.0.s8 %v6730
    %v6732 = vlaneseq
    %v6733 = vshrl.u32 %v6732, 7
    %v6734 = vsub.s32 %v6731, %v6733
    %v6735 = vrot.slane %v6707, %v6734
    %v6736 = vcombine.high %v6714, %v6714
    %v6737 = vcombine.high %v6721, %v6721
    %v6738 = vcombine.high %v6728, %v6728
    %v6739 = vcombine.high %v6735, %v6735
    %v6740 = vcombine.high %v6630, %v6630
    %v6742 = vunpack.c.l.s4 1966171168
    %v6743 = vunpack.c.0.s8 %v6742
    %v6744 = vlaneseq
    %v6745 = vshrl.u32 %v6744, 7
    %v6746 = vsub.s32 %v6743, %v6745
    %v6747 = vrot.slane %v6630, %v6746
    %v6749 = vunpack.c.l.s4 1966171168
    %v6750 = vunpack.c.0.s8 %v6749
    %v6751 = vlaneseq
    %v6752 = vshrl.u32 %v6751, 7
    %v6753 = vsub.s32 %v6750, %v6752
    %v6754 = vrot.slane %v6740, %v6753
    %v6755 = vcombine.high %v6747, %v6747
    %v6756 = vcombine.high %v6754, %v6754
    %v6758 = vunpack.c.l.s4 1966171168
    %v6759 = vunpack.c.0.s8 %v6758
    %v6760 = vlaneseq
    %v6761 = vshrl.u32 %v6760, 7
    %v6762 = vsub.s32 %v6759, %v6761
    %v6763 = vrot.slane %v6747, %v6762
    %v6765 = vunpack.c.l.s4 1966171168
    %v6766 = vunpack.c.0.s8 %v6765
    %v6767 = vlaneseq
    %v6768 = vshrl.u32 %v6767, 7
    %v6769 = vsub.s32 %v6766, %v6768
    %v6770 = vrot.slane %v6754, %v6769
    %v6772 = vunpack.c.l.s4 1966171168
    %v6773 = vunpack.c.0.s8 %v6772
    %v6774 = vlaneseq
    %v6775 = vshrl.u32 %v6774, 7
    %v6776 = vsub.s32 %v6773, %v6775
    %v6777 = vrot.slane %v6755, %v6776
    %v6779 = vunpack.c.l.s4 1966171168
    %v6780 = vunpack.c.0.s8 %v6779
    %v6781 = vlaneseq
    %v6782 = vshrl.u32 %v6781, 7
    %v6783 = vsub.s32 %v6780, %v6782
    %v6784 = vrot.slane %v6756, %v6783
    %v6785 = vcombine.high %v6763, %v6763
    %v6786 = vcombine.high %v6770, %v6770
    %v6787 = vcombine.high %v6777, %v6777
    %v6788 = vcombine.high %v6784, %v6784
    %v6789 = vcombine.high %v6631, %v6631
    %v6791 = vunpack.c.l.s4 1966171168
    %v6792 = vunpack.c.0.s8 %v6791
    %v6793 = vlaneseq
    %v6794 = vshrl.u32 %v6793, 7
    %v6795 = vsub.s32 %v6792, %v6794
    %v6796 = vrot.slane %v6631, %v6795
    %v6798 = vunpack.c.l.s4 1966171168
    %v6799 = vunpack.c.0.s8 %v6798
    %v6800 = vlaneseq
    %v6801 = vshrl.u32 %v6800, 7
    %v6802 = vsub.s32 %v6799, %v6801
    %v6803 = vrot.slane %v6789, %v6802
    %v6804 = vcombine.high %v6796, %v6796
    %v6805 = vcombine.high %v6803, %v6803
    %v6807 = vunpack.c.l.s4 1966171168
    %v6808 = vunpack.c.0.s8 %v6807
    %v6809 = vlaneseq
    %v6810 = vshrl.u32 %v6809, 7
    %v6811 = vsub.s32 %v6808, %v6810
    %v6812 = vrot.slane %v6796, %v6811
    %v6814 = vunpack.c.l.s4 1966171168
    %v6815 = vunpack.c.0.s8 %v6814
    %v6816 = vlaneseq
    %v6817 = vshrl.u32 %v6816, 7
    %v6818 = vsub.s32 %v6815, %v6817
    %v6819 = vrot.slane %v6803, %v6818
    %v6821 = vunpack.c.l.s4 1966171168
    %v6822 = vunpack.c.0.s8 %v6821
    %v6823 = vlaneseq
    %v6824 = vshrl.u32 %v6823, 7
    %v6825 = vsub.s32 %v6822, %v6824
    %v6826 = vrot.slane %v6804, %v6825
    %v6828 = vunpack.c.l.s4 1966171168
    %v6829 = vunpack.c.0.s8 %v6828
    %v6830 = vlaneseq
    %v6831 = vshrl.u32 %v6830, 7
    %v6832 = vsub.s32 %v6829, %v6831
    %v6833 = vrot.slane %v6805, %v6832
    %v6834 = vcombine.high %v6812, %v6812
    %v6835 = vcombine.high %v6819, %v6819
    %v6836 = vcombine.high %v6826, %v6826
    %v6837 = vcombine.high %v6833, %v6833
    %v6838 = vcombine.high %v6632, %v6632
    %v6840 = vunpack.c.l.s4 1966171168
    %v6841 = vunpack.c.0.s8 %v6840
    %v6842 = vlaneseq
    %v6843 = vshrl.u32 %v6842, 7
    %v6844 = vsub.s32 %v6841, %v6843
    %v6845 = vrot.slane %v6632, %v6844
    %v6847 = vunpack.c.l.s4 1966171168
    %v6848 = vunpack.c.0.s8 %v6847
    %v6849 = vlaneseq
    %v6850 = vshrl.u32 %v6849, 7
    %v6851 = vsub.s32 %v6848, %v6850
    %v6852 = vrot.slane %v6838, %v6851
    %v6853 = vcombine.high %v6845, %v6845
    %v6854 = vcombine.high %v6852, %v6852
    %v6856 = vunpack.c.l.s4 1966171168
    %v6857 = vunpack.c.0.s8 %v6856
    %v6858 = vlaneseq
    %v6859 = vshrl.u32 %v6858, 7
    %v6860 = vsub.s32 %v6857, %v6859
    %v6861 = vrot.slane %v6845, %v6860
    %v6863 = vunpack.c.l.s4 1966171168
    %v6864 = vunpack.c.0.s8 %v6863
    %v6865 = vlaneseq
    %v6866 = vshrl.u32 %v6865, 7
    %v6867 = vsub.s32 %v6864, %v6866
    %v6868 = vrot.slane %v6852, %v6867
    %v6870 = vunpack.c.l.s4 1966171168
    %v6871 = vunpack.c.0.s8 %v6870
    %v6872 = vlaneseq
    %v6873 = vshrl.u32 %v6872, 7
    %v6874 = vsub.s32 %v6871, %v6873
    %v6875 = vrot.slane %v6853, %v6874
    %v6877 = vunpack.c.l.s4 1966171168
    %v6878 = vunpack.c.0.s8 %v6877
    %v6879 = vlaneseq
    %v6880 = vshrl.u32 %v6879, 7
    %v6881 = vsub.s32 %v6878, %v6880
    %v6882 = vrot.slane %v6854, %v6881
    %v6883 = vcombine.high %v6861, %v6861
    %v6884 = vcombine.high %v6868, %v6868
    %v6885 = vcombine.high %v6875, %v6875
    %v6886 = vcombine.high %v6882, %v6882
    %v6887 = vcombine.high %v6633, %v6633
    %v6889 = vunpack.c.l.s4 1966171168
    %v6890 = vunpack.c.0.s8 %v6889
    %v6891 = vlaneseq
    %v6892 = vshrl.u32 %v6891, 7
    %v6893 = vsub.s32 %v6890, %v6892
    %v6894 = vrot.slane %v6633, %v6893
    %v6896 = vunpack.c.l.s4 1966171168
    %v6897 = vunpack.c.0.s8 %v6896
    %v6898 = vlaneseq
    %v6899 = vshrl.u32 %v6898, 7
    %v6900 = vsub.s32 %v6897, %v6899
    %v6901 = vrot.slane %v6887, %v6900
    %v6902 = vcombine.high %v6894, %v6894
    %v6903 = vcombine.high %v6901, %v6901
    %v6905 = vunpack.c.l.s4 1966171168
    %v6906 = vunpack.c.0.s8 %v6905
    %v6907 = vlaneseq
    %v6908 = vshrl.u32 %v6907, 7
    %v6909 = vsub.s32 %v6906, %v6908
    %v6910 = vrot.slane %v6894, %v6909
    %v6912 = vunpack.c.l.s4 1966171168
    %v6913 = vunpack.c.0.s8 %v6912
    %v6914 = vlaneseq
    %v6915 = vshrl.u32 %v6914, 7
    %v6916 = vsub.s32 %v6913, %v6915
    %v6917 = vrot.slane %v6901, %v6916
    %v6919 = vunpack.c.l.s4 1966171168
    %v6920 = vunpack.c.0.s8 %v6919
    %v6921 = vlaneseq
    %v6922 = vshrl.u32 %v6921, 7
    %v6923 = vsub.s32 %v6920, %v6922
    %v6924 = vrot.slane %v6902, %v6923
    %v6926 = vunpack.c.l.s4 1966171168
    %v6927 = vunpack.c.0.s8 %v6926
    %v6928 = vlaneseq
    %v6929 = vshrl.u32 %v6928, 7
    %v6930 = vsub.s32 %v6927, %v6929
    %v6931 = vrot.slane %v6903, %v6930
    %v6932 = vcombine.high %v6910, %v6910
    %v6933 = vcombine.high %v6917, %v6917
    %v6934 = vcombine.high %v6924, %v6924
    %v6935 = vcombine.high %v6931, %v6931
    %v6937 = vunpack.c.l.s4 1966171168
    %v6938 = vunpack.c.0.s8 %v6937
    %v6939 = vlaneseq
    %v6940 = vshrl.u32 %v6939, 7
    %v6941 = vsub.s32 %v6938, %v6940
    %v6942 = vrot.slane %v6634, %v6941
    %v6943 = vcombine.high %v6942, %v6942
    %v6945 = vunpack.c.l.s4 1966171168
    %v6946 = vunpack.c.0.s8 %v6945
    %v6947 = vlaneseq
    %v6948 = vshrl.u32 %v6947, 7
    %v6949 = vsub.s32 %v6946, %v6948
    %v6950 = vrot.slane %v6942, %v6949
    %v6952 = vunpack.c.l.s4 1966171168
    %v6953 = vunpack.c.0.s8 %v6952
    %v6954 = vlaneseq
    %v6955 = vshrl.u32 %v6954, 7
    %v6956 = vsub.s32 %v6953, %v6955
    %v6957 = vrot.slane %v6943, %v6956
    %v6958 = vcombine.low %v6665, %v6679
    %v6959 = vcombine.low %v6687, %v6686
    %v6960 = vcombine.low %v6688, %v6690
    %v6961 = vcombine.low %v6736, %v6738
    %v6963 = vunpack.c.l.s4 1966171168
    %v6964 = vunpack.c.0.s8 %v6963
    %v6965 = vlaneseq
    %v6966 = vshrl.u32 %v6965, 7
    %v6967 = vsub.s32 %v6964, %v6966
    %v6968 = vrot.slane %v6958, %v6967
    %v6970 = vunpack.c.l.s4 1966171168
    %v6971 = vunpack.c.0.s8 %v6970
    %v6972 = vlaneseq
    %v6973 = vshrl.u32 %v6972, 7
    %v6974 = vsub.s32 %v6971, %v6973
    %v6975 = vrot.slane %v6959, %v6974
    %v6977 = vunpack.c.l.s4 1966171168
    %v6978 = vunpack.c.0.s8 %v6977
    %v6979 = vlaneseq
    %v6980 = vshrl.u32 %v6979, 7
    %v6981 = vsub.s32 %v6978, %v6980
    %v6982 = vrot.slane %v6960, %v6981
    %v6984 = vunpack.c.l.s4 1966171168
    %v6985 = vunpack.c.0.s8 %v6984
    %v6986 = vlaneseq
    %v6987 = vshrl.u32 %v6986, 7
    %v6988 = vsub.s32 %v6985, %v6987
    %v6989 = vrot.slane %v6961, %v6988
    %v6990 = vcombine.low %v6968, %v6975
    %v6991 = vcombine.low %v6982, %v6989
    %v6993 = vunpack.c.l.s4 1966171168
    %v6994 = vunpack.c.0.s8 %v6993
    %v6995 = vlaneseq
    %v6996 = vshrl.u32 %v6995, 7
    %v6997 = vsub.s32 %v6994, %v6996
    %v6998 = vrot.slane %v6990, %v6997
    %v7000 = vunpack.c.l.s4 1966171168
    %v7001 = vunpack.c.0.s8 %v7000
    %v7002 = vlaneseq
    %v7003 = vshrl.u32 %v7002, 7
    %v7004 = vsub.s32 %v7001, %v7003
    %v7005 = vrot.slane %v6991, %v7004
    %v7006 = vcombine.low %v6998, %v7005
    %v7007 = vcombine.low %v6721, %v6826
    %v7008 = vcombine.low %v6834, %v6836
    %v7009 = vcombine.low %v6835, %v6837
    %v7010 = vcombine.low %v6861, %v6885
    %v7012 = vunpack.c.l.s4 1966171168
    %v7013 = vunpack.c.0.s8 %v7012
    %v7014 = vlaneseq
    %v7015 = vshrl.u32 %v7014, 7
    %v7016 = vsub.s32 %v7013, %v7015
    %v7017 = vrot.slane %v7007, %v7016
    %v7019 = vunpack.c.l.s4 1966171168
    %v7020 = vunpack.c.0.s8 %v7019
    %v7021 = vlaneseq
    %v7022 = vshrl.u32 %v7021, 7
    %v7023 = vsub.s32 %v7020, %v7022
    %v7024 = vrot.slane %v7008, %v7023
    %v7026 = vunpack.c.l.s4 1966171168
    %v7027 = vunpack.c.0.s8 %v7026
    %v7028 = vlaneseq
    %v7029 = vshrl.u32 %v7028, 7
    %v7030 = vsub.s32 %v7027, %v7029
    %v7031 = vrot.slane %v7009, %v7030
    %v7033 = vunpack.c.l.s4 1966171168
    %v7034 = vunpack.c.0.s8 %v7033
    %v7035 = vlaneseq
    %v7036 = vshrl.u32 %v7035, 7
    %v7037 = vsub.s32 %v7034, %v7036
    %v7038 = vrot.slane %v7010, %v7037
    %v7039 = vcombine.low %v7017, %v7024
    %v7040 = vcombine.low %v7031, %v7038
    %v7042 = vunpack.c.l.s4 1966171168
    %v7043 = vunpack.c.0.s8 %v7042
    %v7044 = vlaneseq
    %v7045 = vshrl.u32 %v7044, 7
    %v7046 = vsub.s32 %v7043, %v7045
    %v7047 = vrot.slane %v7039, %v7046
    %v7049 = vunpack.c.l.s4 1966171168
    %v7050 = vunpack.c.0.s8 %v7049
    %v7051 = vlaneseq
    %v7052 = vshrl.u32 %v7051, 7
    %v7053 = vsub.s32 %v7050, %v7052
    %v7054 = vrot.slane %v7040, %v7053
    %v7055 = vcombine.low %v7047, %v7054
    %v7056 = vcombine.low %v6868, %v6882
    %v7058 = vunpack.c.l.s4 1966171168
    %v7059 = vunpack.c.0.s8 %v7058
    %v7060 = vlaneseq
    %v7061 = vshrl.u32 %v7060, 7
    %v7062 = vsub.s32 %v7059, %v7061
    %v7063 = vrot.slane %v7056, %v7062
    %v7065 = vunpack.c.l.s4 1966171168
    %v7066 = vunpack.c.0.s8 %v7065
    %v7067 = vlaneseq
    %v7068 = vshrl.u32 %v7067, 7
    %v7069 = vsub.s32 %v7066, %v7068
    %v7070 = vrot.slane %v7063, %v7069
    %v7074 = vpack.c.bf16 %v7055, %v7006
    %v7075 = vpack.c.bf16 %v7070, %v7070
    %v7076 = vld [vmem:[%s5] sm:$0xf]
    %v7077 = vld [vmem:[%s5 + $0x4] sm:$0xf]
    %v7078 = vld [vmem:[%s5 + $0x8] sm:$0xf]
    %v7079 = vld [vmem:[%s5 + $0xc] sm:$0xf]
    %v7080 = vld [vmem:[%s5 + $0x10] sm:$0xf]
    %v7081 = vld [vmem:[%s5 + $0x14] sm:$0xf]
    %v7082 = vld [vmem:[%s5 + $0x18] sm:$0xf]
    %v7083 = vld [vmem:[%s5 + $0x1c] sm:$0xf]
    %v7084 = vcombine.low %v6679, %v6687
    %v7085 = vcombine.low %v6689, %v6688
    %v7086 = vcombine.low %v6690, %v6714
    %v7087 = vcombine.low %v6738, %v6721
    %v7089 = vunpack.c.l.s4 1966171168
    %v7090 = vunpack.c.0.s8 %v7089
    %v7091 = vlaneseq
    %v7092 = vshrl.u32 %v7091, 7
    %v7093 = vsub.s32 %v7090, %v7092
    %v7094 = vrot.slane %v7084, %v7093
    %v7096 = vunpack.c.l.s4 1966171168
    %v7097 = vunpack.c.0.s8 %v7096
    %v7098 = vlaneseq
    %v7099 = vshrl.u32 %v7098, 7
    %v7100 = vsub.s32 %v7097, %v7099
    %v7101 = vrot.slane %v7085, %v7100
    %v7103 = vunpack.c.l.s4 1966171168
    %v7104 = vunpack.c.0.s8 %v7103
    %v7105 = vlaneseq
    %v7106 = vshrl.u32 %v7105, 7
    %v7107 = vsub.s32 %v7104, %v7106
    %v7108 = vrot.slane %v7086, %v7107
    %v7110 = vunpack.c.l.s4 1966171168
    %v7111 = vunpack.c.0.s8 %v7110
    %v7112 = vlaneseq
    %v7113 = vshrl.u32 %v7112, 7
    %v7114 = vsub.s32 %v7111, %v7113
    %v7115 = vrot.slane %v7087, %v7114
    %v7116 = vcombine.low %v7094, %v7101
    %v7117 = vcombine.low %v7108, %v7115
    %v7119 = vunpack.c.l.s4 1966171168
    %v7120 = vunpack.c.0.s8 %v7119
    %v7121 = vlaneseq
    %v7122 = vshrl.u32 %v7121, 7
    %v7123 = vsub.s32 %v7120, %v7122
    %v7124 = vrot.slane %v7116, %v7123
    %v7126 = vunpack.c.l.s4 1966171168
    %v7127 = vunpack.c.0.s8 %v7126
    %v7128 = vlaneseq
    %v7129 = vshrl.u32 %v7128, 7
    %v7130 = vsub.s32 %v7127, %v7129
    %v7131 = vrot.slane %v7117, %v7130
    %v7132 = vcombine.low %v7124, %v7131
    %v7133 = vcombine.low %v6735, %v6834
    %v7134 = vcombine.low %v6836, %v6819
    %v7135 = vcombine.low %v6837, %v6861
    %v7136 = vcombine.low %v6875, %v6868
    %v7138 = vunpack.c.l.s4 1966171168
    %v7139 = vunpack.c.0.s8 %v7138
    %v7140 = vlaneseq
    %v7141 = vshrl.u32 %v7140, 7
    %v7142 = vsub.s32 %v7139, %v7141
    %v7143 = vrot.slane %v7133, %v7142
    %v7145 = vunpack.c.l.s4 1966171168
    %v7146 = vunpack.c.0.s8 %v7145
    %v7147 = vlaneseq
    %v7148 = vshrl.u32 %v7147, 7
    %v7149 = vsub.s32 %v7146, %v7148
    %v7150 = vrot.slane %v7134, %v7149
    %v7152 = vunpack.c.l.s4 1966171168
    %v7153 = vunpack.c.0.s8 %v7152
    %v7154 = vlaneseq
    %v7155 = vshrl.u32 %v7154, 7
    %v7156 = vsub.s32 %v7153, %v7155
    %v7157 = vrot.slane %v7135, %v7156
    %v7159 = vunpack.c.l.s4 1966171168
    %v7160 = vunpack.c.0.s8 %v7159
    %v7161 = vlaneseq
    %v7162 = vshrl.u32 %v7161, 7
    %v7163 = vsub.s32 %v7160, %v7162
    %v7164 = vrot.slane %v7136, %v7163
    %v7165 = vcombine.low %v7143, %v7150
    %v7166 = vcombine.low %v7157, %v7164
    %v7168 = vunpack.c.l.s4 1966171168
    %v7169 = vunpack.c.0.s8 %v7168
    %v7170 = vlaneseq
    %v7171 = vshrl.u32 %v7170, 7
    %v7172 = vsub.s32 %v7169, %v7171
    %v7173 = vrot.slane %v7165, %v7172
    %v7175 = vunpack.c.l.s4 1966171168
    %v7176 = vunpack.c.0.s8 %v7175
    %v7177 = vlaneseq
    %v7178 = vshrl.u32 %v7177, 7
    %v7179 = vsub.s32 %v7176, %v7178
    %v7180 = vrot.slane %v7166, %v7179
    %v7181 = vcombine.low %v7173, %v7180
    %v7182 = vcombine.low %v6882, %v6884
    %v7184 = vunpack.c.l.s4 1966171168
    %v7185 = vunpack.c.0.s8 %v7184
    %v7186 = vlaneseq
    %v7187 = vshrl.u32 %v7186, 7
    %v7188 = vsub.s32 %v7185, %v7187
    %v7189 = vrot.slane %v7182, %v7188
    %v7191 = vunpack.c.l.s4 1966171168
    %v7192 = vunpack.c.0.s8 %v7191
    %v7193 = vlaneseq
    %v7194 = vshrl.u32 %v7193, 7
    %v7195 = vsub.s32 %v7192, %v7194
    %v7196 = vrot.slane %v7189, %v7195
    %v7200 = vpack.c.bf16 %v7181, %v7132
    %v7201 = vpack.c.bf16 %v7196, %v7196
    %s7202 = scalar_lea.vmem %s5, 32
    %v7203 = vld [vmem:[%s7202] sm:$0xf]
    %v7204 = vld [vmem:[%s7202 + $0x4] sm:$0xf]
    %v7205 = vld [vmem:[%s7202 + $0x8] sm:$0xf]
    %v7206 = vld [vmem:[%s7202 + $0xc] sm:$0xf]
    %v7207 = vld [vmem:[%s7202 + $0x10] sm:$0xf]
    %v7208 = vld [vmem:[%s7202 + $0x14] sm:$0xf]
    %v7209 = vld [vmem:[%s7202 + $0x18] sm:$0xf]
    %v7210 = vld [vmem:[%s7202 + $0x1c] sm:$0xf]
    %v7219 = vunpack.c.l.b16 %v7203
    %v7220 = vunpack.c.l.b16 %v7204
    %v7221 = vunpack.c.l.b16 %v7205
    %v7222 = vunpack.c.l.b16 %v7206
    %v7223 = vunpack.c.l.b16 %v7207
    %v7224 = vunpack.c.l.b16 %v7208
    %v7225 = vunpack.c.l.b16 %v7209
    %v7226 = vunpack.c.l.b16 %v7210
    %v7227 = vpack.c.b16 %v7220, %v7219
    %v7228 = vpack.c.b16 %v7222, %v7221
    %v7229 = vpack.c.b16 %v7224, %v7223
    %v7230 = vpack.c.b16 %v7226, %v7225
    %v7236 = vsel %vm860, %v7200, 0
    %v7239 = vsel %vm860, %v7201, 0
    %7241 = vmatprep.subr.bf16.mxu0 0
    %7242 = vmatpush1.bf16.msra.mxu0 %v7227
    %7243 = vmatprep.subr.bf16.mxu0 0
    %7244 = vmatpush1.bf16.msra.mxu0 %v7228
    %7245 = vmatprep.subr.bf16.mxu0 0
    %7246 = vmatpush1.bf16.msra.mxu0 %v7229
    %7247 = vmatprep.subr.bf16.mxu0 0
    %7248 = vmatpush1.bf16.msra.mxu0 %v7230
    %7249 = vmatprep.subr.bf16.mxu0 0
    %7250 = vmatpush1.bf16.msra.mxu0 0
    %7251 = vmatprep.subr.bf16.mxu0 0
    %7252 = vmatpush1.bf16.msra.mxu0 0
    %7253 = vmatprep.subr.bf16.mxu0 0
    %7254 = vmatpush1.bf16.msra.mxu0 0
    %7255 = vmatprep.subr.bf16.mxu0 0
    %7256 = vmatpush1.bf16.msra.mxu0 0
    %7257 = vmatprep.subr.bf16.mxu0 0
    %7258 = vmatpush1.bf16.msra.mxu0 0
    %7259 = vmatprep.subr.bf16.mxu0 0
    %7260 = vmatpush1.bf16.msra.mxu0 0
    %7261 = vmatprep.subr.bf16.mxu0 0
    %7262 = vmatpush1.bf16.msra.mxu0 0
    %7263 = vmatprep.subr.bf16.mxu0 0
    %7264 = vmatpush1.bf16.msra.mxu0 0
    %7265 = vmatprep.subr.bf16.mxu0 0
    %7266 = vmatpush1.bf16.msra.mxu0 0
    %7267 = vmatprep.subr.bf16.mxu0 0
    %7268 = vmatpush1.bf16.msra.mxu0 0
    %7269 = vmatprep.subr.bf16.mxu0 0
    %7270 = vmatpush1.bf16.msra.mxu0 0
    %7271 = vmatprep.subr.bf16.mxu0 0
    %7272 = vmatpush1.bf16.msra.mxu0 0
    %7273 = vmatprep.mubr.bf16.mxu0 0
    %7274 = vmatmul.mubr.bf16.gmra.mrb[0].mxu0 %v7236
    %v7275 = vpop.f32.mrb[0].mxu0
    %v7276 = vadd.f32 0.0, %v7275
    %v7277 = vpop.f32.mrb[0].mxu0
    %v7278 = vpop.f32.mrb[0].mxu0
    %v7279 = vadd.f32 0.0, %v7278
    %v7280 = vpop.f32.mrb[0].mxu0
    %7281 = vmatprep.mubr.bf16.mxu0 0
    %7282 = vmatmul.mubr.bf16.gmra.mrb[0].mxu0 %v7239
    %v7283 = vpop.f32.mrb[0].mxu0
    %v7284 = vadd.f32 0.0, %v7283
    %v7285 = vpop.f32.mrb[0].mxu0
    %v7286 = vpop.f32.mrb[0].mxu0
    %v7287 = vpop.f32.mrb[0].mxu0
    %7288 = vdwg.mxu0
    %v7297 = vunpack.c.l.b16 %v7076
    %v7298 = vunpack.c.l.b16 %v7077
    %v7299 = vunpack.c.l.b16 %v7078
    %v7300 = vunpack.c.l.b16 %v7079
    %v7301 = vunpack.c.l.b16 %v7080
    %v7302 = vunpack.c.l.b16 %v7081
    %v7303 = vunpack.c.l.b16 %v7082
    %v7304 = vunpack.c.l.b16 %v7083
    %v7305 = vpack.c.b16 %v7298, %v7297
    %v7306 = vpack.c.b16 %v7300, %v7299
    %v7307 = vpack.c.b16 %v7302, %v7301
    %v7308 = vpack.c.b16 %v7304, %v7303
    %v7314 = vsel %vm860, %v7074, 0
    %v7317 = vsel %vm860, %v7075, 0
    %7319 = vmatprep.subr.bf16.mxu0 0
    %7320 = vmatpush1.bf16.msra.mxu0 %v7305
    %7321 = vmatprep.subr.bf16.mxu0 0
    %7322 = vmatpush1.bf16.msra.mxu0 %v7306
    %7323 = vmatprep.subr.bf16.mxu0 0
    %7324 = vmatpush1.bf16.msra.mxu0 %v7307
    %7325 = vmatprep.subr.bf16.mxu0 0
    %7326 = vmatpush1.bf16.msra.mxu0 %v7308
    %7327 = vmatprep.subr.bf16.mxu0 0
    %7328 = vmatpush1.bf16.msra.mxu0 0
    %7329 = vmatprep.subr.bf16.mxu0 0
    %7330 = vmatpush1.bf16.msra.mxu0 0
    %7331 = vmatprep.subr.bf16.mxu0 0
    %7332 = vmatpush1.bf16.msra.mxu0 0
    %7333 = vmatprep.subr.bf16.mxu0 0
    %7334 = vmatpush1.bf16.msra.mxu0 0
    %7335 = vmatprep.subr.bf16.mxu0 0
    %7336 = vmatpush1.bf16.msra.mxu0 0
    %7337 = vmatprep.subr.bf16.mxu0 0
    %7338 = vmatpush1.bf16.msra.mxu0 0
    %7339 = vmatprep.subr.bf16.mxu0 0
    %7340 = vmatpush1.bf16.msra.mxu0 0
    %7341 = vmatprep.subr.bf16.mxu0 0
    %7342 = vmatpush1.bf16.msra.mxu0 0
    %7343 = vmatprep.subr.bf16.mxu0 0
    %7344 = vmatpush1.bf16.msra.mxu0 0
    %7345 = vmatprep.subr.bf16.mxu0 0
    %7346 = vmatpush1.bf16.msra.mxu0 0
    %7347 = vmatprep.subr.bf16.mxu0 0
    %7348 = vmatpush1.bf16.msra.mxu0 0
    %7349 = vmatprep.subr.bf16.mxu0 0
    %7350 = vmatpush1.bf16.msra.mxu0 0
    %7351 = vmatprep.mubr.bf16.mxu0 0
    %7352 = vmatmul.mubr.bf16.gmra.mrb[0].mxu0 %v7314
    %v7353 = vpop.f32.mrb[0].mxu0
    %v7354 = vadd.f32 %v7276, %v7353
    %v7355 = vpop.f32.mrb[0].mxu0
    %v7356 = vpop.f32.mrb[0].mxu0
    %v7357 = vadd.f32 %v7279, %v7356
    %v7358 = vpop.f32.mrb[0].mxu0
    %7359 = vmatprep.mubr.bf16.mxu0 0
    %7360 = vmatmul.mubr.bf16.gmra.mrb[0].mxu0 %v7317
    %v7361 = vpop.f32.mrb[0].mxu0
    %v7362 = vadd.f32 %v7284, %v7361
    %v7363 = vpop.f32.mrb[0].mxu0
    %v7364 = vpop.f32.mrb[0].mxu0
    %v7365 = vpop.f32.mrb[0].mxu0
    %7366 = vdwg.mxu0
    %v7367 = vcombine.low %v6687, %v6689
    %v7368 = vcombine.low %v6672, %v6690
    %v7369 = vcombine.low %v6714, %v6728
    %v7370 = vcombine.low %v6721, %v6735
    %v7372 = vunpack.c.l.s4 1966171168
    %v7373 = vunpack.c.0.s8 %v7372
    %v7374 = vlaneseq
    %v7375 = vshrl.u32 %v7374, 7
    %v7376 = vsub.s32 %v7373, %v7375
    %v7377 = vrot.slane %v7367, %v7376
    %v7379 = vunpack.c.l.s4 1966171168
    %v7380 = vunpack.c.0.s8 %v7379
    %v7381 = vlaneseq
    %v7382 = vshrl.u32 %v7381, 7
    %v7383 = vsub.s32 %v7380, %v7382
    %v7384 = vrot.slane %v7368, %v7383
    %v7386 = vunpack.c.l.s4 1966171168
    %v7387 = vunpack.c.0.s8 %v7386
    %v7388 = vlaneseq
    %v7389 = vshrl.u32 %v7388, 7
    %v7390 = vsub.s32 %v7387, %v7389
    %v7391 = vrot.slane %v7369, %v7390
    %v7393 = vunpack.c.l.s4 1966171168
    %v7394 = vunpack.c.0.s8 %v7393
    %v7395 = vlaneseq
    %v7396 = vshrl.u32 %v7395, 7
    %v7397 = vsub.s32 %v7394, %v7396
    %v7398 = vrot.slane %v7370, %v7397
    %v7399 = vcombine.low %v7377, %v7384
    %v7400 = vcombine.low %v7391, %v7398
    %v7402 = vunpack.c.l.s4 1966171168
    %v7403 = vunpack.c.0.s8 %v7402
    %v7404 = vlaneseq
    %v7405 = vshrl.u32 %v7404, 7
    %v7406 = vsub.s32 %v7403, %v7405
    %v7407 = vrot.slane %v7399, %v7406
    %v7409 = vunpack.c.l.s4 1966171168
    %v7410 = vunpack.c.0.s8 %v7409
    %v7411 = vlaneseq
    %v7412 = vshrl.u32 %v7411, 7
    %v7413 = vsub.s32 %v7410, %v7412
    %v7414 = vrot.slane %v7400, %v7413
    %v7415 = vcombine.low %v7407, %v7414
    %v7416 = vcombine.low %v6737, %v6836
    %v7417 = vcombine.low %v6819, %v6833
    %v7418 = vcombine.low %v6861, %v6875
    %v7419 = vcombine.low %v6883, %v6882
    %v7421 = vunpack.c.l.s4 1966171168
    %v7422 = vunpack.c.0.s8 %v7421
    %v7423 = vlaneseq
    %v7424 = vshrl.u32 %v7423, 7
    %v7425 = vsub.s32 %v7422, %v7424
    %v7426 = vrot.slane %v7416, %v7425
    %v7428 = vunpack.c.l.s4 1966171168
    %v7429 = vunpack.c.0.s8 %v7428
    %v7430 = vlaneseq
    %v7431 = vshrl.u32 %v7430, 7
    %v7432 = vsub.s32 %v7429, %v7431
    %v7433 = vrot.slane %v7417, %v7432
    %v7435 = vunpack.c.l.s4 1966171168
    %v7436 = vunpack.c.0.s8 %v7435
    %v7437 = vlaneseq
    %v7438 = vshrl.u32 %v7437, 7
    %v7439 = vsub.s32 %v7436, %v7438
    %v7440 = vrot.slane %v7418, %v7439
    %v7442 = vunpack.c.l.s4 1966171168
    %v7443 = vunpack.c.0.s8 %v7442
    %v7444 = vlaneseq
    %v7445 = vshrl.u32 %v7444, 7
    %v7446 = vsub.s32 %v7443, %v7445
    %v7447 = vrot.slane %v7419, %v7446
    %v7448 = vcombine.low %v7426, %v7433
    %v7449 = vcombine.low %v7440, %v7447
    %v7451 = vunpack.c.l.s4 1966171168
    %v7452 = vunpack.c.0.s8 %v7451
    %v7453 = vlaneseq
    %v7454 = vshrl.u32 %v7453, 7
    %v7455 = vsub.s32 %v7452, %v7454
    %v7456 = vrot.slane %v7448, %v7455
    %v7458 = vunpack.c.l.s4 1966171168
    %v7459 = vunpack.c.0.s8 %v7458
    %v7460 = vlaneseq
    %v7461 = vshrl.u32 %v7460, 7
    %v7462 = vsub.s32 %v7459, %v7461
    %v7463 = vrot.slane %v7449, %v7462
    %v7464 = vcombine.low %v7456, %v7463
    %v7465 = vcombine.low %v6884, %v6886
    %v7467 = vunpack.c.l.s4 1966171168
    %v7468 = vunpack.c.0.s8 %v7467
    %v7469 = vlaneseq
    %v7470 = vshrl.u32 %v7469, 7
    %v7471 = vsub.s32 %v7468, %v7470
    %v7472 = vrot.slane %v7465, %v7471
    %v7474 = vunpack.c.l.s4 1966171168
    %v7475 = vunpack.c.0.s8 %v7474
    %v7476 = vlaneseq
    %v7477 = vshrl.u32 %v7476, 7
    %v7478 = vsub.s32 %v7475, %v7477
    %v7479 = vrot.slane %v7472, %v7478
    %v7483 = vpack.c.bf16 %v7464, %v7415
    %v7484 = vpack.c.bf16 %v7479, %v7479
    %s7485 = scalar_lea.vmem %s5, 64
    %v7486 = vld [vmem:[%s7485] sm:$0xf]
    %v7487 = vld [vmem:[%s7485 + $0x4] sm:$0xf]
    %v7488 = vld [vmem:[%s7485 + $0x8] sm:$0xf]
    %v7489 = vld [vmem:[%s7485 + $0xc] sm:$0xf]
    %v7490 = vld [vmem:[%s7485 + $0x10] sm:$0xf]
    %v7491 = vld [vmem:[%s7485 + $0x14] sm:$0xf]
    %v7492 = vld [vmem:[%s7485 + $0x18] sm:$0xf]
    %v7493 = vld [vmem:[%s7485 + $0x1c] sm:$0xf]
    %v7502 = vunpack.c.l.b16 %v7486
    %v7503 = vunpack.c.l.b16 %v7487
    %v7504 = vunpack.c.l.b16 %v7488
    %v7505 = vunpack.c.l.b16 %v7489
    %v7506 = vunpack.c.l.b16 %v7490
    %v7507 = vunpack.c.l.b16 %v7491
    %v7508 = vunpack.c.l.b16 %v7492
    %v7509 = vunpack.c.l.b16 %v7493
    %v7510 = vpack.c.b16 %v7503, %v7502
    %v7511 = vpack.c.b16 %v7505, %v7504
    %v7512 = vpack.c.b16 %v7507, %v7506
    %v7513 = vpack.c.b16 %v7509, %v7508
    %v7519 = vsel %vm860, %v7483, 0
    %v7522 = vsel %vm860, %v7484, 0
    %7524 = vmatprep.subr.bf16.mxu0 0
    %7525 = vmatpush1.bf16.msra.mxu0 %v7510
    %7526 = vmatprep.subr.bf16.mxu0 0
    %7527 = vmatpush1.bf16.msra.mxu0 %v7511
    %7528 = vmatprep.subr.bf16.mxu0 0
    %7529 = vmatpush1.bf16.msra.mxu0 %v7512
    %7530 = vmatprep.subr.bf16.mxu0 0
    %7531 = vmatpush1.bf16.msra.mxu0 %v7513
    %7532 = vmatprep.subr.bf16.mxu0 0
    %7533 = vmatpush1.bf16.msra.mxu0 0
    %7534 = vmatprep.subr.bf16.mxu0 0
    %7535 = vmatpush1.bf16.msra.mxu0 0
    %7536 = vmatprep.subr.bf16.mxu0 0
    %7537 = vmatpush1.bf16.msra.mxu0 0
    %7538 = vmatprep.subr.bf16.mxu0 0
    %7539 = vmatpush1.bf16.msra.mxu0 0
    %7540 = vmatprep.subr.bf16.mxu0 0
    %7541 = vmatpush1.bf16.msra.mxu0 0
    %7542 = vmatprep.subr.bf16.mxu0 0
    %7543 = vmatpush1.bf16.msra.mxu0 0
    %7544 = vmatprep.subr.bf16.mxu0 0
    %7545 = vmatpush1.bf16.msra.mxu0 0
    %7546 = vmatprep.subr.bf16.mxu0 0
    %7547 = vmatpush1.bf16.msra.mxu0 0
    %7548 = vmatprep.subr.bf16.mxu0 0
    %7549 = vmatpush1.bf16.msra.mxu0 0
    %7550 = vmatprep.subr.bf16.mxu0 0
    %7551 = vmatpush1.bf16.msra.mxu0 0
    %7552 = vmatprep.subr.bf16.mxu0 0
    %7553 = vmatpush1.bf16.msra.mxu0 0
    %7554 = vmatprep.subr.bf16.mxu0 0
    %7555 = vmatpush1.bf16.msra.mxu0 0
    %7556 = vmatprep.mubr.bf16.mxu0 0
    %7557 = vmatmul.mubr.bf16.gmra.mrb[0].mxu0 %v7519
    %v7558 = vpop.f32.mrb[0].mxu0
    %v7559 = vadd.f32 0.0, %v7558
    %v7560 = vpop.f32.mrb[0].mxu0
    %v7561 = vpop.f32.mrb[0].mxu0
    %v7562 = vadd.f32 0.0, %v7561
    %v7563 = vpop.f32.mrb[0].mxu0
    %7564 = vmatprep.mubr.bf16.mxu0 0
    %7565 = vmatmul.mubr.bf16.gmra.mrb[0].mxu0 %v7522
    %v7566 = vpop.f32.mrb[0].mxu0
    %v7567 = vadd.f32 0.0, %v7566
    %v7568 = vpop.f32.mrb[0].mxu0
    %v7569 = vpop.f32.mrb[0].mxu0
    %v7570 = vpop.f32.mrb[0].mxu0
    %7571 = vdwg.mxu0
    %v7572 = vadd.f32 %v7354, %v7559
    %v7573 = vadd.f32 %v7357, %v7562
    %v7574 = vadd.f32 %v7362, %v7567
    %v7575 = vcombine.low %v6686, %v6688
    %v7576 = vcombine.low %v6690, %v6736
    %v7577 = vcombine.low %v6739, %v6763
    %v7579 = vunpack.c.l.s4 1966171168
    %v7580 = vunpack.c.0.s8 %v7579
    %v7581 = vlaneseq
    %v7582 = vshrl.u32 %v7581, 7
    %v7583 = vsub.s32 %v7580, %v7582
    %v7584 = vrot.slane %v7575, %v7583
    %v7586 = vunpack.c.l.s4 1966171168
    %v7587 = vunpack.c.0.s8 %v7586
    %v7588 = vlaneseq
    %v7589 = vshrl.u32 %v7588, 7
    %v7590 = vsub.s32 %v7587, %v7589
    %v7591 = vrot.slane %v7576, %v7590
    %v7593 = vunpack.c.l.s4 1966171168
    %v7594 = vunpack.c.0.s8 %v7593
    %v7595 = vlaneseq
    %v7596 = vshrl.u32 %v7595, 7
    %v7597 = vsub.s32 %v7594, %v7596
    %v7598 = vrot.slane %v7577, %v7597
    %v7599 = vcombine.low %v7584, %v7591
    %v7600 = vcombine.low %v7115, %v7598
    %v7602 = vunpack.c.l.s4 1966171168
    %v7603 = vunpack.c.0.s8 %v7602
    %v7604 = vlaneseq
    %v7605 = vshrl.u32 %v7604, 7
    %v7606 = vsub.s32 %v7603, %v7605
    %v7607 = vrot.slane %v7599, %v7606
    %v7609 = vunpack.c.l.s4 1966171168
    %v7610 = vunpack.c.0.s8 %v7609
    %v7611 = vlaneseq
    %v7612 = vshrl.u32 %v7611, 7
    %v7613 = vsub.s32 %v7610, %v7612
    %v7614 = vrot.slane %v7600, %v7613
    %v7615 = vcombine.low %v7607, %v7614
    %v7616 = vcombine.low %v6777, %v6835
    %v7617 = vcombine.low %v6885, %v6868
    %v7618 = vcombine.low %v6882, %v6910
    %v7620 = vunpack.c.l.s4 1966171168
    %v7621 = vunpack.c.0.s8 %v7620
    %v7622 = vlaneseq
    %v7623 = vshrl.u32 %v7622, 7
    %v7624 = vsub.s32 %v7621, %v7623
    %v7625 = vrot.slane %v7616, %v7624
    %v7627 = vunpack.c.l.s4 1966171168
    %v7628 = vunpack.c.0.s8 %v7627
    %v7629 = vlaneseq
    %v7630 = vshrl.u32 %v7629, 7
    %v7631 = vsub.s32 %v7628, %v7630
    %v7632 = vrot.slane %v7617, %v7631
    %v7634 = vunpack.c.l.s4 1966171168
    %v7635 = vunpack.c.0.s8 %v7634
    %v7636 = vlaneseq
    %v7637 = vshrl.u32 %v7636, 7
    %v7638 = vsub.s32 %v7635, %v7637
    %v7639 = vrot.slane %v7618, %v7638
    %v7640 = vcombine.low %v7625, %v7157
    %v7641 = vcombine.low %v7632, %v7639
    %v7643 = vunpack.c.l.s4 1966171168
    %v7644 = vunpack.c.0.s8 %v7643
    %v7645 = vlaneseq
    %v7646 = vshrl.u32 %v7645, 7
    %v7647 = vsub.s32 %v7644, %v7646
    %v7648 = vrot.slane %v7640, %v7647
    %v7650 = vunpack.c.l.s4 1966171168
    %v7651 = vunpack.c.0.s8 %v7650
    %v7652 = vlaneseq
    %v7653 = vshrl.u32 %v7652, 7
    %v7654 = vsub.s32 %v7651, %v7653
    %v7655 = vrot.slane %v7641, %v7654
    %v7656 = vcombine.low %v7648, %v7655
    %v7657 = vcombine.low %v6924, %v6932
    %v7659 = vunpack.c.l.s4 1966171168
    %v7660 = vunpack.c.0.s8 %v7659
    %v7661 = vlaneseq
    %v7662 = vshrl.u32 %v7661, 7
    %v7663 = vsub.s32 %v7660, %v7662
    %v7664 = vrot.slane %v7657, %v7663
    %v7666 = vunpack.c.l.s4 1966171168
    %v7667 = vunpack.c.0.s8 %v7666
    %v7668 = vlaneseq
    %v7669 = vshrl.u32 %v7668, 7
    %v7670 = vsub.s32 %v7667, %v7669
    %v7671 = vrot.slane %v7664, %v7670
    %v7675 = vpack.c.bf16 %v7656, %v7615
    %v7676 = vpack.c.bf16 %v7671, %v7671
    %s7677 = scalar_lea.vmem %s5, 96
    %v7678 = vld [vmem:[%s7677] sm:$0xf]
    %v7679 = vld [vmem:[%s7677 + $0x4] sm:$0xf]
    %v7680 = vld [vmem:[%s7677 + $0x8] sm:$0xf]
    %v7681 = vld [vmem:[%s7677 + $0xc] sm:$0xf]
    %v7682 = vld [vmem:[%s7677 + $0x10] sm:$0xf]
    %v7683 = vld [vmem:[%s7677 + $0x14] sm:$0xf]
    %v7684 = vld [vmem:[%s7677 + $0x18] sm:$0xf]
    %v7685 = vld [vmem:[%s7677 + $0x1c] sm:$0xf]
    %v7694 = vunpack.c.l.b16 %v7678
    %v7695 = vunpack.c.l.b16 %v7679
    %v7696 = vunpack.c.l.b16 %v7680
    %v7697 = vunpack.c.l.b16 %v7681
    %v7698 = vunpack.c.l.b16 %v7682
    %v7699 = vunpack.c.l.b16 %v7683
    %v7700 = vunpack.c.l.b16 %v7684
    %v7701 = vunpack.c.l.b16 %v7685
    %v7702 = vpack.c.b16 %v7695, %v7694
    %v7703 = vpack.c.b16 %v7697, %v7696
    %v7704 = vpack.c.b16 %v7699, %v7698
    %v7705 = vpack.c.b16 %v7701, %v7700
    %v7711 = vsel %vm860, %v7675, 0
    %v7714 = vsel %vm860, %v7676, 0
    %7716 = vmatprep.subr.bf16.mxu0 0
    %7717 = vmatpush1.bf16.msra.mxu0 %v7702
    %7718 = vmatprep.subr.bf16.mxu0 0
    %7719 = vmatpush1.bf16.msra.mxu0 %v7703
    %7720 = vmatprep.subr.bf16.mxu0 0
    %7721 = vmatpush1.bf16.msra.mxu0 %v7704
    %7722 = vmatprep.subr.bf16.mxu0 0
    %7723 = vmatpush1.bf16.msra.mxu0 %v7705
    %7724 = vmatprep.subr.bf16.mxu0 0
    %7725 = vmatpush1.bf16.msra.mxu0 0
    %7726 = vmatprep.subr.bf16.mxu0 0
    %7727 = vmatpush1.bf16.msra.mxu0 0
    %7728 = vmatprep.subr.bf16.mxu0 0
    %7729 = vmatpush1.bf16.msra.mxu0 0
    %7730 = vmatprep.subr.bf16.mxu0 0
    %7731 = vmatpush1.bf16.msra.mxu0 0
    %7732 = vmatprep.subr.bf16.mxu0 0
    %7733 = vmatpush1.bf16.msra.mxu0 0
    %7734 = vmatprep.subr.bf16.mxu0 0
    %7735 = vmatpush1.bf16.msra.mxu0 0
    %7736 = vmatprep.subr.bf16.mxu0 0
    %7737 = vmatpush1.bf16.msra.mxu0 0
    %7738 = vmatprep.subr.bf16.mxu0 0
    %7739 = vmatpush1.bf16.msra.mxu0 0
    %7740 = vmatprep.subr.bf16.mxu0 0
    %7741 = vmatpush1.bf16.msra.mxu0 0
    %7742 = vmatprep.subr.bf16.mxu0 0
    %7743 = vmatpush1.bf16.msra.mxu0 0
    %7744 = vmatprep.subr.bf16.mxu0 0
    %7745 = vmatpush1.bf16.msra.mxu0 0
    %7746 = vmatprep.subr.bf16.mxu0 0
    %7747 = vmatpush1.bf16.msra.mxu0 0
    %7748 = vmatprep.mubr.bf16.mxu0 0
    %7749 = vmatmul.mubr.bf16.gmra.mrb[0].mxu0 %v7711
    %v7750 = vpop.f32.mrb[0].mxu0
    %v7751 = vadd.f32 0.0, %v7750
    %v7752 = vpop.f32.mrb[0].mxu0
    %v7753 = vpop.f32.mrb[0].mxu0
    %v7754 = vadd.f32 0.0, %v7753
    %v7755 = vpop.f32.mrb[0].mxu0
    %7756 = vmatprep.mubr.bf16.mxu0 0
    %7757 = vmatmul.mubr.bf16.gmra.mrb[0].mxu0 %v7714
    %v7758 = vpop.f32.mrb[0].mxu0
    %v7759 = vadd.f32 0.0, %v7758
    %v7760 = vpop.f32.mrb[0].mxu0
    %v7761 = vpop.f32.mrb[0].mxu0
    %v7762 = vpop.f32.mrb[0].mxu0
    %7763 = vdwg.mxu0
    %v7764 = vadd.f32 %v7572, %v7751
    %v7765 = vadd.f32 %v7573, %v7754
    %v7766 = vadd.f32 %v7574, %v7759
    %v7767 = vcombine.low %v6714, %v6738
    %v7768 = vcombine.low %v6763, %v6777
    %v7770 = vunpack.c.l.s4 1966171168
    %v7771 = vunpack.c.0.s8 %v7770
    %v7772 = vlaneseq
    %v7773 = vshrl.u32 %v7772, 7
    %v7774 = vsub.s32 %v7771, %v7773
    %v7775 = vrot.slane %v7767, %v7774
    %v7777 = vunpack.c.l.s4 1966171168
    %v7778 = vunpack.c.0.s8 %v7777
    %v7779 = vlaneseq
    %v7780 = vshrl.u32 %v7779, 7
    %v7781 = vsub.s32 %v7778, %v7780
    %v7782 = vrot.slane %v7768, %v7781
    %v7783 = vcombine.low %v6982, %v7775
    %v7784 = vcombine.low %v7398, %v7782
    %v7786 = vunpack.c.l.s4 1966171168
    %v7787 = vunpack.c.0.s8 %v7786
    %v7788 = vlaneseq
    %v7789 = vshrl.u32 %v7788, 7
    %v7790 = vsub.s32 %v7787, %v7789
    %v7791 = vrot.slane %v7783, %v7790
    %v7793 = vunpack.c.l.s4 1966171168
    %v7794 = vunpack.c.0.s8 %v7793
    %v7795 = vlaneseq
    %v7796 = vshrl.u32 %v7795, 7
    %v7797 = vsub.s32 %v7794, %v7796
    %v7798 = vrot.slane %v7784, %v7797
    %v7799 = vcombine.low %v7791, %v7798
    %v7800 = vcombine.low %v6785, %v6837
    %v7801 = vcombine.low %v6884, %v6924
    %v7803 = vunpack.c.l.s4 1966171168
    %v7804 = vunpack.c.0.s8 %v7803
    %v7805 = vlaneseq
    %v7806 = vshrl.u32 %v7805, 7
    %v7807 = vsub.s32 %v7804, %v7806
    %v7808 = vrot.slane %v7800, %v7807
    %v7810 = vunpack.c.l.s4 1966171168
    %v7811 = vunpack.c.0.s8 %v7810
    %v7812 = vlaneseq
    %v7813 = vshrl.u32 %v7812, 7
    %v7814 = vsub.s32 %v7811, %v7813
    %v7815 = vrot.slane %v7801, %v7814
    %v7816 = vcombine.low %v7808, %v7440
    %v7817 = vcombine.low %v7063, %v7815
    %v7819 = vunpack.c.l.s4 1966171168
    %v7820 = vunpack.c.0.s8 %v7819
    %v7821 = vlaneseq
    %v7822 = vshrl.u32 %v7821, 7
    %v7823 = vsub.s32 %v7820, %v7822
    %v7824 = vrot.slane %v7816, %v7823
    %v7826 = vunpack.c.l.s4 1966171168
    %v7827 = vunpack.c.0.s8 %v7826
    %v7828 = vlaneseq
    %v7829 = vshrl.u32 %v7828, 7
    %v7830 = vsub.s32 %v7827, %v7829
    %v7831 = vrot.slane %v7817, %v7830
    %v7832 = vcombine.low %v7824, %v7831
    %v7833 = vcombine.low %v6932, %v6934
    %v7835 = vunpack.c.l.s4 1966171168
    %v7836 = vunpack.c.0.s8 %v7835
    %v7837 = vlaneseq
    %v7838 = vshrl.u32 %v7837, 7
    %v7839 = vsub.s32 %v7836, %v7838
    %v7840 = vrot.slane %v7833, %v7839
    %v7842 = vunpack.c.l.s4 1966171168
    %v7843 = vunpack.c.0.s8 %v7842
    %v7844 = vlaneseq
    %v7845 = vshrl.u32 %v7844, 7
    %v7846 = vsub.s32 %v7843, %v7845
    %v7847 = vrot.slane %v7840, %v7846
    %v7851 = vpack.c.bf16 %v7832, %v7799
    %v7852 = vpack.c.bf16 %v7847, %v7847
    %s7853 = scalar_lea.vmem %s5, 128
    %v7854 = vld [vmem:[%s7853] sm:$0xf]
    %v7855 = vld [vmem:[%s7853 + $0x4] sm:$0xf]
    %v7856 = vld [vmem:[%s7853 + $0x8] sm:$0xf]
    %v7857 = vld [vmem:[%s7853 + $0xc] sm:$0xf]
    %v7858 = vld [vmem:[%s7853 + $0x10] sm:$0xf]
    %v7859 = vld [vmem:[%s7853 + $0x14] sm:$0xf]
    %v7860 = vld [vmem:[%s7853 + $0x18] sm:$0xf]
    %v7861 = vld [vmem:[%s7853 + $0x1c] sm:$0xf]
    %v7870 = vunpack.c.l.b16 %v7854
    %v7871 = vunpack.c.l.b16 %v7855
    %v7872 = vunpack.c.l.b16 %v7856
    %v7873 = vunpack.c.l.b16 %v7857
    %v7874 = vunpack.c.l.b16 %v7858
    %v7875 = vunpack.c.l.b16 %v7859
    %v7876 = vunpack.c.l.b16 %v7860
    %v7877 = vunpack.c.l.b16 %v7861
    %v7878 = vpack.c.b16 %v7871, %v7870
    %v7879 = vpack.c.b16 %v7873, %v7872
    %v7880 = vpack.c.b16 %v7875, %v7874
    %v7881 = vpack.c.b16 %v7877, %v7876
    %v7887 = vsel %vm860, %v7851, 0
    %v7890 = vsel %vm860, %v7852, 0
    %7892 = vmatprep.subr.bf16.mxu0 0
    %7893 = vmatpush1.bf16.msra.mxu0 %v7878
    %7894 = vmatprep.subr.bf16.mxu0 0
    %7895 = vmatpush1.bf16.msra.mxu0 %v7879
    %7896 = vmatprep.subr.bf16.mxu0 0
    %7897 = vmatpush1.bf16.msra.mxu0 %v7880
    %7898 = vmatprep.subr.bf16.mxu0 0
    %7899 = vmatpush1.bf16.msra.mxu0 %v7881
    %7900 = vmatprep.subr.bf16.mxu0 0
    %7901 = vmatpush1.bf16.msra.mxu0 0
    %7902 = vmatprep.subr.bf16.mxu0 0
    %7903 = vmatpush1.bf16.msra.mxu0 0
    %7904 = vmatprep.subr.bf16.mxu0 0
    %7905 = vmatpush1.bf16.msra.mxu0 0
    %7906 = vmatprep.subr.bf16.mxu0 0
    %7907 = vmatpush1.bf16.msra.mxu0 0
    %7908 = vmatprep.subr.bf16.mxu0 0
    %7909 = vmatpush1.bf16.msra.mxu0 0
    %7910 = vmatprep.subr.bf16.mxu0 0
    %7911 = vmatpush1.bf16.msra.mxu0 0
    %7912 = vmatprep.subr.bf16.mxu0 0
    %7913 = vmatpush1.bf16.msra.mxu0 0
    %7914 = vmatprep.subr.bf16.mxu0 0
    %7915 = vmatpush1.bf16.msra.mxu0 0
    %7916 = vmatprep.subr.bf16.mxu0 0
    %7917 = vmatpush1.bf16.msra.mxu0 0
    %7918 = vmatprep.subr.bf16.mxu0 0
    %7919 = vmatpush1.bf16.msra.mxu0 0
    %7920 = vmatprep.subr.bf16.mxu0 0
    %7921 = vmatpush1.bf16.msra.mxu0 0
    %7922 = vmatprep.subr.bf16.mxu0 0
    %7923 = vmatpush1.bf16.msra.mxu0 0
    %7924 = vmatprep.mubr.bf16.mxu0 0
    %7925 = vmatmul.mubr.bf16.gmra.mrb[0].mxu0 %v7887
    %v7926 = vpop.f32.mrb[0].mxu0
    %v7927 = vadd.f32 0.0, %v7926
    %v7928 = vpop.f32.mrb[0].mxu0
    %v7929 = vpop.f32.mrb[0].mxu0
    %v7930 = vadd.f32 0.0, %v7929
    %v7931 = vpop.f32.mrb[0].mxu0
    %7932 = vmatprep.mubr.bf16.mxu0 0
    %7933 = vmatmul.mubr.bf16.gmra.mrb[0].mxu0 %v7890
    %v7934 = vpop.f32.mrb[0].mxu0
    %v7935 = vadd.f32 0.0, %v7934
    %v7936 = vpop.f32.mrb[0].mxu0
    %v7937 = vpop.f32.mrb[0].mxu0
    %v7938 = vpop.f32.mrb[0].mxu0
    %7939 = vdwg.mxu0
    %v7940 = vadd.f32 %v7764, %v7927
    %v7941 = vadd.f32 %v7765, %v7930
    %v7942 = vadd.f32 %v7766, %v7935
    %v7943 = vcombine.low %v6728, %v6721
    %v7944 = vcombine.low %v6735, %v6737
    %v7945 = vcombine.low %v6777, %v6785
    %v7947 = vunpack.c.l.s4 1966171168
    %v7948 = vunpack.c.0.s8 %v7947
    %v7949 = vlaneseq
    %v7950 = vshrl.u32 %v7949, 7
    %v7951 = vsub.s32 %v7948, %v7950
    %v7952 = vrot.slane %v7943, %v7951
    %v7954 = vunpack.c.l.s4 1966171168
    %v7955 = vunpack.c.0.s8 %v7954
    %v7956 = vlaneseq
    %v7957 = vshrl.u32 %v7956, 7
    %v7958 = vsub.s32 %v7955, %v7957
    %v7959 = vrot.slane %v7944, %v7958
    %v7961 = vunpack.c.l.s4 1966171168
    %v7962 = vunpack.c.0.s8 %v7961
    %v7963 = vlaneseq
    %v7964 = vshrl.u32 %v7963, 7
    %v7965 = vsub.s32 %v7962, %v7964
    %v7966 = vrot.slane %v7945, %v7965
    %v7967 = vcombine.low %v7108, %v7952
    %v7968 = vcombine.low %v7959, %v7966
    %v7970 = vunpack.c.l.s4 1966171168
    %v7971 = vunpack.c.0.s8 %v7970
    %v7972 = vlaneseq
    %v7973 = vshrl.u32 %v7972, 7
    %v7974 = vsub.s32 %v7971, %v7973
    %v7975 = vrot.slane %v7967, %v7974
    %v7977 = vunpack.c.l.s4 1966171168
    %v7978 = vunpack.c.0.s8 %v7977
    %v7979 = vlaneseq
    %v7980 = vshrl.u32 %v7979, 7
    %v7981 = vsub.s32 %v7978, %v7980
    %v7982 = vrot.slane %v7968, %v7981
    %v7983 = vcombine.low %v7975, %v7982
    %v7984 = vcombine.low %v6787, %v6861
    %v7985 = vcombine.low %v6875, %v6883
    %v7986 = vcombine.low %v6886, %v6932
    %v7988 = vunpack.c.l.s4 1966171168
    %v7989 = vunpack.c.0.s8 %v7988
    %v7990 = vlaneseq
    %v7991 = vshrl.u32 %v7990, 7
    %v7992 = vsub.s32 %v7989, %v7991
    %v7993 = vrot.slane %v7984, %v7992
    %v7995 = vunpack.c.l.s4 1966171168
    %v7996 = vunpack.c.0.s8 %v7995
    %v7997 = vlaneseq
    %v7998 = vshrl.u32 %v7997, 7
    %v7999 = vsub.s32 %v7996, %v7998
    %v8000 = vrot.slane %v7985, %v7999
    %v8002 = vunpack.c.l.s4 1966171168
    %v8003 = vunpack.c.0.s8 %v8002
    %v8004 = vlaneseq
    %v8005 = vshrl.u32 %v8004, 7
    %v8006 = vsub.s32 %v8003, %v8005
    %v8007 = vrot.slane %v7986, %v8006
    %v8008 = vcombine.low %v7993, %v8000
    %v8009 = vcombine.low %v7189, %v8007
    %v8011 = vunpack.c.l.s4 1966171168
    %v8012 = vunpack.c.0.s8 %v8011
    %v8013 = vlaneseq
    %v8014 = vshrl.u32 %v8013, 7
    %v8015 = vsub.s32 %v8012, %v8014
    %v8016 = vrot.slane %v8008, %v8015
    %v8018 = vunpack.c.l.s4 1966171168
    %v8019 = vunpack.c.0.s8 %v8018
    %v8020 = vlaneseq
    %v8021 = vshrl.u32 %v8020, 7
    %v8022 = vsub.s32 %v8019, %v8021
    %v8023 = vrot.slane %v8009, %v8022
    %v8024 = vcombine.low %v8016, %v8023
    %v8025 = vcombine.low %v6934, %v6917
    %v8027 = vunpack.c.l.s4 1966171168
    %v8028 = vunpack.c.0.s8 %v8027
    %v8029 = vlaneseq
    %v8030 = vshrl.u32 %v8029, 7
    %v8031 = vsub.s32 %v8028, %v8030
    %v8032 = vrot.slane %v8025, %v8031
    %v8034 = vunpack.c.l.s4 1966171168
    %v8035 = vunpack.c.0.s8 %v8034
    %v8036 = vlaneseq
    %v8037 = vshrl.u32 %v8036, 7
    %v8038 = vsub.s32 %v8035, %v8037
    %v8039 = vrot.slane %v8032, %v8038
    %v8043 = vpack.c.bf16 %v8024, %v7983
    %v8044 = vpack.c.bf16 %v8039, %v8039
    %s8045 = scalar_lea.vmem %s5, 160
    %v8046 = vld [vmem:[%s8045] sm:$0xf]
    %v8047 = vld [vmem:[%s8045 + $0x4] sm:$0xf]
    %v8048 = vld [vmem:[%s8045 + $0x8] sm:$0xf]
    %v8049 = vld [vmem:[%s8045 + $0xc] sm:$0xf]
    %v8050 = vld [vmem:[%s8045 + $0x10] sm:$0xf]
    %v8051 = vld [vmem:[%s8045 + $0x14] sm:$0xf]
    %v8052 = vld [vmem:[%s8045 + $0x18] sm:$0xf]
    %v8053 = vld [vmem:[%s8045 + $0x1c] sm:$0xf]
    %v8062 = vunpack.c.l.b16 %v8046
    %v8063 = vunpack.c.l.b16 %v8047
    %v8064 = vunpack.c.l.b16 %v8048
    %v8065 = vunpack.c.l.b16 %v8049
    %v8066 = vunpack.c.l.b16 %v8050
    %v8067 = vunpack.c.l.b16 %v8051
    %v8068 = vunpack.c.l.b16 %v8052
    %v8069 = vunpack.c.l.b16 %v8053
    %v8070 = vpack.c.b16 %v8063, %v8062
    %v8071 = vpack.c.b16 %v8065, %v8064
    %v8072 = vpack.c.b16 %v8067, %v8066
    %v8073 = vpack.c.b16 %v8069, %v8068
    %v8079 = vsel %vm860, %v8043, 0
    %v8082 = vsel %vm860, %v8044, 0
    %8084 = vmatprep.subr.bf16.mxu0 0
    %8085 = vmatpush1.bf16.msra.mxu0 %v8070
    %8086 = vmatprep.subr.bf16.mxu0 0
    %8087 = vmatpush1.bf16.msra.mxu0 %v8071
    %8088 = vmatprep.subr.bf16.mxu0 0
    %8089 = vmatpush1.bf16.msra.mxu0 %v8072
    %8090 = vmatprep.subr.bf16.mxu0 0
    %8091 = vmatpush1.bf16.msra.mxu0 %v8073
    %8092 = vmatprep.subr.bf16.mxu0 0
    %8093 = vmatpush1.bf16.msra.mxu0 0
    %8094 = vmatprep.subr.bf16.mxu0 0
    %8095 = vmatpush1.bf16.msra.mxu0 0
    %8096 = vmatprep.subr.bf16.mxu0 0
    %8097 = vmatpush1.bf16.msra.mxu0 0
    %8098 = vmatprep.subr.bf16.mxu0 0
    %8099 = vmatpush1.bf16.msra.mxu0 0
    %8100 = vmatprep.subr.bf16.mxu0 0
    %8101 = vmatpush1.bf16.msra.mxu0 0
    %8102 = vmatprep.subr.bf16.mxu0 0
    %8103 = vmatpush1.bf16.msra.mxu0 0
    %8104 = vmatprep.subr.bf16.mxu0 0
    %8105 = vmatpush1.bf16.msra.mxu0 0
    %8106 = vmatprep.subr.bf16.mxu0 0
    %8107 = vmatpush1.bf16.msra.mxu0 0
    %8108 = vmatprep.subr.bf16.mxu0 0
    %8109 = vmatpush1.bf16.msra.mxu0 0
    %8110 = vmatprep.subr.bf16.mxu0 0
    %8111 = vmatpush1.bf16.msra.mxu0 0
    %8112 = vmatprep.subr.bf16.mxu0 0
    %8113 = vmatpush1.bf16.msra.mxu0 0
    %8114 = vmatprep.subr.bf16.mxu0 0
    %8115 = vmatpush1.bf16.msra.mxu0 0
    %8116 = vmatprep.mubr.bf16.mxu0 0
    %8117 = vmatmul.mubr.bf16.gmra.mrb[0].mxu0 %v8079
    %v8118 = vpop.f32.mrb[0].mxu0
    %v8119 = vadd.f32 0.0, %v8118
    %v8120 = vpop.f32.mrb[0].mxu0
    %v8121 = vpop.f32.mrb[0].mxu0
    %v8122 = vadd.f32 0.0, %v8121
    %v8123 = vpop.f32.mrb[0].mxu0
    %8124 = vmatprep.mubr.bf16.mxu0 0
    %8125 = vmatmul.mubr.bf16.gmra.mrb[0].mxu0 %v8082
    %v8126 = vpop.f32.mrb[0].mxu0
    %v8127 = vadd.f32 0.0, %v8126
    %v8128 = vpop.f32.mrb[0].mxu0
    %v8129 = vpop.f32.mrb[0].mxu0
    %v8130 = vpop.f32.mrb[0].mxu0
    %8131 = vdwg.mxu0
    %v8132 = vadd.f32 %v7940, %v8119
    %v8133 = vadd.f32 %v7941, %v8122
    %v8134 = vadd.f32 %v7942, %v8127
    %v8135 = vcombine.low %v6721, %v6739
    %v8136 = vcombine.low %v6770, %v6784
    %v8138 = vunpack.c.l.s4 1966171168
    %v8139 = vunpack.c.0.s8 %v8138
    %v8140 = vlaneseq
    %v8141 = vshrl.u32 %v8140, 7
    %v8142 = vsub.s32 %v8139, %v8141
    %v8143 = vrot.slane %v8135, %v8142
    %v8145 = vunpack.c.l.s4 1966171168
    %v8146 = vunpack.c.0.s8 %v8145
    %v8147 = vlaneseq
    %v8148 = vshrl.u32 %v8147, 7
    %v8149 = vsub.s32 %v8146, %v8148
    %v8150 = vrot.slane %v8136, %v8149
    %v8151 = vcombine.low %v6989, %v8143
    %v8152 = vcombine.low %v7782, %v8150
    %v8154 = vunpack.c.l.s4 1966171168
    %v8155 = vunpack.c.0.s8 %v8154
    %v8156 = vlaneseq
    %v8157 = vshrl.u32 %v8156, 7
    %v8158 = vsub.s32 %v8155, %v8157
    %v8159 = vrot.slane %v8151, %v8158
    %v8161 = vunpack.c.l.s4 1966171168
    %v8162 = vunpack.c.0.s8 %v8161
    %v8163 = vlaneseq
    %v8164 = vshrl.u32 %v8163, 7
    %v8165 = vsub.s32 %v8162, %v8164
    %v8166 = vrot.slane %v8152, %v8165
    %v8167 = vcombine.low %v8159, %v8166
    %v8168 = vcombine.low %v6786, %v6885
    %v8169 = vcombine.low %v6910, %v6924
    %v8170 = vcombine.low %v6932, %v6931
    %v8172 = vunpack.c.l.s4 1966171168
    %v8173 = vunpack.c.0.s8 %v8172
    %v8174 = vlaneseq
    %v8175 = vshrl.u32 %v8174, 7
    %v8176 = vsub.s32 %v8173, %v8175
    %v8177 = vrot.slane %v8168, %v8176
    %v8179 = vunpack.c.l.s4 1966171168
    %v8180 = vunpack.c.0.s8 %v8179
    %v8181 = vlaneseq
    %v8182 = vshrl.u32 %v8181, 7
    %v8183 = vsub.s32 %v8180, %v8182
    %v8184 = vrot.slane %v8169, %v8183
    %v8186 = vunpack.c.l.s4 1966171168
    %v8187 = vunpack.c.0.s8 %v8186
    %v8188 = vlaneseq
    %v8189 = vshrl.u32 %v8188, 7
    %v8190 = vsub.s32 %v8187, %v8189
    %v8191 = vrot.slane %v8170, %v8190
    %v8192 = vcombine.low %v8177, %v7063
    %v8193 = vcombine.low %v8184, %v8191
    %v8195 = vunpack.c.l.s4 1966171168
    %v8196 = vunpack.c.0.s8 %v8195
    %v8197 = vlaneseq
    %v8198 = vshrl.u32 %v8197, 7
    %v8199 = vsub.s32 %v8196, %v8198
    %v8200 = vrot.slane %v8192, %v8199
    %v8202 = vunpack.c.l.s4 1966171168
    %v8203 = vunpack.c.0.s8 %v8202
    %v8204 = vlaneseq
    %v8205 = vshrl.u32 %v8204, 7
    %v8206 = vsub.s32 %v8203, %v8205
    %v8207 = vrot.slane %v8193, %v8206
    %v8208 = vcombine.low %v8200, %v8207
    %v8209 = vcombine.low %v6933, %v6935
    %v8211 = vunpack.c.l.s4 1966171168
    %v8212 = vunpack.c.0.s8 %v8211
    %v8213 = vlaneseq
    %v8214 = vshrl.u32 %v8213, 7
    %v8215 = vsub.s32 %v8212, %v8214
    %v8216 = vrot.slane %v8209, %v8215
    %v8218 = vunpack.c.l.s4 1966171168
    %v8219 = vunpack.c.0.s8 %v8218
    %v8220 = vlaneseq
    %v8221 = vshrl.u32 %v8220, 7
    %v8222 = vsub.s32 %v8219, %v8221
    %v8223 = vrot.slane %v8216, %v8222
    %v8227 = vpack.c.bf16 %v8208, %v8167
    %v8228 = vpack.c.bf16 %v8223, %v8223
    %s8229 = scalar_lea.vmem %s5, 192
    %v8230 = vld [vmem:[%s8229] sm:$0xf]
    %v8231 = vld [vmem:[%s8229 + $0x4] sm:$0xf]
    %v8232 = vld [vmem:[%s8229 + $0x8] sm:$0xf]
    %v8233 = vld [vmem:[%s8229 + $0xc] sm:$0xf]
    %v8234 = vld [vmem:[%s8229 + $0x10] sm:$0xf]
    %v8235 = vld [vmem:[%s8229 + $0x14] sm:$0xf]
    %v8236 = vld [vmem:[%s8229 + $0x18] sm:$0xf]
    %v8237 = vld [vmem:[%s8229 + $0x1c] sm:$0xf]
    %v8246 = vunpack.c.l.b16 %v8230
    %v8247 = vunpack.c.l.b16 %v8231
    %v8248 = vunpack.c.l.b16 %v8232
    %v8249 = vunpack.c.l.b16 %v8233
    %v8250 = vunpack.c.l.b16 %v8234
    %v8251 = vunpack.c.l.b16 %v8235
    %v8252 = vunpack.c.l.b16 %v8236
    %v8253 = vunpack.c.l.b16 %v8237
    %v8254 = vpack.c.b16 %v8247, %v8246
    %v8255 = vpack.c.b16 %v8249, %v8248
    %v8256 = vpack.c.b16 %v8251, %v8250
    %v8257 = vpack.c.b16 %v8253, %v8252
    %v8263 = vsel %vm860, %v8227, 0
    %v8266 = vsel %vm860, %v8228, 0
    %8268 = vmatprep.subr.bf16.mxu0 0
    %8269 = vmatpush1.bf16.msra.mxu0 %v8254
    %8270 = vmatprep.subr.bf16.mxu0 0
    %8271 = vmatpush1.bf16.msra.mxu0 %v8255
    %8272 = vmatprep.subr.bf16.mxu0 0
    %8273 = vmatpush1.bf16.msra.mxu0 %v8256
    %8274 = vmatprep.subr.bf16.mxu0 0
    %8275 = vmatpush1.bf16.msra.mxu0 %v8257
    %8276 = vmatprep.subr.bf16.mxu0 0
    %8277 = vmatpush1.bf16.msra.mxu0 0
    %8278 = vmatprep.subr.bf16.mxu0 0
    %8279 = vmatpush1.bf16.msra.mxu0 0
    %8280 = vmatprep.subr.bf16.mxu0 0
    %8281 = vmatpush1.bf16.msra.mxu0 0
    %8282 = vmatprep.subr.bf16.mxu0 0
    %8283 = vmatpush1.bf16.msra.mxu0 0
    %8284 = vmatprep.subr.bf16.mxu0 0
    %8285 = vmatpush1.bf16.msra.mxu0 0
    %8286 = vmatprep.subr.bf16.mxu0 0
    %8287 = vmatpush1.bf16.msra.mxu0 0
    %8288 = vmatprep.subr.bf16.mxu0 0
    %8289 = vmatpush1.bf16.msra.mxu0 0
    %8290 = vmatprep.subr.bf16.mxu0 0
    %8291 = vmatpush1.bf16.msra.mxu0 0
    %8292 = vmatprep.subr.bf16.mxu0 0
    %8293 = vmatpush1.bf16.msra.mxu0 0
    %8294 = vmatprep.subr.bf16.mxu0 0
    %8295 = vmatpush1.bf16.msra.mxu0 0
    %8296 = vmatprep.subr.bf16.mxu0 0
    %8297 = vmatpush1.bf16.msra.mxu0 0
    %8298 = vmatprep.subr.bf16.mxu0 0
    %8299 = vmatpush1.bf16.msra.mxu0 0
    %8300 = vmatprep.mubr.bf16.mxu0 0
    %8301 = vmatmul.mubr.bf16.gmra.mrb[0].mxu0 %v8263
    %v8302 = vpop.f32.mrb[0].mxu0
    %v8303 = vadd.f32 0.0, %v8302
    %v8304 = vpop.f32.mrb[0].mxu0
    %v8305 = vpop.f32.mrb[0].mxu0
    %v8306 = vadd.f32 0.0, %v8305
    %v8307 = vpop.f32.mrb[0].mxu0
    %8308 = vmatprep.mubr.bf16.mxu0 0
    %8309 = vmatmul.mubr.bf16.gmra.mrb[0].mxu0 %v8266
    %v8310 = vpop.f32.mrb[0].mxu0
    %v8311 = vadd.f32 0.0, %v8310
    %v8312 = vpop.f32.mrb[0].mxu0
    %v8313 = vpop.f32.mrb[0].mxu0
    %v8314 = vpop.f32.mrb[0].mxu0
    %8315 = vdwg.mxu0
    %v8316 = vadd.f32 %v8132, %v8303
    %v8317 = vadd.f32 %v8133, %v8306
    %v8318 = vadd.f32 %v8134, %v8311
    %v8319 = vcombine.low %v6735, %v6763
    %v8320 = vcombine.low %v6784, %v6786
    %v8322 = vunpack.c.l.s4 1966171168
    %v8323 = vunpack.c.0.s8 %v8322
    %v8324 = vlaneseq
    %v8325 = vshrl.u32 %v8324, 7
    %v8326 = vsub.s32 %v8323, %v8325
    %v8327 = vrot.slane %v8319, %v8326
    %v8329 = vunpack.c.l.s4 1966171168
    %v8330 = vunpack.c.0.s8 %v8329
    %v8331 = vlaneseq
    %v8332 = vshrl.u32 %v8331, 7
    %v8333 = vsub.s32 %v8330, %v8332
    %v8334 = vrot.slane %v8320, %v8333
    %v8335 = vcombine.low %v7115, %v8327
    %v8336 = vcombine.low %v7966, %v8334
    %v8338 = vunpack.c.l.s4 1966171168
    %v8339 = vunpack.c.0.s8 %v8338
    %v8340 = vlaneseq
    %v8341 = vshrl.u32 %v8340, 7
    %v8342 = vsub.s32 %v8339, %v8341
    %v8343 = vrot.slane %v8335, %v8342
    %v8345 = vunpack.c.l.s4 1966171168
    %v8346 = vunpack.c.0.s8 %v8345
    %v8347 = vlaneseq
    %v8348 = vshrl.u32 %v8347, 7
    %v8349 = vsub.s32 %v8346, %v8348
    %v8350 = vrot.slane %v8336, %v8349
    %v8351 = vcombine.low %v8343, %v8350
    %v8352 = vcombine.low %v6788, %v6868
    %v8353 = vcombine.low %v6934, %v6933
    %v8355 = vunpack.c.l.s4 1966171168
    %v8356 = vunpack.c.0.s8 %v8355
    %v8357 = vlaneseq
    %v8358 = vshrl.u32 %v8357, 7
    %v8359 = vsub.s32 %v8356, %v8358
    %v8360 = vrot.slane %v8352, %v8359
    %v8362 = vunpack.c.l.s4 1966171168
    %v8363 = vunpack.c.0.s8 %v8362
    %v8364 = vlaneseq
    %v8365 = vshrl.u32 %v8364, 7
    %v8366 = vsub.s32 %v8363, %v8365
    %v8367 = vrot.slane %v8353, %v8366
    %v8368 = vcombine.low %v8360, %v7189
    %v8369 = vcombine.low %v7664, %v8367
    %v8371 = vunpack.c.l.s4 1966171168
    %v8372 = vunpack.c.0.s8 %v8371
    %v8373 = vlaneseq
    %v8374 = vshrl.u32 %v8373, 7
    %v8375 = vsub.s32 %v8372, %v8374
    %v8376 = vrot.slane %v8368, %v8375
    %v8378 = vunpack.c.l.s4 1966171168
    %v8379 = vunpack.c.0.s8 %v8378
    %v8380 = vlaneseq
    %v8381 = vshrl.u32 %v8380, 7
    %v8382 = vsub.s32 %v8379, %v8381
    %v8383 = vrot.slane %v8369, %v8382
    %v8384 = vcombine.low %v8376, %v8383
    %v8385 = vcombine.low %v6935, %v6950
    %v8387 = vunpack.c.l.s4 1966171168
    %v8388 = vunpack.c.0.s8 %v8387
    %v8389 = vlaneseq
    %v8390 = vshrl.u32 %v8389, 7
    %v8391 = vsub.s32 %v8388, %v8390
    %v8392 = vrot.slane %v8385, %v8391
    %v8394 = vunpack.c.l.s4 1966171168
    %v8395 = vunpack.c.0.s8 %v8394
    %v8396 = vlaneseq
    %v8397 = vshrl.u32 %v8396, 7
    %v8398 = vsub.s32 %v8395, %v8397
    %v8399 = vrot.slane %v8392, %v8398
    %v8403 = vpack.c.bf16 %v8384, %v8351
    %v8404 = vpack.c.bf16 %v8399, %v8399
    %s8405 = scalar_lea.vmem %s5, 224
    %v8406 = vld [vmem:[%s8405] sm:$0xf]
    %v8407 = vld [vmem:[%s8405 + $0x4] sm:$0xf]
    %v8408 = vld [vmem:[%s8405 + $0x8] sm:$0xf]
    %v8409 = vld [vmem:[%s8405 + $0xc] sm:$0xf]
    %v8410 = vld [vmem:[%s8405 + $0x10] sm:$0xf]
    %v8411 = vld [vmem:[%s8405 + $0x14] sm:$0xf]
    %v8412 = vld [vmem:[%s8405 + $0x18] sm:$0xf]
    %v8413 = vld [vmem:[%s8405 + $0x1c] sm:$0xf]
    %v8422 = vunpack.c.l.b16 %v8406
    %v8423 = vunpack.c.l.b16 %v8407
    %v8424 = vunpack.c.l.b16 %v8408
    %v8425 = vunpack.c.l.b16 %v8409
    %v8426 = vunpack.c.l.b16 %v8410
    %v8427 = vunpack.c.l.b16 %v8411
    %v8428 = vunpack.c.l.b16 %v8412
    %v8429 = vunpack.c.l.b16 %v8413
    %v8430 = vpack.c.b16 %v8423, %v8422
    %v8431 = vpack.c.b16 %v8425, %v8424
    %v8432 = vpack.c.b16 %v8427, %v8426
    %v8433 = vpack.c.b16 %v8429, %v8428
    %v8439 = vsel %vm860, %v8403, 0
    %v8442 = vsel %vm860, %v8404, 0
    %8444 = vmatprep.subr.bf16.mxu0 0
    %8445 = vmatpush1.bf16.msra.mxu0 %v8430
    %8446 = vmatprep.subr.bf16.mxu0 0
    %8447 = vmatpush1.bf16.msra.mxu0 %v8431
    %8448 = vmatprep.subr.bf16.mxu0 0
    %8449 = vmatpush1.bf16.msra.mxu0 %v8432
    %8450 = vmatprep.subr.bf16.mxu0 0
    %8451 = vmatpush1.bf16.msra.mxu0 %v8433
    %8452 = vmatprep.subr.bf16.mxu0 0
    %8453 = vmatpush1.bf16.msra.mxu0 0
    %8454 = vmatprep.subr.bf16.mxu0 0
    %8455 = vmatpush1.bf16.msra.mxu0 0
    %8456 = vmatprep.subr.bf16.mxu0 0
    %8457 = vmatpush1.bf16.msra.mxu0 0
    %8458 = vmatprep.subr.bf16.mxu0 0
    %8459 = vmatpush1.bf16.msra.mxu0 0
    %8460 = vmatprep.subr.bf16.mxu0 0
    %8461 = vmatpush1.bf16.msra.mxu0 0
    %8462 = vmatprep.subr.bf16.mxu0 0
    %8463 = vmatpush1.bf16.msra.mxu0 0
    %8464 = vmatprep.subr.bf16.mxu0 0
    %8465 = vmatpush1.bf16.msra.mxu0 0
    %8466 = vmatprep.subr.bf16.mxu0 0
    %8467 = vmatpush1.bf16.msra.mxu0 0
    %8468 = vmatprep.subr.bf16.mxu0 0
    %8469 = vmatpush1.bf16.msra.mxu0 0
    %8470 = vmatprep.subr.bf16.mxu0 0
    %8471 = vmatpush1.bf16.msra.mxu0 0
    %8472 = vmatprep.subr.bf16.mxu0 0
    %8473 = vmatpush1.bf16.msra.mxu0 0
    %8474 = vmatprep.subr.bf16.mxu0 0
    %8475 = vmatpush1.bf16.msra.mxu0 0
    %8476 = vmatprep.mubr.bf16.mxu0 0
    %8477 = vmatmul.mubr.bf16.gmra.mrb[0].mxu0 %v8439
    %v8478 = vpop.f32.mrb[0].mxu0
    %v8479 = vadd.f32 0.0, %v8478
    %v8480 = vpop.f32.mrb[0].mxu0
    %v8481 = vpop.f32.mrb[0].mxu0
    %v8482 = vadd.f32 0.0, %v8481
    %v8483 = vpop.f32.mrb[0].mxu0
    %8484 = vmatprep.mubr.bf16.mxu0 0
    %8485 = vmatmul.mubr.bf16.gmra.mrb[0].mxu0 %v8442
    %v8486 = vpop.f32.mrb[0].mxu0
    %v8487 = vadd.f32 0.0, %v8486
    %v8488 = vpop.f32.mrb[0].mxu0
    %v8489 = vpop.f32.mrb[0].mxu0
    %v8490 = vpop.f32.mrb[0].mxu0
    %8491 = vdwg.mxu0
    %v8492 = vadd.f32 %v8316, %v8479
    %v8493 = vadd.f32 %v8317, %v8482
    %v8494 = vadd.f32 %v8318, %v8487
    %v8495 = vcombine.low %v6737, %v6777
    %v8496 = vcombine.low %v6785, %v6787
    %v8497 = vcombine.low %v6786, %v6788
    %v8499 = vunpack.c.l.s4 1966171168
    %v8500 = vunpack.c.0.s8 %v8499
    %v8501 = vlaneseq
    %v8502 = vshrl.u32 %v8501, 7
    %v8503 = vsub.s32 %v8500, %v8502
    %v8504 = vrot.slane %v8495, %v8503
    %v8506 = vunpack.c.l.s4 1966171168
    %v8507 = vunpack.c.0.s8 %v8506
    %v8508 = vlaneseq
    %v8509 = vshrl.u32 %v8508, 7
    %v8510 = vsub.s32 %v8507, %v8509
    %v8511 = vrot.slane %v8496, %v8510
    %v8513 = vunpack.c.l.s4 1966171168
    %v8514 = vunpack.c.0.s8 %v8513
    %v8515 = vlaneseq
    %v8516 = vshrl.u32 %v8515, 7
    %v8517 = vsub.s32 %v8514, %v8516
    %v8518 = vrot.slane %v8497, %v8517
    %v8519 = vcombine.low %v7398, %v8504
    %v8520 = vcombine.low %v8511, %v8518
    %v8522 = vunpack.c.l.s4 1966171168
    %v8523 = vunpack.c.0.s8 %v8522
    %v8524 = vlaneseq
    %v8525 = vshrl.u32 %v8524, 7
    %v8526 = vsub.s32 %v8523, %v8525
    %v8527 = vrot.slane %v8519, %v8526
    %v8529 = vunpack.c.l.s4 1966171168
    %v8530 = vunpack.c.0.s8 %v8529
    %v8531 = vlaneseq
    %v8532 = vshrl.u32 %v8531, 7
    %v8533 = vsub.s32 %v8530, %v8532
    %v8534 = vrot.slane %v8520, %v8533
    %v8535 = vcombine.low %v8527, %v8534
    %v8536 = vcombine.low %v6812, %v6882
    %v8537 = vcombine.low %v6917, %v6935
    %v8539 = vunpack.c.l.s4 1966171168
    %v8540 = vunpack.c.0.s8 %v8539
    %v8541 = vlaneseq
    %v8542 = vshrl.u32 %v8541, 7
    %v8543 = vsub.s32 %v8540, %v8542
    %v8544 = vrot.slane %v8536, %v8543
    %v8546 = vunpack.c.l.s4 1966171168
    %v8547 = vunpack.c.0.s8 %v8546
    %v8548 = vlaneseq
    %v8549 = vshrl.u32 %v8548, 7
    %v8550 = vsub.s32 %v8547, %v8549
    %v8551 = vrot.slane %v8537, %v8550
    %v8552 = vcombine.low %v8544, %v7472
    %v8553 = vcombine.low %v7840, %v8551
    %v8555 = vunpack.c.l.s4 1966171168
    %v8556 = vunpack.c.0.s8 %v8555
    %v8557 = vlaneseq
    %v8558 = vshrl.u32 %v8557, 7
    %v8559 = vsub.s32 %v8556, %v8558
    %v8560 = vrot.slane %v8552, %v8559
    %v8562 = vunpack.c.l.s4 1966171168
    %v8563 = vunpack.c.0.s8 %v8562
    %v8564 = vlaneseq
    %v8565 = vshrl.u32 %v8564, 7
    %v8566 = vsub.s32 %v8563, %v8565
    %v8567 = vrot.slane %v8553, %v8566
    %v8568 = vcombine.low %v8560, %v8567
    %v8569 = vcombine.low %v6950, %v6957
    %v8571 = vunpack.c.l.s4 1966171168
    %v8572 = vunpack.c.0.s8 %v8571
    %v8573 = vlaneseq
    %v8574 = vshrl.u32 %v8573, 7
    %v8575 = vsub.s32 %v8572, %v8574
    %v8576 = vrot.slane %v8569, %v8575
    %v8578 = vunpack.c.l.s4 1966171168
    %v8579 = vunpack.c.0.s8 %v8578
    %v8580 = vlaneseq
    %v8581 = vshrl.u32 %v8580, 7
    %v8582 = vsub.s32 %v8579, %v8581
    %v8583 = vrot.slane %v8576, %v8582
    %v8587 = vpack.c.bf16 %v8568, %v8535
    %v8588 = vpack.c.bf16 %v8583, %v8583
    %s8589 = scalar_lea.vmem %s5, 256
    %v8590 = vld [vmem:[%s8589] sm:$0xf]
    %v8591 = vld [vmem:[%s8589 + $0x4] sm:$0xf]
    %v8592 = vld [vmem:[%s8589 + $0x8] sm:$0xf]
    %v8593 = vld [vmem:[%s8589 + $0xc] sm:$0xf]
    %v8594 = vld [vmem:[%s8589 + $0x10] sm:$0xf]
    %v8595 = vld [vmem:[%s8589 + $0x14] sm:$0xf]
    %v8596 = vld [vmem:[%s8589 + $0x18] sm:$0xf]
    %v8597 = vld [vmem:[%s8589 + $0x1c] sm:$0xf]
    %v8606 = vunpack.c.l.b16 %v8590
    %v8607 = vunpack.c.l.b16 %v8591
    %v8608 = vunpack.c.l.b16 %v8592
    %v8609 = vunpack.c.l.b16 %v8593
    %v8610 = vunpack.c.l.b16 %v8594
    %v8611 = vunpack.c.l.b16 %v8595
    %v8612 = vunpack.c.l.b16 %v8596
    %v8613 = vunpack.c.l.b16 %v8597
    %v8614 = vpack.c.b16 %v8607, %v8606
    %v8615 = vpack.c.b16 %v8609, %v8608
    %v8616 = vpack.c.b16 %v8611, %v8610
    %v8617 = vpack.c.b16 %v8613, %v8612
    %v8623 = vsel %vm860, %v8587, 0
    %v8626 = vsel %vm860, %v8588, 0
    %8628 = vmatprep.subr.bf16.mxu0 0
    %8629 = vmatpush1.bf16.msra.mxu0 %v8614
    %8630 = vmatprep.subr.bf16.mxu0 0
    %8631 = vmatpush1.bf16.msra.mxu0 %v8615
    %8632 = vmatprep.subr.bf16.mxu0 0
    %8633 = vmatpush1.bf16.msra.mxu0 %v8616
    %8634 = vmatprep.subr.bf16.mxu0 0
    %8635 = vmatpush1.bf16.msra.mxu0 %v8617
    %8636 = vmatprep.subr.bf16.mxu0 0
    %8637 = vmatpush1.bf16.msra.mxu0 0
    %8638 = vmatprep.subr.bf16.mxu0 0
    %8639 = vmatpush1.bf16.msra.mxu0 0
    %8640 = vmatprep.subr.bf16.mxu0 0
    %8641 = vmatpush1.bf16.msra.mxu0 0
    %8642 = vmatprep.subr.bf16.mxu0 0
    %8643 = vmatpush1.bf16.msra.mxu0 0
    %8644 = vmatprep.subr.bf16.mxu0 0
    %8645 = vmatpush1.bf16.msra.mxu0 0
    %8646 = vmatprep.subr.bf16.mxu0 0
    %8647 = vmatpush1.bf16.msra.mxu0 0
    %8648 = vmatprep.subr.bf16.mxu0 0
    %8649 = vmatpush1.bf16.msra.mxu0 0
    %8650 = vmatprep.subr.bf16.mxu0 0
    %8651 = vmatpush1.bf16.msra.mxu0 0
    %8652 = vmatprep.subr.bf16.mxu0 0
    %8653 = vmatpush1.bf16.msra.mxu0 0
    %8654 = vmatprep.subr.bf16.mxu0 0
    %8655 = vmatpush1.bf16.msra.mxu0 0
    %8656 = vmatprep.subr.bf16.mxu0 0
    %8657 = vmatpush1.bf16.msra.mxu0 0
    %8658 = vmatprep.subr.bf16.mxu0 0
    %8659 = vmatpush1.bf16.msra.mxu0 0
    %8660 = vmatprep.mubr.bf16.mxu0 0
    %8661 = vmatmul.mubr.bf16.gmra.mrb[0].mxu0 %v8623
    %v8662 = vpop.f32.mrb[0].mxu0
    %v8663 = vadd.f32 0.0, %v8662
    %v8664 = vpop.f32.mrb[0].mxu0
    %v8665 = vpop.f32.mrb[0].mxu0
    %v8666 = vadd.f32 0.0, %v8665
    %v8667 = vpop.f32.mrb[0].mxu0
    %8668 = vmatprep.mubr.bf16.mxu0 0
    %8669 = vmatmul.mubr.bf16.gmra.mrb[0].mxu0 %v8626
    %v8670 = vpop.f32.mrb[0].mxu0
    %v8671 = vadd.f32 0.0, %v8670
    %v8672 = vpop.f32.mrb[0].mxu0
    %v8673 = vpop.f32.mrb[0].mxu0
    %v8674 = vpop.f32.mrb[0].mxu0
    %8675 = vdwg.mxu0
    %v8676 = vadd.f32 %v8492, %v8663
    %v8677 = vadd.f32 %v8493, %v8666
    %v8678 = vadd.f32 %v8494, %v8671
    %v8679 = vld [vmem:[%s6] sm:$0x1]
    %v8681 = vlaneseq
    %v8682 = vshrl.u32 %v8681, 7
    %v8683 = vsub.s32 0, %v8682
    %v8684 = vrot.slane %v8679, %v8683
    %v8686 = vadd.f32 %v8676, %v8684
    %v8687 = vadd.f32 %v8677, %v8684
    %v8688 = vadd.f32 %v8678, %v8684
    %v8689 = vmax.f32 %v8686, 0.0
    %v8690 = vmax.f32 %v8687, 0.0
    %v8691 = vmax.f32 %v8688, 0.0
    %v8695 = vcombine.high %v8689, %v8689
    %v8697 = vunpack.c.l.s4 1966171168
    %v8698 = vunpack.c.0.s8 %v8697
    %v8699 = vlaneseq
    %v8700 = vshrl.u32 %v8699, 7
    %v8701 = vsub.s32 %v8698, %v8700
    %v8702 = vrot.slane %v8689, %v8701
    %v8704 = vunpack.c.l.s4 1966171168
    %v8705 = vunpack.c.0.s8 %v8704
    %v8706 = vlaneseq
    %v8707 = vshrl.u32 %v8706, 7
    %v8708 = vsub.s32 %v8705, %v8707
    %v8709 = vrot.slane %v8695, %v8708
    %v8710 = vcombine.high %v8702, %v8702
    %v8711 = vcombine.high %v8709, %v8709
    %v8713 = vunpack.c.l.s4 1966171168
    %v8714 = vunpack.c.0.s8 %v8713
    %v8715 = vlaneseq
    %v8716 = vshrl.u32 %v8715, 7
    %v8717 = vsub.s32 %v8714, %v8716
    %v8718 = vrot.slane %v8702, %v8717
    %v8720 = vunpack.c.l.s4 1966171168
    %v8721 = vunpack.c.0.s8 %v8720
    %v8722 = vlaneseq
    %v8723 = vshrl.u32 %v8722, 7
    %v8724 = vsub.s32 %v8721, %v8723
    %v8725 = vrot.slane %v8709, %v8724
    %v8727 = vunpack.c.l.s4 1966171168
    %v8728 = vunpack.c.0.s8 %v8727
    %v8729 = vlaneseq
    %v8730 = vshrl.u32 %v8729, 7
    %v8731 = vsub.s32 %v8728, %v8730
    %v8732 = vrot.slane %v8710, %v8731
    %v8734 = vunpack.c.l.s4 1966171168
    %v8735 = vunpack.c.0.s8 %v8734
    %v8736 = vlaneseq
    %v8737 = vshrl.u32 %v8736, 7
    %v8738 = vsub.s32 %v8735, %v8737
    %v8739 = vrot.slane %v8711, %v8738
    %v8740 = vcombine.high %v8718, %v8718
    %v8741 = vcombine.high %v8725, %v8725
    %v8742 = vcombine.high %v8732, %v8732
    %v8743 = vcombine.high %v8739, %v8739
    %v8744 = vcombine.high %v8690, %v8690
    %v8746 = vunpack.c.l.s4 1966171168
    %v8747 = vunpack.c.0.s8 %v8746
    %v8748 = vlaneseq
    %v8749 = vshrl.u32 %v8748, 7
    %v8750 = vsub.s32 %v8747, %v8749
    %v8751 = vrot.slane %v8690, %v8750
    %v8753 = vunpack.c.l.s4 1966171168
    %v8754 = vunpack.c.0.s8 %v8753
    %v8755 = vlaneseq
    %v8756 = vshrl.u32 %v8755, 7
    %v8757 = vsub.s32 %v8754, %v8756
    %v8758 = vrot.slane %v8744, %v8757
    %v8759 = vcombine.high %v8751, %v8751
    %v8760 = vcombine.high %v8758, %v8758
    %v8762 = vunpack.c.l.s4 1966171168
    %v8763 = vunpack.c.0.s8 %v8762
    %v8764 = vlaneseq
    %v8765 = vshrl.u32 %v8764, 7
    %v8766 = vsub.s32 %v8763, %v8765
    %v8767 = vrot.slane %v8751, %v8766
    %v8769 = vunpack.c.l.s4 1966171168
    %v8770 = vunpack.c.0.s8 %v8769
    %v8771 = vlaneseq
    %v8772 = vshrl.u32 %v8771, 7
    %v8773 = vsub.s32 %v8770, %v8772
    %v8774 = vrot.slane %v8758, %v8773
    %v8776 = vunpack.c.l.s4 1966171168
    %v8777 = vunpack.c.0.s8 %v8776
    %v8778 = vlaneseq
    %v8779 = vshrl.u32 %v8778, 7
    %v8780 = vsub.s32 %v8777, %v8779
    %v8781 = vrot.slane %v8759, %v8780
    %v8783 = vunpack.c.l.s4 1966171168
    %v8784 = vunpack.c.0.s8 %v8783
    %v8785 = vlaneseq
    %v8786 = vshrl.u32 %v8785, 7
    %v8787 = vsub.s32 %v8784, %v8786
    %v8788 = vrot.slane %v8760, %v8787
    %v8789 = vcombine.high %v8767, %v8767
    %v8790 = vcombine.high %v8774, %v8774
    %v8791 = vcombine.high %v8781, %v8781
    %v8792 = vcombine.high %v8788, %v8788
    %v8794 = vunpack.c.l.s4 1966171168
    %v8795 = vunpack.c.0.s8 %v8794
    %v8796 = vlaneseq
    %v8797 = vshrl.u32 %v8796, 7
    %v8798 = vsub.s32 %v8795, %v8797
    %v8799 = vrot.slane %v8691, %v8798
    %v8800 = vcombine.high %v8799, %v8799
    %v8802 = vunpack.c.l.s4 1966171168
    %v8803 = vunpack.c.0.s8 %v8802
    %v8804 = vlaneseq
    %v8805 = vshrl.u32 %v8804, 7
    %v8806 = vsub.s32 %v8803, %v8805
    %v8807 = vrot.slane %v8799, %v8806
    %v8809 = vunpack.c.l.s4 1966171168
    %v8810 = vunpack.c.0.s8 %v8809
    %v8811 = vlaneseq
    %v8812 = vshrl.u32 %v8811, 7
    %v8813 = vsub.s32 %v8810, %v8812
    %v8814 = vrot.slane %v8800, %v8813
    %v8833 = vpack.c.bf16 %v8718, %v8718
    %v8834 = vpack.c.bf16 %v8781, %v8781
    %v8835 = vld [vmem:[%s7] sm:$0xff]
    %v8836 = vld [vmem:[%s7 + $0x8] sm:$0xff]
    %v8837 = vld [vmem:[%s7 + $0x10] sm:$0xff]
    %v8838 = vld [vmem:[%s7 + $0x18] sm:$0xff]
    %v8839 = vld [vmem:[%s7 + $0x20] sm:$0xff]
    %v8840 = vld [vmem:[%s7 + $0x28] sm:$0xff]
    %v8841 = vld [vmem:[%s7 + $0x30] sm:$0xff]
    %v8842 = vld [vmem:[%s7 + $0x38] sm:$0xff]
    %v8843 = vld [vmem:[%s7 + $0x40] sm:$0xff]
    %v8844 = vld [vmem:[%s7 + $0x48] sm:$0xff]
    %v8845 = vld [vmem:[%s7 + $0x50] sm:$0xff]
    %v8846 = vld [vmem:[%s7 + $0x58] sm:$0xff]
    %v8847 = vld [vmem:[%s7 + $0x60] sm:$0xff]
    %v8848 = vld [vmem:[%s7 + $0x68] sm:$0xff]
    %v8849 = vld [vmem:[%s7 + $0x70] sm:$0xff]
    %v8850 = vld [vmem:[%s7 + $0x78] sm:$0xff]
    %v8851 = vpack.c.bf16 %v8732, %v8732
    %v8852 = vpack.c.bf16 %v8789, %v8789
    %s8853 = scalar_lea.vmem %s7, 128
    %v8854 = vld [vmem:[%s8853] sm:$0xff]
    %v8855 = vld [vmem:[%s8853 + $0x8] sm:$0xff]
    %v8856 = vld [vmem:[%s8853 + $0x10] sm:$0xff]
    %v8857 = vld [vmem:[%s8853 + $0x18] sm:$0xff]
    %v8858 = vld [vmem:[%s8853 + $0x20] sm:$0xff]
    %v8859 = vld [vmem:[%s8853 + $0x28] sm:$0xff]
    %v8860 = vld [vmem:[%s8853 + $0x30] sm:$0xff]
    %v8861 = vld [vmem:[%s8853 + $0x38] sm:$0xff]
    %v8862 = vld [vmem:[%s8853 + $0x40] sm:$0xff]
    %v8863 = vld [vmem:[%s8853 + $0x48] sm:$0xff]
    %v8864 = vld [vmem:[%s8853 + $0x50] sm:$0xff]
    %v8865 = vld [vmem:[%s8853 + $0x58] sm:$0xff]
    %v8866 = vld [vmem:[%s8853 + $0x60] sm:$0xff]
    %v8867 = vld [vmem:[%s8853 + $0x68] sm:$0xff]
    %v8868 = vld [vmem:[%s8853 + $0x70] sm:$0xff]
    %v8869 = vld [vmem:[%s8853 + $0x78] sm:$0xff]
    %v8872 = vunpack.c.l.b16 %v8851
    %v8873 = vunpack.c.l.b16 %v8852
    %v8874 = vrot.slane %v8873, 7
    %v8875 = vsel %vm3170, %v8874, %v8872
    %v8876 = vpack.c.b16 %v8875, %v8875
    %v8893 = vunpack.c.l.b16 %v8854
    %v8894 = vunpack.c.h.b16 %v8854
    %v8895 = vunpack.c.l.b16 %v8855
    %v8896 = vunpack.c.h.b16 %v8855
    %v8897 = vunpack.c.l.b16 %v8856
    %v8898 = vunpack.c.h.b16 %v8856
    %v8899 = vunpack.c.l.b16 %v8857
    %v8900 = vunpack.c.h.b16 %v8857
    %v8901 = vunpack.c.l.b16 %v8858
    %v8902 = vunpack.c.h.b16 %v8858
    %v8903 = vunpack.c.l.b16 %v8859
    %v8904 = vunpack.c.h.b16 %v8859
    %v8905 = vunpack.c.l.b16 %v8860
    %v8906 = vunpack.c.h.b16 %v8860
    %v8907 = vunpack.c.l.b16 %v8861
    %v8908 = vunpack.c.h.b16 %v8861
    %v8909 = vunpack.c.l.b16 %v8862
    %v8910 = vunpack.c.h.b16 %v8862
    %v8911 = vunpack.c.l.b16 %v8863
    %v8912 = vunpack.c.h.b16 %v8863
    %v8913 = vunpack.c.l.b16 %v8864
    %v8914 = vunpack.c.h.b16 %v8864
    %v8915 = vunpack.c.l.b16 %v8865
    %v8916 = vunpack.c.h.b16 %v8865
    %v8917 = vunpack.c.l.b16 %v8866
    %v8918 = vunpack.c.h.b16 %v8866
    %v8919 = vunpack.c.l.b16 %v8867
    %v8920 = vunpack.c.h.b16 %v8867
    %v8921 = vunpack.c.l.b16 %v8868
    %v8922 = vunpack.c.h.b16 %v8868
    %v8923 = vunpack.c.l.b16 %v8869
    %v8924 = vunpack.c.h.b16 %v8869
    %v8925 = vpack.c.b16 %v8897, %v8893
    %v8926 = vpack.c.b16 %v8898, %v8894
    %v8927 = vpack.c.b16 %v8899, %v8895
    %v8928 = vpack.c.b16 %v8900, %v8896
    %v8929 = vpack.c.b16 %v8905, %v8901
    %v8930 = vpack.c.b16 %v8906, %v8902
    %v8931 = vpack.c.b16 %v8907, %v8903
    %v8932 = vpack.c.b16 %v8908, %v8904
    %v8933 = vpack.c.b16 %v8913, %v8909
    %v8934 = vpack.c.b16 %v8914, %v8910
    %v8935 = vpack.c.b16 %v8915, %v8911
    %v8936 = vpack.c.b16 %v8916, %v8912
    %v8937 = vpack.c.b16 %v8921, %v8917
    %v8938 = vpack.c.b16 %v8922, %v8918
    %v8939 = vpack.c.b16 %v8923, %v8919
    %v8940 = vpack.c.b16 %v8924, %v8920
    %v8958 = vsel %vm860, %v8876, 0
    %8960 = vmatprep.subr.bf16.mxu0 %v8926
    %8961 = vmatpush1.bf16.msra.mxu0 %v8925
    %8962 = vmatprep.subr.bf16.mxu0 %v8930
    %8963 = vmatpush1.bf16.msra.mxu0 %v8929
    %8964 = vmatprep.subr.bf16.mxu0 %v8934
    %8965 = vmatpush1.bf16.msra.mxu0 %v8933
    %8966 = vmatprep.subr.bf16.mxu0 %v8938
    %8967 = vmatpush1.bf16.msra.mxu0 %v8937
    %8968 = vmatprep.subr.bf16.mxu0 0
    %8969 = vmatpush1.bf16.msra.mxu0 0
    %8970 = vmatprep.subr.bf16.mxu0 0
    %8971 = vmatpush1.bf16.msra.mxu0 0
    %8972 = vmatprep.subr.bf16.mxu0 0
    %8973 = vmatpush1.bf16.msra.mxu0 0
    %8974 = vmatprep.subr.bf16.mxu0 0
    %8975 = vmatpush1.bf16.msra.mxu0 0
    %8976 = vmatprep.subr.bf16.mxu0 0
    %8977 = vmatpush1.bf16.msra.mxu0 0
    %8978 = vmatprep.subr.bf16.mxu0 0
    %8979 = vmatpush1.bf16.msra.mxu0 0
    %8980 = vmatprep.subr.bf16.mxu0 0
    %8981 = vmatpush1.bf16.msra.mxu0 0
    %8982 = vmatprep.subr.bf16.mxu0 0
    %8983 = vmatpush1.bf16.msra.mxu0 0
    %8984 = vmatprep.subr.bf16.mxu0 0
    %8985 = vmatpush1.bf16.msra.mxu0 0
    %8986 = vmatprep.subr.bf16.mxu0 0
    %8987 = vmatpush1.bf16.msra.mxu0 0
    %8988 = vmatprep.subr.bf16.mxu0 0
    %8989 = vmatpush1.bf16.msra.mxu0 0
    %8990 = vmatprep.subr.bf16.mxu0 0
    %8991 = vmatpush1.bf16.msra.mxu0 0
    %8992 = vmatprep.mubr.bf16.mxu0 0
    %8993 = vmatmul.mubr.bf16.gmra.mrb[0].mxu0 %v8958
    %v8994 = vpop.f32.mrb[0].mxu0
    %v8995 = vadd.f32 0.0, %v8994
    %v8996 = vpop.f32.mrb[0].mxu0
    %v8997 = vadd.f32 0.0, %v8996
    %v8998 = vpop.f32.mrb[0].mxu0
    %v8999 = vpop.f32.mrb[0].mxu0
    %9000 = vdwg.mxu0
    %9001 = vmatprep.subr.bf16.mxu0 %v8928
    %9002 = vmatpush1.bf16.msra.mxu0 %v8927
    %9003 = vmatprep.subr.bf16.mxu0 %v8932
    %9004 = vmatpush1.bf16.msra.mxu0 %v8931
    %9005 = vmatprep.subr.bf16.mxu0 %v8936
    %9006 = vmatpush1.bf16.msra.mxu0 %v8935
    %9007 = vmatprep.subr.bf16.mxu0 %v8940
    %9008 = vmatpush1.bf16.msra.mxu0 %v8939
    %9009 = vmatprep.subr.bf16.mxu0 0
    %9010 = vmatpush1.bf16.msra.mxu0 0
    %9011 = vmatprep.subr.bf16.mxu0 0
    %9012 = vmatpush1.bf16.msra.mxu0 0
    %9013 = vmatprep.subr.bf16.mxu0 0
    %9014 = vmatpush1.bf16.msra.mxu0 0
    %9015 = vmatprep.subr.bf16.mxu0 0
    %9016 = vmatpush1.bf16.msra.mxu0 0
    %9017 = vmatprep.subr.bf16.mxu0 0
    %9018 = vmatpush1.bf16.msra.mxu0 0
    %9019 = vmatprep.subr.bf16.mxu0 0
    %9020 = vmatpush1.bf16.msra.mxu0 0
    %9021 = vmatprep.subr.bf16.mxu0 0
    %9022 = vmatpush1.bf16.msra.mxu0 0
    %9023 = vmatprep.subr.bf16.mxu0 0
    %9024 = vmatpush1.bf16.msra.mxu0 0
    %9025 = vmatprep.subr.bf16.mxu0 0
    %9026 = vmatpush1.bf16.msra.mxu0 0
    %9027 = vmatprep.subr.bf16.mxu0 0
    %9028 = vmatpush1.bf16.msra.mxu0 0
    %9029 = vmatprep.subr.bf16.mxu0 0
    %9030 = vmatpush1.bf16.msra.mxu0 0
    %9031 = vmatprep.subr.bf16.mxu0 0
    %9032 = vmatpush1.bf16.msra.mxu0 0
    %9033 = vmatprep.mubr.bf16.mxu0 0
    %9034 = vmatmul.mubr.bf16.gmra.mrb[0].mxu0 %v8958
    %v9035 = vpop.f32.mrb[0].mxu0
    %v9036 = vadd.f32 0.0, %v9035
    %v9037 = vpop.f32.mrb[0].mxu0
    %v9038 = vadd.f32 0.0, %v9037
    %v9039 = vpop.f32.mrb[0].mxu0
    %v9040 = vpop.f32.mrb[0].mxu0
    %9041 = vdwg.mxu0
    %v9044 = vunpack.c.l.b16 %v8833
    %v9045 = vunpack.c.l.b16 %v8834
    %v9046 = vrot.slane %v9045, 7
    %v9047 = vsel %vm3170, %v9046, %v9044
    %v9048 = vpack.c.b16 %v9047, %v9047
    %v9065 = vunpack.c.l.b16 %v8835
    %v9066 = vunpack.c.h.b16 %v8835
    %v9067 = vunpack.c.l.b16 %v8836
    %v9068 = vunpack.c.h.b16 %v8836
    %v9069 = vunpack.c.l.b16 %v8837
    %v9070 = vunpack.c.h.b16 %v8837
    %v9071 = vunpack.c.l.b16 %v8838
    %v9072 = vunpack.c.h.b16 %v8838
    %v9073 = vunpack.c.l.b16 %v8839
    %v9074 = vunpack.c.h.b16 %v8839
    %v9075 = vunpack.c.l.b16 %v8840
    %v9076 = vunpack.c.h.b16 %v8840
    %v9077 = vunpack.c.l.b16 %v8841
    %v9078 = vunpack.c.h.b16 %v8841
    %v9079 = vunpack.c.l.b16 %v8842
    %v9080 = vunpack.c.h.b16 %v8842
    %v9081 = vunpack.c.l.b16 %v8843
    %v9082 = vunpack.c.h.b16 %v8843
    %v9083 = vunpack.c.l.b16 %v8844
    %v9084 = vunpack.c.h.b16 %v8844
    %v9085 = vunpack.c.l.b16 %v8845
    %v9086 = vunpack.c.h.b16 %v8845
    %v9087 = vunpack.c.l.b16 %v8846
    %v9088 = vunpack.c.h.b16 %v8846
    %v9089 = vunpack.c.l.b16 %v8847
    %v9090 = vunpack.c.h.b16 %v8847
    %v9091 = vunpack.c.l.b16 %v8848
    %v9092 = vunpack.c.h.b16 %v8848
    %v9093 = vunpack.c.l.b16 %v8849
    %v9094 = vunpack.c.h.b16 %v8849
    %v9095 = vunpack.c.l.b16 %v8850
    %v9096 = vunpack.c.h.b16 %v8850
    %v9097 = vpack.c.b16 %v9069, %v9065
    %v9098 = vpack.c.b16 %v9070, %v9066
    %v9099 = vpack.c.b16 %v9071, %v9067
    %v9100 = vpack.c.b16 %v9072, %v9068
    %v9101 = vpack.c.b16 %v9077, %v9073
    %v9102 = vpack.c.b16 %v9078, %v9074
    %v9103 = vpack.c.b16 %v9079, %v9075
    %v9104 = vpack.c.b16 %v9080, %v9076
    %v9105 = vpack.c.b16 %v9085, %v9081
    %v9106 = vpack.c.b16 %v9086, %v9082
    %v9107 = vpack.c.b16 %v9087, %v9083
    %v9108 = vpack.c.b16 %v9088, %v9084
    %v9109 = vpack.c.b16 %v9093, %v9089
    %v9110 = vpack.c.b16 %v9094, %v9090
    %v9111 = vpack.c.b16 %v9095, %v9091
    %v9112 = vpack.c.b16 %v9096, %v9092
    %v9130 = vsel %vm860, %v9048, 0
    %9132 = vmatprep.subr.bf16.mxu0 %v9098
    %9133 = vmatpush1.bf16.msra.mxu0 %v9097
    %9134 = vmatprep.subr.bf16.mxu0 %v9102
    %9135 = vmatpush1.bf16.msra.mxu0 %v9101
    %9136 = vmatprep.subr.bf16.mxu0 %v9106
    %9137 = vmatpush1.bf16.msra.mxu0 %v9105
    %9138 = vmatprep.subr.bf16.mxu0 %v9110
    %9139 = vmatpush1.bf16.msra.mxu0 %v9109
    %9140 = vmatprep.subr.bf16.mxu0 0
    %9141 = vmatpush1.bf16.msra.mxu0 0
    %9142 = vmatprep.subr.bf16.mxu0 0
    %9143 = vmatpush1.bf16.msra.mxu0 0
    %9144 = vmatprep.subr.bf16.mxu0 0
    %9145 = vmatpush1.bf16.msra.mxu0 0
    %9146 = vmatprep.subr.bf16.mxu0 0
    %9147 = vmatpush1.bf16.msra.mxu0 0
    %9148 = vmatprep.subr.bf16.mxu0 0
    %9149 = vmatpush1.bf16.msra.mxu0 0
    %9150 = vmatprep.subr.bf16.mxu0 0
    %9151 = vmatpush1.bf16.msra.mxu0 0
    %9152 = vmatprep.subr.bf16.mxu0 0
    %9153 = vmatpush1.bf16.msra.mxu0 0
    %9154 = vmatprep.subr.bf16.mxu0 0
    %9155 = vmatpush1.bf16.msra.mxu0 0
    %9156 = vmatprep.subr.bf16.mxu0 0
    %9157 = vmatpush1.bf16.msra.mxu0 0
    %9158 = vmatprep.subr.bf16.mxu0 0
    %9159 = vmatpush1.bf16.msra.mxu0 0
    %9160 = vmatprep.subr.bf16.mxu0 0
    %9161 = vmatpush1.bf16.msra.mxu0 0
    %9162 = vmatprep.subr.bf16.mxu0 0
    %9163 = vmatpush1.bf16.msra.mxu0 0
    %9164 = vmatprep.mubr.bf16.mxu0 0
    %9165 = vmatmul.mubr.bf16.gmra.mrb[0].mxu0 %v9130
    %v9166 = vpop.f32.mrb[0].mxu0
    %v9167 = vadd.f32 %v8995, %v9166
    %v9168 = vpop.f32.mrb[0].mxu0
    %v9169 = vadd.f32 %v8997, %v9168
    %v9170 = vpop.f32.mrb[0].mxu0
    %v9171 = vpop.f32.mrb[0].mxu0
    %9172 = vdwg.mxu0
    %9173 = vmatprep.subr.bf16.mxu0 %v9100
    %9174 = vmatpush1.bf16.msra.mxu0 %v9099
    %9175 = vmatprep.subr.bf16.mxu0 %v9104
    %9176 = vmatpush1.bf16.msra.mxu0 %v9103
    %9177 = vmatprep.subr.bf16.mxu0 %v9108
    %9178 = vmatpush1.bf16.msra.mxu0 %v9107
    %9179 = vmatprep.subr.bf16.mxu0 %v9112
    %9180 = vmatpush1.bf16.msra.mxu0 %v9111
    %9181 = vmatprep.subr.bf16.mxu0 0
    %9182 = vmatpush1.bf16.msra.mxu0 0
    %9183 = vmatprep.subr.bf16.mxu0 0
    %9184 = vmatpush1.bf16.msra.mxu0 0
    %9185 = vmatprep.subr.bf16.mxu0 0
    %9186 = vmatpush1.bf16.msra.mxu0 0
    %9187 = vmatprep.subr.bf16.mxu0 0
    %9188 = vmatpush1.bf16.msra.mxu0 0
    %9189 = vmatprep.subr.bf16.mxu0 0
    %9190 = vmatpush1.bf16.msra.mxu0 0
    %9191 = vmatprep.subr.bf16.mxu0 0
    %9192 = vmatpush1.bf16.msra.mxu0 0
    %9193 = vmatprep.subr.bf16.mxu0 0
    %9194 = vmatpush1.bf16.msra.mxu0 0
    %9195 = vmatprep.subr.bf16.mxu0 0
    %9196 = vmatpush1.bf16.msra.mxu0 0
    %9197 = vmatprep.subr.bf16.mxu0 0
    %9198 = vmatpush1.bf16.msra.mxu0 0
    %9199 = vmatprep.subr.bf16.mxu0 0
    %9200 = vmatpush1.bf16.msra.mxu0 0
    %9201 = vmatprep.subr.bf16.mxu0 0
    %9202 = vmatpush1.bf16.msra.mxu0 0
    %9203 = vmatprep.subr.bf16.mxu0 0
    %9204 = vmatpush1.bf16.msra.mxu0 0
    %9205 = vmatprep.mubr.bf16.mxu0 0
    %9206 = vmatmul.mubr.bf16.gmra.mrb[0].mxu0 %v9130
    %v9207 = vpop.f32.mrb[0].mxu0
    %v9208 = vadd.f32 %v9036, %v9207
    %v9209 = vpop.f32.mrb[0].mxu0
    %v9210 = vadd.f32 %v9038, %v9209
    %v9211 = vpop.f32.mrb[0].mxu0
    %v9212 = vpop.f32.mrb[0].mxu0
    %9213 = vdwg.mxu0
    %v9214 = vpack.c.bf16 %v8740, %v8740
    %v9215 = vpack.c.bf16 %v8791, %v8791
    %s9216 = scalar_lea.vmem %s7, 256
    %v9217 = vld [vmem:[%s9216] sm:$0xff]
    %v9218 = vld [vmem:[%s9216 + $0x8] sm:$0xff]
    %v9219 = vld [vmem:[%s9216 + $0x10] sm:$0xff]
    %v9220 = vld [vmem:[%s9216 + $0x18] sm:$0xff]
    %v9221 = vld [vmem:[%s9216 + $0x20] sm:$0xff]
    %v9222 = vld [vmem:[%s9216 + $0x28] sm:$0xff]
    %v9223 = vld [vmem:[%s9216 + $0x30] sm:$0xff]
    %v9224 = vld [vmem:[%s9216 + $0x38] sm:$0xff]
    %v9225 = vld [vmem:[%s9216 + $0x40] sm:$0xff]
    %v9226 = vld [vmem:[%s9216 + $0x48] sm:$0xff]
    %v9227 = vld [vmem:[%s9216 + $0x50] sm:$0xff]
    %v9228 = vld [vmem:[%s9216 + $0x58] sm:$0xff]
    %v9229 = vld [vmem:[%s9216 + $0x60] sm:$0xff]
    %v9230 = vld [vmem:[%s9216 + $0x68] sm:$0xff]
    %v9231 = vld [vmem:[%s9216 + $0x70] sm:$0xff]
    %v9232 = vld [vmem:[%s9216 + $0x78] sm:$0xff]
    %v9235 = vunpack.c.l.b16 %v9214
    %v9236 = vunpack.c.l.b16 %v9215
    %v9237 = vrot.slane %v9236, 7
    %v9238 = vsel %vm3170, %v9237, %v9235
    %v9239 = vpack.c.b16 %v9238, %v9238
    %v9256 = vunpack.c.l.b16 %v9217
    %v9257 = vunpack.c.h.b16 %v9217
    %v9258 = vunpack.c.l.b16 %v9218
    %v9259 = vunpack.c.h.b16 %v9218
    %v9260 = vunpack.c.l.b16 %v9219
    %v9261 = vunpack.c.h.b16 %v9219
    %v9262 = vunpack.c.l.b16 %v9220
    %v9263 = vunpack.c.h.b16 %v9220
    %v9264 = vunpack.c.l.b16 %v9221
    %v9265 = vunpack.c.h.b16 %v9221
    %v9266 = vunpack.c.l.b16 %v9222
    %v9267 = vunpack.c.h.b16 %v9222
    %v9268 = vunpack.c.l.b16 %v9223
    %v9269 = vunpack.c.h.b16 %v9223
    %v9270 = vunpack.c.l.b16 %v9224
    %v9271 = vunpack.c.h.b16 %v9224
    %v9272 = vunpack.c.l.b16 %v9225
    %v9273 = vunpack.c.h.b16 %v9225
    %v9274 = vunpack.c.l.b16 %v9226
    %v9275 = vunpack.c.h.b16 %v9226
    %v9276 = vunpack.c.l.b16 %v9227
    %v9277 = vunpack.c.h.b16 %v9227
    %v9278 = vunpack.c.l.b16 %v9228
    %v9279 = vunpack.c.h.b16 %v9228
    %v9280 = vunpack.c.l.b16 %v9229
    %v9281 = vunpack.c.h.b16 %v9229
    %v9282 = vunpack.c.l.b16 %v9230
    %v9283 = vunpack.c.h.b16 %v9230
    %v9284 = vunpack.c.l.b16 %v9231
    %v9285 = vunpack.c.h.b16 %v9231
    %v9286 = vunpack.c.l.b16 %v9232
    %v9287 = vunpack.c.h.b16 %v9232
    %v9288 = vpack.c.b16 %v9260, %v9256
    %v9289 = vpack.c.b16 %v9261, %v9257
    %v9290 = vpack.c.b16 %v9262, %v9258
    %v9291 = vpack.c.b16 %v9263, %v9259
    %v9292 = vpack.c.b16 %v9268, %v9264
    %v9293 = vpack.c.b16 %v9269, %v9265
    %v9294 = vpack.c.b16 %v9270, %v9266
    %v9295 = vpack.c.b16 %v9271, %v9267
    %v9296 = vpack.c.b16 %v9276, %v9272
    %v9297 = vpack.c.b16 %v9277, %v9273
    %v9298 = vpack.c.b16 %v9278, %v9274
    %v9299 = vpack.c.b16 %v9279, %v9275
    %v9300 = vpack.c.b16 %v9284, %v9280
    %v9301 = vpack.c.b16 %v9285, %v9281
    %v9302 = vpack.c.b16 %v9286, %v9282
    %v9303 = vpack.c.b16 %v9287, %v9283
    %v9321 = vsel %vm860, %v9239, 0
    %9323 = vmatprep.subr.bf16.mxu0 %v9289
    %9324 = vmatpush1.bf16.msra.mxu0 %v9288
    %9325 = vmatprep.subr.bf16.mxu0 %v9293
    %9326 = vmatpush1.bf16.msra.mxu0 %v9292
    %9327 = vmatprep.subr.bf16.mxu0 %v9297
    %9328 = vmatpush1.bf16.msra.mxu0 %v9296
    %9329 = vmatprep.subr.bf16.mxu0 %v9301
    %9330 = vmatpush1.bf16.msra.mxu0 %v9300
    %9331 = vmatprep.subr.bf16.mxu0 0
    %9332 = vmatpush1.bf16.msra.mxu0 0
    %9333 = vmatprep.subr.bf16.mxu0 0
    %9334 = vmatpush1.bf16.msra.mxu0 0
    %9335 = vmatprep.subr.bf16.mxu0 0
    %9336 = vmatpush1.bf16.msra.mxu0 0
    %9337 = vmatprep.subr.bf16.mxu0 0
    %9338 = vmatpush1.bf16.msra.mxu0 0
    %9339 = vmatprep.subr.bf16.mxu0 0
    %9340 = vmatpush1.bf16.msra.mxu0 0
    %9341 = vmatprep.subr.bf16.mxu0 0
    %9342 = vmatpush1.bf16.msra.mxu0 0
    %9343 = vmatprep.subr.bf16.mxu0 0
    %9344 = vmatpush1.bf16.msra.mxu0 0
    %9345 = vmatprep.subr.bf16.mxu0 0
    %9346 = vmatpush1.bf16.msra.mxu0 0
    %9347 = vmatprep.subr.bf16.mxu0 0
    %9348 = vmatpush1.bf16.msra.mxu0 0
    %9349 = vmatprep.subr.bf16.mxu0 0
    %9350 = vmatpush1.bf16.msra.mxu0 0
    %9351 = vmatprep.subr.bf16.mxu0 0
    %9352 = vmatpush1.bf16.msra.mxu0 0
    %9353 = vmatprep.subr.bf16.mxu0 0
    %9354 = vmatpush1.bf16.msra.mxu0 0
    %9355 = vmatprep.mubr.bf16.mxu0 0
    %9356 = vmatmul.mubr.bf16.gmra.mrb[0].mxu0 %v9321
    %v9357 = vpop.f32.mrb[0].mxu0
    %v9358 = vadd.f32 0.0, %v9357
    %v9359 = vpop.f32.mrb[0].mxu0
    %v9360 = vadd.f32 0.0, %v9359
    %v9361 = vpop.f32.mrb[0].mxu0
    %v9362 = vpop.f32.mrb[0].mxu0
    %9363 = vdwg.mxu0
    %9364 = vmatprep.subr.bf16.mxu0 %v9291
    %9365 = vmatpush1.bf16.msra.mxu0 %v9290
    %9366 = vmatprep.subr.bf16.mxu0 %v9295
    %9367 = vmatpush1.bf16.msra.mxu0 %v9294
    %9368 = vmatprep.subr.bf16.mxu0 %v9299
    %9369 = vmatpush1.bf16.msra.mxu0 %v9298
    %9370 = vmatprep.subr.bf16.mxu0 %v9303
    %9371 = vmatpush1.bf16.msra.mxu0 %v9302
    %9372 = vmatprep.subr.bf16.mxu0 0
    %9373 = vmatpush1.bf16.msra.mxu0 0
    %9374 = vmatprep.subr.bf16.mxu0 0
    %9375 = vmatpush1.bf16.msra.mxu0 0
    %9376 = vmatprep.subr.bf16.mxu0 0
    %9377 = vmatpush1.bf16.msra.mxu0 0
    %9378 = vmatprep.subr.bf16.mxu0 0
    %9379 = vmatpush1.bf16.msra.mxu0 0
    %9380 = vmatprep.subr.bf16.mxu0 0
    %9381 = vmatpush1.bf16.msra.mxu0 0
    %9382 = vmatprep.subr.bf16.mxu0 0
    %9383 = vmatpush1.bf16.msra.mxu0 0
    %9384 = vmatprep.subr.bf16.mxu0 0
    %9385 = vmatpush1.bf16.msra.mxu0 0
    %9386 = vmatprep.subr.bf16.mxu0 0
    %9387 = vmatpush1.bf16.msra.mxu0 0
    %9388 = vmatprep.subr.bf16.mxu0 0
    %9389 = vmatpush1.bf16.msra.mxu0 0
    %9390 = vmatprep.subr.bf16.mxu0 0
    %9391 = vmatpush1.bf16.msra.mxu0 0
    %9392 = vmatprep.subr.bf16.mxu0 0
    %9393 = vmatpush1.bf16.msra.mxu0 0
    %9394 = vmatprep.subr.bf16.mxu0 0
    %9395 = vmatpush1.bf16.msra.mxu0 0
    %9396 = vmatprep.mubr.bf16.mxu0 0
    %9397 = vmatmul.mubr.bf16.gmra.mrb[0].mxu0 %v9321
    %v9398 = vpop.f32.mrb[0].mxu0
    %v9399 = vadd.f32 0.0, %v9398
    %v9400 = vpop.f32.mrb[0].mxu0
    %v9401 = vadd.f32 0.0, %v9400
    %v9402 = vpop.f32.mrb[0].mxu0
    %v9403 = vpop.f32.mrb[0].mxu0
    %9404 = vdwg.mxu0
    %v9405 = vadd.f32 %v9167, %v9358
    %v9406 = vadd.f32 %v9169, %v9360
    %v9407 = vadd.f32 %v9208, %v9399
    %v9408 = vadd.f32 %v9210, %v9401
    %v9409 = vpack.c.bf16 %v8742, %v8742
    %v9410 = vpack.c.bf16 %v8774, %v8774
    %s9411 = scalar_lea.vmem %s7, 384
    %v9412 = vld [vmem:[%s9411] sm:$0xff]
    %v9413 = vld [vmem:[%s9411 + $0x8] sm:$0xff]
    %v9414 = vld [vmem:[%s9411 + $0x10] sm:$0xff]
    %v9415 = vld [vmem:[%s9411 + $0x18] sm:$0xff]
    %v9416 = vld [vmem:[%s9411 + $0x20] sm:$0xff]
    %v9417 = vld [vmem:[%s9411 + $0x28] sm:$0xff]
    %v9418 = vld [vmem:[%s9411 + $0x30] sm:$0xff]
    %v9419 = vld [vmem:[%s9411 + $0x38] sm:$0xff]
    %v9420 = vld [vmem:[%s9411 + $0x40] sm:$0xff]
    %v9421 = vld [vmem:[%s9411 + $0x48] sm:$0xff]
    %v9422 = vld [vmem:[%s9411 + $0x50] sm:$0xff]
    %v9423 = vld [vmem:[%s9411 + $0x58] sm:$0xff]
    %v9424 = vld [vmem:[%s9411 + $0x60] sm:$0xff]
    %v9425 = vld [vmem:[%s9411 + $0x68] sm:$0xff]
    %v9426 = vld [vmem:[%s9411 + $0x70] sm:$0xff]
    %v9427 = vld [vmem:[%s9411 + $0x78] sm:$0xff]
    %v9430 = vunpack.c.l.b16 %v9409
    %v9431 = vunpack.c.l.b16 %v9410
    %v9432 = vrot.slane %v9431, 7
    %v9433 = vsel %vm3170, %v9432, %v9430
    %v9434 = vpack.c.b16 %v9433, %v9433
    %v9451 = vunpack.c.l.b16 %v9412
    %v9452 = vunpack.c.h.b16 %v9412
    %v9453 = vunpack.c.l.b16 %v9413
    %v9454 = vunpack.c.h.b16 %v9413
    %v9455 = vunpack.c.l.b16 %v9414
    %v9456 = vunpack.c.h.b16 %v9414
    %v9457 = vunpack.c.l.b16 %v9415
    %v9458 = vunpack.c.h.b16 %v9415
    %v9459 = vunpack.c.l.b16 %v9416
    %v9460 = vunpack.c.h.b16 %v9416
    %v9461 = vunpack.c.l.b16 %v9417
    %v9462 = vunpack.c.h.b16 %v9417
    %v9463 = vunpack.c.l.b16 %v9418
    %v9464 = vunpack.c.h.b16 %v9418
    %v9465 = vunpack.c.l.b16 %v9419
    %v9466 = vunpack.c.h.b16 %v9419
    %v9467 = vunpack.c.l.b16 %v9420
    %v9468 = vunpack.c.h.b16 %v9420
    %v9469 = vunpack.c.l.b16 %v9421
    %v9470 = vunpack.c.h.b16 %v9421
    %v9471 = vunpack.c.l.b16 %v9422
    %v9472 = vunpack.c.h.b16 %v9422
    %v9473 = vunpack.c.l.b16 %v9423
    %v9474 = vunpack.c.h.b16 %v9423
    %v9475 = vunpack.c.l.b16 %v9424
    %v9476 = vunpack.c.h.b16 %v9424
    %v9477 = vunpack.c.l.b16 %v9425
    %v9478 = vunpack.c.h.b16 %v9425
    %v9479 = vunpack.c.l.b16 %v9426
    %v9480 = vunpack.c.h.b16 %v9426
    %v9481 = vunpack.c.l.b16 %v9427
    %v9482 = vunpack.c.h.b16 %v9427
    %v9483 = vpack.c.b16 %v9455, %v9451
    %v9484 = vpack.c.b16 %v9456, %v9452
    %v9485 = vpack.c.b16 %v9457, %v9453
    %v9486 = vpack.c.b16 %v9458, %v9454
    %v9487 = vpack.c.b16 %v9463, %v9459
    %v9488 = vpack.c.b16 %v9464, %v9460
    %v9489 = vpack.c.b16 %v9465, %v9461
    %v9490 = vpack.c.b16 %v9466, %v9462
    %v9491 = vpack.c.b16 %v9471, %v9467
    %v9492 = vpack.c.b16 %v9472, %v9468
    %v9493 = vpack.c.b16 %v9473, %v9469
    %v9494 = vpack.c.b16 %v9474, %v9470
    %v9495 = vpack.c.b16 %v9479, %v9475
    %v9496 = vpack.c.b16 %v9480, %v9476
    %v9497 = vpack.c.b16 %v9481, %v9477
    %v9498 = vpack.c.b16 %v9482, %v9478
    %v9516 = vsel %vm860, %v9434, 0
    %9518 = vmatprep.subr.bf16.mxu0 %v9484
    %9519 = vmatpush1.bf16.msra.mxu0 %v9483
    %9520 = vmatprep.subr.bf16.mxu0 %v9488
    %9521 = vmatpush1.bf16.msra.mxu0 %v9487
    %9522 = vmatprep.subr.bf16.mxu0 %v9492
    %9523 = vmatpush1.bf16.msra.mxu0 %v9491
    %9524 = vmatprep.subr.bf16.mxu0 %v9496
    %9525 = vmatpush1.bf16.msra.mxu0 %v9495
    %9526 = vmatprep.subr.bf16.mxu0 0
    %9527 = vmatpush1.bf16.msra.mxu0 0
    %9528 = vmatprep.subr.bf16.mxu0 0
    %9529 = vmatpush1.bf16.msra.mxu0 0
    %9530 = vmatprep.subr.bf16.mxu0 0
    %9531 = vmatpush1.bf16.msra.mxu0 0
    %9532 = vmatprep.subr.bf16.mxu0 0
    %9533 = vmatpush1.bf16.msra.mxu0 0
    %9534 = vmatprep.subr.bf16.mxu0 0
    %9535 = vmatpush1.bf16.msra.mxu0 0
    %9536 = vmatprep.subr.bf16.mxu0 0
    %9537 = vmatpush1.bf16.msra.mxu0 0
    %9538 = vmatprep.subr.bf16.mxu0 0
    %9539 = vmatpush1.bf16.msra.mxu0 0
    %9540 = vmatprep.subr.bf16.mxu0 0
    %9541 = vmatpush1.bf16.msra.mxu0 0
    %9542 = vmatprep.subr.bf16.mxu0 0
    %9543 = vmatpush1.bf16.msra.mxu0 0
    %9544 = vmatprep.subr.bf16.mxu0 0
    %9545 = vmatpush1.bf16.msra.mxu0 0
    %9546 = vmatprep.subr.bf16.mxu0 0
    %9547 = vmatpush1.bf16.msra.mxu0 0
    %9548 = vmatprep.subr.bf16.mxu0 0
    %9549 = vmatpush1.bf16.msra.mxu0 0
    %9550 = vmatprep.mubr.bf16.mxu0 0
    %9551 = vmatmul.mubr.bf16.gmra.mrb[0].mxu0 %v9516
    %v9552 = vpop.f32.mrb[0].mxu0
    %v9553 = vadd.f32 0.0, %v9552
    %v9554 = vpop.f32.mrb[0].mxu0
    %v9555 = vadd.f32 0.0, %v9554
    %v9556 = vpop.f32.mrb[0].mxu0
    %v9557 = vpop.f32.mrb[0].mxu0
    %9558 = vdwg.mxu0
    %9559 = vmatprep.subr.bf16.mxu0 %v9486
    %9560 = vmatpush1.bf16.msra.mxu0 %v9485
    %9561 = vmatprep.subr.bf16.mxu0 %v9490
    %9562 = vmatpush1.bf16.msra.mxu0 %v9489
    %9563 = vmatprep.subr.bf16.mxu0 %v9494
    %9564 = vmatpush1.bf16.msra.mxu0 %v9493
    %9565 = vmatprep.subr.bf16.mxu0 %v9498
    %9566 = vmatpush1.bf16.msra.mxu0 %v9497
    %9567 = vmatprep.subr.bf16.mxu0 0
    %9568 = vmatpush1.bf16.msra.mxu0 0
    %9569 = vmatprep.subr.bf16.mxu0 0
    %9570 = vmatpush1.bf16.msra.mxu0 0
    %9571 = vmatprep.subr.bf16.mxu0 0
    %9572 = vmatpush1.bf16.msra.mxu0 0
    %9573 = vmatprep.subr.bf16.mxu0 0
    %9574 = vmatpush1.bf16.msra.mxu0 0
    %9575 = vmatprep.subr.bf16.mxu0 0
    %9576 = vmatpush1.bf16.msra.mxu0 0
    %9577 = vmatprep.subr.bf16.mxu0 0
    %9578 = vmatpush1.bf16.msra.mxu0 0
    %9579 = vmatprep.subr.bf16.mxu0 0
    %9580 = vmatpush1.bf16.msra.mxu0 0
    %9581 = vmatprep.subr.bf16.mxu0 0
    %9582 = vmatpush1.bf16.msra.mxu0 0
    %9583 = vmatprep.subr.bf16.mxu0 0
    %9584 = vmatpush1.bf16.msra.mxu0 0
    %9585 = vmatprep.subr.bf16.mxu0 0
    %9586 = vmatpush1.bf16.msra.mxu0 0
    %9587 = vmatprep.subr.bf16.mxu0 0
    %9588 = vmatpush1.bf16.msra.mxu0 0
    %9589 = vmatprep.subr.bf16.mxu0 0
    %9590 = vmatpush1.bf16.msra.mxu0 0
    %9591 = vmatprep.mubr.bf16.mxu0 0
    %9592 = vmatmul.mubr.bf16.gmra.mrb[0].mxu0 %v9516
    %v9593 = vpop.f32.mrb[0].mxu0
    %v9594 = vadd.f32 0.0, %v9593
    %v9595 = vpop.f32.mrb[0].mxu0
    %v9596 = vadd.f32 0.0, %v9595
    %v9597 = vpop.f32.mrb[0].mxu0
    %v9598 = vpop.f32.mrb[0].mxu0
    %9599 = vdwg.mxu0
    %v9600 = vadd.f32 %v9405, %v9553
    %v9601 = vadd.f32 %v9406, %v9555
    %v9602 = vadd.f32 %v9407, %v9594
    %v9603 = vadd.f32 %v9408, %v9596
    %v9604 = vpack.c.bf16 %v8725, %v8725
    %v9605 = vpack.c.bf16 %v8788, %v8788
    %s9606 = scalar_lea.vmem %s7, 512
    %v9607 = vld [vmem:[%s9606] sm:$0xff]
    %v9608 = vld [vmem:[%s9606 + $0x8] sm:$0xff]
    %v9609 = vld [vmem:[%s9606 + $0x10] sm:$0xff]
    %v9610 = vld [vmem:[%s9606 + $0x18] sm:$0xff]
    %v9611 = vld [vmem:[%s9606 + $0x20] sm:$0xff]
    %v9612 = vld [vmem:[%s9606 + $0x28] sm:$0xff]
    %v9613 = vld [vmem:[%s9606 + $0x30] sm:$0xff]
    %v9614 = vld [vmem:[%s9606 + $0x38] sm:$0xff]
    %v9615 = vld [vmem:[%s9606 + $0x40] sm:$0xff]
    %v9616 = vld [vmem:[%s9606 + $0x48] sm:$0xff]
    %v9617 = vld [vmem:[%s9606 + $0x50] sm:$0xff]
    %v9618 = vld [vmem:[%s9606 + $0x58] sm:$0xff]
    %v9619 = vld [vmem:[%s9606 + $0x60] sm:$0xff]
    %v9620 = vld [vmem:[%s9606 + $0x68] sm:$0xff]
    %v9621 = vld [vmem:[%s9606 + $0x70] sm:$0xff]
    %v9622 = vld [vmem:[%s9606 + $0x78] sm:$0xff]
    %v9625 = vunpack.c.l.b16 %v9604
    %v9626 = vunpack.c.l.b16 %v9605
    %v9627 = vrot.slane %v9626, 7
    %v9628 = vsel %vm3170, %v9627, %v9625
    %v9629 = vpack.c.b16 %v9628, %v9628
    %v9646 = vunpack.c.l.b16 %v9607
    %v9647 = vunpack.c.h.b16 %v9607
    %v9648 = vunpack.c.l.b16 %v9608
    %v9649 = vunpack.c.h.b16 %v9608
    %v9650 = vunpack.c.l.b16 %v9609
    %v9651 = vunpack.c.h.b16 %v9609
    %v9652 = vunpack.c.l.b16 %v9610
    %v9653 = vunpack.c.h.b16 %v9610
    %v9654 = vunpack.c.l.b16 %v9611
    %v9655 = vunpack.c.h.b16 %v9611
    %v9656 = vunpack.c.l.b16 %v9612
    %v9657 = vunpack.c.h.b16 %v9612
    %v9658 = vunpack.c.l.b16 %v9613
    %v9659 = vunpack.c.h.b16 %v9613
    %v9660 = vunpack.c.l.b16 %v9614
    %v9661 = vunpack.c.h.b16 %v9614
    %v9662 = vunpack.c.l.b16 %v9615
    %v9663 = vunpack.c.h.b16 %v9615
    %v9664 = vunpack.c.l.b16 %v9616
    %v9665 = vunpack.c.h.b16 %v9616
    %v9666 = vunpack.c.l.b16 %v9617
    %v9667 = vunpack.c.h.b16 %v9617
    %v9668 = vunpack.c.l.b16 %v9618
    %v9669 = vunpack.c.h.b16 %v9618
    %v9670 = vunpack.c.l.b16 %v9619
    %v9671 = vunpack.c.h.b16 %v9619
    %v9672 = vunpack.c.l.b16 %v9620
    %v9673 = vunpack.c.h.b16 %v9620
    %v9674 = vunpack.c.l.b16 %v9621
    %v9675 = vunpack.c.h.b16 %v9621
    %v9676 = vunpack.c.l.b16 %v9622
    %v9677 = vunpack.c.h.b16 %v9622
    %v9678 = vpack.c.b16 %v9650, %v9646
    %v9679 = vpack.c.b16 %v9651, %v9647
    %v9680 = vpack.c.b16 %v9652, %v9648
    %v9681 = vpack.c.b16 %v9653, %v9649
    %v9682 = vpack.c.b16 %v9658, %v9654
    %v9683 = vpack.c.b16 %v9659, %v9655
    %v9684 = vpack.c.b16 %v9660, %v9656
    %v9685 = vpack.c.b16 %v9661, %v9657
    %v9686 = vpack.c.b16 %v9666, %v9662
    %v9687 = vpack.c.b16 %v9667, %v9663
    %v9688 = vpack.c.b16 %v9668, %v9664
    %v9689 = vpack.c.b16 %v9669, %v9665
    %v9690 = vpack.c.b16 %v9674, %v9670
    %v9691 = vpack.c.b16 %v9675, %v9671
    %v9692 = vpack.c.b16 %v9676, %v9672
    %v9693 = vpack.c.b16 %v9677, %v9673
    %v9711 = vsel %vm860, %v9629, 0
    %9713 = vmatprep.subr.bf16.mxu0 %v9679
    %9714 = vmatpush1.bf16.msra.mxu0 %v9678
    %9715 = vmatprep.subr.bf16.mxu0 %v9683
    %9716 = vmatpush1.bf16.msra.mxu0 %v9682
    %9717 = vmatprep.subr.bf16.mxu0 %v9687
    %9718 = vmatpush1.bf16.msra.mxu0 %v9686
    %9719 = vmatprep.subr.bf16.mxu0 %v9691
    %9720 = vmatpush1.bf16.msra.mxu0 %v9690
    %9721 = vmatprep.subr.bf16.mxu0 0
    %9722 = vmatpush1.bf16.msra.mxu0 0
    %9723 = vmatprep.subr.bf16.mxu0 0
    %9724 = vmatpush1.bf16.msra.mxu0 0
    %9725 = vmatprep.subr.bf16.mxu0 0
    %9726 = vmatpush1.bf16.msra.mxu0 0
    %9727 = vmatprep.subr.bf16.mxu0 0
    %9728 = vmatpush1.bf16.msra.mxu0 0
    %9729 = vmatprep.subr.bf16.mxu0 0
    %9730 = vmatpush1.bf16.msra.mxu0 0
    %9731 = vmatprep.subr.bf16.mxu0 0
    %9732 = vmatpush1.bf16.msra.mxu0 0
    %9733 = vmatprep.subr.bf16.mxu0 0
    %9734 = vmatpush1.bf16.msra.mxu0 0
    %9735 = vmatprep.subr.bf16.mxu0 0
    %9736 = vmatpush1.bf16.msra.mxu0 0
    %9737 = vmatprep.subr.bf16.mxu0 0
    %9738 = vmatpush1.bf16.msra.mxu0 0
    %9739 = vmatprep.subr.bf16.mxu0 0
    %9740 = vmatpush1.bf16.msra.mxu0 0
    %9741 = vmatprep.subr.bf16.mxu0 0
    %9742 = vmatpush1.bf16.msra.mxu0 0
    %9743 = vmatprep.subr.bf16.mxu0 0
    %9744 = vmatpush1.bf16.msra.mxu0 0
    %9745 = vmatprep.mubr.bf16.mxu0 0
    %9746 = vmatmul.mubr.bf16.gmra.mrb[0].mxu0 %v9711
    %v9747 = vpop.f32.mrb[0].mxu0
    %v9748 = vadd.f32 0.0, %v9747
    %v9749 = vpop.f32.mrb[0].mxu0
    %v9750 = vadd.f32 0.0, %v9749
    %v9751 = vpop.f32.mrb[0].mxu0
    %v9752 = vpop.f32.mrb[0].mxu0
    %9753 = vdwg.mxu0
    %9754 = vmatprep.subr.bf16.mxu0 %v9681
    %9755 = vmatpush1.bf16.msra.mxu0 %v9680
    %9756 = vmatprep.subr.bf16.mxu0 %v9685
    %9757 = vmatpush1.bf16.msra.mxu0 %v9684
    %9758 = vmatprep.subr.bf16.mxu0 %v9689
    %9759 = vmatpush1.bf16.msra.mxu0 %v9688
    %9760 = vmatprep.subr.bf16.mxu0 %v9693
    %9761 = vmatpush1.bf16.msra.mxu0 %v9692
    %9762 = vmatprep.subr.bf16.mxu0 0
    %9763 = vmatpush1.bf16.msra.mxu0 0
    %9764 = vmatprep.subr.bf16.mxu0 0
    %9765 = vmatpush1.bf16.msra.mxu0 0
    %9766 = vmatprep.subr.bf16.mxu0 0
    %9767 = vmatpush1.bf16.msra.mxu0 0
    %9768 = vmatprep.subr.bf16.mxu0 0
    %9769 = vmatpush1.bf16.msra.mxu0 0
    %9770 = vmatprep.subr.bf16.mxu0 0
    %9771 = vmatpush1.bf16.msra.mxu0 0
    %9772 = vmatprep.subr.bf16.mxu0 0
    %9773 = vmatpush1.bf16.msra.mxu0 0
    %9774 = vmatprep.subr.bf16.mxu0 0
    %9775 = vmatpush1.bf16.msra.mxu0 0
    %9776 = vmatprep.subr.bf16.mxu0 0
    %9777 = vmatpush1.bf16.msra.mxu0 0
    %9778 = vmatprep.subr.bf16.mxu0 0
    %9779 = vmatpush1.bf16.msra.mxu0 0
    %9780 = vmatprep.subr.bf16.mxu0 0
    %9781 = vmatpush1.bf16.msra.mxu0 0
    %9782 = vmatprep.subr.bf16.mxu0 0
    %9783 = vmatpush1.bf16.msra.mxu0 0
    %9784 = vmatprep.subr.bf16.mxu0 0
    %9785 = vmatpush1.bf16.msra.mxu0 0
    %9786 = vmatprep.mubr.bf16.mxu0 0
    %9787 = vmatmul.mubr.bf16.gmra.mrb[0].mxu0 %v9711
    %v9788 = vpop.f32.mrb[0].mxu0
    %v9789 = vadd.f32 0.0, %v9788
    %v9790 = vpop.f32.mrb[0].mxu0
    %v9791 = vadd.f32 0.0, %v9790
    %v9792 = vpop.f32.mrb[0].mxu0
    %v9793 = vpop.f32.mrb[0].mxu0
    %9794 = vdwg.mxu0
    %v9795 = vadd.f32 %v9600, %v9748
    %v9796 = vadd.f32 %v9601, %v9750
    %v9797 = vadd.f32 %v9602, %v9789
    %v9798 = vadd.f32 %v9603, %v9791
    %v9799 = vpack.c.bf16 %v8739, %v8739
    %v9800 = vpack.c.bf16 %v8790, %v8790
    %s9801 = scalar_lea.vmem %s7, 640
    %v9802 = vld [vmem:[%s9801] sm:$0xff]
    %v9803 = vld [vmem:[%s9801 + $0x8] sm:$0xff]
    %v9804 = vld [vmem:[%s9801 + $0x10] sm:$0xff]
    %v9805 = vld [vmem:[%s9801 + $0x18] sm:$0xff]
    %v9806 = vld [vmem:[%s9801 + $0x20] sm:$0xff]
    %v9807 = vld [vmem:[%s9801 + $0x28] sm:$0xff]
    %v9808 = vld [vmem:[%s9801 + $0x30] sm:$0xff]
    %v9809 = vld [vmem:[%s9801 + $0x38] sm:$0xff]
    %v9810 = vld [vmem:[%s9801 + $0x40] sm:$0xff]
    %v9811 = vld [vmem:[%s9801 + $0x48] sm:$0xff]
    %v9812 = vld [vmem:[%s9801 + $0x50] sm:$0xff]
    %v9813 = vld [vmem:[%s9801 + $0x58] sm:$0xff]
    %v9814 = vld [vmem:[%s9801 + $0x60] sm:$0xff]
    %v9815 = vld [vmem:[%s9801 + $0x68] sm:$0xff]
    %v9816 = vld [vmem:[%s9801 + $0x70] sm:$0xff]
    %v9817 = vld [vmem:[%s9801 + $0x78] sm:$0xff]
    %v9820 = vunpack.c.l.b16 %v9799
    %v9821 = vunpack.c.l.b16 %v9800
    %v9822 = vrot.slane %v9821, 7
    %v9823 = vsel %vm3170, %v9822, %v9820
    %v9824 = vpack.c.b16 %v9823, %v9823
    %v9841 = vunpack.c.l.b16 %v9802
    %v9842 = vunpack.c.h.b16 %v9802
    %v9843 = vunpack.c.l.b16 %v9803
    %v9844 = vunpack.c.h.b16 %v9803
    %v9845 = vunpack.c.l.b16 %v9804
    %v9846 = vunpack.c.h.b16 %v9804
    %v9847 = vunpack.c.l.b16 %v9805
    %v9848 = vunpack.c.h.b16 %v9805
    %v9849 = vunpack.c.l.b16 %v9806
    %v9850 = vunpack.c.h.b16 %v9806
    %v9851 = vunpack.c.l.b16 %v9807
    %v9852 = vunpack.c.h.b16 %v9807
    %v9853 = vunpack.c.l.b16 %v9808
    %v9854 = vunpack.c.h.b16 %v9808
    %v9855 = vunpack.c.l.b16 %v9809
    %v9856 = vunpack.c.h.b16 %v9809
    %v9857 = vunpack.c.l.b16 %v9810
    %v9858 = vunpack.c.h.b16 %v9810
    %v9859 = vunpack.c.l.b16 %v9811
    %v9860 = vunpack.c.h.b16 %v9811
    %v9861 = vunpack.c.l.b16 %v9812
    %v9862 = vunpack.c.h.b16 %v9812
    %v9863 = vunpack.c.l.b16 %v9813
    %v9864 = vunpack.c.h.b16 %v9813
    %v9865 = vunpack.c.l.b16 %v9814
    %v9866 = vunpack.c.h.b16 %v9814
    %v9867 = vunpack.c.l.b16 %v9815
    %v9868 = vunpack.c.h.b16 %v9815
    %v9869 = vunpack.c.l.b16 %v9816
    %v9870 = vunpack.c.h.b16 %v9816
    %v9871 = vunpack.c.l.b16 %v9817
    %v9872 = vunpack.c.h.b16 %v9817
    %v9873 = vpack.c.b16 %v9845, %v9841
    %v9874 = vpack.c.b16 %v9846, %v9842
    %v9875 = vpack.c.b16 %v9847, %v9843
    %v9876 = vpack.c.b16 %v9848, %v9844
    %v9877 = vpack.c.b16 %v9853, %v9849
    %v9878 = vpack.c.b16 %v9854, %v9850
    %v9879 = vpack.c.b16 %v9855, %v9851
    %v9880 = vpack.c.b16 %v9856, %v9852
    %v9881 = vpack.c.b16 %v9861, %v9857
    %v9882 = vpack.c.b16 %v9862, %v9858
    %v9883 = vpack.c.b16 %v9863, %v9859
    %v9884 = vpack.c.b16 %v9864, %v9860
    %v9885 = vpack.c.b16 %v9869, %v9865
    %v9886 = vpack.c.b16 %v9870, %v9866
    %v9887 = vpack.c.b16 %v9871, %v9867
    %v9888 = vpack.c.b16 %v9872, %v9868
    %v9906 = vsel %vm860, %v9824, 0
    %9908 = vmatprep.subr.bf16.mxu0 %v9874
    %9909 = vmatpush1.bf16.msra.mxu0 %v9873
    %9910 = vmatprep.subr.bf16.mxu0 %v9878
    %9911 = vmatpush1.bf16.msra.mxu0 %v9877
    %9912 = vmatprep.subr.bf16.mxu0 %v9882
    %9913 = vmatpush1.bf16.msra.mxu0 %v9881
    %9914 = vmatprep.subr.bf16.mxu0 %v9886
    %9915 = vmatpush1.bf16.msra.mxu0 %v9885
    %9916 = vmatprep.subr.bf16.mxu0 0
    %9917 = vmatpush1.bf16.msra.mxu0 0
    %9918 = vmatprep.subr.bf16.mxu0 0
    %9919 = vmatpush1.bf16.msra.mxu0 0
    %9920 = vmatprep.subr.bf16.mxu0 0
    %9921 = vmatpush1.bf16.msra.mxu0 0
    %9922 = vmatprep.subr.bf16.mxu0 0
    %9923 = vmatpush1.bf16.msra.mxu0 0
    %9924 = vmatprep.subr.bf16.mxu0 0
    %9925 = vmatpush1.bf16.msra.mxu0 0
    %9926 = vmatprep.subr.bf16.mxu0 0
    %9927 = vmatpush1.bf16.msra.mxu0 0
    %9928 = vmatprep.subr.bf16.mxu0 0
    %9929 = vmatpush1.bf16.msra.mxu0 0
    %9930 = vmatprep.subr.bf16.mxu0 0
    %9931 = vmatpush1.bf16.msra.mxu0 0
    %9932 = vmatprep.subr.bf16.mxu0 0
    %9933 = vmatpush1.bf16.msra.mxu0 0
    %9934 = vmatprep.subr.bf16.mxu0 0
    %9935 = vmatpush1.bf16.msra.mxu0 0
    %9936 = vmatprep.subr.bf16.mxu0 0
    %9937 = vmatpush1.bf16.msra.mxu0 0
    %9938 = vmatprep.subr.bf16.mxu0 0
    %9939 = vmatpush1.bf16.msra.mxu0 0
    %9940 = vmatprep.mubr.bf16.mxu0 0
    %9941 = vmatmul.mubr.bf16.gmra.mrb[0].mxu0 %v9906
    %v9942 = vpop.f32.mrb[0].mxu0
    %v9943 = vadd.f32 0.0, %v9942
    %v9944 = vpop.f32.mrb[0].mxu0
    %v9945 = vadd.f32 0.0, %v9944
    %v9946 = vpop.f32.mrb[0].mxu0
    %v9947 = vpop.f32.mrb[0].mxu0
    %9948 = vdwg.mxu0
    %9949 = vmatprep.subr.bf16.mxu0 %v9876
    %9950 = vmatpush1.bf16.msra.mxu0 %v9875
    %9951 = vmatprep.subr.bf16.mxu0 %v9880
    %9952 = vmatpush1.bf16.msra.mxu0 %v9879
    %9953 = vmatprep.subr.bf16.mxu0 %v9884
    %9954 = vmatpush1.bf16.msra.mxu0 %v9883
    %9955 = vmatprep.subr.bf16.mxu0 %v9888
    %9956 = vmatpush1.bf16.msra.mxu0 %v9887
    %9957 = vmatprep.subr.bf16.mxu0 0
    %9958 = vmatpush1.bf16.msra.mxu0 0
    %9959 = vmatprep.subr.bf16.mxu0 0
    %9960 = vmatpush1.bf16.msra.mxu0 0
    %9961 = vmatprep.subr.bf16.mxu0 0
    %9962 = vmatpush1.bf16.msra.mxu0 0
    %9963 = vmatprep.subr.bf16.mxu0 0
    %9964 = vmatpush1.bf16.msra.mxu0 0
    %9965 = vmatprep.subr.bf16.mxu0 0
    %9966 = vmatpush1.bf16.msra.mxu0 0
    %9967 = vmatprep.subr.bf16.mxu0 0
    %9968 = vmatpush1.bf16.msra.mxu0 0
    %9969 = vmatprep.subr.bf16.mxu0 0
    %9970 = vmatpush1.bf16.msra.mxu0 0
    %9971 = vmatprep.subr.bf16.mxu0 0
    %9972 = vmatpush1.bf16.msra.mxu0 0
    %9973 = vmatprep.subr.bf16.mxu0 0
    %9974 = vmatpush1.bf16.msra.mxu0 0
    %9975 = vmatprep.subr.bf16.mxu0 0
    %9976 = vmatpush1.bf16.msra.mxu0 0
    %9977 = vmatprep.subr.bf16.mxu0 0
    %9978 = vmatpush1.bf16.msra.mxu0 0
    %9979 = vmatprep.subr.bf16.mxu0 0
    %9980 = vmatpush1.bf16.msra.mxu0 0
    %9981 = vmatprep.mubr.bf16.mxu0 0
    %9982 = vmatmul.mubr.bf16.gmra.mrb[0].mxu0 %v9906
    %v9983 = vpop.f32.mrb[0].mxu0
    %v9984 = vadd.f32 0.0, %v9983
    %v9985 = vpop.f32.mrb[0].mxu0
    %v9986 = vadd.f32 0.0, %v9985
    %v9987 = vpop.f32.mrb[0].mxu0
    %v9988 = vpop.f32.mrb[0].mxu0
    %9989 = vdwg.mxu0
    %v9990 = vadd.f32 %v9795, %v9943
    %v9991 = vadd.f32 %v9796, %v9945
    %v9992 = vadd.f32 %v9797, %v9984
    %v9993 = vadd.f32 %v9798, %v9986
    %v9994 = vpack.c.bf16 %v8741, %v8741
    %v9995 = vpack.c.bf16 %v8792, %v8792
    %s9996 = scalar_lea.vmem %s7, 768
    %v9997 = vld [vmem:[%s9996] sm:$0xff]
    %v9998 = vld [vmem:[%s9996 + $0x8] sm:$0xff]
    %v9999 = vld [vmem:[%s9996 + $0x10] sm:$0xff]
    %v10000 = vld [vmem:[%s9996 + $0x18] sm:$0xff]
    %v10001 = vld [vmem:[%s9996 + $0x20] sm:$0xff]
    %v10002 = vld [vmem:[%s9996 + $0x28] sm:$0xff]
    %v10003 = vld [vmem:[%s9996 + $0x30] sm:$0xff]
    %v10004 = vld [vmem:[%s9996 + $0x38] sm:$0xff]
    %v10005 = vld [vmem:[%s9996 + $0x40] sm:$0xff]
    %v10006 = vld [vmem:[%s9996 + $0x48] sm:$0xff]
    %v10007 = vld [vmem:[%s9996 + $0x50] sm:$0xff]
    %v10008 = vld [vmem:[%s9996 + $0x58] sm:$0xff]
    %v10009 = vld [vmem:[%s9996 + $0x60] sm:$0xff]
    %v10010 = vld [vmem:[%s9996 + $0x68] sm:$0xff]
    %v10011 = vld [vmem:[%s9996 + $0x70] sm:$0xff]
    %v10012 = vld [vmem:[%s9996 + $0x78] sm:$0xff]
    %v10015 = vunpack.c.l.b16 %v9994
    %v10016 = vunpack.c.l.b16 %v9995
    %v10017 = vrot.slane %v10016, 7
    %v10018 = vsel %vm3170, %v10017, %v10015
    %v10019 = vpack.c.b16 %v10018, %v10018
    %v10036 = vunpack.c.l.b16 %v9997
    %v10037 = vunpack.c.h.b16 %v9997
    %v10038 = vunpack.c.l.b16 %v9998
    %v10039 = vunpack.c.h.b16 %v9998
    %v10040 = vunpack.c.l.b16 %v9999
    %v10041 = vunpack.c.h.b16 %v9999
    %v10042 = vunpack.c.l.b16 %v10000
    %v10043 = vunpack.c.h.b16 %v10000
    %v10044 = vunpack.c.l.b16 %v10001
    %v10045 = vunpack.c.h.b16 %v10001
    %v10046 = vunpack.c.l.b16 %v10002
    %v10047 = vunpack.c.h.b16 %v10002
    %v10048 = vunpack.c.l.b16 %v10003
    %v10049 = vunpack.c.h.b16 %v10003
    %v10050 = vunpack.c.l.b16 %v10004
    %v10051 = vunpack.c.h.b16 %v10004
    %v10052 = vunpack.c.l.b16 %v10005
    %v10053 = vunpack.c.h.b16 %v10005
    %v10054 = vunpack.c.l.b16 %v10006
    %v10055 = vunpack.c.h.b16 %v10006
    %v10056 = vunpack.c.l.b16 %v10007
    %v10057 = vunpack.c.h.b16 %v10007
    %v10058 = vunpack.c.l.b16 %v10008
    %v10059 = vunpack.c.h.b16 %v10008
    %v10060 = vunpack.c.l.b16 %v10009
    %v10061 = vunpack.c.h.b16 %v10009
    %v10062 = vunpack.c.l.b16 %v10010
    %v10063 = vunpack.c.h.b16 %v10010
    %v10064 = vunpack.c.l.b16 %v10011
    %v10065 = vunpack.c.h.b16 %v10011
    %v10066 = vunpack.c.l.b16 %v10012
    %v10067 = vunpack.c.h.b16 %v10012
    %v10068 = vpack.c.b16 %v10040, %v10036
    %v10069 = vpack.c.b16 %v10041, %v10037
    %v10070 = vpack.c.b16 %v10042, %v10038
    %v10071 = vpack.c.b16 %v10043, %v10039
    %v10072 = vpack.c.b16 %v10048, %v10044
    %v10073 = vpack.c.b16 %v10049, %v10045
    %v10074 = vpack.c.b16 %v10050, %v10046
    %v10075 = vpack.c.b16 %v10051, %v10047
    %v10076 = vpack.c.b16 %v10056, %v10052
    %v10077 = vpack.c.b16 %v10057, %v10053
    %v10078 = vpack.c.b16 %v10058, %v10054
    %v10079 = vpack.c.b16 %v10059, %v10055
    %v10080 = vpack.c.b16 %v10064, %v10060
    %v10081 = vpack.c.b16 %v10065, %v10061
    %v10082 = vpack.c.b16 %v10066, %v10062
    %v10083 = vpack.c.b16 %v10067, %v10063
    %v10101 = vsel %vm860, %v10019, 0
    %10103 = vmatprep.subr.bf16.mxu0 %v10069
    %10104 = vmatpush1.bf16.msra.mxu0 %v10068
    %10105 = vmatprep.subr.bf16.mxu0 %v10073
    %10106 = vmatpush1.bf16.msra.mxu0 %v10072
    %10107 = vmatprep.subr.bf16.mxu0 %v10077
    %10108 = vmatpush1.bf16.msra.mxu0 %v10076
    %10109 = vmatprep.subr.bf16.mxu0 %v10081
    %10110 = vmatpush1.bf16.msra.mxu0 %v10080
    %10111 = vmatprep.subr.bf16.mxu0 0
    %10112 = vmatpush1.bf16.msra.mxu0 0
    %10113 = vmatprep.subr.bf16.mxu0 0
    %10114 = vmatpush1.bf16.msra.mxu0 0
    %10115 = vmatprep.subr.bf16.mxu0 0
    %10116 = vmatpush1.bf16.msra.mxu0 0
    %10117 = vmatprep.subr.bf16.mxu0 0
    %10118 = vmatpush1.bf16.msra.mxu0 0
    %10119 = vmatprep.subr.bf16.mxu0 0
    %10120 = vmatpush1.bf16.msra.mxu0 0
    %10121 = vmatprep.subr.bf16.mxu0 0
    %10122 = vmatpush1.bf16.msra.mxu0 0
    %10123 = vmatprep.subr.bf16.mxu0 0
    %10124 = vmatpush1.bf16.msra.mxu0 0
    %10125 = vmatprep.subr.bf16.mxu0 0
    %10126 = vmatpush1.bf16.msra.mxu0 0
    %10127 = vmatprep.subr.bf16.mxu0 0
    %10128 = vmatpush1.bf16.msra.mxu0 0
    %10129 = vmatprep.subr.bf16.mxu0 0
    %10130 = vmatpush1.bf16.msra.mxu0 0
    %10131 = vmatprep.subr.bf16.mxu0 0
    %10132 = vmatpush1.bf16.msra.mxu0 0
    %10133 = vmatprep.subr.bf16.mxu0 0
    %10134 = vmatpush1.bf16.msra.mxu0 0
    %10135 = vmatprep.mubr.bf16.mxu0 0
    %10136 = vmatmul.mubr.bf16.gmra.mrb[0].mxu0 %v10101
    %v10137 = vpop.f32.mrb[0].mxu0
    %v10138 = vadd.f32 0.0, %v10137
    %v10139 = vpop.f32.mrb[0].mxu0
    %v10140 = vadd.f32 0.0, %v10139
    %v10141 = vpop.f32.mrb[0].mxu0
    %v10142 = vpop.f32.mrb[0].mxu0
    %10143 = vdwg.mxu0
    %10144 = vmatprep.subr.bf16.mxu0 %v10071
    %10145 = vmatpush1.bf16.msra.mxu0 %v10070
    %10146 = vmatprep.subr.bf16.mxu0 %v10075
    %10147 = vmatpush1.bf16.msra.mxu0 %v10074
    %10148 = vmatprep.subr.bf16.mxu0 %v10079
    %10149 = vmatpush1.bf16.msra.mxu0 %v10078
    %10150 = vmatprep.subr.bf16.mxu0 %v10083
    %10151 = vmatpush1.bf16.msra.mxu0 %v10082
    %10152 = vmatprep.subr.bf16.mxu0 0
    %10153 = vmatpush1.bf16.msra.mxu0 0
    %10154 = vmatprep.subr.bf16.mxu0 0
    %10155 = vmatpush1.bf16.msra.mxu0 0
    %10156 = vmatprep.subr.bf16.mxu0 0
    %10157 = vmatpush1.bf16.msra.mxu0 0
    %10158 = vmatprep.subr.bf16.mxu0 0
    %10159 = vmatpush1.bf16.msra.mxu0 0
    %10160 = vmatprep.subr.bf16.mxu0 0
    %10161 = vmatpush1.bf16.msra.mxu0 0
    %10162 = vmatprep.subr.bf16.mxu0 0
    %10163 = vmatpush1.bf16.msra.mxu0 0
    %10164 = vmatprep.subr.bf16.mxu0 0
    %10165 = vmatpush1.bf16.msra.mxu0 0
    %10166 = vmatprep.subr.bf16.mxu0 0
    %10167 = vmatpush1.bf16.msra.mxu0 0
    %10168 = vmatprep.subr.bf16.mxu0 0
    %10169 = vmatpush1.bf16.msra.mxu0 0
    %10170 = vmatprep.subr.bf16.mxu0 0
    %10171 = vmatpush1.bf16.msra.mxu0 0
    %10172 = vmatprep.subr.bf16.mxu0 0
    %10173 = vmatpush1.bf16.msra.mxu0 0
    %10174 = vmatprep.subr.bf16.mxu0 0
    %10175 = vmatpush1.bf16.msra.mxu0 0
    %10176 = vmatprep.mubr.bf16.mxu0 0
    %10177 = vmatmul.mubr.bf16.gmra.mrb[0].mxu0 %v10101
    %v10178 = vpop.f32.mrb[0].mxu0
    %v10179 = vadd.f32 0.0, %v10178
    %v10180 = vpop.f32.mrb[0].mxu0
    %v10181 = vadd.f32 0.0, %v10180
    %v10182 = vpop.f32.mrb[0].mxu0
    %v10183 = vpop.f32.mrb[0].mxu0
    %10184 = vdwg.mxu0
    %v10185 = vadd.f32 %v9990, %v10138
    %v10186 = vadd.f32 %v9991, %v10140
    %v10187 = vadd.f32 %v9992, %v10179
    %v10188 = vadd.f32 %v9993, %v10181
    %v10189 = vpack.c.bf16 %v8743, %v8743
    %v10190 = vpack.c.bf16 %v8807, %v8807
    %s10191 = scalar_lea.vmem %s7, 896
    %v10192 = vld [vmem:[%s10191] sm:$0xff]
    %v10193 = vld [vmem:[%s10191 + $0x8] sm:$0xff]
    %v10194 = vld [vmem:[%s10191 + $0x10] sm:$0xff]
    %v10195 = vld [vmem:[%s10191 + $0x18] sm:$0xff]
    %v10196 = vld [vmem:[%s10191 + $0x20] sm:$0xff]
    %v10197 = vld [vmem:[%s10191 + $0x28] sm:$0xff]
    %v10198 = vld [vmem:[%s10191 + $0x30] sm:$0xff]
    %v10199 = vld [vmem:[%s10191 + $0x38] sm:$0xff]
    %v10200 = vld [vmem:[%s10191 + $0x40] sm:$0xff]
    %v10201 = vld [vmem:[%s10191 + $0x48] sm:$0xff]
    %v10202 = vld [vmem:[%s10191 + $0x50] sm:$0xff]
    %v10203 = vld [vmem:[%s10191 + $0x58] sm:$0xff]
    %v10204 = vld [vmem:[%s10191 + $0x60] sm:$0xff]
    %v10205 = vld [vmem:[%s10191 + $0x68] sm:$0xff]
    %v10206 = vld [vmem:[%s10191 + $0x70] sm:$0xff]
    %v10207 = vld [vmem:[%s10191 + $0x78] sm:$0xff]
    %v10210 = vunpack.c.l.b16 %v10189
    %v10211 = vunpack.c.l.b16 %v10190
    %v10212 = vrot.slane %v10211, 7
    %v10213 = vsel %vm3170, %v10212, %v10210
    %v10214 = vpack.c.b16 %v10213, %v10213
    %v10231 = vunpack.c.l.b16 %v10192
    %v10232 = vunpack.c.h.b16 %v10192
    %v10233 = vunpack.c.l.b16 %v10193
    %v10234 = vunpack.c.h.b16 %v10193
    %v10235 = vunpack.c.l.b16 %v10194
    %v10236 = vunpack.c.h.b16 %v10194
    %v10237 = vunpack.c.l.b16 %v10195
    %v10238 = vunpack.c.h.b16 %v10195
    %v10239 = vunpack.c.l.b16 %v10196
    %v10240 = vunpack.c.h.b16 %v10196
    %v10241 = vunpack.c.l.b16 %v10197
    %v10242 = vunpack.c.h.b16 %v10197
    %v10243 = vunpack.c.l.b16 %v10198
    %v10244 = vunpack.c.h.b16 %v10198
    %v10245 = vunpack.c.l.b16 %v10199
    %v10246 = vunpack.c.h.b16 %v10199
    %v10247 = vunpack.c.l.b16 %v10200
    %v10248 = vunpack.c.h.b16 %v10200
    %v10249 = vunpack.c.l.b16 %v10201
    %v10250 = vunpack.c.h.b16 %v10201
    %v10251 = vunpack.c.l.b16 %v10202
    %v10252 = vunpack.c.h.b16 %v10202
    %v10253 = vunpack.c.l.b16 %v10203
    %v10254 = vunpack.c.h.b16 %v10203
    %v10255 = vunpack.c.l.b16 %v10204
    %v10256 = vunpack.c.h.b16 %v10204
    %v10257 = vunpack.c.l.b16 %v10205
    %v10258 = vunpack.c.h.b16 %v10205
    %v10259 = vunpack.c.l.b16 %v10206
    %v10260 = vunpack.c.h.b16 %v10206
    %v10261 = vunpack.c.l.b16 %v10207
    %v10262 = vunpack.c.h.b16 %v10207
    %v10263 = vpack.c.b16 %v10235, %v10231
    %v10264 = vpack.c.b16 %v10236, %v10232
    %v10265 = vpack.c.b16 %v10237, %v10233
    %v10266 = vpack.c.b16 %v10238, %v10234
    %v10267 = vpack.c.b16 %v10243, %v10239
    %v10268 = vpack.c.b16 %v10244, %v10240
    %v10269 = vpack.c.b16 %v10245, %v10241
    %v10270 = vpack.c.b16 %v10246, %v10242
    %v10271 = vpack.c.b16 %v10251, %v10247
    %v10272 = vpack.c.b16 %v10252, %v10248
    %v10273 = vpack.c.b16 %v10253, %v10249
    %v10274 = vpack.c.b16 %v10254, %v10250
    %v10275 = vpack.c.b16 %v10259, %v10255
    %v10276 = vpack.c.b16 %v10260, %v10256
    %v10277 = vpack.c.b16 %v10261, %v10257
    %v10278 = vpack.c.b16 %v10262, %v10258
    %v10296 = vsel %vm860, %v10214, 0
    %10298 = vmatprep.subr.bf16.mxu0 %v10264
    %10299 = vmatpush1.bf16.msra.mxu0 %v10263
    %10300 = vmatprep.subr.bf16.mxu0 %v10268
    %10301 = vmatpush1.bf16.msra.mxu0 %v10267
    %10302 = vmatprep.subr.bf16.mxu0 %v10272
    %10303 = vmatpush1.bf16.msra.mxu0 %v10271
    %10304 = vmatprep.subr.bf16.mxu0 %v10276
    %10305 = vmatpush1.bf16.msra.mxu0 %v10275
    %10306 = vmatprep.subr.bf16.mxu0 0
    %10307 = vmatpush1.bf16.msra.mxu0 0
    %10308 = vmatprep.subr.bf16.mxu0 0
    %10309 = vmatpush1.bf16.msra.mxu0 0
    %10310 = vmatprep.subr.bf16.mxu0 0
    %10311 = vmatpush1.bf16.msra.mxu0 0
    %10312 = vmatprep.subr.bf16.mxu0 0
    %10313 = vmatpush1.bf16.msra.mxu0 0
    %10314 = vmatprep.subr.bf16.mxu0 0
    %10315 = vmatpush1.bf16.msra.mxu0 0
    %10316 = vmatprep.subr.bf16.mxu0 0
    %10317 = vmatpush1.bf16.msra.mxu0 0
    %10318 = vmatprep.subr.bf16.mxu0 0
    %10319 = vmatpush1.bf16.msra.mxu0 0
    %10320 = vmatprep.subr.bf16.mxu0 0
    %10321 = vmatpush1.bf16.msra.mxu0 0
    %10322 = vmatprep.subr.bf16.mxu0 0
    %10323 = vmatpush1.bf16.msra.mxu0 0
    %10324 = vmatprep.subr.bf16.mxu0 0
    %10325 = vmatpush1.bf16.msra.mxu0 0
    %10326 = vmatprep.subr.bf16.mxu0 0
    %10327 = vmatpush1.bf16.msra.mxu0 0
    %10328 = vmatprep.subr.bf16.mxu0 0
    %10329 = vmatpush1.bf16.msra.mxu0 0
    %10330 = vmatprep.mubr.bf16.mxu0 0
    %10331 = vmatmul.mubr.bf16.gmra.mrb[0].mxu0 %v10296
    %v10332 = vpop.f32.mrb[0].mxu0
    %v10333 = vadd.f32 0.0, %v10332
    %v10334 = vpop.f32.mrb[0].mxu0
    %v10335 = vadd.f32 0.0, %v10334
    %v10336 = vpop.f32.mrb[0].mxu0
    %v10337 = vpop.f32.mrb[0].mxu0
    %10338 = vdwg.mxu0
    %10339 = vmatprep.subr.bf16.mxu0 %v10266
    %10340 = vmatpush1.bf16.msra.mxu0 %v10265
    %10341 = vmatprep.subr.bf16.mxu0 %v10270
    %10342 = vmatpush1.bf16.msra.mxu0 %v10269
    %10343 = vmatprep.subr.bf16.mxu0 %v10274
    %10344 = vmatpush1.bf16.msra.mxu0 %v10273
    %10345 = vmatprep.subr.bf16.mxu0 %v10278
    %10346 = vmatpush1.bf16.msra.mxu0 %v10277
    %10347 = vmatprep.subr.bf16.mxu0 0
    %10348 = vmatpush1.bf16.msra.mxu0 0
    %10349 = vmatprep.subr.bf16.mxu0 0
    %10350 = vmatpush1.bf16.msra.mxu0 0
    %10351 = vmatprep.subr.bf16.mxu0 0
    %10352 = vmatpush1.bf16.msra.mxu0 0
    %10353 = vmatprep.subr.bf16.mxu0 0
    %10354 = vmatpush1.bf16.msra.mxu0 0
    %10355 = vmatprep.subr.bf16.mxu0 0
    %10356 = vmatpush1.bf16.msra.mxu0 0
    %10357 = vmatprep.subr.bf16.mxu0 0
    %10358 = vmatpush1.bf16.msra.mxu0 0
    %10359 = vmatprep.subr.bf16.mxu0 0
    %10360 = vmatpush1.bf16.msra.mxu0 0
    %10361 = vmatprep.subr.bf16.mxu0 0
    %10362 = vmatpush1.bf16.msra.mxu0 0
    %10363 = vmatprep.subr.bf16.mxu0 0
    %10364 = vmatpush1.bf16.msra.mxu0 0
    %10365 = vmatprep.subr.bf16.mxu0 0
    %10366 = vmatpush1.bf16.msra.mxu0 0
    %10367 = vmatprep.subr.bf16.mxu0 0
    %10368 = vmatpush1.bf16.msra.mxu0 0
    %10369 = vmatprep.subr.bf16.mxu0 0
    %10370 = vmatpush1.bf16.msra.mxu0 0
    %10371 = vmatprep.mubr.bf16.mxu0 0
    %10372 = vmatmul.mubr.bf16.gmra.mrb[0].mxu0 %v10296
    %v10373 = vpop.f32.mrb[0].mxu0
    %v10374 = vadd.f32 0.0, %v10373
    %v10375 = vpop.f32.mrb[0].mxu0
    %v10376 = vadd.f32 0.0, %v10375
    %v10377 = vpop.f32.mrb[0].mxu0
    %v10378 = vpop.f32.mrb[0].mxu0
    %10379 = vdwg.mxu0
    %v10380 = vadd.f32 %v10185, %v10333
    %v10381 = vadd.f32 %v10186, %v10335
    %v10382 = vadd.f32 %v10187, %v10374
    %v10383 = vadd.f32 %v10188, %v10376
    %v10384 = vpack.c.bf16 %v8767, %v8767
    %v10385 = vpack.c.bf16 %v8814, %v8814
    %s10386 = scalar_lea.vmem %s7, 1024
    %v10387 = vld [vmem:[%s10386] sm:$0xff]
    %v10388 = vld [vmem:[%s10386 + $0x8] sm:$0xff]
    %v10389 = vld [vmem:[%s10386 + $0x10] sm:$0xff]
    %v10390 = vld [vmem:[%s10386 + $0x18] sm:$0xff]
    %v10391 = vld [vmem:[%s10386 + $0x20] sm:$0xff]
    %v10392 = vld [vmem:[%s10386 + $0x28] sm:$0xff]
    %v10393 = vld [vmem:[%s10386 + $0x30] sm:$0xff]
    %v10394 = vld [vmem:[%s10386 + $0x38] sm:$0xff]
    %v10395 = vld [vmem:[%s10386 + $0x40] sm:$0xff]
    %v10396 = vld [vmem:[%s10386 + $0x48] sm:$0xff]
    %v10397 = vld [vmem:[%s10386 + $0x50] sm:$0xff]
    %v10398 = vld [vmem:[%s10386 + $0x58] sm:$0xff]
    %v10399 = vld [vmem:[%s10386 + $0x60] sm:$0xff]
    %v10400 = vld [vmem:[%s10386 + $0x68] sm:$0xff]
    %v10401 = vld [vmem:[%s10386 + $0x70] sm:$0xff]
    %v10402 = vld [vmem:[%s10386 + $0x78] sm:$0xff]
    %v10405 = vunpack.c.l.b16 %v10384
    %v10406 = vunpack.c.l.b16 %v10385
    %v10407 = vrot.slane %v10406, 7
    %v10408 = vsel %vm3170, %v10407, %v10405
    %v10409 = vpack.c.b16 %v10408, %v10408
    %v10426 = vunpack.c.l.b16 %v10387
    %v10427 = vunpack.c.h.b16 %v10387
    %v10428 = vunpack.c.l.b16 %v10388
    %v10429 = vunpack.c.h.b16 %v10388
    %v10430 = vunpack.c.l.b16 %v10389
    %v10431 = vunpack.c.h.b16 %v10389
    %v10432 = vunpack.c.l.b16 %v10390
    %v10433 = vunpack.c.h.b16 %v10390
    %v10434 = vunpack.c.l.b16 %v10391
    %v10435 = vunpack.c.h.b16 %v10391
    %v10436 = vunpack.c.l.b16 %v10392
    %v10437 = vunpack.c.h.b16 %v10392
    %v10438 = vunpack.c.l.b16 %v10393
    %v10439 = vunpack.c.h.b16 %v10393
    %v10440 = vunpack.c.l.b16 %v10394
    %v10441 = vunpack.c.h.b16 %v10394
    %v10442 = vunpack.c.l.b16 %v10395
    %v10443 = vunpack.c.h.b16 %v10395
    %v10444 = vunpack.c.l.b16 %v10396
    %v10445 = vunpack.c.h.b16 %v10396
    %v10446 = vunpack.c.l.b16 %v10397
    %v10447 = vunpack.c.h.b16 %v10397
    %v10448 = vunpack.c.l.b16 %v10398
    %v10449 = vunpack.c.h.b16 %v10398
    %v10450 = vunpack.c.l.b16 %v10399
    %v10451 = vunpack.c.h.b16 %v10399
    %v10452 = vunpack.c.l.b16 %v10400
    %v10453 = vunpack.c.h.b16 %v10400
    %v10454 = vunpack.c.l.b16 %v10401
    %v10455 = vunpack.c.h.b16 %v10401
    %v10456 = vunpack.c.l.b16 %v10402
    %v10457 = vunpack.c.h.b16 %v10402
    %v10458 = vpack.c.b16 %v10430, %v10426
    %v10459 = vpack.c.b16 %v10431, %v10427
    %v10460 = vpack.c.b16 %v10432, %v10428
    %v10461 = vpack.c.b16 %v10433, %v10429
    %v10462 = vpack.c.b16 %v10438, %v10434
    %v10463 = vpack.c.b16 %v10439, %v10435
    %v10464 = vpack.c.b16 %v10440, %v10436
    %v10465 = vpack.c.b16 %v10441, %v10437
    %v10466 = vpack.c.b16 %v10446, %v10442
    %v10467 = vpack.c.b16 %v10447, %v10443
    %v10468 = vpack.c.b16 %v10448, %v10444
    %v10469 = vpack.c.b16 %v10449, %v10445
    %v10470 = vpack.c.b16 %v10454, %v10450
    %v10471 = vpack.c.b16 %v10455, %v10451
    %v10472 = vpack.c.b16 %v10456, %v10452
    %v10473 = vpack.c.b16 %v10457, %v10453
    %v10491 = vsel %vm860, %v10409, 0
    %10493 = vmatprep.subr.bf16.mxu0 %v10459
    %10494 = vmatpush1.bf16.msra.mxu0 %v10458
    %10495 = vmatprep.subr.bf16.mxu0 %v10463
    %10496 = vmatpush1.bf16.msra.mxu0 %v10462
    %10497 = vmatprep.subr.bf16.mxu0 %v10467
    %10498 = vmatpush1.bf16.msra.mxu0 %v10466
    %10499 = vmatprep.subr.bf16.mxu0 %v10471
    %10500 = vmatpush1.bf16.msra.mxu0 %v10470
    %10501 = vmatprep.subr.bf16.mxu0 0
    %10502 = vmatpush1.bf16.msra.mxu0 0
    %10503 = vmatprep.subr.bf16.mxu0 0
    %10504 = vmatpush1.bf16.msra.mxu0 0
    %10505 = vmatprep.subr.bf16.mxu0 0
    %10506 = vmatpush1.bf16.msra.mxu0 0
    %10507 = vmatprep.subr.bf16.mxu0 0
    %10508 = vmatpush1.bf16.msra.mxu0 0
    %10509 = vmatprep.subr.bf16.mxu0 0
    %10510 = vmatpush1.bf16.msra.mxu0 0
    %10511 = vmatprep.subr.bf16.mxu0 0
    %10512 = vmatpush1.bf16.msra.mxu0 0
    %10513 = vmatprep.subr.bf16.mxu0 0
    %10514 = vmatpush1.bf16.msra.mxu0 0
    %10515 = vmatprep.subr.bf16.mxu0 0
    %10516 = vmatpush1.bf16.msra.mxu0 0
    %10517 = vmatprep.subr.bf16.mxu0 0
    %10518 = vmatpush1.bf16.msra.mxu0 0
    %10519 = vmatprep.subr.bf16.mxu0 0
    %10520 = vmatpush1.bf16.msra.mxu0 0
    %10521 = vmatprep.subr.bf16.mxu0 0
    %10522 = vmatpush1.bf16.msra.mxu0 0
    %10523 = vmatprep.subr.bf16.mxu0 0
    %10524 = vmatpush1.bf16.msra.mxu0 0
    %10525 = vmatprep.mubr.bf16.mxu0 0
    %10526 = vmatmul.mubr.bf16.gmra.mrb[0].mxu0 %v10491
    %v10527 = vpop.f32.mrb[0].mxu0
    %v10528 = vadd.f32 0.0, %v10527
    %v10529 = vpop.f32.mrb[0].mxu0
    %v10530 = vadd.f32 0.0, %v10529
    %v10531 = vpop.f32.mrb[0].mxu0
    %v10532 = vpop.f32.mrb[0].mxu0
    %10533 = vdwg.mxu0
    %10534 = vmatprep.subr.bf16.mxu0 %v10461
    %10535 = vmatpush1.bf16.msra.mxu0 %v10460
    %10536 = vmatprep.subr.bf16.mxu0 %v10465
    %10537 = vmatpush1.bf16.msra.mxu0 %v10464
    %10538 = vmatprep.subr.bf16.mxu0 %v10469
    %10539 = vmatpush1.bf16.msra.mxu0 %v10468
    %10540 = vmatprep.subr.bf16.mxu0 %v10473
    %10541 = vmatpush1.bf16.msra.mxu0 %v10472
    %10542 = vmatprep.subr.bf16.mxu0 0
    %10543 = vmatpush1.bf16.msra.mxu0 0
    %10544 = vmatprep.subr.bf16.mxu0 0
    %10545 = vmatpush1.bf16.msra.mxu0 0
    %10546 = vmatprep.subr.bf16.mxu0 0
    %10547 = vmatpush1.bf16.msra.mxu0 0
    %10548 = vmatprep.subr.bf16.mxu0 0
    %10549 = vmatpush1.bf16.msra.mxu0 0
    %10550 = vmatprep.subr.bf16.mxu0 0
    %10551 = vmatpush1.bf16.msra.mxu0 0
    %10552 = vmatprep.subr.bf16.mxu0 0
    %10553 = vmatpush1.bf16.msra.mxu0 0
    %10554 = vmatprep.subr.bf16.mxu0 0
    %10555 = vmatpush1.bf16.msra.mxu0 0
    %10556 = vmatprep.subr.bf16.mxu0 0
    %10557 = vmatpush1.bf16.msra.mxu0 0
    %10558 = vmatprep.subr.bf16.mxu0 0
    %10559 = vmatpush1.bf16.msra.mxu0 0
    %10560 = vmatprep.subr.bf16.mxu0 0
    %10561 = vmatpush1.bf16.msra.mxu0 0
    %10562 = vmatprep.subr.bf16.mxu0 0
    %10563 = vmatpush1.bf16.msra.mxu0 0
    %10564 = vmatprep.subr.bf16.mxu0 0
    %10565 = vmatpush1.bf16.msra.mxu0 0
    %10566 = vmatprep.mubr.bf16.mxu0 0
    %10567 = vmatmul.mubr.bf16.gmra.mrb[0].mxu0 %v10491
    %v10568 = vpop.f32.mrb[0].mxu0
    %v10569 = vadd.f32 0.0, %v10568
    %v10570 = vpop.f32.mrb[0].mxu0
    %v10571 = vadd.f32 0.0, %v10570
    %v10572 = vpop.f32.mrb[0].mxu0
    %v10573 = vpop.f32.mrb[0].mxu0
    %10574 = vdwg.mxu0
    %v10575 = vadd.f32 %v10380, %v10528
    %v10576 = vadd.f32 %v10381, %v10530
    %v10577 = vadd.f32 %v10382, %v10569
    %v10578 = vadd.f32 %v10383, %v10571
    %v10579 = vld [vmem:[%s8] sm:$0xf]
    %v10581 = vlaneseq
    %v10582 = vshrl.u32 %v10581, 7
    %v10583 = vsub.s32 0, %v10582
    %v10584 = vrot.slane %v10579, %v10583
    %v10585 = vlaneseq
    %v10586 = vshrl.u32 %v10585, 7
    %v10587 = vsub.s32 1, %v10586
    %v10588 = vrot.slane %v10579, %v10587
    %v10589 = vlaneseq
    %v10590 = vshrl.u32 %v10589, 7
    %v10591 = vsub.s32 2, %v10590
    %v10592 = vrot.slane %v10579, %v10591
    %v10593 = vlaneseq
    %v10594 = vshrl.u32 %v10593, 7
    %v10595 = vsub.s32 3, %v10594
    %v10596 = vrot.slane %v10579, %v10595
    %v10601 = vadd.f32 %v10575, %v10584
    %v10602 = vadd.f32 %v10576, %v10588
    %v10603 = vadd.f32 %v10577, %v10592
    %v10604 = vadd.f32 %v10578, %v10596
    %v10605 = vmax.f32 %v10601, 0.0
    %v10606 = vmax.f32 %v10602, 0.0
    %v10607 = vmax.f32 %v10603, 0.0
    %v10608 = vmax.f32 %v10604, 0.0
    %v10609 = vpack.c.bf16 %v10605, %v10605
    %v10610 = vpack.c.bf16 %v10606, %v10606
    %v10611 = vpack.c.bf16 %v10607, %v10607
    %v10612 = vpack.c.bf16 %v10608, %v10608
    %v10613 = vld [vmem:[%s9] sm:$0xf]
    %v10614 = vld [vmem:[%s9 + $0x4] sm:$0xf]
    %v10615 = vld [vmem:[%s9 + $0x8] sm:$0xf]
    %v10616 = vld [vmem:[%s9 + $0xc] sm:$0xf]
    %v10617 = vld [vmem:[%s9 + $0x10] sm:$0xf]
    %v10618 = vld [vmem:[%s9 + $0x14] sm:$0xf]
    %v10619 = vld [vmem:[%s9 + $0x18] sm:$0xf]
    %v10620 = vld [vmem:[%s9 + $0x1c] sm:$0xf]
    %v10621 = vld [vmem:[%s9 + $0x20] sm:$0xf]
    %v10622 = vld [vmem:[%s9 + $0x24] sm:$0xf]
    %v10623 = vld [vmem:[%s9 + $0x28] sm:$0xf]
    %v10624 = vld [vmem:[%s9 + $0x2c] sm:$0xf]
    %v10625 = vld [vmem:[%s9 + $0x30] sm:$0xf]
    %v10626 = vld [vmem:[%s9 + $0x34] sm:$0xf]
    %v10627 = vld [vmem:[%s9 + $0x38] sm:$0xf]
    %v10628 = vld [vmem:[%s9 + $0x3c] sm:$0xf]
    %v10629 = vld [vmem:[%s9 + $0x40] sm:$0xf]
    %v10630 = vld [vmem:[%s9 + $0x44] sm:$0xf]
    %v10631 = vld [vmem:[%s9 + $0x48] sm:$0xf]
    %v10632 = vld [vmem:[%s9 + $0x4c] sm:$0xf]
    %v10633 = vld [vmem:[%s9 + $0x50] sm:$0xf]
    %v10634 = vld [vmem:[%s9 + $0x54] sm:$0xf]
    %v10635 = vld [vmem:[%s9 + $0x58] sm:$0xf]
    %v10636 = vld [vmem:[%s9 + $0x5c] sm:$0xf]
    %v10637 = vld [vmem:[%s9 + $0x60] sm:$0xf]
    %v10638 = vld [vmem:[%s9 + $0x64] sm:$0xf]
    %v10639 = vld [vmem:[%s9 + $0x68] sm:$0xf]
    %v10640 = vld [vmem:[%s9 + $0x6c] sm:$0xf]
    %v10641 = vld [vmem:[%s9 + $0x70] sm:$0xf]
    %v10642 = vld [vmem:[%s9 + $0x74] sm:$0xf]
    %v10643 = vld [vmem:[%s9 + $0x78] sm:$0xf]
    %v10644 = vld [vmem:[%s9 + $0x7c] sm:$0xf]
    %v10645 = vld [vmem:[%s9 + $0x80] sm:$0xf]
    %v10646 = vld [vmem:[%s9 + $0x84] sm:$0xf]
    %v10647 = vld [vmem:[%s9 + $0x88] sm:$0xf]
    %v10648 = vld [vmem:[%s9 + $0x8c] sm:$0xf]
    %v10649 = vld [vmem:[%s9 + $0x90] sm:$0xf]
    %v10650 = vld [vmem:[%s9 + $0x94] sm:$0xf]
    %v10651 = vld [vmem:[%s9 + $0x98] sm:$0xf]
    %v10652 = vld [vmem:[%s9 + $0x9c] sm:$0xf]
    %v10653 = vld [vmem:[%s9 + $0xa0] sm:$0xf]
    %v10654 = vld [vmem:[%s9 + $0xa4] sm:$0xf]
    %v10655 = vld [vmem:[%s9 + $0xa8] sm:$0xf]
    %v10656 = vld [vmem:[%s9 + $0xac] sm:$0xf]
    %v10657 = vld [vmem:[%s9 + $0xb0] sm:$0xf]
    %v10658 = vld [vmem:[%s9 + $0xb4] sm:$0xf]
    %v10659 = vld [vmem:[%s9 + $0xb8] sm:$0xf]
    %v10660 = vld [vmem:[%s9 + $0xbc] sm:$0xf]
    %v10661 = vld [vmem:[%s9 + $0xc0] sm:$0xf]
    %v10662 = vld [vmem:[%s9 + $0xc4] sm:$0xf]
    %v10663 = vld [vmem:[%s9 + $0xc8] sm:$0xf]
    %v10664 = vld [vmem:[%s9 + $0xcc] sm:$0xf]
    %v10665 = vld [vmem:[%s9 + $0xd0] sm:$0xf]
    %v10666 = vld [vmem:[%s9 + $0xd4] sm:$0xf]
    %v10667 = vld [vmem:[%s9 + $0xd8] sm:$0xf]
    %v10668 = vld [vmem:[%s9 + $0xdc] sm:$0xf]
    %v10669 = vld [vmem:[%s9 + $0xe0] sm:$0xf]
    %v10670 = vld [vmem:[%s9 + $0xe4] sm:$0xf]
    %v10671 = vld [vmem:[%s9 + $0xe8] sm:$0xf]
    %v10672 = vld [vmem:[%s9 + $0xec] sm:$0xf]
    %v10673 = vld [vmem:[%s9 + $0xf0] sm:$0xf]
    %v10674 = vld [vmem:[%s9 + $0xf4] sm:$0xf]
    %v10675 = vld [vmem:[%s9 + $0xf8] sm:$0xf]
    %v10676 = vld [vmem:[%s9 + $0xfc] sm:$0xf]
    %v10677 = vld [vmem:[%s10] sm:$0x1]
    %v10679 = vlaneseq
    %v10680 = vshrl.u32 %v10679, 7
    %v10681 = vsub.s32 0, %v10680
    %v10682 = vrot.slane %v10677, %v10681
    %v10748 = vunpack.c.l.b16 %v10613
    %v10749 = vunpack.c.l.b16 %v10614
    %v10750 = vunpack.c.l.b16 %v10615
    %v10751 = vunpack.c.l.b16 %v10616
    %v10752 = vunpack.c.l.b16 %v10617
    %v10753 = vunpack.c.l.b16 %v10618
    %v10754 = vunpack.c.l.b16 %v10619
    %v10755 = vunpack.c.l.b16 %v10620
    %v10756 = vunpack.c.l.b16 %v10621
    %v10757 = vunpack.c.l.b16 %v10622
    %v10758 = vunpack.c.l.b16 %v10623
    %v10759 = vunpack.c.l.b16 %v10624
    %v10760 = vunpack.c.l.b16 %v10625
    %v10761 = vunpack.c.l.b16 %v10626
    %v10762 = vunpack.c.l.b16 %v10627
    %v10763 = vunpack.c.l.b16 %v10628
    %v10764 = vunpack.c.l.b16 %v10629
    %v10765 = vunpack.c.l.b16 %v10630
    %v10766 = vunpack.c.l.b16 %v10631
    %v10767 = vunpack.c.l.b16 %v10632
    %v10768 = vunpack.c.l.b16 %v10633
    %v10769 = vunpack.c.l.b16 %v10634
    %v10770 = vunpack.c.l.b16 %v10635
    %v10771 = vunpack.c.l.b16 %v10636
    %v10772 = vunpack.c.l.b16 %v10637
    %v10773 = vunpack.c.l.b16 %v10638
    %v10774 = vunpack.c.l.b16 %v10639
    %v10775 = vunpack.c.l.b16 %v10640
    %v10776 = vunpack.c.l.b16 %v10641
    %v10777 = vunpack.c.l.b16 %v10642
    %v10778 = vunpack.c.l.b16 %v10643
    %v10779 = vunpack.c.l.b16 %v10644
    %v10780 = vunpack.c.l.b16 %v10645
    %v10781 = vunpack.c.l.b16 %v10646
    %v10782 = vunpack.c.l.b16 %v10647
    %v10783 = vunpack.c.l.b16 %v10648
    %v10784 = vunpack.c.l.b16 %v10649
    %v10785 = vunpack.c.l.b16 %v10650
    %v10786 = vunpack.c.l.b16 %v10651
    %v10787 = vunpack.c.l.b16 %v10652
    %v10788 = vunpack.c.l.b16 %v10653
    %v10789 = vunpack.c.l.b16 %v10654
    %v10790 = vunpack.c.l.b16 %v10655
    %v10791 = vunpack.c.l.b16 %v10656
    %v10792 = vunpack.c.l.b16 %v10657
    %v10793 = vunpack.c.l.b16 %v10658
    %v10794 = vunpack.c.l.b16 %v10659
    %v10795 = vunpack.c.l.b16 %v10660
    %v10796 = vunpack.c.l.b16 %v10661
    %v10797 = vunpack.c.l.b16 %v10662
    %v10798 = vunpack.c.l.b16 %v10663
    %v10799 = vunpack.c.l.b16 %v10664
    %v10800 = vunpack.c.l.b16 %v10665
    %v10801 = vunpack.c.l.b16 %v10666
    %v10802 = vunpack.c.l.b16 %v10667
    %v10803 = vunpack.c.l.b16 %v10668
    %v10804 = vunpack.c.l.b16 %v10669
    %v10805 = vunpack.c.l.b16 %v10670
    %v10806 = vunpack.c.l.b16 %v10671
    %v10807 = vunpack.c.l.b16 %v10672
    %v10808 = vunpack.c.l.b16 %v10673
    %v10809 = vunpack.c.l.b16 %v10674
    %v10810 = vunpack.c.l.b16 %v10675
    %v10811 = vunpack.c.l.b16 %v10676
    %v10812 = vpack.c.b16 %v10749, %v10748
    %v10813 = vpack.c.b16 %v10751, %v10750
    %v10814 = vpack.c.b16 %v10753, %v10752
    %v10815 = vpack.c.b16 %v10755, %v10754
    %v10816 = vpack.c.b16 %v10757, %v10756
    %v10817 = vpack.c.b16 %v10759, %v10758
    %v10818 = vpack.c.b16 %v10761, %v10760
    %v10819 = vpack.c.b16 %v10763, %v10762
    %v10820 = vpack.c.b16 %v10765, %v10764
    %v10821 = vpack.c.b16 %v10767, %v10766
    %v10822 = vpack.c.b16 %v10769, %v10768
    %v10823 = vpack.c.b16 %v10771, %v10770
    %v10824 = vpack.c.b16 %v10773, %v10772
    %v10825 = vpack.c.b16 %v10775, %v10774
    %v10826 = vpack.c.b16 %v10777, %v10776
    %v10827 = vpack.c.b16 %v10779, %v10778
    %v10828 = vpack.c.b16 %v10781, %v10780
    %v10829 = vpack.c.b16 %v10783, %v10782
    %v10830 = vpack.c.b16 %v10785, %v10784
    %v10831 = vpack.c.b16 %v10787, %v10786
    %v10832 = vpack.c.b16 %v10789, %v10788
    %v10833 = vpack.c.b16 %v10791, %v10790
    %v10834 = vpack.c.b16 %v10793, %v10792
    %v10835 = vpack.c.b16 %v10795, %v10794
    %v10836 = vpack.c.b16 %v10797, %v10796
    %v10837 = vpack.c.b16 %v10799, %v10798
    %v10838 = vpack.c.b16 %v10801, %v10800
    %v10839 = vpack.c.b16 %v10803, %v10802
    %v10840 = vpack.c.b16 %v10805, %v10804
    %v10841 = vpack.c.b16 %v10807, %v10806
    %v10842 = vpack.c.b16 %v10809, %v10808
    %v10843 = vpack.c.b16 %v10811, %v10810
    %10876 = vmatprep.subr.bf16.mxu0 0
    %10877 = vmatpush1.bf16.msra.mxu0 %v10812
    %10878 = vmatprep.subr.bf16.mxu0 0
    %10879 = vmatpush1.bf16.msra.mxu0 %v10813
    %10880 = vmatprep.subr.bf16.mxu0 0
    %10881 = vmatpush1.bf16.msra.mxu0 %v10814
    %10882 = vmatprep.subr.bf16.mxu0 0
    %10883 = vmatpush1.bf16.msra.mxu0 %v10815
    %10884 = vmatprep.subr.bf16.mxu0 0
    %10885 = vmatpush1.bf16.msra.mxu0 %v10816
    %10886 = vmatprep.subr.bf16.mxu0 0
    %10887 = vmatpush1.bf16.msra.mxu0 %v10817
    %10888 = vmatprep.subr.bf16.mxu0 0
    %10889 = vmatpush1.bf16.msra.mxu0 %v10818
    %10890 = vmatprep.subr.bf16.mxu0 0
    %10891 = vmatpush1.bf16.msra.mxu0 %v10819
    %10892 = vmatprep.subr.bf16.mxu0 0
    %10893 = vmatpush1.bf16.msra.mxu0 %v10820
    %10894 = vmatprep.subr.bf16.mxu0 0
    %10895 = vmatpush1.bf16.msra.mxu0 %v10821
    %10896 = vmatprep.subr.bf16.mxu0 0
    %10897 = vmatpush1.bf16.msra.mxu0 %v10822
    %10898 = vmatprep.subr.bf16.mxu0 0
    %10899 = vmatpush1.bf16.msra.mxu0 %v10823
    %10900 = vmatprep.subr.bf16.mxu0 0
    %10901 = vmatpush1.bf16.msra.mxu0 %v10824
    %10902 = vmatprep.subr.bf16.mxu0 0
    %10903 = vmatpush1.bf16.msra.mxu0 %v10825
    %10904 = vmatprep.subr.bf16.mxu0 0
    %10905 = vmatpush1.bf16.msra.mxu0 %v10826
    %10906 = vmatprep.subr.bf16.mxu0 0
    %10907 = vmatpush1.bf16.msra.mxu0 %v10827
    %10908 = vmatprep.mubr.bf16.mxu0 %v10610
    %10909 = vmatmul.mubr.bf16.gmra.mrb[0].mxu0 %v10609
    %v10910 = vpop.f32.mrb[0].mxu0
    %v10911 = vadd.f32 %v10682, %v10910
    %v10912 = vpop.f32.mrb[0].mxu0
    %v10913 = vpop.f32.mrb[0].mxu0
    %v10914 = vpop.f32.mrb[0].mxu0
    %10915 = vdwg.mxu0
    %10916 = vmatprep.subr.bf16.mxu0 0
    %10917 = vmatpush1.bf16.msra.mxu0 %v10828
    %10918 = vmatprep.subr.bf16.mxu0 0
    %10919 = vmatpush1.bf16.msra.mxu0 %v10829
    %10920 = vmatprep.subr.bf16.mxu0 0
    %10921 = vmatpush1.bf16.msra.mxu0 %v10830
    %10922 = vmatprep.subr.bf16.mxu0 0
    %10923 = vmatpush1.bf16.msra.mxu0 %v10831
    %10924 = vmatprep.subr.bf16.mxu0 0
    %10925 = vmatpush1.bf16.msra.mxu0 %v10832
    %10926 = vmatprep.subr.bf16.mxu0 0
    %10927 = vmatpush1.bf16.msra.mxu0 %v10833
    %10928 = vmatprep.subr.bf16.mxu0 0
    %10929 = vmatpush1.bf16.msra.mxu0 %v10834
    %10930 = vmatprep.subr.bf16.mxu0 0
    %10931 = vmatpush1.bf16.msra.mxu0 %v10835
    %10932 = vmatprep.subr.bf16.mxu0 0
    %10933 = vmatpush1.bf16.msra.mxu0 %v10836
    %10934 = vmatprep.subr.bf16.mxu0 0
    %10935 = vmatpush1.bf16.msra.mxu0 %v10837
    %10936 = vmatprep.subr.bf16.mxu0 0
    %10937 = vmatpush1.bf16.msra.mxu0 %v10838
    %10938 = vmatprep.subr.bf16.mxu0 0
    %10939 = vmatpush1.bf16.msra.mxu0 %v10839
    %10940 = vmatprep.subr.bf16.mxu0 0
    %10941 = vmatpush1.bf16.msra.mxu0 %v10840
    %10942 = vmatprep.subr.bf16.mxu0 0
    %10943 = vmatpush1.bf16.msra.mxu0 %v10841
    %10944 = vmatprep.subr.bf16.mxu0 0
    %10945 = vmatpush1.bf16.msra.mxu0 %v10842
    %10946 = vmatprep.subr.bf16.mxu0 0
    %10947 = vmatpush1.bf16.msra.mxu0 %v10843
    %10948 = vmatprep.mubr.bf16.mxu0 %v10612
    %10949 = vmatmul.mubr.bf16.gmra.mrb[0].mxu0 %v10611
    %v10950 = vpop.f32.mrb[0].mxu0
    %v10951 = vadd.f32 %v10911, %v10950
    %v10952 = vpop.f32.mrb[0].mxu0
    %v10953 = vpop.f32.mrb[0].mxu0
    %v10954 = vpop.f32.mrb[0].mxu0
    %10955 = vdwg.mxu0
    %10957 = vset.pattern.permute.xlu0 0
    %10958 = vperm.xlu0 %10957, %v10951
    %v10959 = vpop.permute.xlu0 %10958
    %v10961 = vadd.f32 %v10959, %v10951
    %10962 = vrot.lane.b32.xlu0 %v10951, 127
    %v10963 = vpop.permute.xlu0 %10962
    %vm10965 = vcmask 41984
    %v10966 = vsel %vm10965, %v10963, 0.0
    %10967 = vadd.xlane.f32.xlu0 %v10966
    %v10968 = vpop.xlane.xlu0 %10967
    %v10969 = vrcp.pop 6.0
    %v10970 = vmul.f32 %v10968, %v10969
    %v10971 = vsub.f32 %v10961, %v10970
    %10973 = vrot.lane.b32.xlu0 %v10971, 127
    %v10974 = vpop.permute.xlu0 %10973
    %10976 = vst.msk [vmem:[#allocation2] sm:$0x3] %vm10965, %v10974
    // Predicated region
    $region46: #{dueling_dqn_forward.1} parent=1 // pred_check
      _
    $region47: #{dueling_dqn_forward.1} parent=1 // pred_check_branch
      %10978 = sbr.rel (0) target = $region49
    $region48: #{dueling_dqn_forward.1} parent=1 // pred_region
      %s10980 = ssub.s32 32, 32
      %10981 = vsyncadd [#allocation3], %s10980
      %s10983 = sshll.u32 [#allocation2], 4
      %s10984 = int_to_ptr.vmem [resolvable:$true] %s10983
      %10986 = dma.vmem_to_hbm [thread:$0]  %s10984, 32, %s11, [#allocation3]
    $region49: #{dueling_dqn_forward.1} parent=1 // pred_fallthru
      _
    // Predicated region
    $region50: #{dueling_dqn_forward.1} parent=1 // pred_check
      _
    $region51: #{dueling_dqn_forward.1} parent=1 // pred_check_branch
      %10988 = sbr.rel (0) target = $region53
    $region52: #{dueling_dqn_forward.1} parent=1 // pred_region
      %10989 = dma.done [#allocation3], 32
    $region53: #{dueling_dqn_forward.1} parent=1 // pred_fallthru
      _
    %10990 = vsyncpa [#allocation3], 1

</llo_original>
